<compile_context>
chip_gen: v5e
topology: v5e:2x2
jax: 0.10.0
libtpu: 0.0.40
codegen_flags: <defaults>
</compile_context>

<pallas_src>
import functools
import math

import jax
import jax.numpy as jnp
from jax.experimental import pallas as pl
from jax.experimental.pallas import tpu as pltpu

K = 7                 # conv kernel size
PAD = K // 2          # spatial padding (3, 3)
CIN_P = 8             # channel dim padded to 8 (sublane friendly)
N_LAYERS = 5


def fused_cnn_kernel(x_ref, w_ref, b_ref, a_ref, m_ref, o_ref,
                     buf_a, buf_b, slab, *, wp, k, n_layers, head):
    """All 5 Conv2d(7x7,pad=3)+PReLU layers, fused, VMEM-resident.

    x_ref : (8, xlen)        bf16  head-aligned, padded, channel-padded, flat input plane
    w_ref : (5, 8, K*K*8)    bf16  lane-dense weights (tap-major, channel-minor)
    b_ref : (5, 8, 1)        f32   biases (channel-padded)
    a_ref : (5,)             f32   PReLU alphas (SMEM)
    m_ref : (1, H*Wp)        f32   column-validity mask (1.0 where col < W)
    o_ref : (1, H*Wp)        f32   final output canvas (channel 0; only cols < W valid)
    buf_a, buf_b : (8, xlen) bf16  VMEM ping-pong padded activation planes
    slab  : (K*K*8, H*Wp)    bf16  VMEM im2col slab
    """
    canvas = o_ref.shape[1]
    base = head + (k // 2) * wp + (k // 2)   # 128-aligned interior start of a plane

    # Zero the ping-pong planes once: the padding ring stays zero for every layer.
    buf_a[...] = jnp.zeros_like(buf_a)
    buf_b[...] = jnp.zeros_like(buf_b)

    mask = m_ref[...]                        # (1, canvas) f32
    bufs = [buf_a, buf_b]
    src = x_ref
    n_taps = k * k

    for layer in range(n_layers):
        # One strip load per ky; the 7 kx shifts are lane-slices of the loaded strip.
        strips = [src[:, head + ky * wp: head + ky * wp + canvas + k - 1]
                  for ky in range(k)]

        # Build the im2col slab: two taps (16 sublanes) per store -> aligned bf16 stores.
        for p in range(n_taps // 2):
            t0, t1 = 2 * p, 2 * p + 1
            ky0, kx0 = divmod(t0, k)
            ky1, kx1 = divmod(t1, k)
            pair = jnp.concatenate(
                [strips[ky0][:, kx0:kx0 + canvas],
                 strips[ky1][:, kx1:kx1 + canvas]], axis=0)      # (16, canvas) bf16
            slab[t0 * 8:(t1 + 1) * 8, :] = pair
        t_last = n_taps - 1                                      # odd tap count (49)
        ky_l, kx_l = divmod(t_last, k)
        slab[t_last * 8:(t_last + 1) * 8, :] = strips[ky_l][:, kx_l:kx_l + canvas]

        # One deep contraction (depth K*K*8 = 392) on the MXU, bf16 in / f32 acc.
        acc = jnp.dot(w_ref[layer], slab[...],
                      preferred_element_type=jnp.float32)        # (8, canvas) f32
        acc = acc + b_ref[layer]                                 # (8,1) broadcast
        alpha = a_ref[layer]                                     # SMEM scalar
        act = jnp.where(acc >= 0.0, acc, alpha * acc)            # PReLU (f32)

        if layer == n_layers - 1:
            o_ref[...] = act[0:1, :]                             # channel 0 only
        else:
            dst = bufs[layer % 2]
            # Masked interior write (lane-aligned): garbage columns land on the zero pad.
            dst[:, base:base + canvas] = (act * mask).astype(dst.dtype)
            src = dst


def cnn_forward(x, params):
    """x: (H, W) float32 -> (H, W) float32   (matches CNN.forward semantics)."""
    H, W = x.shape
    Hp = H + 2 * PAD
    # Widen the padded row stride so the canvas (H*Wp) is a multiple of 128 lanes.
    step = 128 // math.gcd(H, 128)
    Wp = -(-(W + 2 * PAD) // step) * step
    canvas = H * Wp
    base = PAD * Wp + PAD
    head = (-base) % 128                       # align interior writes to lane boundaries
    xlen = head + Hp * Wp + (K - 1)
    kk8 = K * K * CIN_P

    # ---- wrapper glue (constant-folded under jit) ----------------------------------
    xp = jnp.pad(x.astype(jnp.float32), ((PAD, PAD), (PAD, Wp - W - PAD)))   # (Hp, Wp)
    x_flat = (jnp.zeros((CIN_P, xlen), jnp.bfloat16)
              .at[0, head:head + Hp * Wp].set(xp.reshape(-1).astype(jnp.bfloat16)))

    w_list, b_list, a_list = [], [], []
    for (w, b, a) in params:
        cout, cin = w.shape[0], w.shape[1]
        wpad = jnp.zeros((CIN_P, CIN_P, K, K), jnp.float32).at[:cout, :cin].set(w)
        # lane-dense: [co, (ky*K + kx)*8 + ci] = W[co, ci, ky, kx]
        w2d = jnp.transpose(wpad, (0, 2, 3, 1)).reshape(CIN_P, kk8)
        w_list.append(w2d)
        b_list.append(jnp.zeros((CIN_P,), jnp.float32).at[:cout].set(b))
        a_list.append(jnp.asarray(a, jnp.float32))

    w_all = jnp.stack(w_list).astype(jnp.bfloat16)               # (5, 8, 392) bf16
    b_all = jnp.stack(b_list).reshape(N_LAYERS, CIN_P, 1)        # (5, 8, 1)  f32
    a_all = jnp.stack(a_list)                                    # (5,)       f32

    cols = jnp.arange(canvas, dtype=jnp.int32) % Wp
    mask = (cols < W).astype(jnp.float32).reshape(1, canvas)     # (1, canvas)

    # Explicit VMEM budget: slab + 2 planes + double-buffered input + weights/mask/out.
    need = (kk8 * canvas * 2 + 4 * CIN_P * xlen * 2
            + 2 * N_LAYERS * CIN_P * kk8 * 2 + 8 * canvas * 4 + (2 << 20))
    vmem_limit = int(min(64 << 20, max(2 * need, 8 << 20)))

    kernel = functools.partial(fused_cnn_kernel, wp=Wp, k=K,
                               n_layers=N_LAYERS, head=head)
    out_canvas = pl.pallas_call(
        kernel,
        out_shape=jax.ShapeDtypeStruct((1, canvas), jnp.float32),
        grid=(1,),
        in_specs=[
            pl.BlockSpec((CIN_P, xlen), lambda i: (0, 0)),
            pl.BlockSpec((N_LAYERS, CIN_P, kk8), lambda i: (0, 0, 0)),
            pl.BlockSpec((N_LAYERS, CIN_P, 1), lambda i: (0, 0, 0)),
            pl.BlockSpec(memory_space=pltpu.SMEM),               # alphas -> scalar path
            pl.BlockSpec((1, canvas), lambda i: (0, 0)),
        ],
        out_specs=pl.BlockSpec((1, canvas), lambda i: (0, 0)),
        scratch_shapes=[
            pltpu.VMEM((CIN_P, xlen), jnp.bfloat16),             # ping plane
            pltpu.VMEM((CIN_P, xlen), jnp.bfloat16),             # pong plane
            pltpu.VMEM((kk8, canvas), jnp.bfloat16),             # im2col slab
        ],
        compiler_params=pltpu.CompilerParams(
            dimension_semantics=("arbitrary",),
            vmem_limit_bytes=vmem_limit),
    )(x_flat, w_all, b_all, a_all, mask)

    # Single slice at the very end: drop the widened padding columns.
    return out_canvas.reshape(H, Wp)[:, :W]


def init_params(key):
    """Deterministic synthetic init mimicking nn.Conv2d / nn.PReLU() defaults."""
    chans = [(1, 8), (8, 8), (8, 8), (8, 8), (8, 1)]
    params = []
    for i, (cin, cout) in enumerate(chans):
        kw, kb = jax.random.split(jax.random.fold_in(key, i))
        bound = 1.0 / float((cin * K * K) ** 0.5)
        w = jax.random.uniform(kw, (cout, cin, K, K), jnp.float32, -bound, bound)
        b = jax.random.uniform(kb, (cout,), jnp.float32, -bound, bound)
        a = jnp.float32(0.25)                                    # nn.PReLU() default
        params.append((w, b, a))
    return params


def cnn_reference(x, params):
    """Pure-JAX (XLA) reference of the PyTorch module, f32 end to end."""
    h = x[None, None].astype(jnp.float32)
    for (w, b, a) in params:
        h = jax.lax.conv_general_dilated(
            h, w, (1, 1), [(PAD, PAD), (PAD, PAD)],
            dimension_numbers=("NCHW", "OIHW", "NCHW"))
        h = h + b[None, :, None, None]
        h = jnp.where(h >= 0, h, a * h)
    return jnp.squeeze(h)


if __name__ == "__main__":
    key = jax.random.PRNGKey(0)
    params = init_params(key)
    x = jax.random.normal(jax.random.fold_in(key, 100), (16, 16), jnp.float32)

    out = jax.jit(lambda xx: cnn_forward(xx, params))(x)
    out = jax.block_until_ready(out)
    assert out.shape == (16, 16) and out.dtype == jnp.float32

    # bf16 MXU inputs / bf16 inter-layer activations with f32 accumulation:
    # each activation is rounded to bf16 exactly once per layer (same as before).
    ref = jax.block_until_ready(cnn_reference(x, params))
    max_err = float(jnp.max(jnp.abs(out - ref)))
    assert max_err < 5e-2, f"max abs err too large: {max_err}"

    print("KERNEL_OK")
</pallas_src>

<mosaic_0001>
module attributes {stable_mosaic.version = 11 : i64} {
  func.func @fused_cnn_kernel(%arg0: i32, %arg1: memref<8x587xbf16, #tpu.memory_space<vmem>>, %arg2: memref<5x8x392xbf16, #tpu.memory_space<vmem>>, %arg3: memref<5x8x1xf32, #tpu.memory_space<vmem>>, %arg4: memref<5xf32, #tpu.memory_space<smem>>, %arg5: memref<1x384xf32, #tpu.memory_space<vmem>>, %arg6: memref<1x384xf32, #tpu.memory_space<vmem>>, %arg7: memref<8x587xbf16, #tpu.memory_space<vmem>>, %arg8: memref<8x587xbf16, #tpu.memory_space<vmem>>, %arg9: memref<392x384xbf16, #tpu.memory_space<vmem>>) attributes {dimension_semantics = [#tpu.dimension_semantics<arbitrary>], iteration_bounds = array<i64: 1>, scalar_prefetch = 0 : i64, scratch_operands = 3 : i64, tpu.core_type = #tpu.core_type<tc>, window_params = [{pipeline_mode = #tpu.pipeline_mode<synchronous>, transform_indices = @transform_0, window_bounds = array<i64: 8, 587>}, {pipeline_mode = #tpu.pipeline_mode<synchronous>, transform_indices = @transform_1, window_bounds = array<i64: 5, 8, 392>}, {pipeline_mode = #tpu.pipeline_mode<synchronous>, transform_indices = @transform_2, window_bounds = array<i64: 5, 8, 1>}, {transform_indices = @transform_3, window_bounds = array<i64: 5>}, {pipeline_mode = #tpu.pipeline_mode<synchronous>, transform_indices = @transform_4, window_bounds = array<i64: 1, 384>}, {pipeline_mode = #tpu.pipeline_mode<synchronous>, transform_indices = @transform_5, window_bounds = array<i64: 1, 384>}]} {
    %cst = arith.constant 0.000000e+00 : bf16
    %0 = vector.broadcast %cst : bf16 to vector<8x587xbf16>
    %c0 = arith.constant 0 : index
    %c0_0 = arith.constant 0 : index
    %1 = vector.load %arg7[%c0, %c0_0] : memref<8x587xbf16, #tpu.memory_space<vmem>>, vector<8x587xbf16>
    tpu.vector_store %arg7[%c0, %c0_0], %0 {strides = array<i32>} : memref<8x587xbf16, #tpu.memory_space<vmem>>, vector<8x587xbf16>,
    %cst_1 = arith.constant 0.000000e+00 : bf16
    %2 = vector.broadcast %cst_1 : bf16 to vector<8x587xbf16>
    %c0_2 = arith.constant 0 : index
    %c0_3 = arith.constant 0 : index
    %3 = vector.load %arg8[%c0_2, %c0_3] : memref<8x587xbf16, #tpu.memory_space<vmem>>, vector<8x587xbf16>
    tpu.vector_store %arg8[%c0_2, %c0_3], %2 {strides = array<i32>} : memref<8x587xbf16, #tpu.memory_space<vmem>>, vector<8x587xbf16>,
    %c0_4 = arith.constant 0 : index
    %c0_5 = arith.constant 0 : index
    %4 = vector.load %arg5[%c0_4, %c0_5] : memref<1x384xf32, #tpu.memory_space<vmem>>, vector<1x384xf32>
    %c0_6 = arith.constant 0 : index
    %c53 = arith.constant 53 : index
    %5 = vector.load %arg1[%c0_6, %c53] : memref<8x587xbf16, #tpu.memory_space<vmem>>, vector<8x390xbf16>
    %c0_7 = arith.constant 0 : index
    %c77 = arith.constant 77 : index
    %6 = vector.load %arg1[%c0_7, %c77] : memref<8x587xbf16, #tpu.memory_space<vmem>>, vector<8x390xbf16>
    %c0_8 = arith.constant 0 : index
    %c101 = arith.constant 101 : index
    %7 = vector.load %arg1[%c0_8, %c101] : memref<8x587xbf16, #tpu.memory_space<vmem>>, vector<8x390xbf16>
    %c0_9 = arith.constant 0 : index
    %c125 = arith.constant 125 : index
    %8 = vector.load %arg1[%c0_9, %c125] : memref<8x587xbf16, #tpu.memory_space<vmem>>, vector<8x390xbf16>
    %c0_10 = arith.constant 0 : index
    %c149 = arith.constant 149 : index
    %9 = vector.load %arg1[%c0_10, %c149] : memref<8x587xbf16, #tpu.memory_space<vmem>>, vector<8x390xbf16>
    %c0_11 = arith.constant 0 : index
    %c173 = arith.constant 173 : index
    %10 = vector.load %arg1[%c0_11, %c173] : memref<8x587xbf16, #tpu.memory_space<vmem>>, vector<8x390xbf16>
    %c0_12 = arith.constant 0 : index
    %c197 = arith.constant 197 : index
    %11 = vector.load %arg1[%c0_12, %c197] : memref<8x587xbf16, #tpu.memory_space<vmem>>, vector<8x390xbf16>
    %12 = vector.extract_strided_slice %5 {offsets = [0, 0], sizes = [8, 384], strides = [1, 1]} : vector<8x390xbf16> to vector<8x384xbf16>
    %13 = vector.extract_strided_slice %5 {offsets = [0, 1], sizes = [8, 384], strides = [1, 1]} : vector<8x390xbf16> to vector<8x384xbf16>
    %14 = tpu.concatenate %12, %13 in 0 : vector<8x384xbf16>, vector<8x384xbf16> -> vector<16x384xbf16>
    %c0_13 = arith.constant 0 : index
    %c0_14 = arith.constant 0 : index
    %15 = vector.load %arg9[%c0_13, %c0_14] : memref<392x384xbf16, #tpu.memory_space<vmem>>, vector<16x384xbf16>
    tpu.vector_store %arg9[%c0_13, %c0_14], %14 {strides = array<i32>} : memref<392x384xbf16, #tpu.memory_space<vmem>>, vector<16x384xbf16>,
    %16 = vector.extract_strided_slice %5 {offsets = [0, 2], sizes = [8, 384], strides = [1, 1]} : vector<8x390xbf16> to vector<8x384xbf16>
    %17 = vector.extract_strided_slice %5 {offsets = [0, 3], sizes = [8, 384], strides = [1, 1]} : vector<8x390xbf16> to vector<8x384xbf16>
    %18 = tpu.concatenate %16, %17 in 0 : vector<8x384xbf16>, vector<8x384xbf16> -> vector<16x384xbf16>
    %c16 = arith.constant 16 : index
    %c0_15 = arith.constant 0 : index
    %19 = vector.load %arg9[%c16, %c0_15] : memref<392x384xbf16, #tpu.memory_space<vmem>>, vector<16x384xbf16>
    tpu.vector_store %arg9[%c16, %c0_15], %18 {strides = array<i32>} : memref<392x384xbf16, #tpu.memory_space<vmem>>, vector<16x384xbf16>,
    %20 = vector.extract_strided_slice %5 {offsets = [0, 4], sizes = [8, 384], strides = [1, 1]} : vector<8x390xbf16> to vector<8x384xbf16>
    %21 = vector.extract_strided_slice %5 {offsets = [0, 5], sizes = [8, 384], strides = [1, 1]} : vector<8x390xbf16> to vector<8x384xbf16>
    %22 = tpu.concatenate %20, %21 in 0 : vector<8x384xbf16>, vector<8x384xbf16> -> vector<16x384xbf16>
    %c32 = arith.constant 32 : index
    %c0_16 = arith.constant 0 : index
    %23 = vector.load %arg9[%c32, %c0_16] : memref<392x384xbf16, #tpu.memory_space<vmem>>, vector<16x384xbf16>
    tpu.vector_store %arg9[%c32, %c0_16], %22 {strides = array<i32>} : memref<392x384xbf16, #tpu.memory_space<vmem>>, vector<16x384xbf16>,
    %24 = vector.extract_strided_slice %5 {offsets = [0, 6], sizes = [8, 384], strides = [1, 1]} : vector<8x390xbf16> to vector<8x384xbf16>
    %25 = vector.extract_strided_slice %6 {offsets = [0, 0], sizes = [8, 384], strides = [1, 1]} : vector<8x390xbf16> to vector<8x384xbf16>
    %26 = tpu.concatenate %24, %25 in 0 : vector<8x384xbf16>, vector<8x384xbf16> -> vector<16x384xbf16>
    %c48 = arith.constant 48 : index
    %c0_17 = arith.constant 0 : index
    %27 = vector.load %arg9[%c48, %c0_17] : memref<392x384xbf16, #tpu.memory_space<vmem>>, vector<16x384xbf16>
    tpu.vector_store %arg9[%c48, %c0_17], %26 {strides = array<i32>} : memref<392x384xbf16, #tpu.memory_space<vmem>>, vector<16x384xbf16>,
    %28 = vector.extract_strided_slice %6 {offsets = [0, 1], sizes = [8, 384], strides = [1, 1]} : vector<8x390xbf16> to vector<8x384xbf16>
    %29 = vector.extract_strided_slice %6 {offsets = [0, 2], sizes = [8, 384], strides = [1, 1]} : vector<8x390xbf16> to vector<8x384xbf16>
    %30 = tpu.concatenate %28, %29 in 0 : vector<8x384xbf16>, vector<8x384xbf16> -> vector<16x384xbf16>
    %c64 = arith.constant 64 : index
    %c0_18 = arith.constant 0 : index
    %31 = vector.load %arg9[%c64, %c0_18] : memref<392x384xbf16, #tpu.memory_space<vmem>>, vector<16x384xbf16>
    tpu.vector_store %arg9[%c64, %c0_18], %30 {strides = array<i32>} : memref<392x384xbf16, #tpu.memory_space<vmem>>, vector<16x384xbf16>,
    %32 = vector.extract_strided_slice %6 {offsets = [0, 3], sizes = [8, 384], strides = [1, 1]} : vector<8x390xbf16> to vector<8x384xbf16>
    %33 = vector.extract_strided_slice %6 {offsets = [0, 4], sizes = [8, 384], strides = [1, 1]} : vector<8x390xbf16> to vector<8x384xbf16>
    %34 = tpu.concatenate %32, %33 in 0 : vector<8x384xbf16>, vector<8x384xbf16> -> vector<16x384xbf16>
    %c80 = arith.constant 80 : index
    %c0_19 = arith.constant 0 : index
    %35 = vector.load %arg9[%c80, %c0_19] : memref<392x384xbf16, #tpu.memory_space<vmem>>, vector<16x384xbf16>
    tpu.vector_store %arg9[%c80, %c0_19], %34 {strides = array<i32>} : memref<392x384xbf16, #tpu.memory_space<vmem>>, vector<16x384xbf16>,
    %36 = vector.extract_strided_slice %6 {offsets = [0, 5], sizes = [8, 384], strides = [1, 1]} : vector<8x390xbf16> to vector<8x384xbf16>
    %37 = vector.extract_strided_slice %6 {offsets = [0, 6], sizes = [8, 384], strides = [1, 1]} : vector<8x390xbf16> to vector<8x384xbf16>
    %38 = tpu.concatenate %36, %37 in 0 : vector<8x384xbf16>, vector<8x384xbf16> -> vector<16x384xbf16>
    %c96 = arith.constant 96 : index
    %c0_20 = arith.constant 0 : index
    %39 = vector.load %arg9[%c96, %c0_20] : memref<392x384xbf16, #tpu.memory_space<vmem>>, vector<16x384xbf16>
    tpu.vector_store %arg9[%c96, %c0_20], %38 {strides = array<i32>} : memref<392x384xbf16, #tpu.memory_space<vmem>>, vector<16x384xbf16>,
    %40 = vector.extract_strided_slice %7 {offsets = [0, 0], sizes = [8, 384], strides = [1, 1]} : vector<8x390xbf16> to vector<8x384xbf16>
    %41 = vector.extract_strided_slice %7 {offsets = [0, 1], sizes = [8, 384], strides = [1, 1]} : vector<8x390xbf16> to vector<8x384xbf16>
    %42 = tpu.concatenate %40, %41 in 0 : vector<8x384xbf16>, vector<8x384xbf16> -> vector<16x384xbf16>
    %c112 = arith.constant 112 : index
    %c0_21 = arith.constant 0 : index
    %43 = vector.load %arg9[%c112, %c0_21] : memref<392x384xbf16, #tpu.memory_space<vmem>>, vector<16x384xbf16>
    tpu.vector_store %arg9[%c112, %c0_21], %42 {strides = array<i32>} : memref<392x384xbf16, #tpu.memory_space<vmem>>, vector<16x384xbf16>,
    %44 = vector.extract_strided_slice %7 {offsets = [0, 2], sizes = [8, 384], strides = [1, 1]} : vector<8x390xbf16> to vector<8x384xbf16>
    %45 = vector.extract_strided_slice %7 {offsets = [0, 3], sizes = [8, 384], strides = [1, 1]} : vector<8x390xbf16> to vector<8x384xbf16>
    %46 = tpu.concatenate %44, %45 in 0 : vector<8x384xbf16>, vector<8x384xbf16> -> vector<16x384xbf16>
    %c128 = arith.constant 128 : index
    %c0_22 = arith.constant 0 : index
    %47 = vector.load %arg9[%c128, %c0_22] : memref<392x384xbf16, #tpu.memory_space<vmem>>, vector<16x384xbf16>
    tpu.vector_store %arg9[%c128, %c0_22], %46 {strides = array<i32>} : memref<392x384xbf16, #tpu.memory_space<vmem>>, vector<16x384xbf16>,
    %48 = vector.extract_strided_slice %7 {offsets = [0, 4], sizes = [8, 384], strides = [1, 1]} : vector<8x390xbf16> to vector<8x384xbf16>
    %49 = vector.extract_strided_slice %7 {offsets = [0, 5], sizes = [8, 384], strides = [1, 1]} : vector<8x390xbf16> to vector<8x384xbf16>
    %50 = tpu.concatenate %48, %49 in 0 : vector<8x384xbf16>, vector<8x384xbf16> -> vector<16x384xbf16>
    %c144 = arith.constant 144 : index
    %c0_23 = arith.constant 0 : index
    %51 = vector.load %arg9[%c144, %c0_23] : memref<392x384xbf16, #tpu.memory_space<vmem>>, vector<16x384xbf16>
    tpu.vector_store %arg9[%c144, %c0_23], %50 {strides = array<i32>} : memref<392x384xbf16, #tpu.memory_space<vmem>>, vector<16x384xbf16>,
    %52 = vector.extract_strided_slice %7 {offsets = [0, 6], sizes = [8, 384], strides = [1, 1]} : vector<8x390xbf16> to vector<8x384xbf16>
    %53 = vector.extract_strided_slice %8 {offsets = [0, 0], sizes = [8, 384], strides = [1, 1]} : vector<8x390xbf16> to vector<8x384xbf16>
    %54 = tpu.concatenate %52, %53 in 0 : vector<8x384xbf16>, vector<8x384xbf16> -> vector<16x384xbf16>
    %c160 = arith.constant 160 : index
    %c0_24 = arith.constant 0 : index
    %55 = vector.load %arg9[%c160, %c0_24] : memref<392x384xbf16, #tpu.memory_space<vmem>>, vector<16x384xbf16>
    tpu.vector_store %arg9[%c160, %c0_24], %54 {strides = array<i32>} : memref<392x384xbf16, #tpu.memory_space<vmem>>, vector<16x384xbf16>,
    %56 = vector.extract_strided_slice %8 {offsets = [0, 1], sizes = [8, 384], strides = [1, 1]} : vector<8x390xbf16> to vector<8x384xbf16>
    %57 = vector.extract_strided_slice %8 {offsets = [0, 2], sizes = [8, 384], strides = [1, 1]} : vector<8x390xbf16> to vector<8x384xbf16>
    %58 = tpu.concatenate %56, %57 in 0 : vector<8x384xbf16>, vector<8x384xbf16> -> vector<16x384xbf16>
    %c176 = arith.constant 176 : index
    %c0_25 = arith.constant 0 : index
    %59 = vector.load %arg9[%c176, %c0_25] : memref<392x384xbf16, #tpu.memory_space<vmem>>, vector<16x384xbf16>
    tpu.vector_store %arg9[%c176, %c0_25], %58 {strides = array<i32>} : memref<392x384xbf16, #tpu.memory_space<vmem>>, vector<16x384xbf16>,
    %60 = vector.extract_strided_slice %8 {offsets = [0, 3], sizes = [8, 384], strides = [1, 1]} : vector<8x390xbf16> to vector<8x384xbf16>
    %61 = vector.extract_strided_slice %8 {offsets = [0, 4], sizes = [8, 384], strides = [1, 1]} : vector<8x390xbf16> to vector<8x384xbf16>
    %62 = tpu.concatenate %60, %61 in 0 : vector<8x384xbf16>, vector<8x384xbf16> -> vector<16x384xbf16>
    %c192 = arith.constant 192 : index
    %c0_26 = arith.constant 0 : index
    %63 = vector.load %arg9[%c192, %c0_26] : memref<392x384xbf16, #tpu.memory_space<vmem>>, vector<16x384xbf16>
    tpu.vector_store %arg9[%c192, %c0_26], %62 {strides = array<i32>} : memref<392x384xbf16, #tpu.memory_space<vmem>>, vector<16x384xbf16>,
    %64 = vector.extract_strided_slice %8 {offsets = [0, 5], sizes = [8, 384], strides = [1, 1]} : vector<8x390xbf16> to vector<8x384xbf16>
    %65 = vector.extract_strided_slice %8 {offsets = [0, 6], sizes = [8, 384], strides = [1, 1]} : vector<8x390xbf16> to vector<8x384xbf16>
    %66 = tpu.concatenate %64, %65 in 0 : vector<8x384xbf16>, vector<8x384xbf16> -> vector<16x384xbf16>
    %c208 = arith.constant 208 : index
    %c0_27 = arith.constant 0 : index
    %67 = vector.load %arg9[%c208, %c0_27] : memref<392x384xbf16, #tpu.memory_space<vmem>>, vector<16x384xbf16>
    tpu.vector_store %arg9[%c208, %c0_27], %66 {strides = array<i32>} : memref<392x384xbf16, #tpu.memory_space<vmem>>, vector<16x384xbf16>,
    %68 = vector.extract_strided_slice %9 {offsets = [0, 0], sizes = [8, 384], strides = [1, 1]} : vector<8x390xbf16> to vector<8x384xbf16>
    %69 = vector.extract_strided_slice %9 {offsets = [0, 1], sizes = [8, 384], strides = [1, 1]} : vector<8x390xbf16> to vector<8x384xbf16>
    %70 = tpu.concatenate %68, %69 in 0 : vector<8x384xbf16>, vector<8x384xbf16> -> vector<16x384xbf16>
    %c224 = arith.constant 224 : index
    %c0_28 = arith.constant 0 : index
    %71 = vector.load %arg9[%c224, %c0_28] : memref<392x384xbf16, #tpu.memory_space<vmem>>, vector<16x384xbf16>
    tpu.vector_store %arg9[%c224, %c0_28], %70 {strides = array<i32>} : memref<392x384xbf16, #tpu.memory_space<vmem>>, vector<16x384xbf16>,
    %72 = vector.extract_strided_slice %9 {offsets = [0, 2], sizes = [8, 384], strides = [1, 1]} : vector<8x390xbf16> to vector<8x384xbf16>
    %73 = vector.extract_strided_slice %9 {offsets = [0, 3], sizes = [8, 384], strides = [1, 1]} : vector<8x390xbf16> to vector<8x384xbf16>
    %74 = tpu.concatenate %72, %73 in 0 : vector<8x384xbf16>, vector<8x384xbf16> -> vector<16x384xbf16>
    %c240 = arith.constant 240 : index
    %c0_29 = arith.constant 0 : index
    %75 = vector.load %arg9[%c240, %c0_29] : memref<392x384xbf16, #tpu.memory_space<vmem>>, vector<16x384xbf16>
    tpu.vector_store %arg9[%c240, %c0_29], %74 {strides = array<i32>} : memref<392x384xbf16, #tpu.memory_space<vmem>>, vector<16x384xbf16>,
    %76 = vector.extract_strided_slice %9 {offsets = [0, 4], sizes = [8, 384], strides = [1, 1]} : vector<8x390xbf16> to vector<8x384xbf16>
    %77 = vector.extract_strided_slice %9 {offsets = [0, 5], sizes = [8, 384], strides = [1, 1]} : vector<8x390xbf16> to vector<8x384xbf16>
    %78 = tpu.concatenate %76, %77 in 0 : vector<8x384xbf16>, vector<8x384xbf16> -> vector<16x384xbf16>
    %c256 = arith.constant 256 : index
    %c0_30 = arith.constant 0 : index
    %79 = vector.load %arg9[%c256, %c0_30] : memref<392x384xbf16, #tpu.memory_space<vmem>>, vector<16x384xbf16>
    tpu.vector_store %arg9[%c256, %c0_30], %78 {strides = array<i32>} : memref<392x384xbf16, #tpu.memory_space<vmem>>, vector<16x384xbf16>,
    %80 = vector.extract_strided_slice %9 {offsets = [0, 6], sizes = [8, 384], strides = [1, 1]} : vector<8x390xbf16> to vector<8x384xbf16>
    %81 = vector.extract_strided_slice %10 {offsets = [0, 0], sizes = [8, 384], strides = [1, 1]} : vector<8x390xbf16> to vector<8x384xbf16>
    %82 = tpu.concatenate %80, %81 in 0 : vector<8x384xbf16>, vector<8x384xbf16> -> vector<16x384xbf16>
    %c272 = arith.constant 272 : index
    %c0_31 = arith.constant 0 : index
    %83 = vector.load %arg9[%c272, %c0_31] : memref<392x384xbf16, #tpu.memory_space<vmem>>, vector<16x384xbf16>
    tpu.vector_store %arg9[%c272, %c0_31], %82 {strides = array<i32>} : memref<392x384xbf16, #tpu.memory_space<vmem>>, vector<16x384xbf16>,
    %84 = vector.extract_strided_slice %10 {offsets = [0, 1], sizes = [8, 384], strides = [1, 1]} : vector<8x390xbf16> to vector<8x384xbf16>
    %85 = vector.extract_strided_slice %10 {offsets = [0, 2], sizes = [8, 384], strides = [1, 1]} : vector<8x390xbf16> to vector<8x384xbf16>
    %86 = tpu.concatenate %84, %85 in 0 : vector<8x384xbf16>, vector<8x384xbf16> -> vector<16x384xbf16>
    %c288 = arith.constant 288 : index
    %c0_32 = arith.constant 0 : index
    %87 = vector.load %arg9[%c288, %c0_32] : memref<392x384xbf16, #tpu.memory_space<vmem>>, vector<16x384xbf16>
    tpu.vector_store %arg9[%c288, %c0_32], %86 {strides = array<i32>} : memref<392x384xbf16, #tpu.memory_space<vmem>>, vector<16x384xbf16>,
    %88 = vector.extract_strided_slice %10 {offsets = [0, 3], sizes = [8, 384], strides = [1, 1]} : vector<8x390xbf16> to vector<8x384xbf16>
    %89 = vector.extract_strided_slice %10 {offsets = [0, 4], sizes = [8, 384], strides = [1, 1]} : vector<8x390xbf16> to vector<8x384xbf16>
    %90 = tpu.concatenate %88, %89 in 0 : vector<8x384xbf16>, vector<8x384xbf16> -> vector<16x384xbf16>
    %c304 = arith.constant 304 : index
    %c0_33 = arith.constant 0 : index
    %91 = vector.load %arg9[%c304, %c0_33] : memref<392x384xbf16, #tpu.memory_space<vmem>>, vector<16x384xbf16>
    tpu.vector_store %arg9[%c304, %c0_33], %90 {strides = array<i32>} : memref<392x384xbf16, #tpu.memory_space<vmem>>, vector<16x384xbf16>,
    %92 = vector.extract_strided_slice %10 {offsets = [0, 5], sizes = [8, 384], strides = [1, 1]} : vector<8x390xbf16> to vector<8x384xbf16>
    %93 = vector.extract_strided_slice %10 {offsets = [0, 6], sizes = [8, 384], strides = [1, 1]} : vector<8x390xbf16> to vector<8x384xbf16>
    %94 = tpu.concatenate %92, %93 in 0 : vector<8x384xbf16>, vector<8x384xbf16> -> vector<16x384xbf16>
    %c320 = arith.constant 320 : index
    %c0_34 = arith.constant 0 : index
    %95 = vector.load %arg9[%c320, %c0_34] : memref<392x384xbf16, #tpu.memory_space<vmem>>, vector<16x384xbf16>
    tpu.vector_store %arg9[%c320, %c0_34], %94 {strides = array<i32>} : memref<392x384xbf16, #tpu.memory_space<vmem>>, vector<16x384xbf16>,
    %96 = vector.extract_strided_slice %11 {offsets = [0, 0], sizes = [8, 384], strides = [1, 1]} : vector<8x390xbf16> to vector<8x384xbf16>
    %97 = vector.extract_strided_slice %11 {offsets = [0, 1], sizes = [8, 384], strides = [1, 1]} : vector<8x390xbf16> to vector<8x384xbf16>
    %98 = tpu.concatenate %96, %97 in 0 : vector<8x384xbf16>, vector<8x384xbf16> -> vector<16x384xbf16>
    %c336 = arith.constant 336 : index
    %c0_35 = arith.constant 0 : index
    %99 = vector.load %arg9[%c336, %c0_35] : memref<392x384xbf16, #tpu.memory_space<vmem>>, vector<16x384xbf16>
    tpu.vector_store %arg9[%c336, %c0_35], %98 {strides = array<i32>} : memref<392x384xbf16, #tpu.memory_space<vmem>>, vector<16x384xbf16>,
    %100 = vector.extract_strided_slice %11 {offsets = [0, 2], sizes = [8, 384], strides = [1, 1]} : vector<8x390xbf16> to vector<8x384xbf16>
    %101 = vector.extract_strided_slice %11 {offsets = [0, 3], sizes = [8, 384], strides = [1, 1]} : vector<8x390xbf16> to vector<8x384xbf16>
    %102 = tpu.concatenate %100, %101 in 0 : vector<8x384xbf16>, vector<8x384xbf16> -> vector<16x384xbf16>
    %c352 = arith.constant 352 : index
    %c0_36 = arith.constant 0 : index
    %103 = vector.load %arg9[%c352, %c0_36] : memref<392x384xbf16, #tpu.memory_space<vmem>>, vector<16x384xbf16>
    tpu.vector_store %arg9[%c352, %c0_36], %102 {strides = array<i32>} : memref<392x384xbf16, #tpu.memory_space<vmem>>, vector<16x384xbf16>,
    %104 = vector.extract_strided_slice %11 {offsets = [0, 4], sizes = [8, 384], strides = [1, 1]} : vector<8x390xbf16> to vector<8x384xbf16>
    %105 = vector.extract_strided_slice %11 {offsets = [0, 5], sizes = [8, 384], strides = [1, 1]} : vector<8x390xbf16> to vector<8x384xbf16>
    %106 = tpu.concatenate %104, %105 in 0 : vector<8x384xbf16>, vector<8x384xbf16> -> vector<16x384xbf16>
    %c368 = arith.constant 368 : index
    %c0_37 = arith.constant 0 : index
    %107 = vector.load %arg9[%c368, %c0_37] : memref<392x384xbf16, #tpu.memory_space<vmem>>, vector<16x384xbf16>
    tpu.vector_store %arg9[%c368, %c0_37], %106 {strides = array<i32>} : memref<392x384xbf16, #tpu.memory_space<vmem>>, vector<16x384xbf16>,
    %108 = vector.extract_strided_slice %11 {offsets = [0, 6], sizes = [8, 384], strides = [1, 1]} : vector<8x390xbf16> to vector<8x384xbf16>
    %c384 = arith.constant 384 : index
    %c0_38 = arith.constant 0 : index
    %109 = vector.load %arg9[%c384, %c0_38] : memref<392x384xbf16, #tpu.memory_space<vmem>>, vector<8x384xbf16>
    tpu.vector_store %arg9[%c384, %c0_38], %108 {strides = array<i32>} : memref<392x384xbf16, #tpu.memory_space<vmem>>, vector<8x384xbf16>,
    %c0_39 = arith.constant 0 : index
    %c0_40 = arith.constant 0 : index
    %c0_41 = arith.constant 0 : index
    %110 = vector.load %arg2[%c0_39, %c0_40, %c0_41] : memref<5x8x392xbf16, #tpu.memory_space<vmem>>, vector<1x8x392xbf16>
    %111 = vector.shape_cast %110 : vector<1x8x392xbf16> to vector<8x392xbf16>
    %c0_42 = arith.constant 0 : index
    %c0_43 = arith.constant 0 : index
    %112 = vector.load %arg9[%c0_42, %c0_43] : memref<392x384xbf16, #tpu.memory_space<vmem>>, vector<392x384xbf16>
    %cst_44 = arith.constant dense<0.000000e+00> : vector<8x384xf32>
    %113 = tpu.matmul %111, %112, %cst_44 {dimension_numbers = #tpu.dot_dimension_numbers<[1], [0], [0], [1], [0, 0, 1, 1], [], []>} : vector<8x392xbf16>, vector<392x384xbf16>, vector<8x384xf32> -> vector<8x384xf32>
    %c0_45 = arith.constant 0 : index
    %c0_46 = arith.constant 0 : index
    %c0_47 = arith.constant 0 : index
    %114 = vector.load %arg3[%c0_45, %c0_46, %c0_47] : memref<5x8x1xf32, #tpu.memory_space<vmem>>, vector<1x8x1xf32>
    %115 = vector.shape_cast %114 : vector<1x8x1xf32> to vector<8x1xf32>
    %116 = vector.broadcast %115 : vector<8x1xf32> to vector<8x384xf32>
    %117 = arith.addf %113, %116 : vector<8x384xf32>
    %c0_48 = arith.constant 0 : index
    %118 = memref.load %arg4[%c0_48] : memref<5xf32, #tpu.memory_space<smem>>
    %cst_49 = arith.constant 0.000000e+00 : f32
    %119 = vector.broadcast %cst_49 : f32 to vector<8x384xf32>
    %120 = arith.cmpf oge, %117, %119 : vector<8x384xf32>
    %121 = vector.broadcast %118 : f32 to vector<8x384xf32>
    %122 = arith.mulf %121, %117 : vector<8x384xf32>
    %123 = arith.select %120, %117, %122 : vector<8x384xi1>, vector<8x384xf32>
    %124 = vector.broadcast %4 : vector<1x384xf32> to vector<8x384xf32>
    %125 = arith.mulf %123, %124 : vector<8x384xf32>
    %126 = arith.truncf %125 : vector<8x384xf32> to vector<8x384xbf16>
    %c0_50 = arith.constant 0 : index
    %c128_51 = arith.constant 128 : index
    %127 = vector.load %arg7[%c0_50, %c128_51] : memref<8x587xbf16, #tpu.memory_space<vmem>>, vector<8x384xbf16>
    tpu.vector_store %arg7[%c0_50, %c128_51], %126 {strides = array<i32>} : memref<8x587xbf16, #tpu.memory_space<vmem>>, vector<8x384xbf16>,
    %c0_52 = arith.constant 0 : index
    %c53_53 = arith.constant 53 : index
    %128 = vector.load %arg7[%c0_52, %c53_53] : memref<8x587xbf16, #tpu.memory_space<vmem>>, vector<8x390xbf16>
    %c0_54 = arith.constant 0 : index
    %c77_55 = arith.constant 77 : index
    %129 = vector.load %arg7[%c0_54, %c77_55] : memref<8x587xbf16, #tpu.memory_space<vmem>>, vector<8x390xbf16>
    %c0_56 = arith.constant 0 : index
    %c101_57 = arith.constant 101 : index
    %130 = vector.load %arg7[%c0_56, %c101_57] : memref<8x587xbf16, #tpu.memory_space<vmem>>, vector<8x390xbf16>
    %c0_58 = arith.constant 0 : index
    %c125_59 = arith.constant 125 : index
    %131 = vector.load %arg7[%c0_58, %c125_59] : memref<8x587xbf16, #tpu.memory_space<vmem>>, vector<8x390xbf16>
    %c0_60 = arith.constant 0 : index
    %c149_61 = arith.constant 149 : index
    %132 = vector.load %arg7[%c0_60, %c149_61] : memref<8x587xbf16, #tpu.memory_space<vmem>>, vector<8x390xbf16>
    %c0_62 = arith.constant 0 : index
    %c173_63 = arith.constant 173 : index
    %133 = vector.load %arg7[%c0_62, %c173_63] : memref<8x587xbf16, #tpu.memory_space<vmem>>, vector<8x390xbf16>
    %c0_64 = arith.constant 0 : index
    %c197_65 = arith.constant 197 : index
    %134 = vector.load %arg7[%c0_64, %c197_65] : memref<8x587xbf16, #tpu.memory_space<vmem>>, vector<8x390xbf16>
    %135 = vector.extract_strided_slice %128 {offsets = [0, 0], sizes = [8, 384], strides = [1, 1]} : vector<8x390xbf16> to vector<8x384xbf16>
    %136 = vector.extract_strided_slice %128 {offsets = [0, 1], sizes = [8, 384], strides = [1, 1]} : vector<8x390xbf16> to vector<8x384xbf16>
    %137 = tpu.concatenate %135, %136 in 0 : vector<8x384xbf16>, vector<8x384xbf16> -> vector<16x384xbf16>
    %c0_66 = arith.constant 0 : index
    %c0_67 = arith.constant 0 : index
    %138 = vector.load %arg9[%c0_66, %c0_67] : memref<392x384xbf16, #tpu.memory_space<vmem>>, vector<16x384xbf16>
    tpu.vector_store %arg9[%c0_66, %c0_67], %137 {strides = array<i32>} : memref<392x384xbf16, #tpu.memory_space<vmem>>, vector<16x384xbf16>,
    %139 = vector.extract_strided_slice %128 {offsets = [0, 2], sizes = [8, 384], strides = [1, 1]} : vector<8x390xbf16> to vector<8x384xbf16>
    %140 = vector.extract_strided_slice %128 {offsets = [0, 3], sizes = [8, 384], strides = [1, 1]} : vector<8x390xbf16> to vector<8x384xbf16>
    %141 = tpu.concatenate %139, %140 in 0 : vector<8x384xbf16>, vector<8x384xbf16> -> vector<16x384xbf16>
    %c16_68 = arith.constant 16 : index
    %c0_69 = arith.constant 0 : index
    %142 = vector.load %arg9[%c16_68, %c0_69] : memref<392x384xbf16, #tpu.memory_space<vmem>>, vector<16x384xbf16>
    tpu.vector_store %arg9[%c16_68, %c0_69], %141 {strides = array<i32>} : memref<392x384xbf16, #tpu.memory_space<vmem>>, vector<16x384xbf16>,
    %143 = vector.extract_strided_slice %128 {offsets = [0, 4], sizes = [8, 384], strides = [1, 1]} : vector<8x390xbf16> to vector<8x384xbf16>
    %144 = vector.extract_strided_slice %128 {offsets = [0, 5], sizes = [8, 384], strides = [1, 1]} : vector<8x390xbf16> to vector<8x384xbf16>
    %145 = tpu.concatenate %143, %144 in 0 : vector<8x384xbf16>, vector<8x384xbf16> -> vector<16x384xbf16>
    %c32_70 = arith.constant 32 : index
    %c0_71 = arith.constant 0 : index
    %146 = vector.load %arg9[%c32_70, %c0_71] : memref<392x384xbf16, #tpu.memory_space<vmem>>, vector<16x384xbf16>
    tpu.vector_store %arg9[%c32_70, %c0_71], %145 {strides = array<i32>} : memref<392x384xbf16, #tpu.memory_space<vmem>>, vector<16x384xbf16>,
    %147 = vector.extract_strided_slice %128 {offsets = [0, 6], sizes = [8, 384], strides = [1, 1]} : vector<8x390xbf16> to vector<8x384xbf16>
    %148 = vector.extract_strided_slice %129 {offsets = [0, 0], sizes = [8, 384], strides = [1, 1]} : vector<8x390xbf16> to vector<8x384xbf16>
    %149 = tpu.concatenate %147, %148 in 0 : vector<8x384xbf16>, vector<8x384xbf16> -> vector<16x384xbf16>
    %c48_72 = arith.constant 48 : index
    %c0_73 = arith.constant 0 : index
    %150 = vector.load %arg9[%c48_72, %c0_73] : memref<392x384xbf16, #tpu.memory_space<vmem>>, vector<16x384xbf16>
    tpu.vector_store %arg9[%c48_72, %c0_73], %149 {strides = array<i32>} : memref<392x384xbf16, #tpu.memory_space<vmem>>, vector<16x384xbf16>,
    %151 = vector.extract_strided_slice %129 {offsets = [0, 1], sizes = [8, 384], strides = [1, 1]} : vector<8x390xbf16> to vector<8x384xbf16>
    %152 = vector.extract_strided_slice %129 {offsets = [0, 2], sizes = [8, 384], strides = [1, 1]} : vector<8x390xbf16> to vector<8x384xbf16>
    %153 = tpu.concatenate %151, %152 in 0 : vector<8x384xbf16>, vector<8x384xbf16> -> vector<16x384xbf16>
    %c64_74 = arith.constant 64 : index
    %c0_75 = arith.constant 0 : index
    %154 = vector.load %arg9[%c64_74, %c0_75] : memref<392x384xbf16, #tpu.memory_space<vmem>>, vector<16x384xbf16>
    tpu.vector_store %arg9[%c64_74, %c0_75], %153 {strides = array<i32>} : memref<392x384xbf16, #tpu.memory_space<vmem>>, vector<16x384xbf16>,
    %155 = vector.extract_strided_slice %129 {offsets = [0, 3], sizes = [8, 384], strides = [1, 1]} : vector<8x390xbf16> to vector<8x384xbf16>
    %156 = vector.extract_strided_slice %129 {offsets = [0, 4], sizes = [8, 384], strides = [1, 1]} : vector<8x390xbf16> to vector<8x384xbf16>
    %157 = tpu.concatenate %155, %156 in 0 : vector<8x384xbf16>, vector<8x384xbf16> -> vector<16x384xbf16>
    %c80_76 = arith.constant 80 : index
    %c0_77 = arith.constant 0 : index
    %158 = vector.load %arg9[%c80_76, %c0_77] : memref<392x384xbf16, #tpu.memory_space<vmem>>, vector<16x384xbf16>
    tpu.vector_store %arg9[%c80_76, %c0_77], %157 {strides = array<i32>} : memref<392x384xbf16, #tpu.memory_space<vmem>>, vector<16x384xbf16>,
    %159 = vector.extract_strided_slice %129 {offsets = [0, 5], sizes = [8, 384], strides = [1, 1]} : vector<8x390xbf16> to vector<8x384xbf16>
    %160 = vector.extract_strided_slice %129 {offsets = [0, 6], sizes = [8, 384], strides = [1, 1]} : vector<8x390xbf16> to vector<8x384xbf16>
    %161 = tpu.concatenate %159, %160 in 0 : vector<8x384xbf16>, vector<8x384xbf16> -> vector<16x384xbf16>
    %c96_78 = arith.constant 96 : index
    %c0_79 = arith.constant 0 : index
    %162 = vector.load %arg9[%c96_78, %c0_79] : memref<392x384xbf16, #tpu.memory_space<vmem>>, vector<16x384xbf16>
    tpu.vector_store %arg9[%c96_78, %c0_79], %161 {strides = array<i32>} : memref<392x384xbf16, #tpu.memory_space<vmem>>, vector<16x384xbf16>,
    %163 = vector.extract_strided_slice %130 {offsets = [0, 0], sizes = [8, 384], strides = [1, 1]} : vector<8x390xbf16> to vector<8x384xbf16>
    %164 = vector.extract_strided_slice %130 {offsets = [0, 1], sizes = [8, 384], strides = [1, 1]} : vector<8x390xbf16> to vector<8x384xbf16>
    %165 = tpu.concatenate %163, %164 in 0 : vector<8x384xbf16>, vector<8x384xbf16> -> vector<16x384xbf16>
    %c112_80 = arith.constant 112 : index
    %c0_81 = arith.constant 0 : index
    %166 = vector.load %arg9[%c112_80, %c0_81] : memref<392x384xbf16, #tpu.memory_space<vmem>>, vector<16x384xbf16>
    tpu.vector_store %arg9[%c112_80, %c0_81], %165 {strides = array<i32>} : memref<392x384xbf16, #tpu.memory_space<vmem>>, vector<16x384xbf16>,
    %167 = vector.extract_strided_slice %130 {offsets = [0, 2], sizes = [8, 384], strides = [1, 1]} : vector<8x390xbf16> to vector<8x384xbf16>
    %168 = vector.extract_strided_slice %130 {offsets = [0, 3], sizes = [8, 384], strides = [1, 1]} : vector<8x390xbf16> to vector<8x384xbf16>
    %169 = tpu.concatenate %167, %168 in 0 : vector<8x384xbf16>, vector<8x384xbf16> -> vector<16x384xbf16>
    %c128_82 = arith.constant 128 : index
    %c0_83 = arith.constant 0 : index
    %170 = vector.load %arg9[%c128_82, %c0_83] : memref<392x384xbf16, #tpu.memory_space<vmem>>, vector<16x384xbf16>
    tpu.vector_store %arg9[%c128_82, %c0_83], %169 {strides = array<i32>} : memref<392x384xbf16, #tpu.memory_space<vmem>>, vector<16x384xbf16>,
    %171 = vector.extract_strided_slice %130 {offsets = [0, 4], sizes = [8, 384], strides = [1, 1]} : vector<8x390xbf16> to vector<8x384xbf16>
    %172 = vector.extract_strided_slice %130 {offsets = [0, 5], sizes = [8, 384], strides = [1, 1]} : vector<8x390xbf16> to vector<8x384xbf16>
    %173 = tpu.concatenate %171, %172 in 0 : vector<8x384xbf16>, vector<8x384xbf16> -> vector<16x384xbf16>
    %c144_84 = arith.constant 144 : index
    %c0_85 = arith.constant 0 : index
    %174 = vector.load %arg9[%c144_84, %c0_85] : memref<392x384xbf16, #tpu.memory_space<vmem>>, vector<16x384xbf16>
    tpu.vector_store %arg9[%c144_84, %c0_85], %173 {strides = array<i32>} : memref<392x384xbf16, #tpu.memory_space<vmem>>, vector<16x384xbf16>,
    %175 = vector.extract_strided_slice %130 {offsets = [0, 6], sizes = [8, 384], strides = [1, 1]} : vector<8x390xbf16> to vector<8x384xbf16>
    %176 = vector.extract_strided_slice %131 {offsets = [0, 0], sizes = [8, 384], strides = [1, 1]} : vector<8x390xbf16> to vector<8x384xbf16>
    %177 = tpu.concatenate %175, %176 in 0 : vector<8x384xbf16>, vector<8x384xbf16> -> vector<16x384xbf16>
    %c160_86 = arith.constant 160 : index
    %c0_87 = arith.constant 0 : index
    %178 = vector.load %arg9[%c160_86, %c0_87] : memref<392x384xbf16, #tpu.memory_space<vmem>>, vector<16x384xbf16>
    tpu.vector_store %arg9[%c160_86, %c0_87], %177 {strides = array<i32>} : memref<392x384xbf16, #tpu.memory_space<vmem>>, vector<16x384xbf16>,
    %179 = vector.extract_strided_slice %131 {offsets = [0, 1], sizes = [8, 384], strides = [1, 1]} : vector<8x390xbf16> to vector<8x384xbf16>
    %180 = vector.extract_strided_slice %131 {offsets = [0, 2], sizes = [8, 384], strides = [1, 1]} : vector<8x390xbf16> to vector<8x384xbf16>
    %181 = tpu.concatenate %179, %180 in 0 : vector<8x384xbf16>, vector<8x384xbf16> -> vector<16x384xbf16>
    %c176_88 = arith.constant 176 : index
    %c0_89 = arith.constant 0 : index
    %182 = vector.load %arg9[%c176_88, %c0_89] : memref<392x384xbf16, #tpu.memory_space<vmem>>, vector<16x384xbf16>
    tpu.vector_store %arg9[%c176_88, %c0_89], %181 {strides = array<i32>} : memref<392x384xbf16, #tpu.memory_space<vmem>>, vector<16x384xbf16>,
    %183 = vector.extract_strided_slice %131 {offsets = [0, 3], sizes = [8, 384], strides = [1, 1]} : vector<8x390xbf16> to vector<8x384xbf16>
    %184 = vector.extract_strided_slice %131 {offsets = [0, 4], sizes = [8, 384], strides = [1, 1]} : vector<8x390xbf16> to vector<8x384xbf16>
    %185 = tpu.concatenate %183, %184 in 0 : vector<8x384xbf16>, vector<8x384xbf16> -> vector<16x384xbf16>
    %c192_90 = arith.constant 192 : index
    %c0_91 = arith.constant 0 : index
    %186 = vector.load %arg9[%c192_90, %c0_91] : memref<392x384xbf16, #tpu.memory_space<vmem>>, vector<16x384xbf16>
    tpu.vector_store %arg9[%c192_90, %c0_91], %185 {strides = array<i32>} : memref<392x384xbf16, #tpu.memory_space<vmem>>, vector<16x384xbf16>,
    %187 = vector.extract_strided_slice %131 {offsets = [0, 5], sizes = [8, 384], strides = [1, 1]} : vector<8x390xbf16> to vector<8x384xbf16>
    %188 = vector.extract_strided_slice %131 {offsets = [0, 6], sizes = [8, 384], strides = [1, 1]} : vector<8x390xbf16> to vector<8x384xbf16>
    %189 = tpu.concatenate %187, %188 in 0 : vector<8x384xbf16>, vector<8x384xbf16> -> vector<16x384xbf16>
    %c208_92 = arith.constant 208 : index
    %c0_93 = arith.constant 0 : index
    %190 = vector.load %arg9[%c208_92, %c0_93] : memref<392x384xbf16, #tpu.memory_space<vmem>>, vector<16x384xbf16>
    tpu.vector_store %arg9[%c208_92, %c0_93], %189 {strides = array<i32>} : memref<392x384xbf16, #tpu.memory_space<vmem>>, vector<16x384xbf16>,
    %191 = vector.extract_strided_slice %132 {offsets = [0, 0], sizes = [8, 384], strides = [1, 1]} : vector<8x390xbf16> to vector<8x384xbf16>
    %192 = vector.extract_strided_slice %132 {offsets = [0, 1], sizes = [8, 384], strides = [1, 1]} : vector<8x390xbf16> to vector<8x384xbf16>
    %193 = tpu.concatenate %191, %192 in 0 : vector<8x384xbf16>, vector<8x384xbf16> -> vector<16x384xbf16>
    %c224_94 = arith.constant 224 : index
    %c0_95 = arith.constant 0 : index
    %194 = vector.load %arg9[%c224_94, %c0_95] : memref<392x384xbf16, #tpu.memory_space<vmem>>, vector<16x384xbf16>
    tpu.vector_store %arg9[%c224_94, %c0_95], %193 {strides = array<i32>} : memref<392x384xbf16, #tpu.memory_space<vmem>>, vector<16x384xbf16>,
    %195 = vector.extract_strided_slice %132 {offsets = [0, 2], sizes = [8, 384], strides = [1, 1]} : vector<8x390xbf16> to vector<8x384xbf16>
    %196 = vector.extract_strided_slice %132 {offsets = [0, 3], sizes = [8, 384], strides = [1, 1]} : vector<8x390xbf16> to vector<8x384xbf16>
    %197 = tpu.concatenate %195, %196 in 0 : vector<8x384xbf16>, vector<8x384xbf16> -> vector<16x384xbf16>
    %c240_96 = arith.constant 240 : index
    %c0_97 = arith.constant 0 : index
    %198 = vector.load %arg9[%c240_96, %c0_97] : memref<392x384xbf16, #tpu.memory_space<vmem>>, vector<16x384xbf16>
    tpu.vector_store %arg9[%c240_96, %c0_97], %197 {strides = array<i32>} : memref<392x384xbf16, #tpu.memory_space<vmem>>, vector<16x384xbf16>,
    %199 = vector.extract_strided_slice %132 {offsets = [0, 4], sizes = [8, 384], strides = [1, 1]} : vector<8x390xbf16> to vector<8x384xbf16>
    %200 = vector.extract_strided_slice %132 {offsets = [0, 5], sizes = [8, 384], strides = [1, 1]} : vector<8x390xbf16> to vector<8x384xbf16>
    %201 = tpu.concatenate %199, %200 in 0 : vector<8x384xbf16>, vector<8x384xbf16> -> vector<16x384xbf16>
    %c256_98 = arith.constant 256 : index
    %c0_99 = arith.constant 0 : index
    %202 = vector.load %arg9[%c256_98, %c0_99] : memref<392x384xbf16, #tpu.memory_space<vmem>>, vector<16x384xbf16>
    tpu.vector_store %arg9[%c256_98, %c0_99], %201 {strides = array<i32>} : memref<392x384xbf16, #tpu.memory_space<vmem>>, vector<16x384xbf16>,
    %203 = vector.extract_strided_slice %132 {offsets = [0, 6], sizes = [8, 384], strides = [1, 1]} : vector<8x390xbf16> to vector<8x384xbf16>
    %204 = vector.extract_strided_slice %133 {offsets = [0, 0], sizes = [8, 384], strides = [1, 1]} : vector<8x390xbf16> to vector<8x384xbf16>
    %205 = tpu.concatenate %203, %204 in 0 : vector<8x384xbf16>, vector<8x384xbf16> -> vector<16x384xbf16>
    %c272_100 = arith.constant 272 : index
    %c0_101 = arith.constant 0 : index
    %206 = vector.load %arg9[%c272_100, %c0_101] : memref<392x384xbf16, #tpu.memory_space<vmem>>, vector<16x384xbf16>
    tpu.vector_store %arg9[%c272_100, %c0_101], %205 {strides = array<i32>} : memref<392x384xbf16, #tpu.memory_space<vmem>>, vector<16x384xbf16>,
    %207 = vector.extract_strided_slice %133 {offsets = [0, 1], sizes = [8, 384], strides = [1, 1]} : vector<8x390xbf16> to vector<8x384xbf16>
    %208 = vector.extract_strided_slice %133 {offsets = [0, 2], sizes = [8, 384], strides = [1, 1]} : vector<8x390xbf16> to vector<8x384xbf16>
    %209 = tpu.concatenate %207, %208 in 0 : vector<8x384xbf16>, vector<8x384xbf16> -> vector<16x384xbf16>
    %c288_102 = arith.constant 288 : index
    %c0_103 = arith.constant 0 : index
    %210 = vector.load %arg9[%c288_102, %c0_103] : memref<392x384xbf16, #tpu.memory_space<vmem>>, vector<16x384xbf16>
    tpu.vector_store %arg9[%c288_102, %c0_103], %209 {strides = array<i32>} : memref<392x384xbf16, #tpu.memory_space<vmem>>, vector<16x384xbf16>,
    %211 = vector.extract_strided_slice %133 {offsets = [0, 3], sizes = [8, 384], strides = [1, 1]} : vector<8x390xbf16> to vector<8x384xbf16>
    %212 = vector.extract_strided_slice %133 {offsets = [0, 4], sizes = [8, 384], strides = [1, 1]} : vector<8x390xbf16> to vector<8x384xbf16>
    %213 = tpu.concatenate %211, %212 in 0 : vector<8x384xbf16>, vector<8x384xbf16> -> vector<16x384xbf16>
    %c304_104 = arith.constant 304 : index
    %c0_105 = arith.constant 0 : index
    %214 = vector.load %arg9[%c304_104, %c0_105] : memref<392x384xbf16, #tpu.memory_space<vmem>>, vector<16x384xbf16>
    tpu.vector_store %arg9[%c304_104, %c0_105], %213 {strides = array<i32>} : memref<392x384xbf16, #tpu.memory_space<vmem>>, vector<16x384xbf16>,
    %215 = vector.extract_strided_slice %133 {offsets = [0, 5], sizes = [8, 384], strides = [1, 1]} : vector<8x390xbf16> to vector<8x384xbf16>
    %216 = vector.extract_strided_slice %133 {offsets = [0, 6], sizes = [8, 384], strides = [1, 1]} : vector<8x390xbf16> to vector<8x384xbf16>
    %217 = tpu.concatenate %215, %216 in 0 : vector<8x384xbf16>, vector<8x384xbf16> -> vector<16x384xbf16>
    %c320_106 = arith.constant 320 : index
    %c0_107 = arith.constant 0 : index
    %218 = vector.load %arg9[%c320_106, %c0_107] : memref<392x384xbf16, #tpu.memory_space<vmem>>, vector<16x384xbf16>
    tpu.vector_store %arg9[%c320_106, %c0_107], %217 {strides = array<i32>} : memref<392x384xbf16, #tpu.memory_space<vmem>>, vector<16x384xbf16>,
    %219 = vector.extract_strided_slice %134 {offsets = [0, 0], sizes = [8, 384], strides = [1, 1]} : vector<8x390xbf16> to vector<8x384xbf16>
    %220 = vector.extract_strided_slice %134 {offsets = [0, 1], sizes = [8, 384], strides = [1, 1]} : vector<8x390xbf16> to vector<8x384xbf16>
    %221 = tpu.concatenate %219, %220 in 0 : vector<8x384xbf16>, vector<8x384xbf16> -> vector<16x384xbf16>
    %c336_108 = arith.constant 336 : index
    %c0_109 = arith.constant 0 : index
    %222 = vector.load %arg9[%c336_108, %c0_109] : memref<392x384xbf16, #tpu.memory_space<vmem>>, vector<16x384xbf16>
    tpu.vector_store %arg9[%c336_108, %c0_109], %221 {strides = array<i32>} : memref<392x384xbf16, #tpu.memory_space<vmem>>, vector<16x384xbf16>,
    %223 = vector.extract_strided_slice %134 {offsets = [0, 2], sizes = [8, 384], strides = [1, 1]} : vector<8x390xbf16> to vector<8x384xbf16>
    %224 = vector.extract_strided_slice %134 {offsets = [0, 3], sizes = [8, 384], strides = [1, 1]} : vector<8x390xbf16> to vector<8x384xbf16>
    %225 = tpu.concatenate %223, %224 in 0 : vector<8x384xbf16>, vector<8x384xbf16> -> vector<16x384xbf16>
    %c352_110 = arith.constant 352 : index
    %c0_111 = arith.constant 0 : index
    %226 = vector.load %arg9[%c352_110, %c0_111] : memref<392x384xbf16, #tpu.memory_space<vmem>>, vector<16x384xbf16>
    tpu.vector_store %arg9[%c352_110, %c0_111], %225 {strides = array<i32>} : memref<392x384xbf16, #tpu.memory_space<vmem>>, vector<16x384xbf16>,
    %227 = vector.extract_strided_slice %134 {offsets = [0, 4], sizes = [8, 384], strides = [1, 1]} : vector<8x390xbf16> to vector<8x384xbf16>
    %228 = vector.extract_strided_slice %134 {offsets = [0, 5], sizes = [8, 384], strides = [1, 1]} : vector<8x390xbf16> to vector<8x384xbf16>
    %229 = tpu.concatenate %227, %228 in 0 : vector<8x384xbf16>, vector<8x384xbf16> -> vector<16x384xbf16>
    %c368_112 = arith.constant 368 : index
    %c0_113 = arith.constant 0 : index
    %230 = vector.load %arg9[%c368_112, %c0_113] : memref<392x384xbf16, #tpu.memory_space<vmem>>, vector<16x384xbf16>
    tpu.vector_store %arg9[%c368_112, %c0_113], %229 {strides = array<i32>} : memref<392x384xbf16, #tpu.memory_space<vmem>>, vector<16x384xbf16>,
    %231 = vector.extract_strided_slice %134 {offsets = [0, 6], sizes = [8, 384], strides = [1, 1]} : vector<8x390xbf16> to vector<8x384xbf16>
    %c384_114 = arith.constant 384 : index
    %c0_115 = arith.constant 0 : index
    %232 = vector.load %arg9[%c384_114, %c0_115] : memref<392x384xbf16, #tpu.memory_space<vmem>>, vector<8x384xbf16>
    tpu.vector_store %arg9[%c384_114, %c0_115], %231 {strides = array<i32>} : memref<392x384xbf16, #tpu.memory_space<vmem>>, vector<8x384xbf16>,
    %c1 = arith.constant 1 : index
    %c0_116 = arith.constant 0 : index
    %c0_117 = arith.constant 0 : index
    %233 = vector.load %arg2[%c1, %c0_116, %c0_117] : memref<5x8x392xbf16, #tpu.memory_space<vmem>>, vector<1x8x392xbf16>
    %234 = vector.shape_cast %233 : vector<1x8x392xbf16> to vector<8x392xbf16>
    %c0_118 = arith.constant 0 : index
    %c0_119 = arith.constant 0 : index
    %235 = vector.load %arg9[%c0_118, %c0_119] : memref<392x384xbf16, #tpu.memory_space<vmem>>, vector<392x384xbf16>
    %cst_120 = arith.constant dense<0.000000e+00> : vector<8x384xf32>
    %236 = tpu.matmul %234, %235, %cst_120 {dimension_numbers = #tpu.dot_dimension_numbers<[1], [0], [0], [1], [0, 0, 1, 1], [], []>} : vector<8x392xbf16>, vector<392x384xbf16>, vector<8x384xf32> -> vector<8x384xf32>
    %c1_121 = arith.constant 1 : index
    %c0_122 = arith.constant 0 : index
    %c0_123 = arith.constant 0 : index
    %237 = vector.load %arg3[%c1_121, %c0_122, %c0_123] : memref<5x8x1xf32, #tpu.memory_space<vmem>>, vector<1x8x1xf32>
    %238 = vector.shape_cast %237 : vector<1x8x1xf32> to vector<8x1xf32>
    %239 = vector.broadcast %238 : vector<8x1xf32> to vector<8x384xf32>
    %240 = arith.addf %236, %239 : vector<8x384xf32>
    %c1_124 = arith.constant 1 : index
    %241 = memref.load %arg4[%c1_124] : memref<5xf32, #tpu.memory_space<smem>>
    %cst_125 = arith.constant 0.000000e+00 : f32
    %242 = vector.broadcast %cst_125 : f32 to vector<8x384xf32>
    %243 = arith.cmpf oge, %240, %242 : vector<8x384xf32>
    %244 = vector.broadcast %241 : f32 to vector<8x384xf32>
    %245 = arith.mulf %244, %240 : vector<8x384xf32>
    %246 = arith.select %243, %240, %245 : vector<8x384xi1>, vector<8x384xf32>
    %247 = vector.broadcast %4 : vector<1x384xf32> to vector<8x384xf32>
    %248 = arith.mulf %246, %247 : vector<8x384xf32>
    %249 = arith.truncf %248 : vector<8x384xf32> to vector<8x384xbf16>
    %c0_126 = arith.constant 0 : index
    %c128_127 = arith.constant 128 : index
    %250 = vector.load %arg8[%c0_126, %c128_127] : memref<8x587xbf16, #tpu.memory_space<vmem>>, vector<8x384xbf16>
    tpu.vector_store %arg8[%c0_126, %c128_127], %249 {strides = array<i32>} : memref<8x587xbf16, #tpu.memory_space<vmem>>, vector<8x384xbf16>,
    %c0_128 = arith.constant 0 : index
    %c53_129 = arith.constant 53 : index
    %251 = vector.load %arg8[%c0_128, %c53_129] : memref<8x587xbf16, #tpu.memory_space<vmem>>, vector<8x390xbf16>
    %c0_130 = arith.constant 0 : index
    %c77_131 = arith.constant 77 : index
    %252 = vector.load %arg8[%c0_130, %c77_131] : memref<8x587xbf16, #tpu.memory_space<vmem>>, vector<8x390xbf16>
    %c0_132 = arith.constant 0 : index
    %c101_133 = arith.constant 101 : index
    %253 = vector.load %arg8[%c0_132, %c101_133] : memref<8x587xbf16, #tpu.memory_space<vmem>>, vector<8x390xbf16>
    %c0_134 = arith.constant 0 : index
    %c125_135 = arith.constant 125 : index
    %254 = vector.load %arg8[%c0_134, %c125_135] : memref<8x587xbf16, #tpu.memory_space<vmem>>, vector<8x390xbf16>
    %c0_136 = arith.constant 0 : index
    %c149_137 = arith.constant 149 : index
    %255 = vector.load %arg8[%c0_136, %c149_137] : memref<8x587xbf16, #tpu.memory_space<vmem>>, vector<8x390xbf16>
    %c0_138 = arith.constant 0 : index
    %c173_139 = arith.constant 173 : index
    %256 = vector.load %arg8[%c0_138, %c173_139] : memref<8x587xbf16, #tpu.memory_space<vmem>>, vector<8x390xbf16>
    %c0_140 = arith.constant 0 : index
    %c197_141 = arith.constant 197 : index
    %257 = vector.load %arg8[%c0_140, %c197_141] : memref<8x587xbf16, #tpu.memory_space<vmem>>, vector<8x390xbf16>
    %258 = vector.extract_strided_slice %251 {offsets = [0, 0], sizes = [8, 384], strides = [1, 1]} : vector<8x390xbf16> to vector<8x384xbf16>
    %259 = vector.extract_strided_slice %251 {offsets = [0, 1], sizes = [8, 384], strides = [1, 1]} : vector<8x390xbf16> to vector<8x384xbf16>
    %260 = tpu.concatenate %258, %259 in 0 : vector<8x384xbf16>, vector<8x384xbf16> -> vector<16x384xbf16>
    %c0_142 = arith.constant 0 : index
    %c0_143 = arith.constant 0 : index
    %261 = vector.load %arg9[%c0_142, %c0_143] : memref<392x384xbf16, #tpu.memory_space<vmem>>, vector<16x384xbf16>
    tpu.vector_store %arg9[%c0_142, %c0_143], %260 {strides = array<i32>} : memref<392x384xbf16, #tpu.memory_space<vmem>>, vector<16x384xbf16>,
    %262 = vector.extract_strided_slice %251 {offsets = [0, 2], sizes = [8, 384], strides = [1, 1]} : vector<8x390xbf16> to vector<8x384xbf16>
    %263 = vector.extract_strided_slice %251 {offsets = [0, 3], sizes = [8, 384], strides = [1, 1]} : vector<8x390xbf16> to vector<8x384xbf16>
    %264 = tpu.concatenate %262, %263 in 0 : vector<8x384xbf16>, vector<8x384xbf16> -> vector<16x384xbf16>
    %c16_144 = arith.constant 16 : index
    %c0_145 = arith.constant 0 : index
    %265 = vector.load %arg9[%c16_144, %c0_145] : memref<392x384xbf16, #tpu.memory_space<vmem>>, vector<16x384xbf16>
    tpu.vector_store %arg9[%c16_144, %c0_145], %264 {strides = array<i32>} : memref<392x384xbf16, #tpu.memory_space<vmem>>, vector<16x384xbf16>,
    %266 = vector.extract_strided_slice %251 {offsets = [0, 4], sizes = [8, 384], strides = [1, 1]} : vector<8x390xbf16> to vector<8x384xbf16>
    %267 = vector.extract_strided_slice %251 {offsets = [0, 5], sizes = [8, 384], strides = [1, 1]} : vector<8x390xbf16> to vector<8x384xbf16>
    %268 = tpu.concatenate %266, %267 in 0 : vector<8x384xbf16>, vector<8x384xbf16> -> vector<16x384xbf16>
    %c32_146 = arith.constant 32 : index
    %c0_147 = arith.constant 0 : index
    %269 = vector.load %arg9[%c32_146, %c0_147] : memref<392x384xbf16, #tpu.memory_space<vmem>>, vector<16x384xbf16>
    tpu.vector_store %arg9[%c32_146, %c0_147], %268 {strides = array<i32>} : memref<392x384xbf16, #tpu.memory_space<vmem>>, vector<16x384xbf16>,
    %270 = vector.extract_strided_slice %251 {offsets = [0, 6], sizes = [8, 384], strides = [1, 1]} : vector<8x390xbf16> to vector<8x384xbf16>
    %271 = vector.extract_strided_slice %252 {offsets = [0, 0], sizes = [8, 384], strides = [1, 1]} : vector<8x390xbf16> to vector<8x384xbf16>
    %272 = tpu.concatenate %270, %271 in 0 : vector<8x384xbf16>, vector<8x384xbf16> -> vector<16x384xbf16>
    %c48_148 = arith.constant 48 : index
    %c0_149 = arith.constant 0 : index
    %273 = vector.load %arg9[%c48_148, %c0_149] : memref<392x384xbf16, #tpu.memory_space<vmem>>, vector<16x384xbf16>
    tpu.vector_store %arg9[%c48_148, %c0_149], %272 {strides = array<i32>} : memref<392x384xbf16, #tpu.memory_space<vmem>>, vector<16x384xbf16>,
    %274 = vector.extract_strided_slice %252 {offsets = [0, 1], sizes = [8, 384], strides = [1, 1]} : vector<8x390xbf16> to vector<8x384xbf16>
    %275 = vector.extract_strided_slice %252 {offsets = [0, 2], sizes = [8, 384], strides = [1, 1]} : vector<8x390xbf16> to vector<8x384xbf16>
    %276 = tpu.concatenate %274, %275 in 0 : vector<8x384xbf16>, vector<8x384xbf16> -> vector<16x384xbf16>
    %c64_150 = arith.constant 64 : index
    %c0_151 = arith.constant 0 : index
    %277 = vector.load %arg9[%c64_150, %c0_151] : memref<392x384xbf16, #tpu.memory_space<vmem>>, vector<16x384xbf16>
    tpu.vector_store %arg9[%c64_150, %c0_151], %276 {strides = array<i32>} : memref<392x384xbf16, #tpu.memory_space<vmem>>, vector<16x384xbf16>,
    %278 = vector.extract_strided_slice %252 {offsets = [0, 3], sizes = [8, 384], strides = [1, 1]} : vector<8x390xbf16> to vector<8x384xbf16>
    %279 = vector.extract_strided_slice %252 {offsets = [0, 4], sizes = [8, 384], strides = [1, 1]} : vector<8x390xbf16> to vector<8x384xbf16>
    %280 = tpu.concatenate %278, %279 in 0 : vector<8x384xbf16>, vector<8x384xbf16> -> vector<16x384xbf16>
    %c80_152 = arith.constant 80 : index
    %c0_153 = arith.constant 0 : index
    %281 = vector.load %arg9[%c80_152, %c0_153] : memref<392x384xbf16, #tpu.memory_space<vmem>>, vector<16x384xbf16>
    tpu.vector_store %arg9[%c80_152, %c0_153], %280 {strides = array<i32>} : memref<392x384xbf16, #tpu.memory_space<vmem>>, vector<16x384xbf16>,
    %282 = vector.extract_strided_slice %252 {offsets = [0, 5], sizes = [8, 384], strides = [1, 1]} : vector<8x390xbf16> to vector<8x384xbf16>
    %283 = vector.extract_strided_slice %252 {offsets = [0, 6], sizes = [8, 384], strides = [1, 1]} : vector<8x390xbf16> to vector<8x384xbf16>
    %284 = tpu.concatenate %282, %283 in 0 : vector<8x384xbf16>, vector<8x384xbf16> -> vector<16x384xbf16>
    %c96_154 = arith.constant 96 : index
    %c0_155 = arith.constant 0 : index
    %285 = vector.load %arg9[%c96_154, %c0_155] : memref<392x384xbf16, #tpu.memory_space<vmem>>, vector<16x384xbf16>
    tpu.vector_store %arg9[%c96_154, %c0_155], %284 {strides = array<i32>} : memref<392x384xbf16, #tpu.memory_space<vmem>>, vector<16x384xbf16>,
    %286 = vector.extract_strided_slice %253 {offsets = [0, 0], sizes = [8, 384], strides = [1, 1]} : vector<8x390xbf16> to vector<8x384xbf16>
    %287 = vector.extract_strided_slice %253 {offsets = [0, 1], sizes = [8, 384], strides = [1, 1]} : vector<8x390xbf16> to vector<8x384xbf16>
    %288 = tpu.concatenate %286, %287 in 0 : vector<8x384xbf16>, vector<8x384xbf16> -> vector<16x384xbf16>
    %c112_156 = arith.constant 112 : index
    %c0_157 = arith.constant 0 : index
    %289 = vector.load %arg9[%c112_156, %c0_157] : memref<392x384xbf16, #tpu.memory_space<vmem>>, vector<16x384xbf16>
    tpu.vector_store %arg9[%c112_156, %c0_157], %288 {strides = array<i32>} : memref<392x384xbf16, #tpu.memory_space<vmem>>, vector<16x384xbf16>,
    %290 = vector.extract_strided_slice %253 {offsets = [0, 2], sizes = [8, 384], strides = [1, 1]} : vector<8x390xbf16> to vector<8x384xbf16>
    %291 = vector.extract_strided_slice %253 {offsets = [0, 3], sizes = [8, 384], strides = [1, 1]} : vector<8x390xbf16> to vector<8x384xbf16>
    %292 = tpu.concatenate %290, %291 in 0 : vector<8x384xbf16>, vector<8x384xbf16> -> vector<16x384xbf16>
    %c128_158 = arith.constant 128 : index
    %c0_159 = arith.constant 0 : index
    %293 = vector.load %arg9[%c128_158, %c0_159] : memref<392x384xbf16, #tpu.memory_space<vmem>>, vector<16x384xbf16>
    tpu.vector_store %arg9[%c128_158, %c0_159], %292 {strides = array<i32>} : memref<392x384xbf16, #tpu.memory_space<vmem>>, vector<16x384xbf16>,
    %294 = vector.extract_strided_slice %253 {offsets = [0, 4], sizes = [8, 384], strides = [1, 1]} : vector<8x390xbf16> to vector<8x384xbf16>
    %295 = vector.extract_strided_slice %253 {offsets = [0, 5], sizes = [8, 384], strides = [1, 1]} : vector<8x390xbf16> to vector<8x384xbf16>
    %296 = tpu.concatenate %294, %295 in 0 : vector<8x384xbf16>, vector<8x384xbf16> -> vector<16x384xbf16>
    %c144_160 = arith.constant 144 : index
    %c0_161 = arith.constant 0 : index
    %297 = vector.load %arg9[%c144_160, %c0_161] : memref<392x384xbf16, #tpu.memory_space<vmem>>, vector<16x384xbf16>
    tpu.vector_store %arg9[%c144_160, %c0_161], %296 {strides = array<i32>} : memref<392x384xbf16, #tpu.memory_space<vmem>>, vector<16x384xbf16>,
    %298 = vector.extract_strided_slice %253 {offsets = [0, 6], sizes = [8, 384], strides = [1, 1]} : vector<8x390xbf16> to vector<8x384xbf16>
    %299 = vector.extract_strided_slice %254 {offsets = [0, 0], sizes = [8, 384], strides = [1, 1]} : vector<8x390xbf16> to vector<8x384xbf16>
    %300 = tpu.concatenate %298, %299 in 0 : vector<8x384xbf16>, vector<8x384xbf16> -> vector<16x384xbf16>
    %c160_162 = arith.constant 160 : index
    %c0_163 = arith.constant 0 : index
    %301 = vector.load %arg9[%c160_162, %c0_163] : memref<392x384xbf16, #tpu.memory_space<vmem>>, vector<16x384xbf16>
    tpu.vector_store %arg9[%c160_162, %c0_163], %300 {strides = array<i32>} : memref<392x384xbf16, #tpu.memory_space<vmem>>, vector<16x384xbf16>,
    %302 = vector.extract_strided_slice %254 {offsets = [0, 1], sizes = [8, 384], strides = [1, 1]} : vector<8x390xbf16> to vector<8x384xbf16>
    %303 = vector.extract_strided_slice %254 {offsets = [0, 2], sizes = [8, 384], strides = [1, 1]} : vector<8x390xbf16> to vector<8x384xbf16>
    %304 = tpu.concatenate %302, %303 in 0 : vector<8x384xbf16>, vector<8x384xbf16> -> vector<16x384xbf16>
    %c176_164 = arith.constant 176 : index
    %c0_165 = arith.constant 0 : index
    %305 = vector.load %arg9[%c176_164, %c0_165] : memref<392x384xbf16, #tpu.memory_space<vmem>>, vector<16x384xbf16>
    tpu.vector_store %arg9[%c176_164, %c0_165], %304 {strides = array<i32>} : memref<392x384xbf16, #tpu.memory_space<vmem>>, vector<16x384xbf16>,
    %306 = vector.extract_strided_slice %254 {offsets = [0, 3], sizes = [8, 384], strides = [1, 1]} : vector<8x390xbf16> to vector<8x384xbf16>
    %307 = vector.extract_strided_slice %254 {offsets = [0, 4], sizes = [8, 384], strides = [1, 1]} : vector<8x390xbf16> to vector<8x384xbf16>
    %308 = tpu.concatenate %306, %307 in 0 : vector<8x384xbf16>, vector<8x384xbf16> -> vector<16x384xbf16>
    %c192_166 = arith.constant 192 : index
    %c0_167 = arith.constant 0 : index
    %309 = vector.load %arg9[%c192_166, %c0_167] : memref<392x384xbf16, #tpu.memory_space<vmem>>, vector<16x384xbf16>
    tpu.vector_store %arg9[%c192_166, %c0_167], %308 {strides = array<i32>} : memref<392x384xbf16, #tpu.memory_space<vmem>>, vector<16x384xbf16>,
    %310 = vector.extract_strided_slice %254 {offsets = [0, 5], sizes = [8, 384], strides = [1, 1]} : vector<8x390xbf16> to vector<8x384xbf16>
    %311 = vector.extract_strided_slice %254 {offsets = [0, 6], sizes = [8, 384], strides = [1, 1]} : vector<8x390xbf16> to vector<8x384xbf16>
    %312 = tpu.concatenate %310, %311 in 0 : vector<8x384xbf16>, vector<8x384xbf16> -> vector<16x384xbf16>
    %c208_168 = arith.constant 208 : index
    %c0_169 = arith.constant 0 : index
    %313 = vector.load %arg9[%c208_168, %c0_169] : memref<392x384xbf16, #tpu.memory_space<vmem>>, vector<16x384xbf16>
    tpu.vector_store %arg9[%c208_168, %c0_169], %312 {strides = array<i32>} : memref<392x384xbf16, #tpu.memory_space<vmem>>, vector<16x384xbf16>,
    %314 = vector.extract_strided_slice %255 {offsets = [0, 0], sizes = [8, 384], strides = [1, 1]} : vector<8x390xbf16> to vector<8x384xbf16>
    %315 = vector.extract_strided_slice %255 {offsets = [0, 1], sizes = [8, 384], strides = [1, 1]} : vector<8x390xbf16> to vector<8x384xbf16>
    %316 = tpu.concatenate %314, %315 in 0 : vector<8x384xbf16>, vector<8x384xbf16> -> vector<16x384xbf16>
    %c224_170 = arith.constant 224 : index
    %c0_171 = arith.constant 0 : index
    %317 = vector.load %arg9[%c224_170, %c0_171] : memref<392x384xbf16, #tpu.memory_space<vmem>>, vector<16x384xbf16>
    tpu.vector_store %arg9[%c224_170, %c0_171], %316 {strides = array<i32>} : memref<392x384xbf16, #tpu.memory_space<vmem>>, vector<16x384xbf16>,
    %318 = vector.extract_strided_slice %255 {offsets = [0, 2], sizes = [8, 384], strides = [1, 1]} : vector<8x390xbf16> to vector<8x384xbf16>
    %319 = vector.extract_strided_slice %255 {offsets = [0, 3], sizes = [8, 384], strides = [1, 1]} : vector<8x390xbf16> to vector<8x384xbf16>
    %320 = tpu.concatenate %318, %319 in 0 : vector<8x384xbf16>, vector<8x384xbf16> -> vector<16x384xbf16>
    %c240_172 = arith.constant 240 : index
    %c0_173 = arith.constant 0 : index
    %321 = vector.load %arg9[%c240_172, %c0_173] : memref<392x384xbf16, #tpu.memory_space<vmem>>, vector<16x384xbf16>
    tpu.vector_store %arg9[%c240_172, %c0_173], %320 {strides = array<i32>} : memref<392x384xbf16, #tpu.memory_space<vmem>>, vector<16x384xbf16>,
    %322 = vector.extract_strided_slice %255 {offsets = [0, 4], sizes = [8, 384], strides = [1, 1]} : vector<8x390xbf16> to vector<8x384xbf16>
    %323 = vector.extract_strided_slice %255 {offsets = [0, 5], sizes = [8, 384], strides = [1, 1]} : vector<8x390xbf16> to vector<8x384xbf16>
    %324 = tpu.concatenate %322, %323 in 0 : vector<8x384xbf16>, vector<8x384xbf16> -> vector<16x384xbf16>
    %c256_174 = arith.constant 256 : index
    %c0_175 = arith.constant 0 : index
    %325 = vector.load %arg9[%c256_174, %c0_175] : memref<392x384xbf16, #tpu.memory_space<vmem>>, vector<16x384xbf16>
    tpu.vector_store %arg9[%c256_174, %c0_175], %324 {strides = array<i32>} : memref<392x384xbf16, #tpu.memory_space<vmem>>, vector<16x384xbf16>,
    %326 = vector.extract_strided_slice %255 {offsets = [0, 6], sizes = [8, 384], strides = [1, 1]} : vector<8x390xbf16> to vector<8x384xbf16>
    %327 = vector.extract_strided_slice %256 {offsets = [0, 0], sizes = [8, 384], strides = [1, 1]} : vector<8x390xbf16> to vector<8x384xbf16>
    %328 = tpu.concatenate %326, %327 in 0 : vector<8x384xbf16>, vector<8x384xbf16> -> vector<16x384xbf16>
    %c272_176 = arith.constant 272 : index
    %c0_177 = arith.constant 0 : index
    %329 = vector.load %arg9[%c272_176, %c0_177] : memref<392x384xbf16, #tpu.memory_space<vmem>>, vector<16x384xbf16>
    tpu.vector_store %arg9[%c272_176, %c0_177], %328 {strides = array<i32>} : memref<392x384xbf16, #tpu.memory_space<vmem>>, vector<16x384xbf16>,
    %330 = vector.extract_strided_slice %256 {offsets = [0, 1], sizes = [8, 384], strides = [1, 1]} : vector<8x390xbf16> to vector<8x384xbf16>
    %331 = vector.extract_strided_slice %256 {offsets = [0, 2], sizes = [8, 384], strides = [1, 1]} : vector<8x390xbf16> to vector<8x384xbf16>
    %332 = tpu.concatenate %330, %331 in 0 : vector<8x384xbf16>, vector<8x384xbf16> -> vector<16x384xbf16>
    %c288_178 = arith.constant 288 : index
    %c0_179 = arith.constant 0 : index
    %333 = vector.load %arg9[%c288_178, %c0_179] : memref<392x384xbf16, #tpu.memory_space<vmem>>, vector<16x384xbf16>
    tpu.vector_store %arg9[%c288_178, %c0_179], %332 {strides = array<i32>} : memref<392x384xbf16, #tpu.memory_space<vmem>>, vector<16x384xbf16>,
    %334 = vector.extract_strided_slice %256 {offsets = [0, 3], sizes = [8, 384], strides = [1, 1]} : vector<8x390xbf16> to vector<8x384xbf16>
    %335 = vector.extract_strided_slice %256 {offsets = [0, 4], sizes = [8, 384], strides = [1, 1]} : vector<8x390xbf16> to vector<8x384xbf16>
    %336 = tpu.concatenate %334, %335 in 0 : vector<8x384xbf16>, vector<8x384xbf16> -> vector<16x384xbf16>
    %c304_180 = arith.constant 304 : index
    %c0_181 = arith.constant 0 : index
    %337 = vector.load %arg9[%c304_180, %c0_181] : memref<392x384xbf16, #tpu.memory_space<vmem>>, vector<16x384xbf16>
    tpu.vector_store %arg9[%c304_180, %c0_181], %336 {strides = array<i32>} : memref<392x384xbf16, #tpu.memory_space<vmem>>, vector<16x384xbf16>,
    %338 = vector.extract_strided_slice %256 {offsets = [0, 5], sizes = [8, 384], strides = [1, 1]} : vector<8x390xbf16> to vector<8x384xbf16>
    %339 = vector.extract_strided_slice %256 {offsets = [0, 6], sizes = [8, 384], strides = [1, 1]} : vector<8x390xbf16> to vector<8x384xbf16>
    %340 = tpu.concatenate %338, %339 in 0 : vector<8x384xbf16>, vector<8x384xbf16> -> vector<16x384xbf16>
    %c320_182 = arith.constant 320 : index
    %c0_183 = arith.constant 0 : index
    %341 = vector.load %arg9[%c320_182, %c0_183] : memref<392x384xbf16, #tpu.memory_space<vmem>>, vector<16x384xbf16>
    tpu.vector_store %arg9[%c320_182, %c0_183], %340 {strides = array<i32>} : memref<392x384xbf16, #tpu.memory_space<vmem>>, vector<16x384xbf16>,
    %342 = vector.extract_strided_slice %257 {offsets = [0, 0], sizes = [8, 384], strides = [1, 1]} : vector<8x390xbf16> to vector<8x384xbf16>
    %343 = vector.extract_strided_slice %257 {offsets = [0, 1], sizes = [8, 384], strides = [1, 1]} : vector<8x390xbf16> to vector<8x384xbf16>
    %344 = tpu.concatenate %342, %343 in 0 : vector<8x384xbf16>, vector<8x384xbf16> -> vector<16x384xbf16>
    %c336_184 = arith.constant 336 : index
    %c0_185 = arith.constant 0 : index
    %345 = vector.load %arg9[%c336_184, %c0_185] : memref<392x384xbf16, #tpu.memory_space<vmem>>, vector<16x384xbf16>
    tpu.vector_store %arg9[%c336_184, %c0_185], %344 {strides = array<i32>} : memref<392x384xbf16, #tpu.memory_space<vmem>>, vector<16x384xbf16>,
    %346 = vector.extract_strided_slice %257 {offsets = [0, 2], sizes = [8, 384], strides = [1, 1]} : vector<8x390xbf16> to vector<8x384xbf16>
    %347 = vector.extract_strided_slice %257 {offsets = [0, 3], sizes = [8, 384], strides = [1, 1]} : vector<8x390xbf16> to vector<8x384xbf16>
    %348 = tpu.concatenate %346, %347 in 0 : vector<8x384xbf16>, vector<8x384xbf16> -> vector<16x384xbf16>
    %c352_186 = arith.constant 352 : index
    %c0_187 = arith.constant 0 : index
    %349 = vector.load %arg9[%c352_186, %c0_187] : memref<392x384xbf16, #tpu.memory_space<vmem>>, vector<16x384xbf16>
    tpu.vector_store %arg9[%c352_186, %c0_187], %348 {strides = array<i32>} : memref<392x384xbf16, #tpu.memory_space<vmem>>, vector<16x384xbf16>,
    %350 = vector.extract_strided_slice %257 {offsets = [0, 4], sizes = [8, 384], strides = [1, 1]} : vector<8x390xbf16> to vector<8x384xbf16>
    %351 = vector.extract_strided_slice %257 {offsets = [0, 5], sizes = [8, 384], strides = [1, 1]} : vector<8x390xbf16> to vector<8x384xbf16>
    %352 = tpu.concatenate %350, %351 in 0 : vector<8x384xbf16>, vector<8x384xbf16> -> vector<16x384xbf16>
    %c368_188 = arith.constant 368 : index
    %c0_189 = arith.constant 0 : index
    %353 = vector.load %arg9[%c368_188, %c0_189] : memref<392x384xbf16, #tpu.memory_space<vmem>>, vector<16x384xbf16>
    tpu.vector_store %arg9[%c368_188, %c0_189], %352 {strides = array<i32>} : memref<392x384xbf16, #tpu.memory_space<vmem>>, vector<16x384xbf16>,
    %354 = vector.extract_strided_slice %257 {offsets = [0, 6], sizes = [8, 384], strides = [1, 1]} : vector<8x390xbf16> to vector<8x384xbf16>
    %c384_190 = arith.constant 384 : index
    %c0_191 = arith.constant 0 : index
    %355 = vector.load %arg9[%c384_190, %c0_191] : memref<392x384xbf16, #tpu.memory_space<vmem>>, vector<8x384xbf16>
    tpu.vector_store %arg9[%c384_190, %c0_191], %354 {strides = array<i32>} : memref<392x384xbf16, #tpu.memory_space<vmem>>, vector<8x384xbf16>,
    %c2 = arith.constant 2 : index
    %c0_192 = arith.constant 0 : index
    %c0_193 = arith.constant 0 : index
    %356 = vector.load %arg2[%c2, %c0_192, %c0_193] : memref<5x8x392xbf16, #tpu.memory_space<vmem>>, vector<1x8x392xbf16>
    %357 = vector.shape_cast %356 : vector<1x8x392xbf16> to vector<8x392xbf16>
    %c0_194 = arith.constant 0 : index
    %c0_195 = arith.constant 0 : index
    %358 = vector.load %arg9[%c0_194, %c0_195] : memref<392x384xbf16, #tpu.memory_space<vmem>>, vector<392x384xbf16>
    %cst_196 = arith.constant dense<0.000000e+00> : vector<8x384xf32>
    %359 = tpu.matmul %357, %358, %cst_196 {dimension_numbers = #tpu.dot_dimension_numbers<[1], [0], [0], [1], [0, 0, 1, 1], [], []>} : vector<8x392xbf16>, vector<392x384xbf16>, vector<8x384xf32> -> vector<8x384xf32>
    %c2_197 = arith.constant 2 : index
    %c0_198 = arith.constant 0 : index
    %c0_199 = arith.constant 0 : index
    %360 = vector.load %arg3[%c2_197, %c0_198, %c0_199] : memref<5x8x1xf32, #tpu.memory_space<vmem>>, vector<1x8x1xf32>
    %361 = vector.shape_cast %360 : vector<1x8x1xf32> to vector<8x1xf32>
    %362 = vector.broadcast %361 : vector<8x1xf32> to vector<8x384xf32>
    %363 = arith.addf %359, %362 : vector<8x384xf32>
    %c2_200 = arith.constant 2 : index
    %364 = memref.load %arg4[%c2_200] : memref<5xf32, #tpu.memory_space<smem>>
    %cst_201 = arith.constant 0.000000e+00 : f32
    %365 = vector.broadcast %cst_201 : f32 to vector<8x384xf32>
    %366 = arith.cmpf oge, %363, %365 : vector<8x384xf32>
    %367 = vector.broadcast %364 : f32 to vector<8x384xf32>
    %368 = arith.mulf %367, %363 : vector<8x384xf32>
    %369 = arith.select %366, %363, %368 : vector<8x384xi1>, vector<8x384xf32>
    %370 = vector.broadcast %4 : vector<1x384xf32> to vector<8x384xf32>
    %371 = arith.mulf %369, %370 : vector<8x384xf32>
    %372 = arith.truncf %371 : vector<8x384xf32> to vector<8x384xbf16>
    %c0_202 = arith.constant 0 : index
    %c128_203 = arith.constant 128 : index
    %373 = vector.load %arg7[%c0_202, %c128_203] : memref<8x587xbf16, #tpu.memory_space<vmem>>, vector<8x384xbf16>
    tpu.vector_store %arg7[%c0_202, %c128_203], %372 {strides = array<i32>} : memref<8x587xbf16, #tpu.memory_space<vmem>>, vector<8x384xbf16>,
    %c0_204 = arith.constant 0 : index
    %c53_205 = arith.constant 53 : index
    %374 = vector.load %arg7[%c0_204, %c53_205] : memref<8x587xbf16, #tpu.memory_space<vmem>>, vector<8x390xbf16>
    %c0_206 = arith.constant 0 : index
    %c77_207 = arith.constant 77 : index
    %375 = vector.load %arg7[%c0_206, %c77_207] : memref<8x587xbf16, #tpu.memory_space<vmem>>, vector<8x390xbf16>
    %c0_208 = arith.constant 0 : index
    %c101_209 = arith.constant 101 : index
    %376 = vector.load %arg7[%c0_208, %c101_209] : memref<8x587xbf16, #tpu.memory_space<vmem>>, vector<8x390xbf16>
    %c0_210 = arith.constant 0 : index
    %c125_211 = arith.constant 125 : index
    %377 = vector.load %arg7[%c0_210, %c125_211] : memref<8x587xbf16, #tpu.memory_space<vmem>>, vector<8x390xbf16>
    %c0_212 = arith.constant 0 : index
    %c149_213 = arith.constant 149 : index
    %378 = vector.load %arg7[%c0_212, %c149_213] : memref<8x587xbf16, #tpu.memory_space<vmem>>, vector<8x390xbf16>
    %c0_214 = arith.constant 0 : index
    %c173_215 = arith.constant 173 : index
    %379 = vector.load %arg7[%c0_214, %c173_215] : memref<8x587xbf16, #tpu.memory_space<vmem>>, vector<8x390xbf16>
    %c0_216 = arith.constant 0 : index
    %c197_217 = arith.constant 197 : index
    %380 = vector.load %arg7[%c0_216, %c197_217] : memref<8x587xbf16, #tpu.memory_space<vmem>>, vector<8x390xbf16>
    %381 = vector.extract_strided_slice %374 {offsets = [0, 0], sizes = [8, 384], strides = [1, 1]} : vector<8x390xbf16> to vector<8x384xbf16>
    %382 = vector.extract_strided_slice %374 {offsets = [0, 1], sizes = [8, 384], strides = [1, 1]} : vector<8x390xbf16> to vector<8x384xbf16>
    %383 = tpu.concatenate %381, %382 in 0 : vector<8x384xbf16>, vector<8x384xbf16> -> vector<16x384xbf16>
    %c0_218 = arith.constant 0 : index
    %c0_219 = arith.constant 0 : index
    %384 = vector.load %arg9[%c0_218, %c0_219] : memref<392x384xbf16, #tpu.memory_space<vmem>>, vector<16x384xbf16>
    tpu.vector_store %arg9[%c0_218, %c0_219], %383 {strides = array<i32>} : memref<392x384xbf16, #tpu.memory_space<vmem>>, vector<16x384xbf16>,
    %385 = vector.extract_strided_slice %374 {offsets = [0, 2], sizes = [8, 384], strides = [1, 1]} : vector<8x390xbf16> to vector<8x384xbf16>
    %386 = vector.extract_strided_slice %374 {offsets = [0, 3], sizes = [8, 384], strides = [1, 1]} : vector<8x390xbf16> to vector<8x384xbf16>
    %387 = tpu.concatenate %385, %386 in 0 : vector<8x384xbf16>, vector<8x384xbf16> -> vector<16x384xbf16>
    %c16_220 = arith.constant 16 : index
    %c0_221 = arith.constant 0 : index
    %388 = vector.load %arg9[%c16_220, %c0_221] : memref<392x384xbf16, #tpu.memory_space<vmem>>, vector<16x384xbf16>
    tpu.vector_store %arg9[%c16_220, %c0_221], %387 {strides = array<i32>} : memref<392x384xbf16, #tpu.memory_space<vmem>>, vector<16x384xbf16>,
    %389 = vector.extract_strided_slice %374 {offsets = [0, 4], sizes = [8, 384], strides = [1, 1]} : vector<8x390xbf16> to vector<8x384xbf16>
    %390 = vector.extract_strided_slice %374 {offsets = [0, 5], sizes = [8, 384], strides = [1, 1]} : vector<8x390xbf16> to vector<8x384xbf16>
    %391 = tpu.concatenate %389, %390 in 0 : vector<8x384xbf16>, vector<8x384xbf16> -> vector<16x384xbf16>
    %c32_222 = arith.constant 32 : index
    %c0_223 = arith.constant 0 : index
    %392 = vector.load %arg9[%c32_222, %c0_223] : memref<392x384xbf16, #tpu.memory_space<vmem>>, vector<16x384xbf16>
    tpu.vector_store %arg9[%c32_222, %c0_223], %391 {strides = array<i32>} : memref<392x384xbf16, #tpu.memory_space<vmem>>, vector<16x384xbf16>,
    %393 = vector.extract_strided_slice %374 {offsets = [0, 6], sizes = [8, 384], strides = [1, 1]} : vector<8x390xbf16> to vector<8x384xbf16>
    %394 = vector.extract_strided_slice %375 {offsets = [0, 0], sizes = [8, 384], strides = [1, 1]} : vector<8x390xbf16> to vector<8x384xbf16>
    %395 = tpu.concatenate %393, %394 in 0 : vector<8x384xbf16>, vector<8x384xbf16> -> vector<16x384xbf16>
    %c48_224 = arith.constant 48 : index
    %c0_225 = arith.constant 0 : index
    %396 = vector.load %arg9[%c48_224, %c0_225] : memref<392x384xbf16, #tpu.memory_space<vmem>>, vector<16x384xbf16>
    tpu.vector_store %arg9[%c48_224, %c0_225], %395 {strides = array<i32>} : memref<392x384xbf16, #tpu.memory_space<vmem>>, vector<16x384xbf16>,
    %397 = vector.extract_strided_slice %375 {offsets = [0, 1], sizes = [8, 384], strides = [1, 1]} : vector<8x390xbf16> to vector<8x384xbf16>
    %398 = vector.extract_strided_slice %375 {offsets = [0, 2], sizes = [8, 384], strides = [1, 1]} : vector<8x390xbf16> to vector<8x384xbf16>
    %399 = tpu.concatenate %397, %398 in 0 : vector<8x384xbf16>, vector<8x384xbf16> -> vector<16x384xbf16>
    %c64_226 = arith.constant 64 : index
    %c0_227 = arith.constant 0 : index
    %400 = vector.load %arg9[%c64_226, %c0_227] : memref<392x384xbf16, #tpu.memory_space<vmem>>, vector<16x384xbf16>
    tpu.vector_store %arg9[%c64_226, %c0_227], %399 {strides = array<i32>} : memref<392x384xbf16, #tpu.memory_space<vmem>>, vector<16x384xbf16>,
    %401 = vector.extract_strided_slice %375 {offsets = [0, 3], sizes = [8, 384], strides = [1, 1]} : vector<8x390xbf16> to vector<8x384xbf16>
    %402 = vector.extract_strided_slice %375 {offsets = [0, 4], sizes = [8, 384], strides = [1, 1]} : vector<8x390xbf16> to vector<8x384xbf16>
    %403 = tpu.concatenate %401, %402 in 0 : vector<8x384xbf16>, vector<8x384xbf16> -> vector<16x384xbf16>
    %c80_228 = arith.constant 80 : index
    %c0_229 = arith.constant 0 : index
    %404 = vector.load %arg9[%c80_228, %c0_229] : memref<392x384xbf16, #tpu.memory_space<vmem>>, vector<16x384xbf16>
    tpu.vector_store %arg9[%c80_228, %c0_229], %403 {strides = array<i32>} : memref<392x384xbf16, #tpu.memory_space<vmem>>, vector<16x384xbf16>,
    %405 = vector.extract_strided_slice %375 {offsets = [0, 5], sizes = [8, 384], strides = [1, 1]} : vector<8x390xbf16> to vector<8x384xbf16>
    %406 = vector.extract_strided_slice %375 {offsets = [0, 6], sizes = [8, 384], strides = [1, 1]} : vector<8x390xbf16> to vector<8x384xbf16>
    %407 = tpu.concatenate %405, %406 in 0 : vector<8x384xbf16>, vector<8x384xbf16> -> vector<16x384xbf16>
    %c96_230 = arith.constant 96 : index
    %c0_231 = arith.constant 0 : index
    %408 = vector.load %arg9[%c96_230, %c0_231] : memref<392x384xbf16, #tpu.memory_space<vmem>>, vector<16x384xbf16>
    tpu.vector_store %arg9[%c96_230, %c0_231], %407 {strides = array<i32>} : memref<392x384xbf16, #tpu.memory_space<vmem>>, vector<16x384xbf16>,
    %409 = vector.extract_strided_slice %376 {offsets = [0, 0], sizes = [8, 384], strides = [1, 1]} : vector<8x390xbf16> to vector<8x384xbf16>
    %410 = vector.extract_strided_slice %376 {offsets = [0, 1], sizes = [8, 384], strides = [1, 1]} : vector<8x390xbf16> to vector<8x384xbf16>
    %411 = tpu.concatenate %409, %410 in 0 : vector<8x384xbf16>, vector<8x384xbf16> -> vector<16x384xbf16>
    %c112_232 = arith.constant 112 : index
    %c0_233 = arith.constant 0 : index
    %412 = vector.load %arg9[%c112_232, %c0_233] : memref<392x384xbf16, #tpu.memory_space<vmem>>, vector<16x384xbf16>
    tpu.vector_store %arg9[%c112_232, %c0_233], %411 {strides = array<i32>} : memref<392x384xbf16, #tpu.memory_space<vmem>>, vector<16x384xbf16>,
    %413 = vector.extract_strided_slice %376 {offsets = [0, 2], sizes = [8, 384], strides = [1, 1]} : vector<8x390xbf16> to vector<8x384xbf16>
    %414 = vector.extract_strided_slice %376 {offsets = [0, 3], sizes = [8, 384], strides = [1, 1]} : vector<8x390xbf16> to vector<8x384xbf16>
    %415 = tpu.concatenate %413, %414 in 0 : vector<8x384xbf16>, vector<8x384xbf16> -> vector<16x384xbf16>
    %c128_234 = arith.constant 128 : index
    %c0_235 = arith.constant 0 : index
    %416 = vector.load %arg9[%c128_234, %c0_235] : memref<392x384xbf16, #tpu.memory_space<vmem>>, vector<16x384xbf16>
    tpu.vector_store %arg9[%c128_234, %c0_235], %415 {strides = array<i32>} : memref<392x384xbf16, #tpu.memory_space<vmem>>, vector<16x384xbf16>,
    %417 = vector.extract_strided_slice %376 {offsets = [0, 4], sizes = [8, 384], strides = [1, 1]} : vector<8x390xbf16> to vector<8x384xbf16>
    %418 = vector.extract_strided_slice %376 {offsets = [0, 5], sizes = [8, 384], strides = [1, 1]} : vector<8x390xbf16> to vector<8x384xbf16>
    %419 = tpu.concatenate %417, %418 in 0 : vector<8x384xbf16>, vector<8x384xbf16> -> vector<16x384xbf16>
    %c144_236 = arith.constant 144 : index
    %c0_237 = arith.constant 0 : index
    %420 = vector.load %arg9[%c144_236, %c0_237] : memref<392x384xbf16, #tpu.memory_space<vmem>>, vector<16x384xbf16>
    tpu.vector_store %arg9[%c144_236, %c0_237], %419 {strides = array<i32>} : memref<392x384xbf16, #tpu.memory_space<vmem>>, vector<16x384xbf16>,
    %421 = vector.extract_strided_slice %376 {offsets = [0, 6], sizes = [8, 384], strides = [1, 1]} : vector<8x390xbf16> to vector<8x384xbf16>
    %422 = vector.extract_strided_slice %377 {offsets = [0, 0], sizes = [8, 384], strides = [1, 1]} : vector<8x390xbf16> to vector<8x384xbf16>
    %423 = tpu.concatenate %421, %422 in 0 : vector<8x384xbf16>, vector<8x384xbf16> -> vector<16x384xbf16>
    %c160_238 = arith.constant 160 : index
    %c0_239 = arith.constant 0 : index
    %424 = vector.load %arg9[%c160_238, %c0_239] : memref<392x384xbf16, #tpu.memory_space<vmem>>, vector<16x384xbf16>
    tpu.vector_store %arg9[%c160_238, %c0_239], %423 {strides = array<i32>} : memref<392x384xbf16, #tpu.memory_space<vmem>>, vector<16x384xbf16>,
    %425 = vector.extract_strided_slice %377 {offsets = [0, 1], sizes = [8, 384], strides = [1, 1]} : vector<8x390xbf16> to vector<8x384xbf16>
    %426 = vector.extract_strided_slice %377 {offsets = [0, 2], sizes = [8, 384], strides = [1, 1]} : vector<8x390xbf16> to vector<8x384xbf16>
    %427 = tpu.concatenate %425, %426 in 0 : vector<8x384xbf16>, vector<8x384xbf16> -> vector<16x384xbf16>
    %c176_240 = arith.constant 176 : index
    %c0_241 = arith.constant 0 : index
    %428 = vector.load %arg9[%c176_240, %c0_241] : memref<392x384xbf16, #tpu.memory_space<vmem>>, vector<16x384xbf16>
    tpu.vector_store %arg9[%c176_240, %c0_241], %427 {strides = array<i32>} : memref<392x384xbf16, #tpu.memory_space<vmem>>, vector<16x384xbf16>,
    %429 = vector.extract_strided_slice %377 {offsets = [0, 3], sizes = [8, 384], strides = [1, 1]} : vector<8x390xbf16> to vector<8x384xbf16>
    %430 = vector.extract_strided_slice %377 {offsets = [0, 4], sizes = [8, 384], strides = [1, 1]} : vector<8x390xbf16> to vector<8x384xbf16>
    %431 = tpu.concatenate %429, %430 in 0 : vector<8x384xbf16>, vector<8x384xbf16> -> vector<16x384xbf16>
    %c192_242 = arith.constant 192 : index
    %c0_243 = arith.constant 0 : index
    %432 = vector.load %arg9[%c192_242, %c0_243] : memref<392x384xbf16, #tpu.memory_space<vmem>>, vector<16x384xbf16>
    tpu.vector_store %arg9[%c192_242, %c0_243], %431 {strides = array<i32>} : memref<392x384xbf16, #tpu.memory_space<vmem>>, vector<16x384xbf16>,
    %433 = vector.extract_strided_slice %377 {offsets = [0, 5], sizes = [8, 384], strides = [1, 1]} : vector<8x390xbf16> to vector<8x384xbf16>
    %434 = vector.extract_strided_slice %377 {offsets = [0, 6], sizes = [8, 384], strides = [1, 1]} : vector<8x390xbf16> to vector<8x384xbf16>
    %435 = tpu.concatenate %433, %434 in 0 : vector<8x384xbf16>, vector<8x384xbf16> -> vector<16x384xbf16>
    %c208_244 = arith.constant 208 : index
    %c0_245 = arith.constant 0 : index
    %436 = vector.load %arg9[%c208_244, %c0_245] : memref<392x384xbf16, #tpu.memory_space<vmem>>, vector<16x384xbf16>
    tpu.vector_store %arg9[%c208_244, %c0_245], %435 {strides = array<i32>} : memref<392x384xbf16, #tpu.memory_space<vmem>>, vector<16x384xbf16>,
    %437 = vector.extract_strided_slice %378 {offsets = [0, 0], sizes = [8, 384], strides = [1, 1]} : vector<8x390xbf16> to vector<8x384xbf16>
    %438 = vector.extract_strided_slice %378 {offsets = [0, 1], sizes = [8, 384], strides = [1, 1]} : vector<8x390xbf16> to vector<8x384xbf16>
    %439 = tpu.concatenate %437, %438 in 0 : vector<8x384xbf16>, vector<8x384xbf16> -> vector<16x384xbf16>
    %c224_246 = arith.constant 224 : index
    %c0_247 = arith.constant 0 : index
    %440 = vector.load %arg9[%c224_246, %c0_247] : memref<392x384xbf16, #tpu.memory_space<vmem>>, vector<16x384xbf16>
    tpu.vector_store %arg9[%c224_246, %c0_247], %439 {strides = array<i32>} : memref<392x384xbf16, #tpu.memory_space<vmem>>, vector<16x384xbf16>,
    %441 = vector.extract_strided_slice %378 {offsets = [0, 2], sizes = [8, 384], strides = [1, 1]} : vector<8x390xbf16> to vector<8x384xbf16>
    %442 = vector.extract_strided_slice %378 {offsets = [0, 3], sizes = [8, 384], strides = [1, 1]} : vector<8x390xbf16> to vector<8x384xbf16>
    %443 = tpu.concatenate %441, %442 in 0 : vector<8x384xbf16>, vector<8x384xbf16> -> vector<16x384xbf16>
    %c240_248 = arith.constant 240 : index
    %c0_249 = arith.constant 0 : index
    %444 = vector.load %arg9[%c240_248, %c0_249] : memref<392x384xbf16, #tpu.memory_space<vmem>>, vector<16x384xbf16>
    tpu.vector_store %arg9[%c240_248, %c0_249], %443 {strides = array<i32>} : memref<392x384xbf16, #tpu.memory_space<vmem>>, vector<16x384xbf16>,
    %445 = vector.extract_strided_slice %378 {offsets = [0, 4], sizes = [8, 384], strides = [1, 1]} : vector<8x390xbf16> to vector<8x384xbf16>
    %446 = vector.extract_strided_slice %378 {offsets = [0, 5], sizes = [8, 384], strides = [1, 1]} : vector<8x390xbf16> to vector<8x384xbf16>
    %447 = tpu.concatenate %445, %446 in 0 : vector<8x384xbf16>, vector<8x384xbf16> -> vector<16x384xbf16>
    %c256_250 = arith.constant 256 : index
    %c0_251 = arith.constant 0 : index
    %448 = vector.load %arg9[%c256_250, %c0_251] : memref<392x384xbf16, #tpu.memory_space<vmem>>, vector<16x384xbf16>
    tpu.vector_store %arg9[%c256_250, %c0_251], %447 {strides = array<i32>} : memref<392x384xbf16, #tpu.memory_space<vmem>>, vector<16x384xbf16>,
    %449 = vector.extract_strided_slice %378 {offsets = [0, 6], sizes = [8, 384], strides = [1, 1]} : vector<8x390xbf16> to vector<8x384xbf16>
    %450 = vector.extract_strided_slice %379 {offsets = [0, 0], sizes = [8, 384], strides = [1, 1]} : vector<8x390xbf16> to vector<8x384xbf16>
    %451 = tpu.concatenate %449, %450 in 0 : vector<8x384xbf16>, vector<8x384xbf16> -> vector<16x384xbf16>
    %c272_252 = arith.constant 272 : index
    %c0_253 = arith.constant 0 : index
    %452 = vector.load %arg9[%c272_252, %c0_253] : memref<392x384xbf16, #tpu.memory_space<vmem>>, vector<16x384xbf16>
    tpu.vector_store %arg9[%c272_252, %c0_253], %451 {strides = array<i32>} : memref<392x384xbf16, #tpu.memory_space<vmem>>, vector<16x384xbf16>,
    %453 = vector.extract_strided_slice %379 {offsets = [0, 1], sizes = [8, 384], strides = [1, 1]} : vector<8x390xbf16> to vector<8x384xbf16>
    %454 = vector.extract_strided_slice %379 {offsets = [0, 2], sizes = [8, 384], strides = [1, 1]} : vector<8x390xbf16> to vector<8x384xbf16>
    %455 = tpu.concatenate %453, %454 in 0 : vector<8x384xbf16>, vector<8x384xbf16> -> vector<16x384xbf16>
    %c288_254 = arith.constant 288 : index
    %c0_255 = arith.constant 0 : index
    %456 = vector.load %arg9[%c288_254, %c0_255] : memref<392x384xbf16, #tpu.memory_space<vmem>>, vector<16x384xbf16>
    tpu.vector_store %arg9[%c288_254, %c0_255], %455 {strides = array<i32>} : memref<392x384xbf16, #tpu.memory_space<vmem>>, vector<16x384xbf16>,
    %457 = vector.extract_strided_slice %379 {offsets = [0, 3], sizes = [8, 384], strides = [1, 1]} : vector<8x390xbf16> to vector<8x384xbf16>
    %458 = vector.extract_strided_slice %379 {offsets = [0, 4], sizes = [8, 384], strides = [1, 1]} : vector<8x390xbf16> to vector<8x384xbf16>
    %459 = tpu.concatenate %457, %458 in 0 : vector<8x384xbf16>, vector<8x384xbf16> -> vector<16x384xbf16>
    %c304_256 = arith.constant 304 : index
    %c0_257 = arith.constant 0 : index
    %460 = vector.load %arg9[%c304_256, %c0_257] : memref<392x384xbf16, #tpu.memory_space<vmem>>, vector<16x384xbf16>
    tpu.vector_store %arg9[%c304_256, %c0_257], %459 {strides = array<i32>} : memref<392x384xbf16, #tpu.memory_space<vmem>>, vector<16x384xbf16>,
    %461 = vector.extract_strided_slice %379 {offsets = [0, 5], sizes = [8, 384], strides = [1, 1]} : vector<8x390xbf16> to vector<8x384xbf16>
    %462 = vector.extract_strided_slice %379 {offsets = [0, 6], sizes = [8, 384], strides = [1, 1]} : vector<8x390xbf16> to vector<8x384xbf16>
    %463 = tpu.concatenate %461, %462 in 0 : vector<8x384xbf16>, vector<8x384xbf16> -> vector<16x384xbf16>
    %c320_258 = arith.constant 320 : index
    %c0_259 = arith.constant 0 : index
    %464 = vector.load %arg9[%c320_258, %c0_259] : memref<392x384xbf16, #tpu.memory_space<vmem>>, vector<16x384xbf16>
    tpu.vector_store %arg9[%c320_258, %c0_259], %463 {strides = array<i32>} : memref<392x384xbf16, #tpu.memory_space<vmem>>, vector<16x384xbf16>,
    %465 = vector.extract_strided_slice %380 {offsets = [0, 0], sizes = [8, 384], strides = [1, 1]} : vector<8x390xbf16> to vector<8x384xbf16>
    %466 = vector.extract_strided_slice %380 {offsets = [0, 1], sizes = [8, 384], strides = [1, 1]} : vector<8x390xbf16> to vector<8x384xbf16>
    %467 = tpu.concatenate %465, %466 in 0 : vector<8x384xbf16>, vector<8x384xbf16> -> vector<16x384xbf16>
    %c336_260 = arith.constant 336 : index
    %c0_261 = arith.constant 0 : index
    %468 = vector.load %arg9[%c336_260, %c0_261] : memref<392x384xbf16, #tpu.memory_space<vmem>>, vector<16x384xbf16>
    tpu.vector_store %arg9[%c336_260, %c0_261], %467 {strides = array<i32>} : memref<392x384xbf16, #tpu.memory_space<vmem>>, vector<16x384xbf16>,
    %469 = vector.extract_strided_slice %380 {offsets = [0, 2], sizes = [8, 384], strides = [1, 1]} : vector<8x390xbf16> to vector<8x384xbf16>
    %470 = vector.extract_strided_slice %380 {offsets = [0, 3], sizes = [8, 384], strides = [1, 1]} : vector<8x390xbf16> to vector<8x384xbf16>
    %471 = tpu.concatenate %469, %470 in 0 : vector<8x384xbf16>, vector<8x384xbf16> -> vector<16x384xbf16>
    %c352_262 = arith.constant 352 : index
    %c0_263 = arith.constant 0 : index
    %472 = vector.load %arg9[%c352_262, %c0_263] : memref<392x384xbf16, #tpu.memory_space<vmem>>, vector<16x384xbf16>
    tpu.vector_store %arg9[%c352_262, %c0_263], %471 {strides = array<i32>} : memref<392x384xbf16, #tpu.memory_space<vmem>>, vector<16x384xbf16>,
    %473 = vector.extract_strided_slice %380 {offsets = [0, 4], sizes = [8, 384], strides = [1, 1]} : vector<8x390xbf16> to vector<8x384xbf16>
    %474 = vector.extract_strided_slice %380 {offsets = [0, 5], sizes = [8, 384], strides = [1, 1]} : vector<8x390xbf16> to vector<8x384xbf16>
    %475 = tpu.concatenate %473, %474 in 0 : vector<8x384xbf16>, vector<8x384xbf16> -> vector<16x384xbf16>
    %c368_264 = arith.constant 368 : index
    %c0_265 = arith.constant 0 : index
    %476 = vector.load %arg9[%c368_264, %c0_265] : memref<392x384xbf16, #tpu.memory_space<vmem>>, vector<16x384xbf16>
    tpu.vector_store %arg9[%c368_264, %c0_265], %475 {strides = array<i32>} : memref<392x384xbf16, #tpu.memory_space<vmem>>, vector<16x384xbf16>,
    %477 = vector.extract_strided_slice %380 {offsets = [0, 6], sizes = [8, 384], strides = [1, 1]} : vector<8x390xbf16> to vector<8x384xbf16>
    %c384_266 = arith.constant 384 : index
    %c0_267 = arith.constant 0 : index
    %478 = vector.load %arg9[%c384_266, %c0_267] : memref<392x384xbf16, #tpu.memory_space<vmem>>, vector<8x384xbf16>
    tpu.vector_store %arg9[%c384_266, %c0_267], %477 {strides = array<i32>} : memref<392x384xbf16, #tpu.memory_space<vmem>>, vector<8x384xbf16>,
    %c3 = arith.constant 3 : index
    %c0_268 = arith.constant 0 : index
    %c0_269 = arith.constant 0 : index
    %479 = vector.load %arg2[%c3, %c0_268, %c0_269] : memref<5x8x392xbf16, #tpu.memory_space<vmem>>, vector<1x8x392xbf16>
    %480 = vector.shape_cast %479 : vector<1x8x392xbf16> to vector<8x392xbf16>
    %c0_270 = arith.constant 0 : index
    %c0_271 = arith.constant 0 : index
    %481 = vector.load %arg9[%c0_270, %c0_271] : memref<392x384xbf16, #tpu.memory_space<vmem>>, vector<392x384xbf16>
    %cst_272 = arith.constant dense<0.000000e+00> : vector<8x384xf32>
    %482 = tpu.matmul %480, %481, %cst_272 {dimension_numbers = #tpu.dot_dimension_numbers<[1], [0], [0], [1], [0, 0, 1, 1], [], []>} : vector<8x392xbf16>, vector<392x384xbf16>, vector<8x384xf32> -> vector<8x384xf32>
    %c3_273 = arith.constant 3 : index
    %c0_274 = arith.constant 0 : index
    %c0_275 = arith.constant 0 : index
    %483 = vector.load %arg3[%c3_273, %c0_274, %c0_275] : memref<5x8x1xf32, #tpu.memory_space<vmem>>, vector<1x8x1xf32>
    %484 = vector.shape_cast %483 : vector<1x8x1xf32> to vector<8x1xf32>
    %485 = vector.broadcast %484 : vector<8x1xf32> to vector<8x384xf32>
    %486 = arith.addf %482, %485 : vector<8x384xf32>
    %c3_276 = arith.constant 3 : index
    %487 = memref.load %arg4[%c3_276] : memref<5xf32, #tpu.memory_space<smem>>
    %cst_277 = arith.constant 0.000000e+00 : f32
    %488 = vector.broadcast %cst_277 : f32 to vector<8x384xf32>
    %489 = arith.cmpf oge, %486, %488 : vector<8x384xf32>
    %490 = vector.broadcast %487 : f32 to vector<8x384xf32>
    %491 = arith.mulf %490, %486 : vector<8x384xf32>
    %492 = arith.select %489, %486, %491 : vector<8x384xi1>, vector<8x384xf32>
    %493 = vector.broadcast %4 : vector<1x384xf32> to vector<8x384xf32>
    %494 = arith.mulf %492, %493 : vector<8x384xf32>
    %495 = arith.truncf %494 : vector<8x384xf32> to vector<8x384xbf16>
    %c0_278 = arith.constant 0 : index
    %c128_279 = arith.constant 128 : index
    %496 = vector.load %arg8[%c0_278, %c128_279] : memref<8x587xbf16, #tpu.memory_space<vmem>>, vector<8x384xbf16>
    tpu.vector_store %arg8[%c0_278, %c128_279], %495 {strides = array<i32>} : memref<8x587xbf16, #tpu.memory_space<vmem>>, vector<8x384xbf16>,
    %c0_280 = arith.constant 0 : index
    %c53_281 = arith.constant 53 : index
    %497 = vector.load %arg8[%c0_280, %c53_281] : memref<8x587xbf16, #tpu.memory_space<vmem>>, vector<8x390xbf16>
    %c0_282 = arith.constant 0 : index
    %c77_283 = arith.constant 77 : index
    %498 = vector.load %arg8[%c0_282, %c77_283] : memref<8x587xbf16, #tpu.memory_space<vmem>>, vector<8x390xbf16>
    %c0_284 = arith.constant 0 : index
    %c101_285 = arith.constant 101 : index
    %499 = vector.load %arg8[%c0_284, %c101_285] : memref<8x587xbf16, #tpu.memory_space<vmem>>, vector<8x390xbf16>
    %c0_286 = arith.constant 0 : index
    %c125_287 = arith.constant 125 : index
    %500 = vector.load %arg8[%c0_286, %c125_287] : memref<8x587xbf16, #tpu.memory_space<vmem>>, vector<8x390xbf16>
    %c0_288 = arith.constant 0 : index
    %c149_289 = arith.constant 149 : index
    %501 = vector.load %arg8[%c0_288, %c149_289] : memref<8x587xbf16, #tpu.memory_space<vmem>>, vector<8x390xbf16>
    %c0_290 = arith.constant 0 : index
    %c173_291 = arith.constant 173 : index
    %502 = vector.load %arg8[%c0_290, %c173_291] : memref<8x587xbf16, #tpu.memory_space<vmem>>, vector<8x390xbf16>
    %c0_292 = arith.constant 0 : index
    %c197_293 = arith.constant 197 : index
    %503 = vector.load %arg8[%c0_292, %c197_293] : memref<8x587xbf16, #tpu.memory_space<vmem>>, vector<8x390xbf16>
    %504 = vector.extract_strided_slice %497 {offsets = [0, 0], sizes = [8, 384], strides = [1, 1]} : vector<8x390xbf16> to vector<8x384xbf16>
    %505 = vector.extract_strided_slice %497 {offsets = [0, 1], sizes = [8, 384], strides = [1, 1]} : vector<8x390xbf16> to vector<8x384xbf16>
    %506 = tpu.concatenate %504, %505 in 0 : vector<8x384xbf16>, vector<8x384xbf16> -> vector<16x384xbf16>
    %c0_294 = arith.constant 0 : index
    %c0_295 = arith.constant 0 : index
    %507 = vector.load %arg9[%c0_294, %c0_295] : memref<392x384xbf16, #tpu.memory_space<vmem>>, vector<16x384xbf16>
    tpu.vector_store %arg9[%c0_294, %c0_295], %506 {strides = array<i32>} : memref<392x384xbf16, #tpu.memory_space<vmem>>, vector<16x384xbf16>,
    %508 = vector.extract_strided_slice %497 {offsets = [0, 2], sizes = [8, 384], strides = [1, 1]} : vector<8x390xbf16> to vector<8x384xbf16>
    %509 = vector.extract_strided_slice %497 {offsets = [0, 3], sizes = [8, 384], strides = [1, 1]} : vector<8x390xbf16> to vector<8x384xbf16>
    %510 = tpu.concatenate %508, %509 in 0 : vector<8x384xbf16>, vector<8x384xbf16> -> vector<16x384xbf16>
    %c16_296 = arith.constant 16 : index
    %c0_297 = arith.constant 0 : index
    %511 = vector.load %arg9[%c16_296, %c0_297] : memref<392x384xbf16, #tpu.memory_space<vmem>>, vector<16x384xbf16>
    tpu.vector_store %arg9[%c16_296, %c0_297], %510 {strides = array<i32>} : memref<392x384xbf16, #tpu.memory_space<vmem>>, vector<16x384xbf16>,
    %512 = vector.extract_strided_slice %497 {offsets = [0, 4], sizes = [8, 384], strides = [1, 1]} : vector<8x390xbf16> to vector<8x384xbf16>
    %513 = vector.extract_strided_slice %497 {offsets = [0, 5], sizes = [8, 384], strides = [1, 1]} : vector<8x390xbf16> to vector<8x384xbf16>
    %514 = tpu.concatenate %512, %513 in 0 : vector<8x384xbf16>, vector<8x384xbf16> -> vector<16x384xbf16>
    %c32_298 = arith.constant 32 : index
    %c0_299 = arith.constant 0 : index
    %515 = vector.load %arg9[%c32_298, %c0_299] : memref<392x384xbf16, #tpu.memory_space<vmem>>, vector<16x384xbf16>
    tpu.vector_store %arg9[%c32_298, %c0_299], %514 {strides = array<i32>} : memref<392x384xbf16, #tpu.memory_space<vmem>>, vector<16x384xbf16>,
    %516 = vector.extract_strided_slice %497 {offsets = [0, 6], sizes = [8, 384], strides = [1, 1]} : vector<8x390xbf16> to vector<8x384xbf16>
    %517 = vector.extract_strided_slice %498 {offsets = [0, 0], sizes = [8, 384], strides = [1, 1]} : vector<8x390xbf16> to vector<8x384xbf16>
    %518 = tpu.concatenate %516, %517 in 0 : vector<8x384xbf16>, vector<8x384xbf16> -> vector<16x384xbf16>
    %c48_300 = arith.constant 48 : index
    %c0_301 = arith.constant 0 : index
    %519 = vector.load %arg9[%c48_300, %c0_301] : memref<392x384xbf16, #tpu.memory_space<vmem>>, vector<16x384xbf16>
    tpu.vector_store %arg9[%c48_300, %c0_301], %518 {strides = array<i32>} : memref<392x384xbf16, #tpu.memory_space<vmem>>, vector<16x384xbf16>,
    %520 = vector.extract_strided_slice %498 {offsets = [0, 1], sizes = [8, 384], strides = [1, 1]} : vector<8x390xbf16> to vector<8x384xbf16>
    %521 = vector.extract_strided_slice %498 {offsets = [0, 2], sizes = [8, 384], strides = [1, 1]} : vector<8x390xbf16> to vector<8x384xbf16>
    %522 = tpu.concatenate %520, %521 in 0 : vector<8x384xbf16>, vector<8x384xbf16> -> vector<16x384xbf16>
    %c64_302 = arith.constant 64 : index
    %c0_303 = arith.constant 0 : index
    %523 = vector.load %arg9[%c64_302, %c0_303] : memref<392x384xbf16, #tpu.memory_space<vmem>>, vector<16x384xbf16>
    tpu.vector_store %arg9[%c64_302, %c0_303], %522 {strides = array<i32>} : memref<392x384xbf16, #tpu.memory_space<vmem>>, vector<16x384xbf16>,
    %524 = vector.extract_strided_slice %498 {offsets = [0, 3], sizes = [8, 384], strides = [1, 1]} : vector<8x390xbf16> to vector<8x384xbf16>
    %525 = vector.extract_strided_slice %498 {offsets = [0, 4], sizes = [8, 384], strides = [1, 1]} : vector<8x390xbf16> to vector<8x384xbf16>
    %526 = tpu.concatenate %524, %525 in 0 : vector<8x384xbf16>, vector<8x384xbf16> -> vector<16x384xbf16>
    %c80_304 = arith.constant 80 : index
    %c0_305 = arith.constant 0 : index
    %527 = vector.load %arg9[%c80_304, %c0_305] : memref<392x384xbf16, #tpu.memory_space<vmem>>, vector<16x384xbf16>
    tpu.vector_store %arg9[%c80_304, %c0_305], %526 {strides = array<i32>} : memref<392x384xbf16, #tpu.memory_space<vmem>>, vector<16x384xbf16>,
    %528 = vector.extract_strided_slice %498 {offsets = [0, 5], sizes = [8, 384], strides = [1, 1]} : vector<8x390xbf16> to vector<8x384xbf16>
    %529 = vector.extract_strided_slice %498 {offsets = [0, 6], sizes = [8, 384], strides = [1, 1]} : vector<8x390xbf16> to vector<8x384xbf16>
    %530 = tpu.concatenate %528, %529 in 0 : vector<8x384xbf16>, vector<8x384xbf16> -> vector<16x384xbf16>
    %c96_306 = arith.constant 96 : index
    %c0_307 = arith.constant 0 : index
    %531 = vector.load %arg9[%c96_306, %c0_307] : memref<392x384xbf16, #tpu.memory_space<vmem>>, vector<16x384xbf16>
    tpu.vector_store %arg9[%c96_306, %c0_307], %530 {strides = array<i32>} : memref<392x384xbf16, #tpu.memory_space<vmem>>, vector<16x384xbf16>,
    %532 = vector.extract_strided_slice %499 {offsets = [0, 0], sizes = [8, 384], strides = [1, 1]} : vector<8x390xbf16> to vector<8x384xbf16>
    %533 = vector.extract_strided_slice %499 {offsets = [0, 1], sizes = [8, 384], strides = [1, 1]} : vector<8x390xbf16> to vector<8x384xbf16>
    %534 = tpu.concatenate %532, %533 in 0 : vector<8x384xbf16>, vector<8x384xbf16> -> vector<16x384xbf16>
    %c112_308 = arith.constant 112 : index
    %c0_309 = arith.constant 0 : index
    %535 = vector.load %arg9[%c112_308, %c0_309] : memref<392x384xbf16, #tpu.memory_space<vmem>>, vector<16x384xbf16>
    tpu.vector_store %arg9[%c112_308, %c0_309], %534 {strides = array<i32>} : memref<392x384xbf16, #tpu.memory_space<vmem>>, vector<16x384xbf16>,
    %536 = vector.extract_strided_slice %499 {offsets = [0, 2], sizes = [8, 384], strides = [1, 1]} : vector<8x390xbf16> to vector<8x384xbf16>
    %537 = vector.extract_strided_slice %499 {offsets = [0, 3], sizes = [8, 384], strides = [1, 1]} : vector<8x390xbf16> to vector<8x384xbf16>
    %538 = tpu.concatenate %536, %537 in 0 : vector<8x384xbf16>, vector<8x384xbf16> -> vector<16x384xbf16>
    %c128_310 = arith.constant 128 : index
    %c0_311 = arith.constant 0 : index
    %539 = vector.load %arg9[%c128_310, %c0_311] : memref<392x384xbf16, #tpu.memory_space<vmem>>, vector<16x384xbf16>
    tpu.vector_store %arg9[%c128_310, %c0_311], %538 {strides = array<i32>} : memref<392x384xbf16, #tpu.memory_space<vmem>>, vector<16x384xbf16>,
    %540 = vector.extract_strided_slice %499 {offsets = [0, 4], sizes = [8, 384], strides = [1, 1]} : vector<8x390xbf16> to vector<8x384xbf16>
    %541 = vector.extract_strided_slice %499 {offsets = [0, 5], sizes = [8, 384], strides = [1, 1]} : vector<8x390xbf16> to vector<8x384xbf16>
    %542 = tpu.concatenate %540, %541 in 0 : vector<8x384xbf16>, vector<8x384xbf16> -> vector<16x384xbf16>
    %c144_312 = arith.constant 144 : index
    %c0_313 = arith.constant 0 : index
    %543 = vector.load %arg9[%c144_312, %c0_313] : memref<392x384xbf16, #tpu.memory_space<vmem>>, vector<16x384xbf16>
    tpu.vector_store %arg9[%c144_312, %c0_313], %542 {strides = array<i32>} : memref<392x384xbf16, #tpu.memory_space<vmem>>, vector<16x384xbf16>,
    %544 = vector.extract_strided_slice %499 {offsets = [0, 6], sizes = [8, 384], strides = [1, 1]} : vector<8x390xbf16> to vector<8x384xbf16>
    %545 = vector.extract_strided_slice %500 {offsets = [0, 0], sizes = [8, 384], strides = [1, 1]} : vector<8x390xbf16> to vector<8x384xbf16>
    %546 = tpu.concatenate %544, %545 in 0 : vector<8x384xbf16>, vector<8x384xbf16> -> vector<16x384xbf16>
    %c160_314 = arith.constant 160 : index
    %c0_315 = arith.constant 0 : index
    %547 = vector.load %arg9[%c160_314, %c0_315] : memref<392x384xbf16, #tpu.memory_space<vmem>>, vector<16x384xbf16>
    tpu.vector_store %arg9[%c160_314, %c0_315], %546 {strides = array<i32>} : memref<392x384xbf16, #tpu.memory_space<vmem>>, vector<16x384xbf16>,
    %548 = vector.extract_strided_slice %500 {offsets = [0, 1], sizes = [8, 384], strides = [1, 1]} : vector<8x390xbf16> to vector<8x384xbf16>
    %549 = vector.extract_strided_slice %500 {offsets = [0, 2], sizes = [8, 384], strides = [1, 1]} : vector<8x390xbf16> to vector<8x384xbf16>
    %550 = tpu.concatenate %548, %549 in 0 : vector<8x384xbf16>, vector<8x384xbf16> -> vector<16x384xbf16>
    %c176_316 = arith.constant 176 : index
    %c0_317 = arith.constant 0 : index
    %551 = vector.load %arg9[%c176_316, %c0_317] : memref<392x384xbf16, #tpu.memory_space<vmem>>, vector<16x384xbf16>
    tpu.vector_store %arg9[%c176_316, %c0_317], %550 {strides = array<i32>} : memref<392x384xbf16, #tpu.memory_space<vmem>>, vector<16x384xbf16>,
    %552 = vector.extract_strided_slice %500 {offsets = [0, 3], sizes = [8, 384], strides = [1, 1]} : vector<8x390xbf16> to vector<8x384xbf16>
    %553 = vector.extract_strided_slice %500 {offsets = [0, 4], sizes = [8, 384], strides = [1, 1]} : vector<8x390xbf16> to vector<8x384xbf16>
    %554 = tpu.concatenate %552, %553 in 0 : vector<8x384xbf16>, vector<8x384xbf16> -> vector<16x384xbf16>
    %c192_318 = arith.constant 192 : index
    %c0_319 = arith.constant 0 : index
    %555 = vector.load %arg9[%c192_318, %c0_319] : memref<392x384xbf16, #tpu.memory_space<vmem>>, vector<16x384xbf16>
    tpu.vector_store %arg9[%c192_318, %c0_319], %554 {strides = array<i32>} : memref<392x384xbf16, #tpu.memory_space<vmem>>, vector<16x384xbf16>,
    %556 = vector.extract_strided_slice %500 {offsets = [0, 5], sizes = [8, 384], strides = [1, 1]} : vector<8x390xbf16> to vector<8x384xbf16>
    %557 = vector.extract_strided_slice %500 {offsets = [0, 6], sizes = [8, 384], strides = [1, 1]} : vector<8x390xbf16> to vector<8x384xbf16>
    %558 = tpu.concatenate %556, %557 in 0 : vector<8x384xbf16>, vector<8x384xbf16> -> vector<16x384xbf16>
    %c208_320 = arith.constant 208 : index
    %c0_321 = arith.constant 0 : index
    %559 = vector.load %arg9[%c208_320, %c0_321] : memref<392x384xbf16, #tpu.memory_space<vmem>>, vector<16x384xbf16>
    tpu.vector_store %arg9[%c208_320, %c0_321], %558 {strides = array<i32>} : memref<392x384xbf16, #tpu.memory_space<vmem>>, vector<16x384xbf16>,
    %560 = vector.extract_strided_slice %501 {offsets = [0, 0], sizes = [8, 384], strides = [1, 1]} : vector<8x390xbf16> to vector<8x384xbf16>
    %561 = vector.extract_strided_slice %501 {offsets = [0, 1], sizes = [8, 384], strides = [1, 1]} : vector<8x390xbf16> to vector<8x384xbf16>
    %562 = tpu.concatenate %560, %561 in 0 : vector<8x384xbf16>, vector<8x384xbf16> -> vector<16x384xbf16>
    %c224_322 = arith.constant 224 : index
    %c0_323 = arith.constant 0 : index
    %563 = vector.load %arg9[%c224_322, %c0_323] : memref<392x384xbf16, #tpu.memory_space<vmem>>, vector<16x384xbf16>
    tpu.vector_store %arg9[%c224_322, %c0_323], %562 {strides = array<i32>} : memref<392x384xbf16, #tpu.memory_space<vmem>>, vector<16x384xbf16>,
    %564 = vector.extract_strided_slice %501 {offsets = [0, 2], sizes = [8, 384], strides = [1, 1]} : vector<8x390xbf16> to vector<8x384xbf16>
    %565 = vector.extract_strided_slice %501 {offsets = [0, 3], sizes = [8, 384], strides = [1, 1]} : vector<8x390xbf16> to vector<8x384xbf16>
    %566 = tpu.concatenate %564, %565 in 0 : vector<8x384xbf16>, vector<8x384xbf16> -> vector<16x384xbf16>
    %c240_324 = arith.constant 240 : index
    %c0_325 = arith.constant 0 : index
    %567 = vector.load %arg9[%c240_324, %c0_325] : memref<392x384xbf16, #tpu.memory_space<vmem>>, vector<16x384xbf16>
    tpu.vector_store %arg9[%c240_324, %c0_325], %566 {strides = array<i32>} : memref<392x384xbf16, #tpu.memory_space<vmem>>, vector<16x384xbf16>,
    %568 = vector.extract_strided_slice %501 {offsets = [0, 4], sizes = [8, 384], strides = [1, 1]} : vector<8x390xbf16> to vector<8x384xbf16>
    %569 = vector.extract_strided_slice %501 {offsets = [0, 5], sizes = [8, 384], strides = [1, 1]} : vector<8x390xbf16> to vector<8x384xbf16>
    %570 = tpu.concatenate %568, %569 in 0 : vector<8x384xbf16>, vector<8x384xbf16> -> vector<16x384xbf16>
    %c256_326 = arith.constant 256 : index
    %c0_327 = arith.constant 0 : index
    %571 = vector.load %arg9[%c256_326, %c0_327] : memref<392x384xbf16, #tpu.memory_space<vmem>>, vector<16x384xbf16>
    tpu.vector_store %arg9[%c256_326, %c0_327], %570 {strides = array<i32>} : memref<392x384xbf16, #tpu.memory_space<vmem>>, vector<16x384xbf16>,
    %572 = vector.extract_strided_slice %501 {offsets = [0, 6], sizes = [8, 384], strides = [1, 1]} : vector<8x390xbf16> to vector<8x384xbf16>
    %573 = vector.extract_strided_slice %502 {offsets = [0, 0], sizes = [8, 384], strides = [1, 1]} : vector<8x390xbf16> to vector<8x384xbf16>
    %574 = tpu.concatenate %572, %573 in 0 : vector<8x384xbf16>, vector<8x384xbf16> -> vector<16x384xbf16>
    %c272_328 = arith.constant 272 : index
    %c0_329 = arith.constant 0 : index
    %575 = vector.load %arg9[%c272_328, %c0_329] : memref<392x384xbf16, #tpu.memory_space<vmem>>, vector<16x384xbf16>
    tpu.vector_store %arg9[%c272_328, %c0_329], %574 {strides = array<i32>} : memref<392x384xbf16, #tpu.memory_space<vmem>>, vector<16x384xbf16>,
    %576 = vector.extract_strided_slice %502 {offsets = [0, 1], sizes = [8, 384], strides = [1, 1]} : vector<8x390xbf16> to vector<8x384xbf16>
    %577 = vector.extract_strided_slice %502 {offsets = [0, 2], sizes = [8, 384], strides = [1, 1]} : vector<8x390xbf16> to vector<8x384xbf16>
    %578 = tpu.concatenate %576, %577 in 0 : vector<8x384xbf16>, vector<8x384xbf16> -> vector<16x384xbf16>
    %c288_330 = arith.constant 288 : index
    %c0_331 = arith.constant 0 : index
    %579 = vector.load %arg9[%c288_330, %c0_331] : memref<392x384xbf16, #tpu.memory_space<vmem>>, vector<16x384xbf16>
    tpu.vector_store %arg9[%c288_330, %c0_331], %578 {strides = array<i32>} : memref<392x384xbf16, #tpu.memory_space<vmem>>, vector<16x384xbf16>,
    %580 = vector.extract_strided_slice %502 {offsets = [0, 3], sizes = [8, 384], strides = [1, 1]} : vector<8x390xbf16> to vector<8x384xbf16>
    %581 = vector.extract_strided_slice %502 {offsets = [0, 4], sizes = [8, 384], strides = [1, 1]} : vector<8x390xbf16> to vector<8x384xbf16>
    %582 = tpu.concatenate %580, %581 in 0 : vector<8x384xbf16>, vector<8x384xbf16> -> vector<16x384xbf16>
    %c304_332 = arith.constant 304 : index
    %c0_333 = arith.constant 0 : index
    %583 = vector.load %arg9[%c304_332, %c0_333] : memref<392x384xbf16, #tpu.memory_space<vmem>>, vector<16x384xbf16>
    tpu.vector_store %arg9[%c304_332, %c0_333], %582 {strides = array<i32>} : memref<392x384xbf16, #tpu.memory_space<vmem>>, vector<16x384xbf16>,
    %584 = vector.extract_strided_slice %502 {offsets = [0, 5], sizes = [8, 384], strides = [1, 1]} : vector<8x390xbf16> to vector<8x384xbf16>
    %585 = vector.extract_strided_slice %502 {offsets = [0, 6], sizes = [8, 384], strides = [1, 1]} : vector<8x390xbf16> to vector<8x384xbf16>
    %586 = tpu.concatenate %584, %585 in 0 : vector<8x384xbf16>, vector<8x384xbf16> -> vector<16x384xbf16>
    %c320_334 = arith.constant 320 : index
    %c0_335 = arith.constant 0 : index
    %587 = vector.load %arg9[%c320_334, %c0_335] : memref<392x384xbf16, #tpu.memory_space<vmem>>, vector<16x384xbf16>
    tpu.vector_store %arg9[%c320_334, %c0_335], %586 {strides = array<i32>} : memref<392x384xbf16, #tpu.memory_space<vmem>>, vector<16x384xbf16>,
    %588 = vector.extract_strided_slice %503 {offsets = [0, 0], sizes = [8, 384], strides = [1, 1]} : vector<8x390xbf16> to vector<8x384xbf16>
    %589 = vector.extract_strided_slice %503 {offsets = [0, 1], sizes = [8, 384], strides = [1, 1]} : vector<8x390xbf16> to vector<8x384xbf16>
    %590 = tpu.concatenate %588, %589 in 0 : vector<8x384xbf16>, vector<8x384xbf16> -> vector<16x384xbf16>
    %c336_336 = arith.constant 336 : index
    %c0_337 = arith.constant 0 : index
    %591 = vector.load %arg9[%c336_336, %c0_337] : memref<392x384xbf16, #tpu.memory_space<vmem>>, vector<16x384xbf16>
    tpu.vector_store %arg9[%c336_336, %c0_337], %590 {strides = array<i32>} : memref<392x384xbf16, #tpu.memory_space<vmem>>, vector<16x384xbf16>,
    %592 = vector.extract_strided_slice %503 {offsets = [0, 2], sizes = [8, 384], strides = [1, 1]} : vector<8x390xbf16> to vector<8x384xbf16>
    %593 = vector.extract_strided_slice %503 {offsets = [0, 3], sizes = [8, 384], strides = [1, 1]} : vector<8x390xbf16> to vector<8x384xbf16>
    %594 = tpu.concatenate %592, %593 in 0 : vector<8x384xbf16>, vector<8x384xbf16> -> vector<16x384xbf16>
    %c352_338 = arith.constant 352 : index
    %c0_339 = arith.constant 0 : index
    %595 = vector.load %arg9[%c352_338, %c0_339] : memref<392x384xbf16, #tpu.memory_space<vmem>>, vector<16x384xbf16>
    tpu.vector_store %arg9[%c352_338, %c0_339], %594 {strides = array<i32>} : memref<392x384xbf16, #tpu.memory_space<vmem>>, vector<16x384xbf16>,
    %596 = vector.extract_strided_slice %503 {offsets = [0, 4], sizes = [8, 384], strides = [1, 1]} : vector<8x390xbf16> to vector<8x384xbf16>
    %597 = vector.extract_strided_slice %503 {offsets = [0, 5], sizes = [8, 384], strides = [1, 1]} : vector<8x390xbf16> to vector<8x384xbf16>
    %598 = tpu.concatenate %596, %597 in 0 : vector<8x384xbf16>, vector<8x384xbf16> -> vector<16x384xbf16>
    %c368_340 = arith.constant 368 : index
    %c0_341 = arith.constant 0 : index
    %599 = vector.load %arg9[%c368_340, %c0_341] : memref<392x384xbf16, #tpu.memory_space<vmem>>, vector<16x384xbf16>
    tpu.vector_store %arg9[%c368_340, %c0_341], %598 {strides = array<i32>} : memref<392x384xbf16, #tpu.memory_space<vmem>>, vector<16x384xbf16>,
    %600 = vector.extract_strided_slice %503 {offsets = [0, 6], sizes = [8, 384], strides = [1, 1]} : vector<8x390xbf16> to vector<8x384xbf16>
    %c384_342 = arith.constant 384 : index
    %c0_343 = arith.constant 0 : index
    %601 = vector.load %arg9[%c384_342, %c0_343] : memref<392x384xbf16, #tpu.memory_space<vmem>>, vector<8x384xbf16>
    tpu.vector_store %arg9[%c384_342, %c0_343], %600 {strides = array<i32>} : memref<392x384xbf16, #tpu.memory_space<vmem>>, vector<8x384xbf16>,
    %c4 = arith.constant 4 : index
    %c0_344 = arith.constant 0 : index
    %c0_345 = arith.constant 0 : index
    %602 = vector.load %arg2[%c4, %c0_344, %c0_345] : memref<5x8x392xbf16, #tpu.memory_space<vmem>>, vector<1x8x392xbf16>
    %603 = vector.shape_cast %602 : vector<1x8x392xbf16> to vector<8x392xbf16>
    %c0_346 = arith.constant 0 : index
    %c0_347 = arith.constant 0 : index
    %604 = vector.load %arg9[%c0_346, %c0_347] : memref<392x384xbf16, #tpu.memory_space<vmem>>, vector<392x384xbf16>
    %cst_348 = arith.constant dense<0.000000e+00> : vector<8x384xf32>
    %605 = tpu.matmul %603, %604, %cst_348 {dimension_numbers = #tpu.dot_dimension_numbers<[1], [0], [0], [1], [0, 0, 1, 1], [], []>} : vector<8x392xbf16>, vector<392x384xbf16>, vector<8x384xf32> -> vector<8x384xf32>
    %c4_349 = arith.constant 4 : index
    %c0_350 = arith.constant 0 : index
    %c0_351 = arith.constant 0 : index
    %606 = vector.load %arg3[%c4_349, %c0_350, %c0_351] : memref<5x8x1xf32, #tpu.memory_space<vmem>>, vector<1x8x1xf32>
    %607 = vector.shape_cast %606 : vector<1x8x1xf32> to vector<8x1xf32>
    %608 = vector.broadcast %607 : vector<8x1xf32> to vector<8x384xf32>
    %609 = arith.addf %605, %608 : vector<8x384xf32>
    %c4_352 = arith.constant 4 : index
    %610 = memref.load %arg4[%c4_352] : memref<5xf32, #tpu.memory_space<smem>>
    %cst_353 = arith.constant 0.000000e+00 : f32
    %611 = vector.broadcast %cst_353 : f32 to vector<8x384xf32>
    %612 = arith.cmpf oge, %609, %611 : vector<8x384xf32>
    %613 = vector.broadcast %610 : f32 to vector<8x384xf32>
    %614 = arith.mulf %613, %609 : vector<8x384xf32>
    %615 = arith.select %612, %609, %614 : vector<8x384xi1>, vector<8x384xf32>
    %616 = vector.extract_strided_slice %615 {offsets = [0, 0], sizes = [1, 384], strides = [1, 1]} : vector<8x384xf32> to vector<1x384xf32>
    %c0_354 = arith.constant 0 : index
    %c0_355 = arith.constant 0 : index
    %617 = vector.load %arg6[%c0_354, %c0_355] : memref<1x384xf32, #tpu.memory_space<vmem>>, vector<1x384xf32>
    tpu.vector_store %arg6[%c0_354, %c0_355], %616 {strides = array<i32>} : memref<1x384xf32, #tpu.memory_space<vmem>>, vector<1x384xf32>,
    return
  }
  func.func @transform_0(%arg0: i32) -> (i32, i32) {
    %c0_i32 = arith.constant 0 : i32
    %c0_i32_0 = arith.constant 0 : i32
    %c0_i32_1 = arith.constant 0 : i32
    return %c0_i32, %c0_i32_0 : i32, i32
  }
  func.func @transform_1(%arg0: i32) -> (i32, i32, i32) {
    %c0_i32 = arith.constant 0 : i32
    %c0_i32_0 = arith.constant 0 : i32
    %c0_i32_1 = arith.constant 0 : i32
    %c0_i32_2 = arith.constant 0 : i32
    return %c0_i32, %c0_i32_0, %c0_i32_1 : i32, i32, i32
  }
  func.func @transform_2(%arg0: i32) -> (i32, i32, i32) {
    %c0_i32 = arith.constant 0 : i32
    %c0_i32_0 = arith.constant 0 : i32
    %c0_i32_1 = arith.constant 0 : i32
    %c0_i32_2 = arith.constant 0 : i32
    return %c0_i32, %c0_i32_0, %c0_i32_1 : i32, i32, i32
  }
  func.func @transform_3(%arg0: i32) -> i32 {
    %c0_i32 = arith.constant 0 : i32
    %c0_i32_0 = arith.constant 0 : i32
    return %c0_i32 : i32
  }
  func.func @transform_4(%arg0: i32) -> (i32, i32) {
    %c0_i32 = arith.constant 0 : i32
    %c0_i32_0 = arith.constant 0 : i32
    %c0_i32_1 = arith.constant 0 : i32
    return %c0_i32, %c0_i32_0 : i32, i32
  }
  func.func @transform_5(%arg0: i32) -> (i32, i32) {
    %c0_i32 = arith.constant 0 : i32
    %c0_i32_0 = arith.constant 0 : i32
    %c0_i32_1 = arith.constant 0 : i32
    return %c0_i32, %c0_i32_0 : i32, i32
  }
}

</mosaic_0001>

<llo_original>
// kernel: _lambda_.1
$region0: #{_lambda_.1}
  #allocation0 [shape = 'u32[]', space=smem, size = 0x4, offset = 0x4, fixed_abs, tag = 'smem constant byte address 0x4 - core index']
  #allocation1 [shape = 'u32[72,128]{1,0:T(1,128)}', space=vmem, size = 0x9000, scoped, tag = 'internal scratch']
  #allocation2 [shape = 'bf16[8,587]{1,0:T(8,128)(2,1)}', space=vmem, size = 0x2800, scoped, tag = 'scratch operand']
  #allocation3 [shape = 'bf16[8,587]{1,0:T(8,128)(2,1)}', space=vmem, size = 0x2800, scoped, tag = 'scratch operand']
  #allocation4 [shape = 'bf16[392,384]{1,0:T(8,128)(2,1)}', space=vmem, size = 0x49800, scoped, tag = 'scratch operand']
  %s0 = inlined_call_operand.vmem [shape: bf16[8,587], index: 0, kind: input, shape index: {}]
  %s1 = inlined_call_operand.vmem [shape: bf16[5,8,392], index: 1, kind: input, shape index: {}]
  %s2 = inlined_call_operand.hbm [shape: f32[5,8,1], index: 2, kind: input, shape index: {}]
  %s3 = inlined_call_operand.vmem [shape: f32[5], index: 3, kind: input, shape index: {}]
  %s4 = inlined_call_operand.vmem [shape: f32[1,384], index: 4, kind: input, shape index: {}]
  %s5 = inlined_call_operand.vmem [shape: f32[1,384], index: 5, kind: output, shape index: {}]
  %s6 = sld [smem:[#allocation0]]
  $region38: #{_lambda_.1} parent=0
    _
  %s8 = ssub.s32 1, %s6
  %s9 = scalar_select 0, %s8, %s6
  $region1: #{_lambda_.1} parent=0
    #allocation5 [shape = 'u8[20480]{0}', space=vmem, size = 0x5000, scoped, tag = 'input window, operand 2, single buffered']
    #allocation6 [shape = 's32[1]{0}', space=sflag, size = 0x4, scoped, tag = 'scoped memory for _lambda_.1']
    #allocation7 [shape = 's32[1]{0}', space=sflag, size = 0x4, scoped, tag = 'scoped memory for _lambda_.1']
    #allocation8 [shape = 'u8[512]{0}', space=smem, size = 0x200, scoped, tag = 'input window, operand 3, single buffered']
    %10 = vsyncpa [#allocation6], 0
    %11 = vsyncpa [#allocation7], 0
    // Predicated region
    $region2: #{_lambda_.1} parent=1 // pred_check
      _
    $region3: #{_lambda_.1} parent=1 // pred_check_branch
      %13 = sbr.rel (0) target = $region5
    $region4: #{_lambda_.1} parent=1 // pred_region
      _
    $region5: #{_lambda_.1} parent=1 // pred_fallthru
      _
    // Predicated region
    $region6: #{_lambda_.1} parent=1 // pred_check
      _
    $region7: #{_lambda_.1} parent=1 // pred_check_branch
      %15 = sbr.rel (0) target = $region9
    $region8: #{_lambda_.1} parent=1 // pred_region
      _
    $region9: #{_lambda_.1} parent=1 // pred_fallthru
      _
    // Predicated region
    $region10: #{_lambda_.1} parent=1 // pred_check
      _
    $region11: #{_lambda_.1} parent=1 // pred_check_branch
      %17 = sbr.rel (0) target = $region13
    $region12: #{_lambda_.1} parent=1 // pred_region
      %19 = vsyncadd [#allocation6], 0
      %s20 = sshll.u32 %s2, 4
      %s21 = int_to_ptr.hbm [resolvable:$true] %s20
      %s22 = sshll.u32 [#allocation5], 4
      %s23 = int_to_ptr.vmem [resolvable:$true] %s22
      %28 = dma.hbm_to_vmem [thread:$0]  %s21, 640, %s23, [#allocation6], 128, 128, 8
    $region13: #{_lambda_.1} parent=1 // pred_fallthru
      _
    // Predicated region
    $region14: #{_lambda_.1} parent=1 // pred_check
      _
    $region15: #{_lambda_.1} parent=1 // pred_check_branch
      %30 = sbr.rel (0) target = $region17
    $region16: #{_lambda_.1} parent=1 // pred_region
      %32 = vsyncadd [#allocation7], 0
      %s34 = sshll.u32 %s3, 4
      %s35 = int_to_ptr.vmem [resolvable:$true] %s34
      %37 = dma.vmem_to_smem %s35, 16, [#allocation8], [#allocation7]
    $region17: #{_lambda_.1} parent=1 // pred_fallthru
      _
    // Predicated region
    $region18: #{_lambda_.1} parent=1 // pred_check
      _
    $region19: #{_lambda_.1} parent=1 // pred_check_branch
      %39 = sbr.rel (0) target = $region21
    $region20: #{_lambda_.1} parent=1 // pred_region
      _
    $region21: #{_lambda_.1} parent=1 // pred_fallthru
      _
    // Predicated region
    $region22: #{_lambda_.1} parent=1 // pred_check
      _
    $region23: #{_lambda_.1} parent=1 // pred_check_branch
      %41 = sbr.rel (0) target = $region25
    $region24: #{_lambda_.1} parent=1 // pred_region
      %43 = dma.done [#allocation6], 640
    $region25: #{_lambda_.1} parent=1 // pred_fallthru
      _
    // Predicated region
    $region26: #{_lambda_.1} parent=1 // pred_check
      _
    $region27: #{_lambda_.1} parent=1 // pred_check_branch
      %45 = sbr.rel (0) target = $region29
    $region28: #{_lambda_.1} parent=1 // pred_region
      %47 = dma.done [#allocation7], 16
    $region29: #{_lambda_.1} parent=1 // pred_fallthru
      _
    %48 = sfence
    %50 = vst [vmem:[#allocation2] sm:$0xff] 0
    %51 = vst [vmem:[#allocation2 + $0x8] sm:$0xff] 0
    %vm52 = vcmask 609280
    %53 = vst.msk [vmem:[#allocation2 + $0x10] sm:$0xf] %vm52, 0
    %54 = vst [vmem:[#allocation3] sm:$0xff] 0
    %55 = vst [vmem:[#allocation3 + $0x8] sm:$0xff] 0
    %56 = vst.msk [vmem:[#allocation3 + $0x10] sm:$0xf] %vm52, 0
    %v57 = vld [vmem:[%s4] sm:$0x7]
    %v58 = vld [vmem:[%s0] sm:$0xff]
    %v59 = vld [vmem:[%s0 + $0x8] sm:$0xff]
    %v60 = vld [vmem:[%s0 + $0x10] sm:$0xf]
    %v61 = vld [vmem:[%s0 + $0x4] sm:$0xff]
    %v62 = vld [vmem:[%s0 + $0xc] sm:$0xff]
    %v65 = vunpack.c.l.b16 %v58
    %v66 = vunpack.c.h.b16 %v58
    %v67 = vunpack.c.l.b16 %v59
    %v68 = vunpack.c.h.b16 %v59
    %v69 = vpack.c.b16 %v65, %v65
    %v70 = vpack.c.b16 %v66, %v66
    %v71 = vpack.c.b16 %v67, %v67
    %v72 = vpack.c.b16 %v68, %v68
    %73 = vrot.lane.b32.xlu0 %v69, 127
    %v74 = vpop.permute.xlu0 %73
    %75 = vrot.lane.b32.xlu0 %v70, 127
    %v76 = vpop.permute.xlu0 %75
    %77 = vrot.lane.b32.xlu0 %v71, 127
    %v78 = vpop.permute.xlu0 %77
    %79 = vrot.lane.b32.xlu0 %v72, 127
    %v80 = vpop.permute.xlu0 %79
    %vm81 = vcmask 1039360
    %v82 = vsel %vm81, %v74, %v76
    %v83 = vsel %vm81, %v76, %v78
    %v84 = vsel %vm81, %v78, %v80
    %vm85 = vcmask 1043456
    %v88 = vsel %vm85, %v69, %v82
    %v91 = vsel %vm85, %v70, %v83
    %v94 = vsel %vm85, %v71, %v84
    %v97 = vsel %vm85, %v72, %v80
    %v102 = vunpack.c.l.b16 %v88
    %v103 = vunpack.c.l.b16 %v91
    %v104 = vunpack.c.l.b16 %v94
    %v105 = vunpack.c.l.b16 %v97
    %v106 = vunpack.c.h.b16 %v88
    %v107 = vunpack.c.h.b16 %v91
    %v108 = vunpack.c.h.b16 %v94
    %v109 = vunpack.c.h.b16 %v97
    %v110 = vpack.c.b16 %v103, %v102
    %v111 = vpack.c.b16 %v105, %v104
    %v112 = vpack.c.b16 %v107, %v106
    %v113 = vpack.c.b16 %v109, %v108
    %114 = vrot.lane.b32.xlu0 %v110, 75
    %v115 = vpop.permute.xlu0 %114
    %116 = vrot.lane.b32.xlu0 %v111, 75
    %v117 = vpop.permute.xlu0 %116
    %118 = vrot.lane.b32.xlu0 %v112, 75
    %v119 = vpop.permute.xlu0 %118
    %120 = vrot.lane.b32.xlu0 %v113, 75
    %v121 = vpop.permute.xlu0 %120
    %v122 = vrot.slane %v115, 4
    %v123 = vrot.slane %v117, 4
    %v124 = vrot.slane %v119, 4
    %v125 = vrot.slane %v121, 4
    %vm126 = vcmask 1043456
    %v127 = vsel %vm126, %v122, %v123
    %vm128 = vcmask 613376
    %v129 = vsel %vm128, %v115, %v127
    %v130 = vsel %vm128, %v117, %v123
    %v131 = vsel %vm126, %v124, %v125
    %v132 = vsel %vm128, %v119, %v131
    %v133 = vsel %vm128, %v121, %v125
    %138 = vst [vmem:[#allocation4] sm:$0xff] %v129
    %139 = vst [vmem:[#allocation4 + $0x8] sm:$0xf] %v130
    %140 = vst [vmem:[#allocation4 + $0xc] sm:$0xff] %v132
    %141 = vst [vmem:[#allocation4 + $0x14] sm:$0xf] %v133
    %142 = vrot.lane.b32.xlu0 %v110, 73
    %v143 = vpop.permute.xlu0 %142
    %144 = vrot.lane.b32.xlu0 %v111, 73
    %v145 = vpop.permute.xlu0 %144
    %146 = vrot.lane.b32.xlu0 %v112, 73
    %v147 = vpop.permute.xlu0 %146
    %148 = vrot.lane.b32.xlu0 %v113, 73
    %v149 = vpop.permute.xlu0 %148
    %v150 = vrot.slane %v143, 4
    %v151 = vrot.slane %v145, 4
    %v152 = vrot.slane %v147, 4
    %v153 = vrot.slane %v149, 4
    %v154 = vsel %vm126, %v150, %v151
    %vm155 = vcmask 596992
    %v156 = vsel %vm155, %v143, %v154
    %v157 = vsel %vm155, %v145, %v151
    %v158 = vsel %vm126, %v152, %v153
    %v159 = vsel %vm155, %v147, %v158
    %v160 = vsel %vm155, %v149, %v153
    %165 = vst [vmem:[#allocation4 + $0x18] sm:$0xff] %v156
    %166 = vst [vmem:[#allocation4 + $0x20] sm:$0xf] %v157
    %167 = vst [vmem:[#allocation4 + $0x24] sm:$0xff] %v159
    %168 = vst [vmem:[#allocation4 + $0x2c] sm:$0xf] %v160
    %169 = vrot.lane.b32.xlu0 %v110, 71
    %v170 = vpop.permute.xlu0 %169
    %171 = vrot.lane.b32.xlu0 %v111, 71
    %v172 = vpop.permute.xlu0 %171
    %173 = vrot.lane.b32.xlu0 %v112, 71
    %v174 = vpop.permute.xlu0 %173
    %175 = vrot.lane.b32.xlu0 %v113, 71
    %v176 = vpop.permute.xlu0 %175
    %v177 = vrot.slane %v170, 4
    %v178 = vrot.slane %v172, 4
    %v179 = vrot.slane %v174, 4
    %v180 = vrot.slane %v176, 4
    %v181 = vsel %vm126, %v177, %v178
    %vm182 = vcmask 580608
    %v183 = vsel %vm182, %v170, %v181
    %v184 = vsel %vm182, %v172, %v178
    %v185 = vsel %vm126, %v179, %v180
    %v186 = vsel %vm182, %v174, %v185
    %v187 = vsel %vm182, %v176, %v180
    %192 = vst [vmem:[#allocation4 + $0x30] sm:$0xff] %v183
    %193 = vst [vmem:[#allocation4 + $0x38] sm:$0xf] %v184
    %194 = vst [vmem:[#allocation4 + $0x3c] sm:$0xff] %v186
    %195 = vst [vmem:[#allocation4 + $0x44] sm:$0xf] %v187
    %196 = vrot.lane.b32.xlu0 %v69, 110
    %v197 = vpop.permute.xlu0 %196
    %198 = vrot.lane.b32.xlu0 %v70, 110
    %v199 = vpop.permute.xlu0 %198
    %200 = vrot.lane.b32.xlu0 %v71, 110
    %v201 = vpop.permute.xlu0 %200
    %202 = vrot.lane.b32.xlu0 %v72, 110
    %v203 = vpop.permute.xlu0 %202
    %vm204 = vcmask 900096
    %v205 = vsel %vm204, %v197, %v199
    %v206 = vsel %vm204, %v199, %v201
    %v207 = vsel %vm204, %v201, %v203
    %v209 = vsel %vm85, %v69, %v205
    %v211 = vsel %vm85, %v70, %v206
    %v213 = vsel %vm85, %v71, %v207
    %v215 = vsel %vm85, %v72, %v203
    %v220 = vunpack.c.l.b16 %v209
    %v221 = vunpack.c.l.b16 %v211
    %v222 = vunpack.c.l.b16 %v213
    %v223 = vunpack.c.l.b16 %v215
    %v224 = vunpack.c.h.b16 %v209
    %v225 = vunpack.c.h.b16 %v211
    %v226 = vunpack.c.h.b16 %v213
    %v227 = vunpack.c.h.b16 %v215
    %v228 = vpack.c.b16 %v221, %v220
    %v229 = vpack.c.b16 %v223, %v222
    %v230 = vpack.c.b16 %v225, %v224
    %v231 = vpack.c.b16 %v227, %v226
    %232 = vrot.lane.b32.xlu0 %v228, 69
    %v233 = vpop.permute.xlu0 %232
    %234 = vrot.lane.b32.xlu0 %v229, 69
    %v235 = vpop.permute.xlu0 %234
    %236 = vrot.lane.b32.xlu0 %v230, 69
    %v237 = vpop.permute.xlu0 %236
    %238 = vrot.lane.b32.xlu0 %v231, 69
    %v239 = vpop.permute.xlu0 %238
    %v240 = vrot.slane %v233, 4
    %v241 = vrot.slane %v235, 4
    %v242 = vrot.slane %v237, 4
    %v243 = vrot.slane %v239, 4
    %v244 = vsel %vm126, %v240, %v241
    %vm245 = vcmask 564224
    %v246 = vsel %vm245, %v233, %v244
    %v247 = vsel %vm245, %v235, %v241
    %v248 = vsel %vm126, %v242, %v243
    %v249 = vsel %vm245, %v237, %v248
    %v250 = vsel %vm245, %v239, %v243
    %255 = vst [vmem:[#allocation4 + $0x48] sm:$0xff] %v246
    %256 = vst [vmem:[#allocation4 + $0x50] sm:$0xf] %v247
    %257 = vst [vmem:[#allocation4 + $0x54] sm:$0xff] %v249
    %258 = vst [vmem:[#allocation4 + $0x5c] sm:$0xf] %v250
    %259 = vrot.lane.b32.xlu0 %v110, 50
    %v260 = vpop.permute.xlu0 %259
    %261 = vrot.lane.b32.xlu0 %v111, 50
    %v262 = vpop.permute.xlu0 %261
    %263 = vrot.lane.b32.xlu0 %v112, 50
    %v264 = vpop.permute.xlu0 %263
    %265 = vrot.lane.b32.xlu0 %v113, 50
    %v266 = vpop.permute.xlu0 %265
    %v267 = vrot.slane %v260, 4
    %v268 = vrot.slane %v262, 4
    %v269 = vrot.slane %v264, 4
    %v270 = vrot.slane %v266, 4
    %v271 = vsel %vm126, %v267, %v268
    %vm272 = vcmask 408576
    %v273 = vsel %vm272, %v260, %v271
    %v274 = vsel %vm272, %v262, %v268
    %v275 = vsel %vm126, %v269, %v270
    %v276 = vsel %vm272, %v264, %v275
    %v277 = vsel %vm272, %v266, %v270
    %282 = vst [vmem:[#allocation4 + $0x60] sm:$0xff] %v273
    %283 = vst [vmem:[#allocation4 + $0x68] sm:$0xf] %v274
    %284 = vst [vmem:[#allocation4 + $0x6c] sm:$0xff] %v276
    %285 = vst [vmem:[#allocation4 + $0x74] sm:$0xf] %v277
    %286 = vrot.lane.b32.xlu0 %v110, 48
    %v287 = vpop.permute.xlu0 %286
    %288 = vrot.lane.b32.xlu0 %v111, 48
    %v289 = vpop.permute.xlu0 %288
    %290 = vrot.lane.b32.xlu0 %v112, 48
    %v291 = vpop.permute.xlu0 %290
    %292 = vrot.lane.b32.xlu0 %v113, 48
    %v293 = vpop.permute.xlu0 %292
    %v294 = vrot.slane %v287, 4
    %v295 = vrot.slane %v289, 4
    %v296 = vrot.slane %v291, 4
    %v297 = vrot.slane %v293, 4
    %v298 = vsel %vm126, %v294, %v295
    %vm299 = vcmask 392192
    %v300 = vsel %vm299, %v287, %v298
    %v301 = vsel %vm299, %v289, %v295
    %v302 = vsel %vm126, %v296, %v297
    %v303 = vsel %vm299, %v291, %v302
    %v304 = vsel %vm299, %v293, %v297
    %309 = vst [vmem:[#allocation4 + $0x78] sm:$0xff] %v300
    %310 = vst [vmem:[#allocation4 + $0x80] sm:$0xf] %v301
    %311 = vst [vmem:[#allocation4 + $0x84] sm:$0xff] %v303
    %312 = vst [vmem:[#allocation4 + $0x8c] sm:$0xf] %v304
    %313 = vrot.lane.b32.xlu0 %v110, 46
    %v314 = vpop.permute.xlu0 %313
    %315 = vrot.lane.b32.xlu0 %v111, 46
    %v316 = vpop.permute.xlu0 %315
    %317 = vrot.lane.b32.xlu0 %v112, 46
    %v318 = vpop.permute.xlu0 %317
    %319 = vrot.lane.b32.xlu0 %v113, 46
    %v320 = vpop.permute.xlu0 %319
    %v321 = vrot.slane %v314, 4
    %v322 = vrot.slane %v316, 4
    %v323 = vrot.slane %v318, 4
    %v324 = vrot.slane %v320, 4
    %v325 = vsel %vm126, %v321, %v322
    %vm326 = vcmask 375808
    %v327 = vsel %vm326, %v314, %v325
    %v328 = vsel %vm326, %v316, %v322
    %v329 = vsel %vm126, %v323, %v324
    %v330 = vsel %vm326, %v318, %v329
    %v331 = vsel %vm326, %v320, %v324
    %336 = vst [vmem:[#allocation4 + $0x90] sm:$0xff] %v327
    %337 = vst [vmem:[#allocation4 + $0x98] sm:$0xf] %v328
    %338 = vst [vmem:[#allocation4 + $0x9c] sm:$0xff] %v330
    %339 = vst [vmem:[#allocation4 + $0xa4] sm:$0xf] %v331
    %340 = vrot.lane.b32.xlu0 %v110, 27
    %v341 = vpop.permute.xlu0 %340
    %342 = vrot.lane.b32.xlu0 %v111, 27
    %v343 = vpop.permute.xlu0 %342
    %344 = vrot.lane.b32.xlu0 %v112, 27
    %v345 = vpop.permute.xlu0 %344
    %346 = vrot.lane.b32.xlu0 %v113, 27
    %v347 = vpop.permute.xlu0 %346
    %v348 = vrot.slane %v341, 4
    %v349 = vrot.slane %v343, 4
    %v350 = vrot.slane %v345, 4
    %v351 = vrot.slane %v347, 4
    %v352 = vsel %vm126, %v348, %v349
    %vm353 = vcmask 220160
    %v354 = vsel %vm353, %v341, %v352
    %v355 = vsel %vm353, %v343, %v349
    %v356 = vsel %vm126, %v350, %v351
    %v357 = vsel %vm353, %v345, %v356
    %v358 = vsel %vm353, %v347, %v351
    %363 = vst [vmem:[#allocation4 + $0xa8] sm:$0xff] %v354
    %364 = vst [vmem:[#allocation4 + $0xb0] sm:$0xf] %v355
    %365 = vst [vmem:[#allocation4 + $0xb4] sm:$0xff] %v357
    %366 = vst [vmem:[#allocation4 + $0xbc] sm:$0xf] %v358
    %367 = vrot.lane.b32.xlu0 %v110, 25
    %v368 = vpop.permute.xlu0 %367
    %369 = vrot.lane.b32.xlu0 %v111, 25
    %v370 = vpop.permute.xlu0 %369
    %371 = vrot.lane.b32.xlu0 %v112, 25
    %v372 = vpop.permute.xlu0 %371
    %373 = vrot.lane.b32.xlu0 %v113, 25
    %v374 = vpop.permute.xlu0 %373
    %v375 = vrot.slane %v368, 4
    %v376 = vrot.slane %v370, 4
    %v377 = vrot.slane %v372, 4
    %v378 = vrot.slane %v374, 4
    %v379 = vsel %vm126, %v375, %v376
    %vm380 = vcmask 203776
    %v381 = vsel %vm380, %v368, %v379
    %v382 = vsel %vm380, %v370, %v376
    %v383 = vsel %vm126, %v377, %v378
    %v384 = vsel %vm380, %v372, %v383
    %v385 = vsel %vm380, %v374, %v378
    %390 = vst [vmem:[#allocation4 + $0xc0] sm:$0xff] %v381
    %391 = vst [vmem:[#allocation4 + $0xc8] sm:$0xf] %v382
    %392 = vst [vmem:[#allocation4 + $0xcc] sm:$0xff] %v384
    %393 = vst [vmem:[#allocation4 + $0xd4] sm:$0xf] %v385
    %394 = vrot.lane.b32.xlu0 %v110, 23
    %v395 = vpop.permute.xlu0 %394
    %396 = vrot.lane.b32.xlu0 %v111, 23
    %v397 = vpop.permute.xlu0 %396
    %398 = vrot.lane.b32.xlu0 %v112, 23
    %v399 = vpop.permute.xlu0 %398
    %400 = vrot.lane.b32.xlu0 %v113, 23
    %v401 = vpop.permute.xlu0 %400
    %v402 = vrot.slane %v395, 4
    %v403 = vrot.slane %v397, 4
    %v404 = vrot.slane %v399, 4
    %v405 = vrot.slane %v401, 4
    %v406 = vsel %vm126, %v402, %v403
    %vm407 = vcmask 187392
    %v408 = vsel %vm407, %v395, %v406
    %v409 = vsel %vm407, %v397, %v403
    %v410 = vsel %vm126, %v404, %v405
    %v411 = vsel %vm407, %v399, %v410
    %v412 = vsel %vm407, %v401, %v405
    %417 = vst [vmem:[#allocation4 + $0xd8] sm:$0xff] %v408
    %418 = vst [vmem:[#allocation4 + $0xe0] sm:$0xf] %v409
    %419 = vst [vmem:[#allocation4 + $0xe4] sm:$0xff] %v411
    %420 = vst [vmem:[#allocation4 + $0xec] sm:$0xf] %v412
    %421 = vrot.lane.b32.xlu0 %v228, 21
    %v422 = vpop.permute.xlu0 %421
    %423 = vrot.lane.b32.xlu0 %v229, 21
    %v424 = vpop.permute.xlu0 %423
    %425 = vrot.lane.b32.xlu0 %v230, 21
    %v426 = vpop.permute.xlu0 %425
    %427 = vrot.lane.b32.xlu0 %v231, 21
    %v428 = vpop.permute.xlu0 %427
    %v429 = vrot.slane %v422, 4
    %v430 = vrot.slane %v424, 4
    %v431 = vrot.slane %v426, 4
    %v432 = vrot.slane %v428, 4
    %v433 = vsel %vm126, %v429, %v430
    %vm434 = vcmask 171008
    %v435 = vsel %vm434, %v422, %v433
    %v436 = vsel %vm434, %v424, %v430
    %v437 = vsel %vm126, %v431, %v432
    %v438 = vsel %vm434, %v426, %v437
    %v439 = vsel %vm434, %v428, %v432
    %444 = vst [vmem:[#allocation4 + $0xf0] sm:$0xff] %v435
    %445 = vst [vmem:[#allocation4 + $0xf8] sm:$0xf] %v436
    %446 = vst [vmem:[#allocation4 + $0xfc] sm:$0xff] %v438
    %447 = vst [vmem:[#allocation4 + $0x104] sm:$0xf] %v439
    %448 = vrot.lane.b32.xlu0 %v110, 2
    %v449 = vpop.permute.xlu0 %448
    %450 = vrot.lane.b32.xlu0 %v111, 2
    %v451 = vpop.permute.xlu0 %450
    %452 = vrot.lane.b32.xlu0 %v112, 2
    %v453 = vpop.permute.xlu0 %452
    %454 = vrot.lane.b32.xlu0 %v113, 2
    %v455 = vpop.permute.xlu0 %454
    %v456 = vrot.slane %v449, 4
    %v457 = vrot.slane %v451, 4
    %v458 = vrot.slane %v453, 4
    %v459 = vrot.slane %v455, 4
    %v460 = vsel %vm126, %v456, %v457
    %vm461 = vcmask 15360
    %v462 = vsel %vm461, %v449, %v460
    %v463 = vsel %vm461, %v451, %v457
    %v464 = vsel %vm126, %v458, %v459
    %v465 = vsel %vm461, %v453, %v464
    %v466 = vsel %vm461, %v455, %v459
    %471 = vst [vmem:[#allocation4 + $0x108] sm:$0xff] %v462
    %472 = vst [vmem:[#allocation4 + $0x110] sm:$0xf] %v463
    %473 = vst [vmem:[#allocation4 + $0x114] sm:$0xff] %v465
    %474 = vst [vmem:[#allocation4 + $0x11c] sm:$0xf] %v466
    %v476 = vunpack.c.l.b16 %v60
    %v477 = vpack.c.b16 %v476, %v476
    %478 = vrot.lane.b32.xlu0 %v477, 127
    %v479 = vpop.permute.xlu0 %478
    %v480 = vsel %vm81, %v80, %v479
    %v482 = vsel %vm85, %v72, %v480
    %v484 = vunpack.c.l.b16 %v482
    %v485 = vunpack.c.h.b16 %v482
    %v486 = vpack.c.b16 %v104, %v103
    %v487 = vpack.c.b16 %v484, %v484
    %v488 = vpack.c.b16 %v108, %v107
    %v489 = vpack.c.b16 %v485, %v485
    %494 = vst [vmem:[#allocation4 + $0x120] sm:$0xff] %v486
    %495 = vst [vmem:[#allocation4 + $0x128] sm:$0xf] %v487
    %496 = vst [vmem:[#allocation4 + $0x12c] sm:$0xff] %v488
    %497 = vst [vmem:[#allocation4 + $0x134] sm:$0xf] %v489
    %498 = vrot.lane.b32.xlu0 %v70, 126
    %v499 = vpop.permute.xlu0 %498
    %500 = vrot.lane.b32.xlu0 %v71, 126
    %v501 = vpop.permute.xlu0 %500
    %502 = vrot.lane.b32.xlu0 %v72, 126
    %v503 = vpop.permute.xlu0 %502
    %504 = vrot.lane.b32.xlu0 %v477, 126
    %v505 = vpop.permute.xlu0 %504
    %vm506 = vcmask 1031168
    %v507 = vsel %vm506, %v499, %v501
    %v508 = vsel %vm506, %v501, %v503
    %v509 = vsel %vm506, %v503, %v505
    %510 = vrot.lane.b32.xlu0 %v70, 125
    %v511 = vpop.permute.xlu0 %510
    %512 = vrot.lane.b32.xlu0 %v71, 125
    %v513 = vpop.permute.xlu0 %512
    %514 = vrot.lane.b32.xlu0 %v72, 125
    %v515 = vpop.permute.xlu0 %514
    %516 = vrot.lane.b32.xlu0 %v477, 125
    %v517 = vpop.permute.xlu0 %516
    %vm518 = vcmask 1022976
    %v519 = vsel %vm518, %v511, %v513
    %v520 = vsel %vm518, %v513, %v515
    %v521 = vsel %vm518, %v515, %v517
    %v524 = vsel %vm85, %v507, %v519
    %v527 = vsel %vm85, %v508, %v520
    %v530 = vsel %vm85, %v509, %v521
    %v534 = vunpack.c.l.b16 %v524
    %v535 = vunpack.c.l.b16 %v527
    %v536 = vunpack.c.l.b16 %v530
    %v537 = vunpack.c.h.b16 %v524
    %v538 = vunpack.c.h.b16 %v527
    %v539 = vunpack.c.h.b16 %v530
    %v540 = vpack.c.b16 %v535, %v534
    %v541 = vpack.c.b16 %v536, %v536
    %v542 = vpack.c.b16 %v538, %v537
    %v543 = vpack.c.b16 %v539, %v539
    %548 = vst [vmem:[#allocation4 + $0x138] sm:$0xff] %v540
    %549 = vst [vmem:[#allocation4 + $0x140] sm:$0xf] %v541
    %550 = vst [vmem:[#allocation4 + $0x144] sm:$0xff] %v542
    %551 = vst [vmem:[#allocation4 + $0x14c] sm:$0xf] %v543
    %v554 = vunpack.c.l.b16 %v61
    %v555 = vunpack.c.h.b16 %v61
    %v556 = vunpack.c.l.b16 %v62
    %v557 = vunpack.c.h.b16 %v62
    %v558 = vpack.c.b16 %v554, %v554
    %v559 = vpack.c.b16 %v555, %v555
    %v560 = vpack.c.b16 %v556, %v556
    %v561 = vpack.c.b16 %v557, %v557
    %562 = vrot.lane.b32.xlu0 %v558, 127
    %v563 = vpop.permute.xlu0 %562
    %564 = vrot.lane.b32.xlu0 %v559, 127
    %v565 = vpop.permute.xlu0 %564
    %566 = vrot.lane.b32.xlu0 %v560, 127
    %v567 = vpop.permute.xlu0 %566
    %568 = vrot.lane.b32.xlu0 %v561, 127
    %v569 = vpop.permute.xlu0 %568
    %v570 = vsel %vm81, %v563, %v565
    %v571 = vsel %vm81, %v565, %v567
    %v572 = vsel %vm81, %v567, %v569
    %v575 = vsel %vm85, %v558, %v570
    %v578 = vsel %vm85, %v559, %v571
    %v581 = vsel %vm85, %v560, %v572
    %v584 = vsel %vm85, %v561, %v569
    %v589 = vunpack.c.l.b16 %v575
    %v590 = vunpack.c.l.b16 %v578
    %v591 = vunpack.c.l.b16 %v581
    %v592 = vunpack.c.l.b16 %v584
    %v593 = vunpack.c.h.b16 %v575
    %v594 = vunpack.c.h.b16 %v578
    %v595 = vunpack.c.h.b16 %v581
    %v596 = vunpack.c.h.b16 %v584
    %v597 = vpack.c.b16 %v590, %v589
    %v598 = vpack.c.b16 %v592, %v591
    %v599 = vpack.c.b16 %v594, %v593
    %v600 = vpack.c.b16 %v596, %v595
    %601 = vrot.lane.b32.xlu0 %v597, 107
    %v602 = vpop.permute.xlu0 %601
    %603 = vrot.lane.b32.xlu0 %v598, 107
    %v604 = vpop.permute.xlu0 %603
    %605 = vrot.lane.b32.xlu0 %v599, 107
    %v606 = vpop.permute.xlu0 %605
    %607 = vrot.lane.b32.xlu0 %v600, 107
    %v608 = vpop.permute.xlu0 %607
    %v609 = vrot.slane %v602, 4
    %v610 = vrot.slane %v604, 4
    %v611 = vrot.slane %v606, 4
    %v612 = vrot.slane %v608, 4
    %v613 = vsel %vm126, %v609, %v610
    %vm614 = vcmask 875520
    %v615 = vsel %vm614, %v602, %v613
    %v616 = vsel %vm614, %v604, %v610
    %v617 = vsel %vm126, %v611, %v612
    %v618 = vsel %vm614, %v606, %v617
    %v619 = vsel %vm614, %v608, %v612
    %624 = vst [vmem:[#allocation4 + $0x150] sm:$0xff] %v615
    %625 = vst [vmem:[#allocation4 + $0x158] sm:$0xf] %v616
    %626 = vst [vmem:[#allocation4 + $0x15c] sm:$0xff] %v618
    %627 = vst [vmem:[#allocation4 + $0x164] sm:$0xf] %v619
    %628 = vrot.lane.b32.xlu0 %v597, 105
    %v629 = vpop.permute.xlu0 %628
    %630 = vrot.lane.b32.xlu0 %v598, 105
    %v631 = vpop.permute.xlu0 %630
    %632 = vrot.lane.b32.xlu0 %v599, 105
    %v633 = vpop.permute.xlu0 %632
    %634 = vrot.lane.b32.xlu0 %v600, 105
    %v635 = vpop.permute.xlu0 %634
    %v636 = vrot.slane %v629, 4
    %v637 = vrot.slane %v631, 4
    %v638 = vrot.slane %v633, 4
    %v639 = vrot.slane %v635, 4
    %v640 = vsel %vm126, %v636, %v637
    %vm641 = vcmask 859136
    %v642 = vsel %vm641, %v629, %v640
    %v643 = vsel %vm641, %v631, %v637
    %v644 = vsel %vm126, %v638, %v639
    %v645 = vsel %vm641, %v633, %v644
    %v646 = vsel %vm641, %v635, %v639
    %651 = vst [vmem:[#allocation4 + $0x168] sm:$0xff] %v642
    %652 = vst [vmem:[#allocation4 + $0x170] sm:$0xf] %v643
    %653 = vst [vmem:[#allocation4 + $0x174] sm:$0xff] %v645
    %654 = vst [vmem:[#allocation4 + $0x17c] sm:$0xf] %v646
    %655 = vrot.lane.b32.xlu0 %v597, 103
    %v656 = vpop.permute.xlu0 %655
    %657 = vrot.lane.b32.xlu0 %v598, 103
    %v658 = vpop.permute.xlu0 %657
    %659 = vrot.lane.b32.xlu0 %v599, 103
    %v660 = vpop.permute.xlu0 %659
    %661 = vrot.lane.b32.xlu0 %v600, 103
    %v662 = vpop.permute.xlu0 %661
    %v663 = vrot.slane %v656, 4
    %v664 = vrot.slane %v658, 4
    %v665 = vrot.slane %v660, 4
    %v666 = vrot.slane %v662, 4
    %v667 = vsel %vm126, %v663, %v664
    %vm668 = vcmask 842752
    %v669 = vsel %vm668, %v656, %v667
    %v670 = vsel %vm668, %v658, %v664
    %v671 = vsel %vm126, %v665, %v666
    %v672 = vsel %vm668, %v660, %v671
    %v673 = vsel %vm668, %v662, %v666
    %678 = vst [vmem:[#allocation4 + $0x180] sm:$0xff] %v669
    %679 = vst [vmem:[#allocation4 + $0x188] sm:$0xf] %v670
    %680 = vst [vmem:[#allocation4 + $0x18c] sm:$0xff] %v672
    %681 = vst [vmem:[#allocation4 + $0x194] sm:$0xf] %v673
    %682 = vrot.lane.b32.xlu0 %v558, 110
    %v683 = vpop.permute.xlu0 %682
    %684 = vrot.lane.b32.xlu0 %v559, 110
    %v685 = vpop.permute.xlu0 %684
    %686 = vrot.lane.b32.xlu0 %v560, 110
    %v687 = vpop.permute.xlu0 %686
    %688 = vrot.lane.b32.xlu0 %v561, 110
    %v689 = vpop.permute.xlu0 %688
    %v690 = vsel %vm204, %v683, %v685
    %v691 = vsel %vm204, %v685, %v687
    %v692 = vsel %vm204, %v687, %v689
    %v694 = vsel %vm85, %v558, %v690
    %v696 = vsel %vm85, %v559, %v691
    %v698 = vsel %vm85, %v560, %v692
    %v700 = vsel %vm85, %v561, %v689
    %v705 = vunpack.c.l.b16 %v694
    %v706 = vunpack.c.l.b16 %v696
    %v707 = vunpack.c.l.b16 %v698
    %v708 = vunpack.c.l.b16 %v700
    %v709 = vunpack.c.h.b16 %v694
    %v710 = vunpack.c.h.b16 %v696
    %v711 = vunpack.c.h.b16 %v698
    %v712 = vunpack.c.h.b16 %v700
    %v713 = vpack.c.b16 %v706, %v705
    %v714 = vpack.c.b16 %v708, %v707
    %v715 = vpack.c.b16 %v710, %v709
    %v716 = vpack.c.b16 %v712, %v711
    %717 = vrot.lane.b32.xlu0 %v713, 101
    %v718 = vpop.permute.xlu0 %717
    %719 = vrot.lane.b32.xlu0 %v714, 101
    %v720 = vpop.permute.xlu0 %719
    %721 = vrot.lane.b32.xlu0 %v715, 101
    %v722 = vpop.permute.xlu0 %721
    %723 = vrot.lane.b32.xlu0 %v716, 101
    %v724 = vpop.permute.xlu0 %723
    %v725 = vrot.slane %v718, 4
    %v726 = vrot.slane %v720, 4
    %v727 = vrot.slane %v722, 4
    %v728 = vrot.slane %v724, 4
    %v729 = vsel %vm126, %v725, %v726
    %vm730 = vcmask 826368
    %v731 = vsel %vm730, %v718, %v729
    %v732 = vsel %vm730, %v720, %v726
    %v733 = vsel %vm126, %v727, %v728
    %v734 = vsel %vm730, %v722, %v733
    %v735 = vsel %vm730, %v724, %v728
    %740 = vst [vmem:[#allocation4 + $0x198] sm:$0xff] %v731
    %741 = vst [vmem:[#allocation4 + $0x1a0] sm:$0xf] %v732
    %742 = vst [vmem:[#allocation4 + $0x1a4] sm:$0xff] %v734
    %743 = vst [vmem:[#allocation4 + $0x1ac] sm:$0xf] %v735
    %744 = vrot.lane.b32.xlu0 %v597, 82
    %v745 = vpop.permute.xlu0 %744
    %746 = vrot.lane.b32.xlu0 %v598, 82
    %v747 = vpop.permute.xlu0 %746
    %748 = vrot.lane.b32.xlu0 %v599, 82
    %v749 = vpop.permute.xlu0 %748
    %750 = vrot.lane.b32.xlu0 %v600, 82
    %v751 = vpop.permute.xlu0 %750
    %v752 = vrot.slane %v745, 4
    %v753 = vrot.slane %v747, 4
    %v754 = vrot.slane %v749, 4
    %v755 = vrot.slane %v751, 4
    %v756 = vsel %vm126, %v752, %v753
    %vm757 = vcmask 670720
    %v758 = vsel %vm757, %v745, %v756
    %v759 = vsel %vm757, %v747, %v753
    %v760 = vsel %vm126, %v754, %v755
    %v761 = vsel %vm757, %v749, %v760
    %v762 = vsel %vm757, %v751, %v755
    %767 = vst [vmem:[#allocation4 + $0x1b0] sm:$0xff] %v758
    %768 = vst [vmem:[#allocation4 + $0x1b8] sm:$0xf] %v759
    %769 = vst [vmem:[#allocation4 + $0x1bc] sm:$0xff] %v761
    %770 = vst [vmem:[#allocation4 + $0x1c4] sm:$0xf] %v762
    %771 = vrot.lane.b32.xlu0 %v597, 80
    %v772 = vpop.permute.xlu0 %771
    %773 = vrot.lane.b32.xlu0 %v598, 80
    %v774 = vpop.permute.xlu0 %773
    %775 = vrot.lane.b32.xlu0 %v599, 80
    %v776 = vpop.permute.xlu0 %775
    %777 = vrot.lane.b32.xlu0 %v600, 80
    %v778 = vpop.permute.xlu0 %777
    %v779 = vrot.slane %v772, 4
    %v780 = vrot.slane %v774, 4
    %v781 = vrot.slane %v776, 4
    %v782 = vrot.slane %v778, 4
    %v783 = vsel %vm126, %v779, %v780
    %vm784 = vcmask 654336
    %v785 = vsel %vm784, %v772, %v783
    %v786 = vsel %vm784, %v774, %v780
    %v787 = vsel %vm126, %v781, %v782
    %v788 = vsel %vm784, %v776, %v787
    %v789 = vsel %vm784, %v778, %v782
    %794 = vst [vmem:[#allocation4 + $0x1c8] sm:$0xff] %v785
    %795 = vst [vmem:[#allocation4 + $0x1d0] sm:$0xf] %v786
    %796 = vst [vmem:[#allocation4 + $0x1d4] sm:$0xff] %v788
    %797 = vst [vmem:[#allocation4 + $0x1dc] sm:$0xf] %v789
    %798 = vrot.lane.b32.xlu0 %v597, 78
    %v799 = vpop.permute.xlu0 %798
    %800 = vrot.lane.b32.xlu0 %v598, 78
    %v801 = vpop.permute.xlu0 %800
    %802 = vrot.lane.b32.xlu0 %v599, 78
    %v803 = vpop.permute.xlu0 %802
    %804 = vrot.lane.b32.xlu0 %v600, 78
    %v805 = vpop.permute.xlu0 %804
    %v806 = vrot.slane %v799, 4
    %v807 = vrot.slane %v801, 4
    %v808 = vrot.slane %v803, 4
    %v809 = vrot.slane %v805, 4
    %v810 = vsel %vm126, %v806, %v807
    %vm811 = vcmask 637952
    %v812 = vsel %vm811, %v799, %v810
    %v813 = vsel %vm811, %v801, %v807
    %v814 = vsel %vm126, %v808, %v809
    %v815 = vsel %vm811, %v803, %v814
    %v816 = vsel %vm811, %v805, %v809
    %821 = vst [vmem:[#allocation4 + $0x1e0] sm:$0xff] %v812
    %822 = vst [vmem:[#allocation4 + $0x1e8] sm:$0xf] %v813
    %823 = vst [vmem:[#allocation4 + $0x1ec] sm:$0xff] %v815
    %824 = vst [vmem:[#allocation4 + $0x1f4] sm:$0xf] %v816
    %825 = vrot.lane.b32.xlu0 %v597, 59
    %v826 = vpop.permute.xlu0 %825
    %827 = vrot.lane.b32.xlu0 %v598, 59
    %v828 = vpop.permute.xlu0 %827
    %829 = vrot.lane.b32.xlu0 %v599, 59
    %v830 = vpop.permute.xlu0 %829
    %831 = vrot.lane.b32.xlu0 %v600, 59
    %v832 = vpop.permute.xlu0 %831
    %v833 = vrot.slane %v826, 4
    %v834 = vrot.slane %v828, 4
    %v835 = vrot.slane %v830, 4
    %v836 = vrot.slane %v832, 4
    %v837 = vsel %vm126, %v833, %v834
    %vm838 = vcmask 482304
    %v839 = vsel %vm838, %v826, %v837
    %v840 = vsel %vm838, %v828, %v834
    %v841 = vsel %vm126, %v835, %v836
    %v842 = vsel %vm838, %v830, %v841
    %v843 = vsel %vm838, %v832, %v836
    %848 = vst [vmem:[#allocation4 + $0x1f8] sm:$0xff] %v839
    %849 = vst [vmem:[#allocation4 + $0x200] sm:$0xf] %v840
    %850 = vst [vmem:[#allocation4 + $0x204] sm:$0xff] %v842
    %851 = vst [vmem:[#allocation4 + $0x20c] sm:$0xf] %v843
    %852 = vrot.lane.b32.xlu0 %v597, 57
    %v853 = vpop.permute.xlu0 %852
    %854 = vrot.lane.b32.xlu0 %v598, 57
    %v855 = vpop.permute.xlu0 %854
    %856 = vrot.lane.b32.xlu0 %v599, 57
    %v857 = vpop.permute.xlu0 %856
    %858 = vrot.lane.b32.xlu0 %v600, 57
    %v859 = vpop.permute.xlu0 %858
    %v860 = vrot.slane %v853, 4
    %v861 = vrot.slane %v855, 4
    %v862 = vrot.slane %v857, 4
    %v863 = vrot.slane %v859, 4
    %v864 = vsel %vm126, %v860, %v861
    %vm865 = vcmask 465920
    %v866 = vsel %vm865, %v853, %v864
    %v867 = vsel %vm865, %v855, %v861
    %v868 = vsel %vm126, %v862, %v863
    %v869 = vsel %vm865, %v857, %v868
    %v870 = vsel %vm865, %v859, %v863
    %875 = vst [vmem:[#allocation4 + $0x210] sm:$0xff] %v866
    %876 = vst [vmem:[#allocation4 + $0x218] sm:$0xf] %v867
    %877 = vst [vmem:[#allocation4 + $0x21c] sm:$0xff] %v869
    %878 = vst [vmem:[#allocation4 + $0x224] sm:$0xf] %v870
    %879 = vrot.lane.b32.xlu0 %v597, 55
    %v880 = vpop.permute.xlu0 %879
    %881 = vrot.lane.b32.xlu0 %v598, 55
    %v882 = vpop.permute.xlu0 %881
    %883 = vrot.lane.b32.xlu0 %v599, 55
    %v884 = vpop.permute.xlu0 %883
    %885 = vrot.lane.b32.xlu0 %v600, 55
    %v886 = vpop.permute.xlu0 %885
    %v887 = vrot.slane %v880, 4
    %v888 = vrot.slane %v882, 4
    %v889 = vrot.slane %v884, 4
    %v890 = vrot.slane %v886, 4
    %v891 = vsel %vm126, %v887, %v888
    %vm892 = vcmask 449536
    %v893 = vsel %vm892, %v880, %v891
    %v894 = vsel %vm892, %v882, %v888
    %v895 = vsel %vm126, %v889, %v890
    %v896 = vsel %vm892, %v884, %v895
    %v897 = vsel %vm892, %v886, %v890
    %902 = vst [vmem:[#allocation4 + $0x228] sm:$0xff] %v893
    %903 = vst [vmem:[#allocation4 + $0x230] sm:$0xf] %v894
    %904 = vst [vmem:[#allocation4 + $0x234] sm:$0xff] %v896
    %905 = vst [vmem:[#allocation4 + $0x23c] sm:$0xf] %v897
    %906 = vrot.lane.b32.xlu0 %v61, 53
    %v907 = vpop.permute.xlu0 %906
    %908 = vrot.lane.b32.xlu0 %v62, 53
    %v909 = vpop.permute.xlu0 %908
    %v910 = vrot.slane %v907, 4
    %v911 = vrot.slane %v909, 4
    %v912 = vsel %vm126, %v910, %v911
    %vm913 = vcmask 433152
    %v914 = vsel %vm913, %v907, %v912
    %v915 = vsel %vm913, %v909, %v911
    %918 = vst [vmem:[#allocation4 + $0x240] sm:$0xff] %v914
    %919 = vst [vmem:[#allocation4 + $0x248] sm:$0xf] %v915
    %v920 = vld [vmem:[%s1] sm:$0xff]
    %v921 = vld [vmem:[%s1 + $0x8] sm:$0xff]
    %v922 = vld [vmem:[#allocation4] sm:$0xff]
    %v923 = vld [vmem:[#allocation4 + $0x8] sm:$0xf]
    %v924 = vld [vmem:[#allocation4 + $0xc] sm:$0xff]
    %v925 = vld [vmem:[#allocation4 + $0x14] sm:$0xf]
    %v926 = vld [vmem:[#allocation4 + $0x18] sm:$0xff]
    %v927 = vld [vmem:[#allocation4 + $0x20] sm:$0xf]
    %v928 = vld [vmem:[#allocation4 + $0x24] sm:$0xff]
    %v929 = vld [vmem:[#allocation4 + $0x2c] sm:$0xf]
    %v930 = vld [vmem:[#allocation4 + $0x30] sm:$0xff]
    %v931 = vld [vmem:[#allocation4 + $0x38] sm:$0xf]
    %v932 = vld [vmem:[#allocation4 + $0x3c] sm:$0xff]
    %v933 = vld [vmem:[#allocation4 + $0x44] sm:$0xf]
    %v934 = vld [vmem:[#allocation4 + $0x48] sm:$0xff]
    %v935 = vld [vmem:[#allocation4 + $0x50] sm:$0xf]
    %v936 = vld [vmem:[#allocation4 + $0x54] sm:$0xff]
    %v937 = vld [vmem:[#allocation4 + $0x5c] sm:$0xf]
    %v938 = vld [vmem:[#allocation4 + $0x60] sm:$0xff]
    %v939 = vld [vmem:[#allocation4 + $0x68] sm:$0xf]
    %v940 = vld [vmem:[#allocation4 + $0x6c] sm:$0xff]
    %v941 = vld [vmem:[#allocation4 + $0x74] sm:$0xf]
    %v942 = vld [vmem:[#allocation4 + $0x78] sm:$0xff]
    %v943 = vld [vmem:[#allocation4 + $0x80] sm:$0xf]
    %v944 = vld [vmem:[#allocation4 + $0x84] sm:$0xff]
    %v945 = vld [vmem:[#allocation4 + $0x8c] sm:$0xf]
    %v946 = vld [vmem:[#allocation4 + $0x90] sm:$0xff]
    %v947 = vld [vmem:[#allocation4 + $0x98] sm:$0xf]
    %v948 = vld [vmem:[#allocation4 + $0x9c] sm:$0xff]
    %v949 = vld [vmem:[#allocation4 + $0xa4] sm:$0xf]
    %v950 = vld [vmem:[#allocation4 + $0xa8] sm:$0xff]
    %v951 = vld [vmem:[#allocation4 + $0xb0] sm:$0xf]
    %v952 = vld [vmem:[#allocation4 + $0xb4] sm:$0xff]
    %v953 = vld [vmem:[#allocation4 + $0xbc] sm:$0xf]
    %v954 = vld [vmem:[#allocation4 + $0xc0] sm:$0xff]
    %v955 = vld [vmem:[#allocation4 + $0xc8] sm:$0xf]
    %v956 = vld [vmem:[#allocation4 + $0xcc] sm:$0xff]
    %v957 = vld [vmem:[#allocation4 + $0xd4] sm:$0xf]
    %v958 = vld [vmem:[#allocation4 + $0xd8] sm:$0xff]
    %v959 = vld [vmem:[#allocation4 + $0xe0] sm:$0xf]
    %v960 = vld [vmem:[#allocation4 + $0xe4] sm:$0xff]
    %v961 = vld [vmem:[#allocation4 + $0xec] sm:$0xf]
    %v962 = vld [vmem:[#allocation4 + $0xf0] sm:$0xff]
    %v963 = vld [vmem:[#allocation4 + $0xf8] sm:$0xf]
    %v964 = vld [vmem:[#allocation4 + $0xfc] sm:$0xff]
    %v965 = vld [vmem:[#allocation4 + $0x104] sm:$0xf]
    %v966 = vld [vmem:[#allocation4 + $0x108] sm:$0xff]
    %v967 = vld [vmem:[#allocation4 + $0x110] sm:$0xf]
    %v968 = vld [vmem:[#allocation4 + $0x114] sm:$0xff]
    %v969 = vld [vmem:[#allocation4 + $0x11c] sm:$0xf]
    %v970 = vld [vmem:[#allocation4 + $0x120] sm:$0xff]
    %v971 = vld [vmem:[#allocation4 + $0x128] sm:$0xf]
    %v972 = vld [vmem:[#allocation4 + $0x12c] sm:$0xff]
    %v973 = vld [vmem:[#allocation4 + $0x134] sm:$0xf]
    %v974 = vld [vmem:[#allocation4 + $0x138] sm:$0xff]
    %v975 = vld [vmem:[#allocation4 + $0x140] sm:$0xf]
    %v976 = vld [vmem:[#allocation4 + $0x144] sm:$0xff]
    %v977 = vld [vmem:[#allocation4 + $0x14c] sm:$0xf]
    %v978 = vld [vmem:[#allocation4 + $0x150] sm:$0xff]
    %v979 = vld [vmem:[#allocation4 + $0x158] sm:$0xf]
    %v980 = vld [vmem:[#allocation4 + $0x15c] sm:$0xff]
    %v981 = vld [vmem:[#allocation4 + $0x164] sm:$0xf]
    %v982 = vld [vmem:[#allocation4 + $0x168] sm:$0xff]
    %v983 = vld [vmem:[#allocation4 + $0x170] sm:$0xf]
    %v984 = vld [vmem:[#allocation4 + $0x174] sm:$0xff]
    %v985 = vld [vmem:[#allocation4 + $0x17c] sm:$0xf]
    %v986 = vld [vmem:[#allocation4 + $0x180] sm:$0xff]
    %v987 = vld [vmem:[#allocation4 + $0x188] sm:$0xf]
    %v988 = vld [vmem:[#allocation4 + $0x18c] sm:$0xff]
    %v989 = vld [vmem:[#allocation4 + $0x194] sm:$0xf]
    %v990 = vld [vmem:[#allocation4 + $0x198] sm:$0xff]
    %v991 = vld [vmem:[#allocation4 + $0x1a0] sm:$0xf]
    %v992 = vld [vmem:[#allocation4 + $0x1a4] sm:$0xff]
    %v993 = vld [vmem:[#allocation4 + $0x1ac] sm:$0xf]
    %v994 = vld [vmem:[#allocation4 + $0x1b0] sm:$0xff]
    %v995 = vld [vmem:[#allocation4 + $0x1b8] sm:$0xf]
    %v996 = vld [vmem:[#allocation4 + $0x1bc] sm:$0xff]
    %v997 = vld [vmem:[#allocation4 + $0x1c4] sm:$0xf]
    %v998 = vld [vmem:[#allocation4 + $0x1c8] sm:$0xff]
    %v999 = vld [vmem:[#allocation4 + $0x1d0] sm:$0xf]
    %v1000 = vld [vmem:[#allocation4 + $0x1d4] sm:$0xff]
    %v1001 = vld [vmem:[#allocation4 + $0x1dc] sm:$0xf]
    %v1002 = vld [vmem:[#allocation4 + $0x1e0] sm:$0xff]
    %v1003 = vld [vmem:[#allocation4 + $0x1e8] sm:$0xf]
    %v1004 = vld [vmem:[#allocation4 + $0x1ec] sm:$0xff]
    %v1005 = vld [vmem:[#allocation4 + $0x1f4] sm:$0xf]
    %v1006 = vld [vmem:[#allocation4 + $0x1f8] sm:$0xff]
    %v1007 = vld [vmem:[#allocation4 + $0x200] sm:$0xf]
    %v1008 = vld [vmem:[#allocation4 + $0x204] sm:$0xff]
    %v1009 = vld [vmem:[#allocation4 + $0x20c] sm:$0xf]
    %v1010 = vld [vmem:[#allocation4 + $0x210] sm:$0xff]
    %v1011 = vld [vmem:[#allocation4 + $0x218] sm:$0xf]
    %v1012 = vld [vmem:[#allocation4 + $0x21c] sm:$0xff]
    %v1013 = vld [vmem:[#allocation4 + $0x224] sm:$0xf]
    %v1014 = vld [vmem:[#allocation4 + $0x228] sm:$0xff]
    %v1015 = vld [vmem:[#allocation4 + $0x230] sm:$0xf]
    %v1016 = vld [vmem:[#allocation4 + $0x234] sm:$0xff]
    %v1017 = vld [vmem:[#allocation4 + $0x23c] sm:$0xf]
    %v1018 = vld [vmem:[#allocation4 + $0x240] sm:$0xff]
    %v1019 = vld [vmem:[#allocation4 + $0x248] sm:$0xf]
    %v1020 = vld [vmem:[#allocation5] sm:$0xff]
    %1022 = vset.pattern.permute.xlu0 0
    %1023 = vperm.xlu0 %1022, %v1020
    %v1024 = vpop.permute.xlu0 %1023
    %v1028 = vunpack.c.l.b16 %v920
    %v1029 = vunpack.c.h.b16 %v920
    %v1030 = vunpack.c.l.b16 %v921
    %v1031 = vunpack.c.h.b16 %v921
    %v1032 = vpack.c.b16 %v1028, %v1028
    %v1033 = vpack.c.b16 %v1029, %v1029
    %v1034 = vpack.c.b16 %v1030, %v1030
    %v1035 = vpack.c.b16 %v1031, %v1031
    %v1137 = vunpack.c.l.b16 %v922
    %v1138 = vunpack.c.h.b16 %v922
    %v1139 = vunpack.c.l.b16 %v923
    %v1140 = vunpack.c.l.b16 %v924
    %v1141 = vunpack.c.h.b16 %v924
    %v1142 = vunpack.c.l.b16 %v925
    %v1143 = vunpack.c.l.b16 %v926
    %v1144 = vunpack.c.h.b16 %v926
    %v1145 = vunpack.c.l.b16 %v927
    %v1146 = vunpack.c.l.b16 %v928
    %v1147 = vunpack.c.h.b16 %v928
    %v1148 = vunpack.c.l.b16 %v929
    %v1149 = vunpack.c.l.b16 %v930
    %v1150 = vunpack.c.h.b16 %v930
    %v1151 = vunpack.c.l.b16 %v931
    %v1152 = vunpack.c.l.b16 %v932
    %v1153 = vunpack.c.h.b16 %v932
    %v1154 = vunpack.c.l.b16 %v933
    %v1155 = vunpack.c.l.b16 %v934
    %v1156 = vunpack.c.h.b16 %v934
    %v1157 = vunpack.c.l.b16 %v935
    %v1158 = vunpack.c.l.b16 %v936
    %v1159 = vunpack.c.h.b16 %v936
    %v1160 = vunpack.c.l.b16 %v937
    %v1161 = vunpack.c.l.b16 %v938
    %v1162 = vunpack.c.h.b16 %v938
    %v1163 = vunpack.c.l.b16 %v939
    %v1164 = vunpack.c.l.b16 %v940
    %v1165 = vunpack.c.h.b16 %v940
    %v1166 = vunpack.c.l.b16 %v941
    %v1167 = vunpack.c.l.b16 %v942
    %v1168 = vunpack.c.h.b16 %v942
    %v1169 = vunpack.c.l.b16 %v943
    %v1170 = vunpack.c.l.b16 %v944
    %v1171 = vunpack.c.h.b16 %v944
    %v1172 = vunpack.c.l.b16 %v945
    %v1173 = vunpack.c.l.b16 %v946
    %v1174 = vunpack.c.h.b16 %v946
    %v1175 = vunpack.c.l.b16 %v947
    %v1176 = vunpack.c.l.b16 %v948
    %v1177 = vunpack.c.h.b16 %v948
    %v1178 = vunpack.c.l.b16 %v949
    %v1179 = vunpack.c.l.b16 %v950
    %v1180 = vunpack.c.h.b16 %v950
    %v1181 = vunpack.c.l.b16 %v951
    %v1182 = vunpack.c.l.b16 %v952
    %v1183 = vunpack.c.h.b16 %v952
    %v1184 = vunpack.c.l.b16 %v953
    %v1185 = vunpack.c.l.b16 %v954
    %v1186 = vunpack.c.h.b16 %v954
    %v1187 = vunpack.c.l.b16 %v955
    %v1188 = vunpack.c.l.b16 %v956
    %v1189 = vunpack.c.h.b16 %v956
    %v1190 = vunpack.c.l.b16 %v957
    %v1191 = vunpack.c.l.b16 %v958
    %v1192 = vunpack.c.h.b16 %v958
    %v1193 = vunpack.c.l.b16 %v959
    %v1194 = vunpack.c.l.b16 %v960
    %v1195 = vunpack.c.h.b16 %v960
    %v1196 = vunpack.c.l.b16 %v961
    %v1197 = vunpack.c.l.b16 %v962
    %v1198 = vunpack.c.h.b16 %v962
    %v1199 = vunpack.c.l.b16 %v963
    %v1200 = vunpack.c.l.b16 %v964
    %v1201 = vunpack.c.h.b16 %v964
    %v1202 = vunpack.c.l.b16 %v965
    %v1203 = vunpack.c.l.b16 %v966
    %v1204 = vunpack.c.h.b16 %v966
    %v1205 = vunpack.c.l.b16 %v967
    %v1206 = vunpack.c.l.b16 %v968
    %v1207 = vunpack.c.h.b16 %v968
    %v1208 = vunpack.c.l.b16 %v969
    %v1209 = vunpack.c.l.b16 %v970
    %v1210 = vunpack.c.h.b16 %v970
    %v1211 = vunpack.c.l.b16 %v971
    %v1212 = vunpack.c.l.b16 %v972
    %v1213 = vunpack.c.h.b16 %v972
    %v1214 = vunpack.c.l.b16 %v973
    %v1215 = vunpack.c.l.b16 %v974
    %v1216 = vunpack.c.h.b16 %v974
    %v1217 = vunpack.c.l.b16 %v975
    %v1218 = vunpack.c.l.b16 %v976
    %v1219 = vunpack.c.h.b16 %v976
    %v1220 = vunpack.c.l.b16 %v977
    %v1221 = vunpack.c.l.b16 %v978
    %v1222 = vunpack.c.h.b16 %v978
    %v1223 = vunpack.c.l.b16 %v979
    %v1224 = vunpack.c.l.b16 %v980
    %v1225 = vunpack.c.h.b16 %v980
    %v1226 = vunpack.c.l.b16 %v981
    %v1227 = vunpack.c.l.b16 %v982
    %v1228 = vunpack.c.h.b16 %v982
    %v1229 = vunpack.c.l.b16 %v983
    %v1230 = vunpack.c.l.b16 %v984
    %v1231 = vunpack.c.h.b16 %v984
    %v1232 = vunpack.c.l.b16 %v985
    %v1233 = vunpack.c.l.b16 %v986
    %v1234 = vunpack.c.h.b16 %v986
    %v1235 = vunpack.c.l.b16 %v987
    %v1236 = vunpack.c.l.b16 %v988
    %v1237 = vunpack.c.h.b16 %v988
    %v1238 = vunpack.c.l.b16 %v989
    %v1239 = vunpack.c.l.b16 %v990
    %v1240 = vunpack.c.h.b16 %v990
    %v1241 = vunpack.c.l.b16 %v991
    %v1242 = vunpack.c.l.b16 %v992
    %v1243 = vunpack.c.h.b16 %v992
    %v1244 = vunpack.c.l.b16 %v993
    %v1245 = vunpack.c.l.b16 %v994
    %v1246 = vunpack.c.h.b16 %v994
    %v1247 = vunpack.c.l.b16 %v995
    %v1248 = vunpack.c.l.b16 %v996
    %v1249 = vunpack.c.h.b16 %v996
    %v1250 = vunpack.c.l.b16 %v997
    %v1251 = vunpack.c.l.b16 %v998
    %v1252 = vunpack.c.h.b16 %v998
    %v1253 = vunpack.c.l.b16 %v999
    %v1254 = vunpack.c.l.b16 %v1000
    %v1255 = vunpack.c.h.b16 %v1000
    %v1256 = vunpack.c.l.b16 %v1001
    %v1257 = vunpack.c.l.b16 %v1002
    %v1258 = vunpack.c.h.b16 %v1002
    %v1259 = vunpack.c.l.b16 %v1003
    %v1260 = vunpack.c.l.b16 %v1004
    %v1261 = vunpack.c.h.b16 %v1004
    %v1262 = vunpack.c.l.b16 %v1005
    %v1263 = vunpack.c.l.b16 %v1006
    %v1264 = vunpack.c.h.b16 %v1006
    %v1265 = vunpack.c.l.b16 %v1007
    %v1266 = vunpack.c.l.b16 %v1008
    %v1267 = vunpack.c.h.b16 %v1008
    %v1268 = vunpack.c.l.b16 %v1009
    %v1269 = vunpack.c.l.b16 %v1010
    %v1270 = vunpack.c.h.b16 %v1010
    %v1271 = vunpack.c.l.b16 %v1011
    %v1272 = vunpack.c.l.b16 %v1012
    %v1273 = vunpack.c.h.b16 %v1012
    %v1274 = vunpack.c.l.b16 %v1013
    %v1275 = vunpack.c.l.b16 %v1014
    %v1276 = vunpack.c.h.b16 %v1014
    %v1277 = vunpack.c.l.b16 %v1015
    %v1278 = vunpack.c.l.b16 %v1016
    %v1279 = vunpack.c.h.b16 %v1016
    %v1280 = vunpack.c.l.b16 %v1017
    %v1281 = vunpack.c.l.b16 %v1018
    %v1282 = vunpack.c.h.b16 %v1018
    %v1283 = vunpack.c.l.b16 %v1019
    %v1284 = vpack.c.b16 %v1140, %v1137
    %v1285 = vpack.c.b16 %v1141, %v1138
    %v1286 = vpack.c.b16 %v1142, %v1139
    %v1287 = vpack.c.b16 %v1146, %v1143
    %v1288 = vpack.c.b16 %v1147, %v1144
    %v1289 = vpack.c.b16 %v1148, %v1145
    %v1290 = vpack.c.b16 %v1152, %v1149
    %v1291 = vpack.c.b16 %v1153, %v1150
    %v1292 = vpack.c.b16 %v1154, %v1151
    %v1293 = vpack.c.b16 %v1158, %v1155
    %v1294 = vpack.c.b16 %v1159, %v1156
    %v1295 = vpack.c.b16 %v1160, %v1157
    %v1296 = vpack.c.b16 %v1164, %v1161
    %v1297 = vpack.c.b16 %v1165, %v1162
    %v1298 = vpack.c.b16 %v1166, %v1163
    %v1299 = vpack.c.b16 %v1170, %v1167
    %v1300 = vpack.c.b16 %v1171, %v1168
    %v1301 = vpack.c.b16 %v1172, %v1169
    %v1302 = vpack.c.b16 %v1176, %v1173
    %v1303 = vpack.c.b16 %v1177, %v1174
    %v1304 = vpack.c.b16 %v1178, %v1175
    %v1305 = vpack.c.b16 %v1182, %v1179
    %v1306 = vpack.c.b16 %v1183, %v1180
    %v1307 = vpack.c.b16 %v1184, %v1181
    %v1308 = vpack.c.b16 %v1188, %v1185
    %v1309 = vpack.c.b16 %v1189, %v1186
    %v1310 = vpack.c.b16 %v1190, %v1187
    %v1311 = vpack.c.b16 %v1194, %v1191
    %v1312 = vpack.c.b16 %v1195, %v1192
    %v1313 = vpack.c.b16 %v1196, %v1193
    %v1314 = vpack.c.b16 %v1200, %v1197
    %v1315 = vpack.c.b16 %v1201, %v1198
    %v1316 = vpack.c.b16 %v1202, %v1199
    %v1317 = vpack.c.b16 %v1206, %v1203
    %v1318 = vpack.c.b16 %v1207, %v1204
    %v1319 = vpack.c.b16 %v1208, %v1205
    %v1320 = vpack.c.b16 %v1212, %v1209
    %v1321 = vpack.c.b16 %v1213, %v1210
    %v1322 = vpack.c.b16 %v1214, %v1211
    %v1323 = vpack.c.b16 %v1218, %v1215
    %v1324 = vpack.c.b16 %v1219, %v1216
    %v1325 = vpack.c.b16 %v1220, %v1217
    %v1326 = vpack.c.b16 %v1224, %v1221
    %v1327 = vpack.c.b16 %v1225, %v1222
    %v1328 = vpack.c.b16 %v1226, %v1223
    %v1329 = vpack.c.b16 %v1230, %v1227
    %v1330 = vpack.c.b16 %v1231, %v1228
    %v1331 = vpack.c.b16 %v1232, %v1229
    %v1332 = vpack.c.b16 %v1236, %v1233
    %v1333 = vpack.c.b16 %v1237, %v1234
    %v1334 = vpack.c.b16 %v1238, %v1235
    %v1335 = vpack.c.b16 %v1242, %v1239
    %v1336 = vpack.c.b16 %v1243, %v1240
    %v1337 = vpack.c.b16 %v1244, %v1241
    %v1338 = vpack.c.b16 %v1248, %v1245
    %v1339 = vpack.c.b16 %v1249, %v1246
    %v1340 = vpack.c.b16 %v1250, %v1247
    %v1341 = vpack.c.b16 %v1254, %v1251
    %v1342 = vpack.c.b16 %v1255, %v1252
    %v1343 = vpack.c.b16 %v1256, %v1253
    %v1344 = vpack.c.b16 %v1260, %v1257
    %v1345 = vpack.c.b16 %v1261, %v1258
    %v1346 = vpack.c.b16 %v1262, %v1259
    %v1347 = vpack.c.b16 %v1266, %v1263
    %v1348 = vpack.c.b16 %v1267, %v1264
    %v1349 = vpack.c.b16 %v1268, %v1265
    %v1350 = vpack.c.b16 %v1272, %v1269
    %v1351 = vpack.c.b16 %v1273, %v1270
    %v1352 = vpack.c.b16 %v1274, %v1271
    %v1353 = vpack.c.b16 %v1278, %v1275
    %v1354 = vpack.c.b16 %v1279, %v1276
    %v1355 = vpack.c.b16 %v1280, %v1277
    %v1356 = vpack.c.b16 %v1281, %v1281
    %v1357 = vpack.c.b16 %v1282, %v1282
    %v1358 = vpack.c.b16 %v1283, %v1283
    %vm1431 = vcmask 64512
    %v1433 = vsel %vm1431, %v1035, 0
    %v1436 = vsel %vm85, %v1356, 0
    %v1439 = vsel %vm85, %v1357, 0
    %v1442 = vsel %vm85, %v1358, 0
    %1444 = vmatpush.bf16.msra.mxu0 %v1305
    %1445 = vmatpush.bf16.msra.mxu0 %v1302
    %1446 = vmatpush.bf16.msra.mxu0 %v1299
    %1447 = vmatpush.bf16.msra.mxu0 %v1296
    %1448 = vmatpush.bf16.msra.mxu0 %v1293
    %1449 = vmatpush.bf16.msra.mxu0 %v1290
    %1450 = vmatpush.bf16.msra.mxu0 %v1287
    %1451 = vmatpush.bf16.msra.mxu0 %v1284
    %1452 = vmatmul.bf16.gmra.mxu0 %v1032
    %v1453 = vpop.f32.mrf.mxu0
    %v1454 = vadd.f32 %v1024, %v1453
    %v1455 = vpop.f32.mrf.mxu0
    %1456 = vdwg.mxu0
    %1457 = vmatpush.bf16.msra.mxu0 %v1329
    %1458 = vmatpush.bf16.msra.mxu0 %v1326
    %1459 = vmatpush.bf16.msra.mxu0 %v1323
    %1460 = vmatpush.bf16.msra.mxu0 %v1320
    %1461 = vmatpush.bf16.msra.mxu0 %v1317
    %1462 = vmatpush.bf16.msra.mxu0 %v1314
    %1463 = vmatpush.bf16.msra.mxu0 %v1311
    %1464 = vmatpush.bf16.msra.mxu0 %v1308
    %1465 = vmatmul.bf16.gmra.mxu0 %v1033
    %v1466 = vpop.f32.mrf.mxu0
    %v1467 = vadd.f32 %v1454, %v1466
    %v1468 = vpop.f32.mrf.mxu0
    %1469 = vdwg.mxu0
    %1470 = vmatpush.bf16.msra.mxu0 %v1353
    %1471 = vmatpush.bf16.msra.mxu0 %v1350
    %1472 = vmatpush.bf16.msra.mxu0 %v1347
    %1473 = vmatpush.bf16.msra.mxu0 %v1344
    %1474 = vmatpush.bf16.msra.mxu0 %v1341
    %1475 = vmatpush.bf16.msra.mxu0 %v1338
    %1476 = vmatpush.bf16.msra.mxu0 %v1335
    %1477 = vmatpush.bf16.msra.mxu0 %v1332
    %1478 = vmatmul.bf16.gmra.mxu0 %v1034
    %v1479 = vpop.f32.mrf.mxu0
    %v1480 = vadd.f32 %v1467, %v1479
    %v1481 = vpop.f32.mrf.mxu0
    %1482 = vdwg.mxu0
    %1483 = vmatpush.bf16.msra.mxu0 0
    %1484 = vmatpush.bf16.msra.mxu0 0
    %1485 = vmatpush.bf16.msra.mxu0 0
    %1486 = vmatpush.bf16.msra.mxu0 0
    %1487 = vmatpush.bf16.msra.mxu0 0
    %1488 = vmatpush.bf16.msra.mxu0 0
    %1489 = vmatpush.bf16.msra.mxu0 0
    %1490 = vmatpush.bf16.msra.mxu0 %v1436
    %1491 = vmatmul.bf16.gmra.mxu0 %v1433
    %v1492 = vpop.f32.mrf.mxu0
    %v1493 = vadd.f32 %v1480, %v1492
    %v1494 = vpop.f32.mrf.mxu0
    %1495 = vdwg.mxu0
    %1496 = vmatpush.bf16.msra.mxu0 %v1306
    %1497 = vmatpush.bf16.msra.mxu0 %v1303
    %1498 = vmatpush.bf16.msra.mxu0 %v1300
    %1499 = vmatpush.bf16.msra.mxu0 %v1297
    %1500 = vmatpush.bf16.msra.mxu0 %v1294
    %1501 = vmatpush.bf16.msra.mxu0 %v1291
    %1502 = vmatpush.bf16.msra.mxu0 %v1288
    %1503 = vmatpush.bf16.msra.mxu0 %v1285
    %1504 = vmatmul.bf16.gmra.mxu0 %v1032
    %v1505 = vpop.f32.mrf.mxu0
    %v1506 = vadd.f32 %v1024, %v1505
    %v1507 = vpop.f32.mrf.mxu0
    %1508 = vdwg.mxu0
    %1509 = vmatpush.bf16.msra.mxu0 %v1330
    %1510 = vmatpush.bf16.msra.mxu0 %v1327
    %1511 = vmatpush.bf16.msra.mxu0 %v1324
    %1512 = vmatpush.bf16.msra.mxu0 %v1321
    %1513 = vmatpush.bf16.msra.mxu0 %v1318
    %1514 = vmatpush.bf16.msra.mxu0 %v1315
    %1515 = vmatpush.bf16.msra.mxu0 %v1312
    %1516 = vmatpush.bf16.msra.mxu0 %v1309
    %1517 = vmatmul.bf16.gmra.mxu0 %v1033
    %v1518 = vpop.f32.mrf.mxu0
    %v1519 = vadd.f32 %v1506, %v1518
    %v1520 = vpop.f32.mrf.mxu0
    %1521 = vdwg.mxu0
    %1522 = vmatpush.bf16.msra.mxu0 %v1354
    %1523 = vmatpush.bf16.msra.mxu0 %v1351
    %1524 = vmatpush.bf16.msra.mxu0 %v1348
    %1525 = vmatpush.bf16.msra.mxu0 %v1345
    %1526 = vmatpush.bf16.msra.mxu0 %v1342
    %1527 = vmatpush.bf16.msra.mxu0 %v1339
    %1528 = vmatpush.bf16.msra.mxu0 %v1336
    %1529 = vmatpush.bf16.msra.mxu0 %v1333
    %1530 = vmatmul.bf16.gmra.mxu0 %v1034
    %v1531 = vpop.f32.mrf.mxu0
    %v1532 = vadd.f32 %v1519, %v1531
    %v1533 = vpop.f32.mrf.mxu0
    %1534 = vdwg.mxu0
    %1535 = vmatpush.bf16.msra.mxu0 0
    %1536 = vmatpush.bf16.msra.mxu0 0
    %1537 = vmatpush.bf16.msra.mxu0 0
    %1538 = vmatpush.bf16.msra.mxu0 0
    %1539 = vmatpush.bf16.msra.mxu0 0
    %1540 = vmatpush.bf16.msra.mxu0 0
    %1541 = vmatpush.bf16.msra.mxu0 0
    %1542 = vmatpush.bf16.msra.mxu0 %v1439
    %1543 = vmatmul.bf16.gmra.mxu0 %v1433
    %v1544 = vpop.f32.mrf.mxu0
    %v1545 = vadd.f32 %v1532, %v1544
    %v1546 = vpop.f32.mrf.mxu0
    %1547 = vdwg.mxu0
    %1548 = vmatpush.bf16.msra.mxu0 %v1307
    %1549 = vmatpush.bf16.msra.mxu0 %v1304
    %1550 = vmatpush.bf16.msra.mxu0 %v1301
    %1551 = vmatpush.bf16.msra.mxu0 %v1298
    %1552 = vmatpush.bf16.msra.mxu0 %v1295
    %1553 = vmatpush.bf16.msra.mxu0 %v1292
    %1554 = vmatpush.bf16.msra.mxu0 %v1289
    %1555 = vmatpush.bf16.msra.mxu0 %v1286
    %1556 = vmatmul.bf16.gmra.mxu0 %v1032
    %v1557 = vpop.f32.mrf.mxu0
    %v1558 = vadd.f32 %v1024, %v1557
    %v1559 = vpop.f32.mrf.mxu0
    %1560 = vdwg.mxu0
    %1561 = vmatpush.bf16.msra.mxu0 %v1331
    %1562 = vmatpush.bf16.msra.mxu0 %v1328
    %1563 = vmatpush.bf16.msra.mxu0 %v1325
    %1564 = vmatpush.bf16.msra.mxu0 %v1322
    %1565 = vmatpush.bf16.msra.mxu0 %v1319
    %1566 = vmatpush.bf16.msra.mxu0 %v1316
    %1567 = vmatpush.bf16.msra.mxu0 %v1313
    %1568 = vmatpush.bf16.msra.mxu0 %v1310
    %1569 = vmatmul.bf16.gmra.mxu0 %v1033
    %v1570 = vpop.f32.mrf.mxu0
    %v1571 = vadd.f32 %v1558, %v1570
    %v1572 = vpop.f32.mrf.mxu0
    %1573 = vdwg.mxu0
    %1574 = vmatpush.bf16.msra.mxu0 %v1355
    %1575 = vmatpush.bf16.msra.mxu0 %v1352
    %1576 = vmatpush.bf16.msra.mxu0 %v1349
    %1577 = vmatpush.bf16.msra.mxu0 %v1346
    %1578 = vmatpush.bf16.msra.mxu0 %v1343
    %1579 = vmatpush.bf16.msra.mxu0 %v1340
    %1580 = vmatpush.bf16.msra.mxu0 %v1337
    %1581 = vmatpush.bf16.msra.mxu0 %v1334
    %1582 = vmatmul.bf16.gmra.mxu0 %v1034
    %v1583 = vpop.f32.mrf.mxu0
    %v1584 = vadd.f32 %v1571, %v1583
    %v1585 = vpop.f32.mrf.mxu0
    %1586 = vdwg.mxu0
    %1587 = vmatpush.bf16.msra.mxu0 0
    %1588 = vmatpush.bf16.msra.mxu0 0
    %1589 = vmatpush.bf16.msra.mxu0 0
    %1590 = vmatpush.bf16.msra.mxu0 0
    %1591 = vmatpush.bf16.msra.mxu0 0
    %1592 = vmatpush.bf16.msra.mxu0 0
    %1593 = vmatpush.bf16.msra.mxu0 0
    %1594 = vmatpush.bf16.msra.mxu0 %v1442
    %1595 = vmatmul.bf16.gmra.mxu0 %v1433
    %v1596 = vpop.f32.mrf.mxu0
    %v1597 = vadd.f32 %v1584, %v1596
    %v1598 = vpop.f32.mrf.mxu0
    %1599 = vdwg.mxu0
    %s1600 = sld [smem:[#allocation8]]
    %vm1601 = vcmp.ge.f32.partialorder %v1493, 0.0
    %vm1602 = vcmp.ge.f32.partialorder %v1545, 0.0
    %vm1603 = vcmp.ge.f32.partialorder %v1597, 0.0
    %v1604 = vstv %s1600
    %v1605 = vmul.f32 %v1604, %v1493
    %v1606 = vmul.f32 %v1604, %v1545
    %v1607 = vmul.f32 %v1604, %v1597
    %v1608 = vsel %vm1601, %v1493, %v1605
    %v1609 = vsel %vm1602, %v1545, %v1606
    %v1610 = vsel %vm1603, %v1597, %v1607
    %v1612 = vperm.slane %v57, 0
    %v1613 = vperm.slane %v57, 1
    %v1614 = vperm.slane %v57, 2
    %v1618 = vmul.f32 %v1608, %v1612
    %v1619 = vmul.f32 %v1609, %v1613
    %v1620 = vmul.f32 %v1610, %v1614
    %v1621 = vpack.c.bf16 %v1619, %v1618
    %v1622 = vpack.c.bf16 %v1620, %v1620
    %1623 = vst [vmem:[#allocation2 + $0x4] sm:$0xff] %v1621
    %1624 = vst [vmem:[#allocation2 + $0xc] sm:$0xf] %v1622
    %v1625 = vld [vmem:[#allocation2] sm:$0xff]
    %v1626 = vld [vmem:[#allocation2 + $0x8] sm:$0xff]
    %v1627 = vld [vmem:[#allocation2 + $0x10] sm:$0xf]
    %v1628 = vld [vmem:[#allocation2 + $0x4] sm:$0xff]
    %v1629 = vld [vmem:[#allocation2 + $0xc] sm:$0xff]
    %v1632 = vunpack.c.l.b16 %v1625
    %v1633 = vunpack.c.h.b16 %v1625
    %v1634 = vunpack.c.l.b16 %v1626
    %v1635 = vunpack.c.h.b16 %v1626
    %v1636 = vpack.c.b16 %v1632, %v1632
    %v1637 = vpack.c.b16 %v1633, %v1633
    %v1638 = vpack.c.b16 %v1634, %v1634
    %v1639 = vpack.c.b16 %v1635, %v1635
    %1640 = vrot.lane.b32.xlu0 %v1636, 127
    %v1641 = vpop.permute.xlu0 %1640
    %1642 = vrot.lane.b32.xlu0 %v1637, 127
    %v1643 = vpop.permute.xlu0 %1642
    %1644 = vrot.lane.b32.xlu0 %v1638, 127
    %v1645 = vpop.permute.xlu0 %1644
    %1646 = vrot.lane.b32.xlu0 %v1639, 127
    %v1647 = vpop.permute.xlu0 %1646
    %v1648 = vsel %vm81, %v1641, %v1643
    %v1649 = vsel %vm81, %v1643, %v1645
    %v1650 = vsel %vm81, %v1645, %v1647
    %v1653 = vsel %vm85, %v1636, %v1648
    %v1656 = vsel %vm85, %v1637, %v1649
    %v1659 = vsel %vm85, %v1638, %v1650
    %v1662 = vsel %vm85, %v1639, %v1647
    %v1667 = vunpack.c.l.b16 %v1653
    %v1668 = vunpack.c.l.b16 %v1656
    %v1669 = vunpack.c.l.b16 %v1659
    %v1670 = vunpack.c.l.b16 %v1662
    %v1671 = vunpack.c.h.b16 %v1653
    %v1672 = vunpack.c.h.b16 %v1656
    %v1673 = vunpack.c.h.b16 %v1659
    %v1674 = vunpack.c.h.b16 %v1662
    %v1675 = vpack.c.b16 %v1668, %v1667
    %v1676 = vpack.c.b16 %v1670, %v1669
    %v1677 = vpack.c.b16 %v1672, %v1671
    %v1678 = vpack.c.b16 %v1674, %v1673
    %1679 = vrot.lane.b32.xlu0 %v1675, 75
    %v1680 = vpop.permute.xlu0 %1679
    %1681 = vrot.lane.b32.xlu0 %v1676, 75
    %v1682 = vpop.permute.xlu0 %1681
    %1683 = vrot.lane.b32.xlu0 %v1677, 75
    %v1684 = vpop.permute.xlu0 %1683
    %1685 = vrot.lane.b32.xlu0 %v1678, 75
    %v1686 = vpop.permute.xlu0 %1685
    %v1687 = vrot.slane %v1680, 4
    %v1688 = vrot.slane %v1682, 4
    %v1689 = vrot.slane %v1684, 4
    %v1690 = vrot.slane %v1686, 4
    %v1691 = vsel %vm126, %v1687, %v1688
    %v1692 = vsel %vm128, %v1680, %v1691
    %v1693 = vsel %vm128, %v1682, %v1688
    %v1694 = vsel %vm126, %v1689, %v1690
    %v1695 = vsel %vm128, %v1684, %v1694
    %v1696 = vsel %vm128, %v1686, %v1690
    %1701 = vst [vmem:[#allocation4] sm:$0xff] %v1692
    %1702 = vst [vmem:[#allocation4 + $0x8] sm:$0xf] %v1693
    %1703 = vst [vmem:[#allocation4 + $0xc] sm:$0xff] %v1695
    %1704 = vst [vmem:[#allocation4 + $0x14] sm:$0xf] %v1696
    %1705 = vrot.lane.b32.xlu0 %v1675, 73
    %v1706 = vpop.permute.xlu0 %1705
    %1707 = vrot.lane.b32.xlu0 %v1676, 73
    %v1708 = vpop.permute.xlu0 %1707
    %1709 = vrot.lane.b32.xlu0 %v1677, 73
    %v1710 = vpop.permute.xlu0 %1709
    %1711 = vrot.lane.b32.xlu0 %v1678, 73
    %v1712 = vpop.permute.xlu0 %1711
    %v1713 = vrot.slane %v1706, 4
    %v1714 = vrot.slane %v1708, 4
    %v1715 = vrot.slane %v1710, 4
    %v1716 = vrot.slane %v1712, 4
    %v1717 = vsel %vm126, %v1713, %v1714
    %v1718 = vsel %vm155, %v1706, %v1717
    %v1719 = vsel %vm155, %v1708, %v1714
    %v1720 = vsel %vm126, %v1715, %v1716
    %v1721 = vsel %vm155, %v1710, %v1720
    %v1722 = vsel %vm155, %v1712, %v1716
    %1727 = vst [vmem:[#allocation4 + $0x18] sm:$0xff] %v1718
    %1728 = vst [vmem:[#allocation4 + $0x20] sm:$0xf] %v1719
    %1729 = vst [vmem:[#allocation4 + $0x24] sm:$0xff] %v1721
    %1730 = vst [vmem:[#allocation4 + $0x2c] sm:$0xf] %v1722
    %1731 = vrot.lane.b32.xlu0 %v1675, 71
    %v1732 = vpop.permute.xlu0 %1731
    %1733 = vrot.lane.b32.xlu0 %v1676, 71
    %v1734 = vpop.permute.xlu0 %1733
    %1735 = vrot.lane.b32.xlu0 %v1677, 71
    %v1736 = vpop.permute.xlu0 %1735
    %1737 = vrot.lane.b32.xlu0 %v1678, 71
    %v1738 = vpop.permute.xlu0 %1737
    %v1739 = vrot.slane %v1732, 4
    %v1740 = vrot.slane %v1734, 4
    %v1741 = vrot.slane %v1736, 4
    %v1742 = vrot.slane %v1738, 4
    %v1743 = vsel %vm126, %v1739, %v1740
    %v1744 = vsel %vm182, %v1732, %v1743
    %v1745 = vsel %vm182, %v1734, %v1740
    %v1746 = vsel %vm126, %v1741, %v1742
    %v1747 = vsel %vm182, %v1736, %v1746
    %v1748 = vsel %vm182, %v1738, %v1742
    %1753 = vst [vmem:[#allocation4 + $0x30] sm:$0xff] %v1744
    %1754 = vst [vmem:[#allocation4 + $0x38] sm:$0xf] %v1745
    %1755 = vst [vmem:[#allocation4 + $0x3c] sm:$0xff] %v1747
    %1756 = vst [vmem:[#allocation4 + $0x44] sm:$0xf] %v1748
    %1757 = vrot.lane.b32.xlu0 %v1636, 110
    %v1758 = vpop.permute.xlu0 %1757
    %1759 = vrot.lane.b32.xlu0 %v1637, 110
    %v1760 = vpop.permute.xlu0 %1759
    %1761 = vrot.lane.b32.xlu0 %v1638, 110
    %v1762 = vpop.permute.xlu0 %1761
    %1763 = vrot.lane.b32.xlu0 %v1639, 110
    %v1764 = vpop.permute.xlu0 %1763
    %v1765 = vsel %vm204, %v1758, %v1760
    %v1766 = vsel %vm204, %v1760, %v1762
    %v1767 = vsel %vm204, %v1762, %v1764
    %v1769 = vsel %vm85, %v1636, %v1765
    %v1771 = vsel %vm85, %v1637, %v1766
    %v1773 = vsel %vm85, %v1638, %v1767
    %v1775 = vsel %vm85, %v1639, %v1764
    %v1780 = vunpack.c.l.b16 %v1769
    %v1781 = vunpack.c.l.b16 %v1771
    %v1782 = vunpack.c.l.b16 %v1773
    %v1783 = vunpack.c.l.b16 %v1775
    %v1784 = vunpack.c.h.b16 %v1769
    %v1785 = vunpack.c.h.b16 %v1771
    %v1786 = vunpack.c.h.b16 %v1773
    %v1787 = vunpack.c.h.b16 %v1775
    %v1788 = vpack.c.b16 %v1781, %v1780
    %v1789 = vpack.c.b16 %v1783, %v1782
    %v1790 = vpack.c.b16 %v1785, %v1784
    %v1791 = vpack.c.b16 %v1787, %v1786
    %1792 = vrot.lane.b32.xlu0 %v1788, 69
    %v1793 = vpop.permute.xlu0 %1792
    %1794 = vrot.lane.b32.xlu0 %v1789, 69
    %v1795 = vpop.permute.xlu0 %1794
    %1796 = vrot.lane.b32.xlu0 %v1790, 69
    %v1797 = vpop.permute.xlu0 %1796
    %1798 = vrot.lane.b32.xlu0 %v1791, 69
    %v1799 = vpop.permute.xlu0 %1798
    %v1800 = vrot.slane %v1793, 4
    %v1801 = vrot.slane %v1795, 4
    %v1802 = vrot.slane %v1797, 4
    %v1803 = vrot.slane %v1799, 4
    %v1804 = vsel %vm126, %v1800, %v1801
    %v1805 = vsel %vm245, %v1793, %v1804
    %v1806 = vsel %vm245, %v1795, %v1801
    %v1807 = vsel %vm126, %v1802, %v1803
    %v1808 = vsel %vm245, %v1797, %v1807
    %v1809 = vsel %vm245, %v1799, %v1803
    %1814 = vst [vmem:[#allocation4 + $0x48] sm:$0xff] %v1805
    %1815 = vst [vmem:[#allocation4 + $0x50] sm:$0xf] %v1806
    %1816 = vst [vmem:[#allocation4 + $0x54] sm:$0xff] %v1808
    %1817 = vst [vmem:[#allocation4 + $0x5c] sm:$0xf] %v1809
    %1818 = vrot.lane.b32.xlu0 %v1675, 50
    %v1819 = vpop.permute.xlu0 %1818
    %1820 = vrot.lane.b32.xlu0 %v1676, 50
    %v1821 = vpop.permute.xlu0 %1820
    %1822 = vrot.lane.b32.xlu0 %v1677, 50
    %v1823 = vpop.permute.xlu0 %1822
    %1824 = vrot.lane.b32.xlu0 %v1678, 50
    %v1825 = vpop.permute.xlu0 %1824
    %v1826 = vrot.slane %v1819, 4
    %v1827 = vrot.slane %v1821, 4
    %v1828 = vrot.slane %v1823, 4
    %v1829 = vrot.slane %v1825, 4
    %v1830 = vsel %vm126, %v1826, %v1827
    %v1831 = vsel %vm272, %v1819, %v1830
    %v1832 = vsel %vm272, %v1821, %v1827
    %v1833 = vsel %vm126, %v1828, %v1829
    %v1834 = vsel %vm272, %v1823, %v1833
    %v1835 = vsel %vm272, %v1825, %v1829
    %1840 = vst [vmem:[#allocation4 + $0x60] sm:$0xff] %v1831
    %1841 = vst [vmem:[#allocation4 + $0x68] sm:$0xf] %v1832
    %1842 = vst [vmem:[#allocation4 + $0x6c] sm:$0xff] %v1834
    %1843 = vst [vmem:[#allocation4 + $0x74] sm:$0xf] %v1835
    %1844 = vrot.lane.b32.xlu0 %v1675, 48
    %v1845 = vpop.permute.xlu0 %1844
    %1846 = vrot.lane.b32.xlu0 %v1676, 48
    %v1847 = vpop.permute.xlu0 %1846
    %1848 = vrot.lane.b32.xlu0 %v1677, 48
    %v1849 = vpop.permute.xlu0 %1848
    %1850 = vrot.lane.b32.xlu0 %v1678, 48
    %v1851 = vpop.permute.xlu0 %1850
    %v1852 = vrot.slane %v1845, 4
    %v1853 = vrot.slane %v1847, 4
    %v1854 = vrot.slane %v1849, 4
    %v1855 = vrot.slane %v1851, 4
    %v1856 = vsel %vm126, %v1852, %v1853
    %v1857 = vsel %vm299, %v1845, %v1856
    %v1858 = vsel %vm299, %v1847, %v1853
    %v1859 = vsel %vm126, %v1854, %v1855
    %v1860 = vsel %vm299, %v1849, %v1859
    %v1861 = vsel %vm299, %v1851, %v1855
    %1866 = vst [vmem:[#allocation4 + $0x78] sm:$0xff] %v1857
    %1867 = vst [vmem:[#allocation4 + $0x80] sm:$0xf] %v1858
    %1868 = vst [vmem:[#allocation4 + $0x84] sm:$0xff] %v1860
    %1869 = vst [vmem:[#allocation4 + $0x8c] sm:$0xf] %v1861
    %1870 = vrot.lane.b32.xlu0 %v1675, 46
    %v1871 = vpop.permute.xlu0 %1870
    %1872 = vrot.lane.b32.xlu0 %v1676, 46
    %v1873 = vpop.permute.xlu0 %1872
    %1874 = vrot.lane.b32.xlu0 %v1677, 46
    %v1875 = vpop.permute.xlu0 %1874
    %1876 = vrot.lane.b32.xlu0 %v1678, 46
    %v1877 = vpop.permute.xlu0 %1876
    %v1878 = vrot.slane %v1871, 4
    %v1879 = vrot.slane %v1873, 4
    %v1880 = vrot.slane %v1875, 4
    %v1881 = vrot.slane %v1877, 4
    %v1882 = vsel %vm126, %v1878, %v1879
    %v1883 = vsel %vm326, %v1871, %v1882
    %v1884 = vsel %vm326, %v1873, %v1879
    %v1885 = vsel %vm126, %v1880, %v1881
    %v1886 = vsel %vm326, %v1875, %v1885
    %v1887 = vsel %vm326, %v1877, %v1881
    %1892 = vst [vmem:[#allocation4 + $0x90] sm:$0xff] %v1883
    %1893 = vst [vmem:[#allocation4 + $0x98] sm:$0xf] %v1884
    %1894 = vst [vmem:[#allocation4 + $0x9c] sm:$0xff] %v1886
    %1895 = vst [vmem:[#allocation4 + $0xa4] sm:$0xf] %v1887
    %1896 = vrot.lane.b32.xlu0 %v1675, 27
    %v1897 = vpop.permute.xlu0 %1896
    %1898 = vrot.lane.b32.xlu0 %v1676, 27
    %v1899 = vpop.permute.xlu0 %1898
    %1900 = vrot.lane.b32.xlu0 %v1677, 27
    %v1901 = vpop.permute.xlu0 %1900
    %1902 = vrot.lane.b32.xlu0 %v1678, 27
    %v1903 = vpop.permute.xlu0 %1902
    %v1904 = vrot.slane %v1897, 4
    %v1905 = vrot.slane %v1899, 4
    %v1906 = vrot.slane %v1901, 4
    %v1907 = vrot.slane %v1903, 4
    %v1908 = vsel %vm126, %v1904, %v1905
    %v1909 = vsel %vm353, %v1897, %v1908
    %v1910 = vsel %vm353, %v1899, %v1905
    %v1911 = vsel %vm126, %v1906, %v1907
    %v1912 = vsel %vm353, %v1901, %v1911
    %v1913 = vsel %vm353, %v1903, %v1907
    %1918 = vst [vmem:[#allocation4 + $0xa8] sm:$0xff] %v1909
    %1919 = vst [vmem:[#allocation4 + $0xb0] sm:$0xf] %v1910
    %1920 = vst [vmem:[#allocation4 + $0xb4] sm:$0xff] %v1912
    %1921 = vst [vmem:[#allocation4 + $0xbc] sm:$0xf] %v1913
    %1922 = vrot.lane.b32.xlu0 %v1675, 25
    %v1923 = vpop.permute.xlu0 %1922
    %1924 = vrot.lane.b32.xlu0 %v1676, 25
    %v1925 = vpop.permute.xlu0 %1924
    %1926 = vrot.lane.b32.xlu0 %v1677, 25
    %v1927 = vpop.permute.xlu0 %1926
    %1928 = vrot.lane.b32.xlu0 %v1678, 25
    %v1929 = vpop.permute.xlu0 %1928
    %v1930 = vrot.slane %v1923, 4
    %v1931 = vrot.slane %v1925, 4
    %v1932 = vrot.slane %v1927, 4
    %v1933 = vrot.slane %v1929, 4
    %v1934 = vsel %vm126, %v1930, %v1931
    %v1935 = vsel %vm380, %v1923, %v1934
    %v1936 = vsel %vm380, %v1925, %v1931
    %v1937 = vsel %vm126, %v1932, %v1933
    %v1938 = vsel %vm380, %v1927, %v1937
    %v1939 = vsel %vm380, %v1929, %v1933
    %1944 = vst [vmem:[#allocation4 + $0xc0] sm:$0xff] %v1935
    %1945 = vst [vmem:[#allocation4 + $0xc8] sm:$0xf] %v1936
    %1946 = vst [vmem:[#allocation4 + $0xcc] sm:$0xff] %v1938
    %1947 = vst [vmem:[#allocation4 + $0xd4] sm:$0xf] %v1939
    %1948 = vrot.lane.b32.xlu0 %v1675, 23
    %v1949 = vpop.permute.xlu0 %1948
    %1950 = vrot.lane.b32.xlu0 %v1676, 23
    %v1951 = vpop.permute.xlu0 %1950
    %1952 = vrot.lane.b32.xlu0 %v1677, 23
    %v1953 = vpop.permute.xlu0 %1952
    %1954 = vrot.lane.b32.xlu0 %v1678, 23
    %v1955 = vpop.permute.xlu0 %1954
    %v1956 = vrot.slane %v1949, 4
    %v1957 = vrot.slane %v1951, 4
    %v1958 = vrot.slane %v1953, 4
    %v1959 = vrot.slane %v1955, 4
    %v1960 = vsel %vm126, %v1956, %v1957
    %v1961 = vsel %vm407, %v1949, %v1960
    %v1962 = vsel %vm407, %v1951, %v1957
    %v1963 = vsel %vm126, %v1958, %v1959
    %v1964 = vsel %vm407, %v1953, %v1963
    %v1965 = vsel %vm407, %v1955, %v1959
    %1970 = vst [vmem:[#allocation4 + $0xd8] sm:$0xff] %v1961
    %1971 = vst [vmem:[#allocation4 + $0xe0] sm:$0xf] %v1962
    %1972 = vst [vmem:[#allocation4 + $0xe4] sm:$0xff] %v1964
    %1973 = vst [vmem:[#allocation4 + $0xec] sm:$0xf] %v1965
    %1974 = vrot.lane.b32.xlu0 %v1788, 21
    %v1975 = vpop.permute.xlu0 %1974
    %1976 = vrot.lane.b32.xlu0 %v1789, 21
    %v1977 = vpop.permute.xlu0 %1976
    %1978 = vrot.lane.b32.xlu0 %v1790, 21
    %v1979 = vpop.permute.xlu0 %1978
    %1980 = vrot.lane.b32.xlu0 %v1791, 21
    %v1981 = vpop.permute.xlu0 %1980
    %v1982 = vrot.slane %v1975, 4
    %v1983 = vrot.slane %v1977, 4
    %v1984 = vrot.slane %v1979, 4
    %v1985 = vrot.slane %v1981, 4
    %v1986 = vsel %vm126, %v1982, %v1983
    %v1987 = vsel %vm434, %v1975, %v1986
    %v1988 = vsel %vm434, %v1977, %v1983
    %v1989 = vsel %vm126, %v1984, %v1985
    %v1990 = vsel %vm434, %v1979, %v1989
    %v1991 = vsel %vm434, %v1981, %v1985
    %1996 = vst [vmem:[#allocation4 + $0xf0] sm:$0xff] %v1987
    %1997 = vst [vmem:[#allocation4 + $0xf8] sm:$0xf] %v1988
    %1998 = vst [vmem:[#allocation4 + $0xfc] sm:$0xff] %v1990
    %1999 = vst [vmem:[#allocation4 + $0x104] sm:$0xf] %v1991
    %2000 = vrot.lane.b32.xlu0 %v1675, 2
    %v2001 = vpop.permute.xlu0 %2000
    %2002 = vrot.lane.b32.xlu0 %v1676, 2
    %v2003 = vpop.permute.xlu0 %2002
    %2004 = vrot.lane.b32.xlu0 %v1677, 2
    %v2005 = vpop.permute.xlu0 %2004
    %2006 = vrot.lane.b32.xlu0 %v1678, 2
    %v2007 = vpop.permute.xlu0 %2006
    %v2008 = vrot.slane %v2001, 4
    %v2009 = vrot.slane %v2003, 4
    %v2010 = vrot.slane %v2005, 4
    %v2011 = vrot.slane %v2007, 4
    %v2012 = vsel %vm126, %v2008, %v2009
    %v2013 = vsel %vm461, %v2001, %v2012
    %v2014 = vsel %vm461, %v2003, %v2009
    %v2015 = vsel %vm126, %v2010, %v2011
    %v2016 = vsel %vm461, %v2005, %v2015
    %v2017 = vsel %vm461, %v2007, %v2011
    %2022 = vst [vmem:[#allocation4 + $0x108] sm:$0xff] %v2013
    %2023 = vst [vmem:[#allocation4 + $0x110] sm:$0xf] %v2014
    %2024 = vst [vmem:[#allocation4 + $0x114] sm:$0xff] %v2016
    %2025 = vst [vmem:[#allocation4 + $0x11c] sm:$0xf] %v2017
    %v2027 = vunpack.c.l.b16 %v1627
    %v2028 = vpack.c.b16 %v2027, %v2027
    %2029 = vrot.lane.b32.xlu0 %v2028, 127
    %v2030 = vpop.permute.xlu0 %2029
    %v2031 = vsel %vm81, %v1647, %v2030
    %v2033 = vsel %vm85, %v1639, %v2031
    %v2035 = vunpack.c.l.b16 %v2033
    %v2036 = vunpack.c.h.b16 %v2033
    %v2037 = vpack.c.b16 %v1669, %v1668
    %v2038 = vpack.c.b16 %v2035, %v2035
    %v2039 = vpack.c.b16 %v1673, %v1672
    %v2040 = vpack.c.b16 %v2036, %v2036
    %2045 = vst [vmem:[#allocation4 + $0x120] sm:$0xff] %v2037
    %2046 = vst [vmem:[#allocation4 + $0x128] sm:$0xf] %v2038
    %2047 = vst [vmem:[#allocation4 + $0x12c] sm:$0xff] %v2039
    %2048 = vst [vmem:[#allocation4 + $0x134] sm:$0xf] %v2040
    %2049 = vrot.lane.b32.xlu0 %v1637, 126
    %v2050 = vpop.permute.xlu0 %2049
    %2051 = vrot.lane.b32.xlu0 %v1638, 126
    %v2052 = vpop.permute.xlu0 %2051
    %2053 = vrot.lane.b32.xlu0 %v1639, 126
    %v2054 = vpop.permute.xlu0 %2053
    %2055 = vrot.lane.b32.xlu0 %v2028, 126
    %v2056 = vpop.permute.xlu0 %2055
    %v2057 = vsel %vm506, %v2050, %v2052
    %v2058 = vsel %vm506, %v2052, %v2054
    %v2059 = vsel %vm506, %v2054, %v2056
    %2060 = vrot.lane.b32.xlu0 %v1637, 125
    %v2061 = vpop.permute.xlu0 %2060
    %2062 = vrot.lane.b32.xlu0 %v1638, 125
    %v2063 = vpop.permute.xlu0 %2062
    %2064 = vrot.lane.b32.xlu0 %v1639, 125
    %v2065 = vpop.permute.xlu0 %2064
    %2066 = vrot.lane.b32.xlu0 %v2028, 125
    %v2067 = vpop.permute.xlu0 %2066
    %v2068 = vsel %vm518, %v2061, %v2063
    %v2069 = vsel %vm518, %v2063, %v2065
    %v2070 = vsel %vm518, %v2065, %v2067
    %v2073 = vsel %vm85, %v2057, %v2068
    %v2076 = vsel %vm85, %v2058, %v2069
    %v2079 = vsel %vm85, %v2059, %v2070
    %v2083 = vunpack.c.l.b16 %v2073
    %v2084 = vunpack.c.l.b16 %v2076
    %v2085 = vunpack.c.l.b16 %v2079
    %v2086 = vunpack.c.h.b16 %v2073
    %v2087 = vunpack.c.h.b16 %v2076
    %v2088 = vunpack.c.h.b16 %v2079
    %v2089 = vpack.c.b16 %v2084, %v2083
    %v2090 = vpack.c.b16 %v2085, %v2085
    %v2091 = vpack.c.b16 %v2087, %v2086
    %v2092 = vpack.c.b16 %v2088, %v2088
    %2097 = vst [vmem:[#allocation4 + $0x138] sm:$0xff] %v2089
    %2098 = vst [vmem:[#allocation4 + $0x140] sm:$0xf] %v2090
    %2099 = vst [vmem:[#allocation4 + $0x144] sm:$0xff] %v2091
    %2100 = vst [vmem:[#allocation4 + $0x14c] sm:$0xf] %v2092
    %v2103 = vunpack.c.l.b16 %v1628
    %v2104 = vunpack.c.h.b16 %v1628
    %v2105 = vunpack.c.l.b16 %v1629
    %v2106 = vunpack.c.h.b16 %v1629
    %v2107 = vpack.c.b16 %v2103, %v2103
    %v2108 = vpack.c.b16 %v2104, %v2104
    %v2109 = vpack.c.b16 %v2105, %v2105
    %v2110 = vpack.c.b16 %v2106, %v2106
    %2111 = vrot.lane.b32.xlu0 %v2107, 127
    %v2112 = vpop.permute.xlu0 %2111
    %2113 = vrot.lane.b32.xlu0 %v2108, 127
    %v2114 = vpop.permute.xlu0 %2113
    %2115 = vrot.lane.b32.xlu0 %v2109, 127
    %v2116 = vpop.permute.xlu0 %2115
    %2117 = vrot.lane.b32.xlu0 %v2110, 127
    %v2118 = vpop.permute.xlu0 %2117
    %v2119 = vsel %vm81, %v2112, %v2114
    %v2120 = vsel %vm81, %v2114, %v2116
    %v2121 = vsel %vm81, %v2116, %v2118
    %v2124 = vsel %vm85, %v2107, %v2119
    %v2127 = vsel %vm85, %v2108, %v2120
    %v2130 = vsel %vm85, %v2109, %v2121
    %v2133 = vsel %vm85, %v2110, %v2118
    %v2138 = vunpack.c.l.b16 %v2124
    %v2139 = vunpack.c.l.b16 %v2127
    %v2140 = vunpack.c.l.b16 %v2130
    %v2141 = vunpack.c.l.b16 %v2133
    %v2142 = vunpack.c.h.b16 %v2124
    %v2143 = vunpack.c.h.b16 %v2127
    %v2144 = vunpack.c.h.b16 %v2130
    %v2145 = vunpack.c.h.b16 %v2133
    %v2146 = vpack.c.b16 %v2139, %v2138
    %v2147 = vpack.c.b16 %v2141, %v2140
    %v2148 = vpack.c.b16 %v2143, %v2142
    %v2149 = vpack.c.b16 %v2145, %v2144
    %2150 = vrot.lane.b32.xlu0 %v2146, 107
    %v2151 = vpop.permute.xlu0 %2150
    %2152 = vrot.lane.b32.xlu0 %v2147, 107
    %v2153 = vpop.permute.xlu0 %2152
    %2154 = vrot.lane.b32.xlu0 %v2148, 107
    %v2155 = vpop.permute.xlu0 %2154
    %2156 = vrot.lane.b32.xlu0 %v2149, 107
    %v2157 = vpop.permute.xlu0 %2156
    %v2158 = vrot.slane %v2151, 4
    %v2159 = vrot.slane %v2153, 4
    %v2160 = vrot.slane %v2155, 4
    %v2161 = vrot.slane %v2157, 4
    %v2162 = vsel %vm126, %v2158, %v2159
    %v2163 = vsel %vm614, %v2151, %v2162
    %v2164 = vsel %vm614, %v2153, %v2159
    %v2165 = vsel %vm126, %v2160, %v2161
    %v2166 = vsel %vm614, %v2155, %v2165
    %v2167 = vsel %vm614, %v2157, %v2161
    %2172 = vst [vmem:[#allocation4 + $0x150] sm:$0xff] %v2163
    %2173 = vst [vmem:[#allocation4 + $0x158] sm:$0xf] %v2164
    %2174 = vst [vmem:[#allocation4 + $0x15c] sm:$0xff] %v2166
    %2175 = vst [vmem:[#allocation4 + $0x164] sm:$0xf] %v2167
    %2176 = vrot.lane.b32.xlu0 %v2146, 105
    %v2177 = vpop.permute.xlu0 %2176
    %2178 = vrot.lane.b32.xlu0 %v2147, 105
    %v2179 = vpop.permute.xlu0 %2178
    %2180 = vrot.lane.b32.xlu0 %v2148, 105
    %v2181 = vpop.permute.xlu0 %2180
    %2182 = vrot.lane.b32.xlu0 %v2149, 105
    %v2183 = vpop.permute.xlu0 %2182
    %v2184 = vrot.slane %v2177, 4
    %v2185 = vrot.slane %v2179, 4
    %v2186 = vrot.slane %v2181, 4
    %v2187 = vrot.slane %v2183, 4
    %v2188 = vsel %vm126, %v2184, %v2185
    %v2189 = vsel %vm641, %v2177, %v2188
    %v2190 = vsel %vm641, %v2179, %v2185
    %v2191 = vsel %vm126, %v2186, %v2187
    %v2192 = vsel %vm641, %v2181, %v2191
    %v2193 = vsel %vm641, %v2183, %v2187
    %2198 = vst [vmem:[#allocation4 + $0x168] sm:$0xff] %v2189
    %2199 = vst [vmem:[#allocation4 + $0x170] sm:$0xf] %v2190
    %2200 = vst [vmem:[#allocation4 + $0x174] sm:$0xff] %v2192
    %2201 = vst [vmem:[#allocation4 + $0x17c] sm:$0xf] %v2193
    %2202 = vrot.lane.b32.xlu0 %v2146, 103
    %v2203 = vpop.permute.xlu0 %2202
    %2204 = vrot.lane.b32.xlu0 %v2147, 103
    %v2205 = vpop.permute.xlu0 %2204
    %2206 = vrot.lane.b32.xlu0 %v2148, 103
    %v2207 = vpop.permute.xlu0 %2206
    %2208 = vrot.lane.b32.xlu0 %v2149, 103
    %v2209 = vpop.permute.xlu0 %2208
    %v2210 = vrot.slane %v2203, 4
    %v2211 = vrot.slane %v2205, 4
    %v2212 = vrot.slane %v2207, 4
    %v2213 = vrot.slane %v2209, 4
    %v2214 = vsel %vm126, %v2210, %v2211
    %v2215 = vsel %vm668, %v2203, %v2214
    %v2216 = vsel %vm668, %v2205, %v2211
    %v2217 = vsel %vm126, %v2212, %v2213
    %v2218 = vsel %vm668, %v2207, %v2217
    %v2219 = vsel %vm668, %v2209, %v2213
    %2224 = vst [vmem:[#allocation4 + $0x180] sm:$0xff] %v2215
    %2225 = vst [vmem:[#allocation4 + $0x188] sm:$0xf] %v2216
    %2226 = vst [vmem:[#allocation4 + $0x18c] sm:$0xff] %v2218
    %2227 = vst [vmem:[#allocation4 + $0x194] sm:$0xf] %v2219
    %2228 = vrot.lane.b32.xlu0 %v2107, 110
    %v2229 = vpop.permute.xlu0 %2228
    %2230 = vrot.lane.b32.xlu0 %v2108, 110
    %v2231 = vpop.permute.xlu0 %2230
    %2232 = vrot.lane.b32.xlu0 %v2109, 110
    %v2233 = vpop.permute.xlu0 %2232
    %2234 = vrot.lane.b32.xlu0 %v2110, 110
    %v2235 = vpop.permute.xlu0 %2234
    %v2236 = vsel %vm204, %v2229, %v2231
    %v2237 = vsel %vm204, %v2231, %v2233
    %v2238 = vsel %vm204, %v2233, %v2235
    %v2240 = vsel %vm85, %v2107, %v2236
    %v2242 = vsel %vm85, %v2108, %v2237
    %v2244 = vsel %vm85, %v2109, %v2238
    %v2246 = vsel %vm85, %v2110, %v2235
    %v2251 = vunpack.c.l.b16 %v2240
    %v2252 = vunpack.c.l.b16 %v2242
    %v2253 = vunpack.c.l.b16 %v2244
    %v2254 = vunpack.c.l.b16 %v2246
    %v2255 = vunpack.c.h.b16 %v2240
    %v2256 = vunpack.c.h.b16 %v2242
    %v2257 = vunpack.c.h.b16 %v2244
    %v2258 = vunpack.c.h.b16 %v2246
    %v2259 = vpack.c.b16 %v2252, %v2251
    %v2260 = vpack.c.b16 %v2254, %v2253
    %v2261 = vpack.c.b16 %v2256, %v2255
    %v2262 = vpack.c.b16 %v2258, %v2257
    %2263 = vrot.lane.b32.xlu0 %v2259, 101
    %v2264 = vpop.permute.xlu0 %2263
    %2265 = vrot.lane.b32.xlu0 %v2260, 101
    %v2266 = vpop.permute.xlu0 %2265
    %2267 = vrot.lane.b32.xlu0 %v2261, 101
    %v2268 = vpop.permute.xlu0 %2267
    %2269 = vrot.lane.b32.xlu0 %v2262, 101
    %v2270 = vpop.permute.xlu0 %2269
    %v2271 = vrot.slane %v2264, 4
    %v2272 = vrot.slane %v2266, 4
    %v2273 = vrot.slane %v2268, 4
    %v2274 = vrot.slane %v2270, 4
    %v2275 = vsel %vm126, %v2271, %v2272
    %v2276 = vsel %vm730, %v2264, %v2275
    %v2277 = vsel %vm730, %v2266, %v2272
    %v2278 = vsel %vm126, %v2273, %v2274
    %v2279 = vsel %vm730, %v2268, %v2278
    %v2280 = vsel %vm730, %v2270, %v2274
    %2285 = vst [vmem:[#allocation4 + $0x198] sm:$0xff] %v2276
    %2286 = vst [vmem:[#allocation4 + $0x1a0] sm:$0xf] %v2277
    %2287 = vst [vmem:[#allocation4 + $0x1a4] sm:$0xff] %v2279
    %2288 = vst [vmem:[#allocation4 + $0x1ac] sm:$0xf] %v2280
    %2289 = vrot.lane.b32.xlu0 %v2146, 82
    %v2290 = vpop.permute.xlu0 %2289
    %2291 = vrot.lane.b32.xlu0 %v2147, 82
    %v2292 = vpop.permute.xlu0 %2291
    %2293 = vrot.lane.b32.xlu0 %v2148, 82
    %v2294 = vpop.permute.xlu0 %2293
    %2295 = vrot.lane.b32.xlu0 %v2149, 82
    %v2296 = vpop.permute.xlu0 %2295
    %v2297 = vrot.slane %v2290, 4
    %v2298 = vrot.slane %v2292, 4
    %v2299 = vrot.slane %v2294, 4
    %v2300 = vrot.slane %v2296, 4
    %v2301 = vsel %vm126, %v2297, %v2298
    %v2302 = vsel %vm757, %v2290, %v2301
    %v2303 = vsel %vm757, %v2292, %v2298
    %v2304 = vsel %vm126, %v2299, %v2300
    %v2305 = vsel %vm757, %v2294, %v2304
    %v2306 = vsel %vm757, %v2296, %v2300
    %2311 = vst [vmem:[#allocation4 + $0x1b0] sm:$0xff] %v2302
    %2312 = vst [vmem:[#allocation4 + $0x1b8] sm:$0xf] %v2303
    %2313 = vst [vmem:[#allocation4 + $0x1bc] sm:$0xff] %v2305
    %2314 = vst [vmem:[#allocation4 + $0x1c4] sm:$0xf] %v2306
    %2315 = vrot.lane.b32.xlu0 %v2146, 80
    %v2316 = vpop.permute.xlu0 %2315
    %2317 = vrot.lane.b32.xlu0 %v2147, 80
    %v2318 = vpop.permute.xlu0 %2317
    %2319 = vrot.lane.b32.xlu0 %v2148, 80
    %v2320 = vpop.permute.xlu0 %2319
    %2321 = vrot.lane.b32.xlu0 %v2149, 80
    %v2322 = vpop.permute.xlu0 %2321
    %v2323 = vrot.slane %v2316, 4
    %v2324 = vrot.slane %v2318, 4
    %v2325 = vrot.slane %v2320, 4
    %v2326 = vrot.slane %v2322, 4
    %v2327 = vsel %vm126, %v2323, %v2324
    %v2328 = vsel %vm784, %v2316, %v2327
    %v2329 = vsel %vm784, %v2318, %v2324
    %v2330 = vsel %vm126, %v2325, %v2326
    %v2331 = vsel %vm784, %v2320, %v2330
    %v2332 = vsel %vm784, %v2322, %v2326
    %2337 = vst [vmem:[#allocation4 + $0x1c8] sm:$0xff] %v2328
    %2338 = vst [vmem:[#allocation4 + $0x1d0] sm:$0xf] %v2329
    %2339 = vst [vmem:[#allocation4 + $0x1d4] sm:$0xff] %v2331
    %2340 = vst [vmem:[#allocation4 + $0x1dc] sm:$0xf] %v2332
    %2341 = vrot.lane.b32.xlu0 %v2146, 78
    %v2342 = vpop.permute.xlu0 %2341
    %2343 = vrot.lane.b32.xlu0 %v2147, 78
    %v2344 = vpop.permute.xlu0 %2343
    %2345 = vrot.lane.b32.xlu0 %v2148, 78
    %v2346 = vpop.permute.xlu0 %2345
    %2347 = vrot.lane.b32.xlu0 %v2149, 78
    %v2348 = vpop.permute.xlu0 %2347
    %v2349 = vrot.slane %v2342, 4
    %v2350 = vrot.slane %v2344, 4
    %v2351 = vrot.slane %v2346, 4
    %v2352 = vrot.slane %v2348, 4
    %v2353 = vsel %vm126, %v2349, %v2350
    %v2354 = vsel %vm811, %v2342, %v2353
    %v2355 = vsel %vm811, %v2344, %v2350
    %v2356 = vsel %vm126, %v2351, %v2352
    %v2357 = vsel %vm811, %v2346, %v2356
    %v2358 = vsel %vm811, %v2348, %v2352
    %2363 = vst [vmem:[#allocation4 + $0x1e0] sm:$0xff] %v2354
    %2364 = vst [vmem:[#allocation4 + $0x1e8] sm:$0xf] %v2355
    %2365 = vst [vmem:[#allocation4 + $0x1ec] sm:$0xff] %v2357
    %2366 = vst [vmem:[#allocation4 + $0x1f4] sm:$0xf] %v2358
    %2367 = vrot.lane.b32.xlu0 %v2146, 59
    %v2368 = vpop.permute.xlu0 %2367
    %2369 = vrot.lane.b32.xlu0 %v2147, 59
    %v2370 = vpop.permute.xlu0 %2369
    %2371 = vrot.lane.b32.xlu0 %v2148, 59
    %v2372 = vpop.permute.xlu0 %2371
    %2373 = vrot.lane.b32.xlu0 %v2149, 59
    %v2374 = vpop.permute.xlu0 %2373
    %v2375 = vrot.slane %v2368, 4
    %v2376 = vrot.slane %v2370, 4
    %v2377 = vrot.slane %v2372, 4
    %v2378 = vrot.slane %v2374, 4
    %v2379 = vsel %vm126, %v2375, %v2376
    %v2380 = vsel %vm838, %v2368, %v2379
    %v2381 = vsel %vm838, %v2370, %v2376
    %v2382 = vsel %vm126, %v2377, %v2378
    %v2383 = vsel %vm838, %v2372, %v2382
    %v2384 = vsel %vm838, %v2374, %v2378
    %2389 = vst [vmem:[#allocation4 + $0x1f8] sm:$0xff] %v2380
    %2390 = vst [vmem:[#allocation4 + $0x200] sm:$0xf] %v2381
    %2391 = vst [vmem:[#allocation4 + $0x204] sm:$0xff] %v2383
    %2392 = vst [vmem:[#allocation4 + $0x20c] sm:$0xf] %v2384
    %2393 = vrot.lane.b32.xlu0 %v2146, 57
    %v2394 = vpop.permute.xlu0 %2393
    %2395 = vrot.lane.b32.xlu0 %v2147, 57
    %v2396 = vpop.permute.xlu0 %2395
    %2397 = vrot.lane.b32.xlu0 %v2148, 57
    %v2398 = vpop.permute.xlu0 %2397
    %2399 = vrot.lane.b32.xlu0 %v2149, 57
    %v2400 = vpop.permute.xlu0 %2399
    %v2401 = vrot.slane %v2394, 4
    %v2402 = vrot.slane %v2396, 4
    %v2403 = vrot.slane %v2398, 4
    %v2404 = vrot.slane %v2400, 4
    %v2405 = vsel %vm126, %v2401, %v2402
    %v2406 = vsel %vm865, %v2394, %v2405
    %v2407 = vsel %vm865, %v2396, %v2402
    %v2408 = vsel %vm126, %v2403, %v2404
    %v2409 = vsel %vm865, %v2398, %v2408
    %v2410 = vsel %vm865, %v2400, %v2404
    %2415 = vst [vmem:[#allocation4 + $0x210] sm:$0xff] %v2406
    %2416 = vst [vmem:[#allocation4 + $0x218] sm:$0xf] %v2407
    %2417 = vst [vmem:[#allocation4 + $0x21c] sm:$0xff] %v2409
    %2418 = vst [vmem:[#allocation4 + $0x224] sm:$0xf] %v2410
    %2419 = vrot.lane.b32.xlu0 %v2146, 55
    %v2420 = vpop.permute.xlu0 %2419
    %2421 = vrot.lane.b32.xlu0 %v2147, 55
    %v2422 = vpop.permute.xlu0 %2421
    %2423 = vrot.lane.b32.xlu0 %v2148, 55
    %v2424 = vpop.permute.xlu0 %2423
    %2425 = vrot.lane.b32.xlu0 %v2149, 55
    %v2426 = vpop.permute.xlu0 %2425
    %v2427 = vrot.slane %v2420, 4
    %v2428 = vrot.slane %v2422, 4
    %v2429 = vrot.slane %v2424, 4
    %v2430 = vrot.slane %v2426, 4
    %v2431 = vsel %vm126, %v2427, %v2428
    %v2432 = vsel %vm892, %v2420, %v2431
    %v2433 = vsel %vm892, %v2422, %v2428
    %v2434 = vsel %vm126, %v2429, %v2430
    %v2435 = vsel %vm892, %v2424, %v2434
    %v2436 = vsel %vm892, %v2426, %v2430
    %2441 = vst [vmem:[#allocation4 + $0x228] sm:$0xff] %v2432
    %2442 = vst [vmem:[#allocation4 + $0x230] sm:$0xf] %v2433
    %2443 = vst [vmem:[#allocation4 + $0x234] sm:$0xff] %v2435
    %2444 = vst [vmem:[#allocation4 + $0x23c] sm:$0xf] %v2436
    %2445 = vrot.lane.b32.xlu0 %v1628, 53
    %v2446 = vpop.permute.xlu0 %2445
    %2447 = vrot.lane.b32.xlu0 %v1629, 53
    %v2448 = vpop.permute.xlu0 %2447
    %v2449 = vrot.slane %v2446, 4
    %v2450 = vrot.slane %v2448, 4
    %v2451 = vsel %vm126, %v2449, %v2450
    %v2452 = vsel %vm913, %v2446, %v2451
    %v2453 = vsel %vm913, %v2448, %v2450
    %2456 = vst [vmem:[#allocation4 + $0x240] sm:$0xff] %v2452
    %2457 = vst [vmem:[#allocation4 + $0x248] sm:$0xf] %v2453
    %s2458 = scalar_lea.vmem %s1, 16
    %v2459 = vld [vmem:[%s2458] sm:$0xff]
    %v2460 = vld [vmem:[%s2458 + $0x8] sm:$0xff]
    %v2461 = vld [vmem:[#allocation4] sm:$0xff]
    %v2462 = vld [vmem:[#allocation4 + $0x8] sm:$0xf]
    %v2463 = vld [vmem:[#allocation4 + $0xc] sm:$0xff]
    %v2464 = vld [vmem:[#allocation4 + $0x14] sm:$0xf]
    %v2465 = vld [vmem:[#allocation4 + $0x18] sm:$0xff]
    %v2466 = vld [vmem:[#allocation4 + $0x20] sm:$0xf]
    %v2467 = vld [vmem:[#allocation4 + $0x24] sm:$0xff]
    %v2468 = vld [vmem:[#allocation4 + $0x2c] sm:$0xf]
    %v2469 = vld [vmem:[#allocation4 + $0x30] sm:$0xff]
    %v2470 = vld [vmem:[#allocation4 + $0x38] sm:$0xf]
    %v2471 = vld [vmem:[#allocation4 + $0x3c] sm:$0xff]
    %v2472 = vld [vmem:[#allocation4 + $0x44] sm:$0xf]
    %v2473 = vld [vmem:[#allocation4 + $0x48] sm:$0xff]
    %v2474 = vld [vmem:[#allocation4 + $0x50] sm:$0xf]
    %v2475 = vld [vmem:[#allocation4 + $0x54] sm:$0xff]
    %v2476 = vld [vmem:[#allocation4 + $0x5c] sm:$0xf]
    %v2477 = vld [vmem:[#allocation4 + $0x60] sm:$0xff]
    %v2478 = vld [vmem:[#allocation4 + $0x68] sm:$0xf]
    %v2479 = vld [vmem:[#allocation4 + $0x6c] sm:$0xff]
    %v2480 = vld [vmem:[#allocation4 + $0x74] sm:$0xf]
    %v2481 = vld [vmem:[#allocation4 + $0x78] sm:$0xff]
    %v2482 = vld [vmem:[#allocation4 + $0x80] sm:$0xf]
    %v2483 = vld [vmem:[#allocation4 + $0x84] sm:$0xff]
    %v2484 = vld [vmem:[#allocation4 + $0x8c] sm:$0xf]
    %v2485 = vld [vmem:[#allocation4 + $0x90] sm:$0xff]
    %v2486 = vld [vmem:[#allocation4 + $0x98] sm:$0xf]
    %v2487 = vld [vmem:[#allocation4 + $0x9c] sm:$0xff]
    %v2488 = vld [vmem:[#allocation4 + $0xa4] sm:$0xf]
    %v2489 = vld [vmem:[#allocation4 + $0xa8] sm:$0xff]
    %v2490 = vld [vmem:[#allocation4 + $0xb0] sm:$0xf]
    %v2491 = vld [vmem:[#allocation4 + $0xb4] sm:$0xff]
    %v2492 = vld [vmem:[#allocation4 + $0xbc] sm:$0xf]
    %v2493 = vld [vmem:[#allocation4 + $0xc0] sm:$0xff]
    %v2494 = vld [vmem:[#allocation4 + $0xc8] sm:$0xf]
    %v2495 = vld [vmem:[#allocation4 + $0xcc] sm:$0xff]
    %v2496 = vld [vmem:[#allocation4 + $0xd4] sm:$0xf]
    %v2497 = vld [vmem:[#allocation4 + $0xd8] sm:$0xff]
    %v2498 = vld [vmem:[#allocation4 + $0xe0] sm:$0xf]
    %v2499 = vld [vmem:[#allocation4 + $0xe4] sm:$0xff]
    %v2500 = vld [vmem:[#allocation4 + $0xec] sm:$0xf]
    %v2501 = vld [vmem:[#allocation4 + $0xf0] sm:$0xff]
    %v2502 = vld [vmem:[#allocation4 + $0xf8] sm:$0xf]
    %v2503 = vld [vmem:[#allocation4 + $0xfc] sm:$0xff]
    %v2504 = vld [vmem:[#allocation4 + $0x104] sm:$0xf]
    %v2505 = vld [vmem:[#allocation4 + $0x108] sm:$0xff]
    %v2506 = vld [vmem:[#allocation4 + $0x110] sm:$0xf]
    %v2507 = vld [vmem:[#allocation4 + $0x114] sm:$0xff]
    %v2508 = vld [vmem:[#allocation4 + $0x11c] sm:$0xf]
    %v2509 = vld [vmem:[#allocation4 + $0x120] sm:$0xff]
    %v2510 = vld [vmem:[#allocation4 + $0x128] sm:$0xf]
    %v2511 = vld [vmem:[#allocation4 + $0x12c] sm:$0xff]
    %v2512 = vld [vmem:[#allocation4 + $0x134] sm:$0xf]
    %v2513 = vld [vmem:[#allocation4 + $0x138] sm:$0xff]
    %v2514 = vld [vmem:[#allocation4 + $0x140] sm:$0xf]
    %v2515 = vld [vmem:[#allocation4 + $0x144] sm:$0xff]
    %v2516 = vld [vmem:[#allocation4 + $0x14c] sm:$0xf]
    %v2517 = vld [vmem:[#allocation4 + $0x150] sm:$0xff]
    %v2518 = vld [vmem:[#allocation4 + $0x158] sm:$0xf]
    %v2519 = vld [vmem:[#allocation4 + $0x15c] sm:$0xff]
    %v2520 = vld [vmem:[#allocation4 + $0x164] sm:$0xf]
    %v2521 = vld [vmem:[#allocation4 + $0x168] sm:$0xff]
    %v2522 = vld [vmem:[#allocation4 + $0x170] sm:$0xf]
    %v2523 = vld [vmem:[#allocation4 + $0x174] sm:$0xff]
    %v2524 = vld [vmem:[#allocation4 + $0x17c] sm:$0xf]
    %v2525 = vld [vmem:[#allocation4 + $0x180] sm:$0xff]
    %v2526 = vld [vmem:[#allocation4 + $0x188] sm:$0xf]
    %v2527 = vld [vmem:[#allocation4 + $0x18c] sm:$0xff]
    %v2528 = vld [vmem:[#allocation4 + $0x194] sm:$0xf]
    %v2529 = vld [vmem:[#allocation4 + $0x198] sm:$0xff]
    %v2530 = vld [vmem:[#allocation4 + $0x1a0] sm:$0xf]
    %v2531 = vld [vmem:[#allocation4 + $0x1a4] sm:$0xff]
    %v2532 = vld [vmem:[#allocation4 + $0x1ac] sm:$0xf]
    %v2533 = vld [vmem:[#allocation4 + $0x1b0] sm:$0xff]
    %v2534 = vld [vmem:[#allocation4 + $0x1b8] sm:$0xf]
    %v2535 = vld [vmem:[#allocation4 + $0x1bc] sm:$0xff]
    %v2536 = vld [vmem:[#allocation4 + $0x1c4] sm:$0xf]
    %v2537 = vld [vmem:[#allocation4 + $0x1c8] sm:$0xff]
    %v2538 = vld [vmem:[#allocation4 + $0x1d0] sm:$0xf]
    %v2539 = vld [vmem:[#allocation4 + $0x1d4] sm:$0xff]
    %v2540 = vld [vmem:[#allocation4 + $0x1dc] sm:$0xf]
    %v2541 = vld [vmem:[#allocation4 + $0x1e0] sm:$0xff]
    %v2542 = vld [vmem:[#allocation4 + $0x1e8] sm:$0xf]
    %v2543 = vld [vmem:[#allocation4 + $0x1ec] sm:$0xff]
    %v2544 = vld [vmem:[#allocation4 + $0x1f4] sm:$0xf]
    %v2545 = vld [vmem:[#allocation4 + $0x1f8] sm:$0xff]
    %v2546 = vld [vmem:[#allocation4 + $0x200] sm:$0xf]
    %v2547 = vld [vmem:[#allocation4 + $0x204] sm:$0xff]
    %v2548 = vld [vmem:[#allocation4 + $0x20c] sm:$0xf]
    %v2549 = vld [vmem:[#allocation4 + $0x210] sm:$0xff]
    %v2550 = vld [vmem:[#allocation4 + $0x218] sm:$0xf]
    %v2551 = vld [vmem:[#allocation4 + $0x21c] sm:$0xff]
    %v2552 = vld [vmem:[#allocation4 + $0x224] sm:$0xf]
    %v2553 = vld [vmem:[#allocation4 + $0x228] sm:$0xff]
    %v2554 = vld [vmem:[#allocation4 + $0x230] sm:$0xf]
    %v2555 = vld [vmem:[#allocation4 + $0x234] sm:$0xff]
    %v2556 = vld [vmem:[#allocation4 + $0x23c] sm:$0xf]
    %v2557 = vld [vmem:[#allocation4 + $0x240] sm:$0xff]
    %v2558 = vld [vmem:[#allocation4 + $0x248] sm:$0xf]
    %s2559 = scalar_lea.vmem [#allocation5], 8
    %v2560 = vld [vmem:[%s2559] sm:$0xff]
    %2562 = vset.pattern.permute.xlu0 0
    %2563 = vperm.xlu0 %2562, %v2560
    %v2564 = vpop.permute.xlu0 %2563
    %v2568 = vunpack.c.l.b16 %v2459
    %v2569 = vunpack.c.h.b16 %v2459
    %v2570 = vunpack.c.l.b16 %v2460
    %v2571 = vunpack.c.h.b16 %v2460
    %v2572 = vpack.c.b16 %v2568, %v2568
    %v2573 = vpack.c.b16 %v2569, %v2569
    %v2574 = vpack.c.b16 %v2570, %v2570
    %v2575 = vpack.c.b16 %v2571, %v2571
    %v2677 = vunpack.c.l.b16 %v2461
    %v2678 = vunpack.c.h.b16 %v2461
    %v2679 = vunpack.c.l.b16 %v2462
    %v2680 = vunpack.c.l.b16 %v2463
    %v2681 = vunpack.c.h.b16 %v2463
    %v2682 = vunpack.c.l.b16 %v2464
    %v2683 = vunpack.c.l.b16 %v2465
    %v2684 = vunpack.c.h.b16 %v2465
    %v2685 = vunpack.c.l.b16 %v2466
    %v2686 = vunpack.c.l.b16 %v2467
    %v2687 = vunpack.c.h.b16 %v2467
    %v2688 = vunpack.c.l.b16 %v2468
    %v2689 = vunpack.c.l.b16 %v2469
    %v2690 = vunpack.c.h.b16 %v2469
    %v2691 = vunpack.c.l.b16 %v2470
    %v2692 = vunpack.c.l.b16 %v2471
    %v2693 = vunpack.c.h.b16 %v2471
    %v2694 = vunpack.c.l.b16 %v2472
    %v2695 = vunpack.c.l.b16 %v2473
    %v2696 = vunpack.c.h.b16 %v2473
    %v2697 = vunpack.c.l.b16 %v2474
    %v2698 = vunpack.c.l.b16 %v2475
    %v2699 = vunpack.c.h.b16 %v2475
    %v2700 = vunpack.c.l.b16 %v2476
    %v2701 = vunpack.c.l.b16 %v2477
    %v2702 = vunpack.c.h.b16 %v2477
    %v2703 = vunpack.c.l.b16 %v2478
    %v2704 = vunpack.c.l.b16 %v2479
    %v2705 = vunpack.c.h.b16 %v2479
    %v2706 = vunpack.c.l.b16 %v2480
    %v2707 = vunpack.c.l.b16 %v2481
    %v2708 = vunpack.c.h.b16 %v2481
    %v2709 = vunpack.c.l.b16 %v2482
    %v2710 = vunpack.c.l.b16 %v2483
    %v2711 = vunpack.c.h.b16 %v2483
    %v2712 = vunpack.c.l.b16 %v2484
    %v2713 = vunpack.c.l.b16 %v2485
    %v2714 = vunpack.c.h.b16 %v2485
    %v2715 = vunpack.c.l.b16 %v2486
    %v2716 = vunpack.c.l.b16 %v2487
    %v2717 = vunpack.c.h.b16 %v2487
    %v2718 = vunpack.c.l.b16 %v2488
    %v2719 = vunpack.c.l.b16 %v2489
    %v2720 = vunpack.c.h.b16 %v2489
    %v2721 = vunpack.c.l.b16 %v2490
    %v2722 = vunpack.c.l.b16 %v2491
    %v2723 = vunpack.c.h.b16 %v2491
    %v2724 = vunpack.c.l.b16 %v2492
    %v2725 = vunpack.c.l.b16 %v2493
    %v2726 = vunpack.c.h.b16 %v2493
    %v2727 = vunpack.c.l.b16 %v2494
    %v2728 = vunpack.c.l.b16 %v2495
    %v2729 = vunpack.c.h.b16 %v2495
    %v2730 = vunpack.c.l.b16 %v2496
    %v2731 = vunpack.c.l.b16 %v2497
    %v2732 = vunpack.c.h.b16 %v2497
    %v2733 = vunpack.c.l.b16 %v2498
    %v2734 = vunpack.c.l.b16 %v2499
    %v2735 = vunpack.c.h.b16 %v2499
    %v2736 = vunpack.c.l.b16 %v2500
    %v2737 = vunpack.c.l.b16 %v2501
    %v2738 = vunpack.c.h.b16 %v2501
    %v2739 = vunpack.c.l.b16 %v2502
    %v2740 = vunpack.c.l.b16 %v2503
    %v2741 = vunpack.c.h.b16 %v2503
    %v2742 = vunpack.c.l.b16 %v2504
    %v2743 = vunpack.c.l.b16 %v2505
    %v2744 = vunpack.c.h.b16 %v2505
    %v2745 = vunpack.c.l.b16 %v2506
    %v2746 = vunpack.c.l.b16 %v2507
    %v2747 = vunpack.c.h.b16 %v2507
    %v2748 = vunpack.c.l.b16 %v2508
    %v2749 = vunpack.c.l.b16 %v2509
    %v2750 = vunpack.c.h.b16 %v2509
    %v2751 = vunpack.c.l.b16 %v2510
    %v2752 = vunpack.c.l.b16 %v2511
    %v2753 = vunpack.c.h.b16 %v2511
    %v2754 = vunpack.c.l.b16 %v2512
    %v2755 = vunpack.c.l.b16 %v2513
    %v2756 = vunpack.c.h.b16 %v2513
    %v2757 = vunpack.c.l.b16 %v2514
    %v2758 = vunpack.c.l.b16 %v2515
    %v2759 = vunpack.c.h.b16 %v2515
    %v2760 = vunpack.c.l.b16 %v2516
    %v2761 = vunpack.c.l.b16 %v2517
    %v2762 = vunpack.c.h.b16 %v2517
    %v2763 = vunpack.c.l.b16 %v2518
    %v2764 = vunpack.c.l.b16 %v2519
    %v2765 = vunpack.c.h.b16 %v2519
    %v2766 = vunpack.c.l.b16 %v2520
    %v2767 = vunpack.c.l.b16 %v2521
    %v2768 = vunpack.c.h.b16 %v2521
    %v2769 = vunpack.c.l.b16 %v2522
    %v2770 = vunpack.c.l.b16 %v2523
    %v2771 = vunpack.c.h.b16 %v2523
    %v2772 = vunpack.c.l.b16 %v2524
    %v2773 = vunpack.c.l.b16 %v2525
    %v2774 = vunpack.c.h.b16 %v2525
    %v2775 = vunpack.c.l.b16 %v2526
    %v2776 = vunpack.c.l.b16 %v2527
    %v2777 = vunpack.c.h.b16 %v2527
    %v2778 = vunpack.c.l.b16 %v2528
    %v2779 = vunpack.c.l.b16 %v2529
    %v2780 = vunpack.c.h.b16 %v2529
    %v2781 = vunpack.c.l.b16 %v2530
    %v2782 = vunpack.c.l.b16 %v2531
    %v2783 = vunpack.c.h.b16 %v2531
    %v2784 = vunpack.c.l.b16 %v2532
    %v2785 = vunpack.c.l.b16 %v2533
    %v2786 = vunpack.c.h.b16 %v2533
    %v2787 = vunpack.c.l.b16 %v2534
    %v2788 = vunpack.c.l.b16 %v2535
    %v2789 = vunpack.c.h.b16 %v2535
    %v2790 = vunpack.c.l.b16 %v2536
    %v2791 = vunpack.c.l.b16 %v2537
    %v2792 = vunpack.c.h.b16 %v2537
    %v2793 = vunpack.c.l.b16 %v2538
    %v2794 = vunpack.c.l.b16 %v2539
    %v2795 = vunpack.c.h.b16 %v2539
    %v2796 = vunpack.c.l.b16 %v2540
    %v2797 = vunpack.c.l.b16 %v2541
    %v2798 = vunpack.c.h.b16 %v2541
    %v2799 = vunpack.c.l.b16 %v2542
    %v2800 = vunpack.c.l.b16 %v2543
    %v2801 = vunpack.c.h.b16 %v2543
    %v2802 = vunpack.c.l.b16 %v2544
    %v2803 = vunpack.c.l.b16 %v2545
    %v2804 = vunpack.c.h.b16 %v2545
    %v2805 = vunpack.c.l.b16 %v2546
    %v2806 = vunpack.c.l.b16 %v2547
    %v2807 = vunpack.c.h.b16 %v2547
    %v2808 = vunpack.c.l.b16 %v2548
    %v2809 = vunpack.c.l.b16 %v2549
    %v2810 = vunpack.c.h.b16 %v2549
    %v2811 = vunpack.c.l.b16 %v2550
    %v2812 = vunpack.c.l.b16 %v2551
    %v2813 = vunpack.c.h.b16 %v2551
    %v2814 = vunpack.c.l.b16 %v2552
    %v2815 = vunpack.c.l.b16 %v2553
    %v2816 = vunpack.c.h.b16 %v2553
    %v2817 = vunpack.c.l.b16 %v2554
    %v2818 = vunpack.c.l.b16 %v2555
    %v2819 = vunpack.c.h.b16 %v2555
    %v2820 = vunpack.c.l.b16 %v2556
    %v2821 = vunpack.c.l.b16 %v2557
    %v2822 = vunpack.c.h.b16 %v2557
    %v2823 = vunpack.c.l.b16 %v2558
    %v2824 = vpack.c.b16 %v2680, %v2677
    %v2825 = vpack.c.b16 %v2681, %v2678
    %v2826 = vpack.c.b16 %v2682, %v2679
    %v2827 = vpack.c.b16 %v2686, %v2683
    %v2828 = vpack.c.b16 %v2687, %v2684
    %v2829 = vpack.c.b16 %v2688, %v2685
    %v2830 = vpack.c.b16 %v2692, %v2689
    %v2831 = vpack.c.b16 %v2693, %v2690
    %v2832 = vpack.c.b16 %v2694, %v2691
    %v2833 = vpack.c.b16 %v2698, %v2695
    %v2834 = vpack.c.b16 %v2699, %v2696
    %v2835 = vpack.c.b16 %v2700, %v2697
    %v2836 = vpack.c.b16 %v2704, %v2701
    %v2837 = vpack.c.b16 %v2705, %v2702
    %v2838 = vpack.c.b16 %v2706, %v2703
    %v2839 = vpack.c.b16 %v2710, %v2707
    %v2840 = vpack.c.b16 %v2711, %v2708
    %v2841 = vpack.c.b16 %v2712, %v2709
    %v2842 = vpack.c.b16 %v2716, %v2713
    %v2843 = vpack.c.b16 %v2717, %v2714
    %v2844 = vpack.c.b16 %v2718, %v2715
    %v2845 = vpack.c.b16 %v2722, %v2719
    %v2846 = vpack.c.b16 %v2723, %v2720
    %v2847 = vpack.c.b16 %v2724, %v2721
    %v2848 = vpack.c.b16 %v2728, %v2725
    %v2849 = vpack.c.b16 %v2729, %v2726
    %v2850 = vpack.c.b16 %v2730, %v2727
    %v2851 = vpack.c.b16 %v2734, %v2731
    %v2852 = vpack.c.b16 %v2735, %v2732
    %v2853 = vpack.c.b16 %v2736, %v2733
    %v2854 = vpack.c.b16 %v2740, %v2737
    %v2855 = vpack.c.b16 %v2741, %v2738
    %v2856 = vpack.c.b16 %v2742, %v2739
    %v2857 = vpack.c.b16 %v2746, %v2743
    %v2858 = vpack.c.b16 %v2747, %v2744
    %v2859 = vpack.c.b16 %v2748, %v2745
    %v2860 = vpack.c.b16 %v2752, %v2749
    %v2861 = vpack.c.b16 %v2753, %v2750
    %v2862 = vpack.c.b16 %v2754, %v2751
    %v2863 = vpack.c.b16 %v2758, %v2755
    %v2864 = vpack.c.b16 %v2759, %v2756
    %v2865 = vpack.c.b16 %v2760, %v2757
    %v2866 = vpack.c.b16 %v2764, %v2761
    %v2867 = vpack.c.b16 %v2765, %v2762
    %v2868 = vpack.c.b16 %v2766, %v2763
    %v2869 = vpack.c.b16 %v2770, %v2767
    %v2870 = vpack.c.b16 %v2771, %v2768
    %v2871 = vpack.c.b16 %v2772, %v2769
    %v2872 = vpack.c.b16 %v2776, %v2773
    %v2873 = vpack.c.b16 %v2777, %v2774
    %v2874 = vpack.c.b16 %v2778, %v2775
    %v2875 = vpack.c.b16 %v2782, %v2779
    %v2876 = vpack.c.b16 %v2783, %v2780
    %v2877 = vpack.c.b16 %v2784, %v2781
    %v2878 = vpack.c.b16 %v2788, %v2785
    %v2879 = vpack.c.b16 %v2789, %v2786
    %v2880 = vpack.c.b16 %v2790, %v2787
    %v2881 = vpack.c.b16 %v2794, %v2791
    %v2882 = vpack.c.b16 %v2795, %v2792
    %v2883 = vpack.c.b16 %v2796, %v2793
    %v2884 = vpack.c.b16 %v2800, %v2797
    %v2885 = vpack.c.b16 %v2801, %v2798
    %v2886 = vpack.c.b16 %v2802, %v2799
    %v2887 = vpack.c.b16 %v2806, %v2803
    %v2888 = vpack.c.b16 %v2807, %v2804
    %v2889 = vpack.c.b16 %v2808, %v2805
    %v2890 = vpack.c.b16 %v2812, %v2809
    %v2891 = vpack.c.b16 %v2813, %v2810
    %v2892 = vpack.c.b16 %v2814, %v2811
    %v2893 = vpack.c.b16 %v2818, %v2815
    %v2894 = vpack.c.b16 %v2819, %v2816
    %v2895 = vpack.c.b16 %v2820, %v2817
    %v2896 = vpack.c.b16 %v2821, %v2821
    %v2897 = vpack.c.b16 %v2822, %v2822
    %v2898 = vpack.c.b16 %v2823, %v2823
    %v2972 = vsel %vm1431, %v2575, 0
    %v2975 = vsel %vm85, %v2896, 0
    %v2978 = vsel %vm85, %v2897, 0
    %v2981 = vsel %vm85, %v2898, 0
    %2983 = vmatpush.bf16.msra.mxu0 %v2845
    %2984 = vmatpush.bf16.msra.mxu0 %v2842
    %2985 = vmatpush.bf16.msra.mxu0 %v2839
    %2986 = vmatpush.bf16.msra.mxu0 %v2836
    %2987 = vmatpush.bf16.msra.mxu0 %v2833
    %2988 = vmatpush.bf16.msra.mxu0 %v2830
    %2989 = vmatpush.bf16.msra.mxu0 %v2827
    %2990 = vmatpush.bf16.msra.mxu0 %v2824
    %2991 = vmatmul.bf16.gmra.mxu0 %v2572
    %v2992 = vpop.f32.mrf.mxu0
    %v2993 = vadd.f32 %v2564, %v2992
    %v2994 = vpop.f32.mrf.mxu0
    %2995 = vdwg.mxu0
    %2996 = vmatpush.bf16.msra.mxu0 %v2869
    %2997 = vmatpush.bf16.msra.mxu0 %v2866
    %2998 = vmatpush.bf16.msra.mxu0 %v2863
    %2999 = vmatpush.bf16.msra.mxu0 %v2860
    %3000 = vmatpush.bf16.msra.mxu0 %v2857
    %3001 = vmatpush.bf16.msra.mxu0 %v2854
    %3002 = vmatpush.bf16.msra.mxu0 %v2851
    %3003 = vmatpush.bf16.msra.mxu0 %v2848
    %3004 = vmatmul.bf16.gmra.mxu0 %v2573
    %v3005 = vpop.f32.mrf.mxu0
    %v3006 = vadd.f32 %v2993, %v3005
    %v3007 = vpop.f32.mrf.mxu0
    %3008 = vdwg.mxu0
    %3009 = vmatpush.bf16.msra.mxu0 %v2893
    %3010 = vmatpush.bf16.msra.mxu0 %v2890
    %3011 = vmatpush.bf16.msra.mxu0 %v2887
    %3012 = vmatpush.bf16.msra.mxu0 %v2884
    %3013 = vmatpush.bf16.msra.mxu0 %v2881
    %3014 = vmatpush.bf16.msra.mxu0 %v2878
    %3015 = vmatpush.bf16.msra.mxu0 %v2875
    %3016 = vmatpush.bf16.msra.mxu0 %v2872
    %3017 = vmatmul.bf16.gmra.mxu0 %v2574
    %v3018 = vpop.f32.mrf.mxu0
    %v3019 = vadd.f32 %v3006, %v3018
    %v3020 = vpop.f32.mrf.mxu0
    %3021 = vdwg.mxu0
    %3022 = vmatpush.bf16.msra.mxu0 0
    %3023 = vmatpush.bf16.msra.mxu0 0
    %3024 = vmatpush.bf16.msra.mxu0 0
    %3025 = vmatpush.bf16.msra.mxu0 0
    %3026 = vmatpush.bf16.msra.mxu0 0
    %3027 = vmatpush.bf16.msra.mxu0 0
    %3028 = vmatpush.bf16.msra.mxu0 0
    %3029 = vmatpush.bf16.msra.mxu0 %v2975
    %3030 = vmatmul.bf16.gmra.mxu0 %v2972
    %v3031 = vpop.f32.mrf.mxu0
    %v3032 = vadd.f32 %v3019, %v3031
    %v3033 = vpop.f32.mrf.mxu0
    %3034 = vdwg.mxu0
    %3035 = vmatpush.bf16.msra.mxu0 %v2846
    %3036 = vmatpush.bf16.msra.mxu0 %v2843
    %3037 = vmatpush.bf16.msra.mxu0 %v2840
    %3038 = vmatpush.bf16.msra.mxu0 %v2837
    %3039 = vmatpush.bf16.msra.mxu0 %v2834
    %3040 = vmatpush.bf16.msra.mxu0 %v2831
    %3041 = vmatpush.bf16.msra.mxu0 %v2828
    %3042 = vmatpush.bf16.msra.mxu0 %v2825
    %3043 = vmatmul.bf16.gmra.mxu0 %v2572
    %v3044 = vpop.f32.mrf.mxu0
    %v3045 = vadd.f32 %v2564, %v3044
    %v3046 = vpop.f32.mrf.mxu0
    %3047 = vdwg.mxu0
    %3048 = vmatpush.bf16.msra.mxu0 %v2870
    %3049 = vmatpush.bf16.msra.mxu0 %v2867
    %3050 = vmatpush.bf16.msra.mxu0 %v2864
    %3051 = vmatpush.bf16.msra.mxu0 %v2861
    %3052 = vmatpush.bf16.msra.mxu0 %v2858
    %3053 = vmatpush.bf16.msra.mxu0 %v2855
    %3054 = vmatpush.bf16.msra.mxu0 %v2852
    %3055 = vmatpush.bf16.msra.mxu0 %v2849
    %3056 = vmatmul.bf16.gmra.mxu0 %v2573
    %v3057 = vpop.f32.mrf.mxu0
    %v3058 = vadd.f32 %v3045, %v3057
    %v3059 = vpop.f32.mrf.mxu0
    %3060 = vdwg.mxu0
    %3061 = vmatpush.bf16.msra.mxu0 %v2894
    %3062 = vmatpush.bf16.msra.mxu0 %v2891
    %3063 = vmatpush.bf16.msra.mxu0 %v2888
    %3064 = vmatpush.bf16.msra.mxu0 %v2885
    %3065 = vmatpush.bf16.msra.mxu0 %v2882
    %3066 = vmatpush.bf16.msra.mxu0 %v2879
    %3067 = vmatpush.bf16.msra.mxu0 %v2876
    %3068 = vmatpush.bf16.msra.mxu0 %v2873
    %3069 = vmatmul.bf16.gmra.mxu0 %v2574
    %v3070 = vpop.f32.mrf.mxu0
    %v3071 = vadd.f32 %v3058, %v3070
    %v3072 = vpop.f32.mrf.mxu0
    %3073 = vdwg.mxu0
    %3074 = vmatpush.bf16.msra.mxu0 0
    %3075 = vmatpush.bf16.msra.mxu0 0
    %3076 = vmatpush.bf16.msra.mxu0 0
    %3077 = vmatpush.bf16.msra.mxu0 0
    %3078 = vmatpush.bf16.msra.mxu0 0
    %3079 = vmatpush.bf16.msra.mxu0 0
    %3080 = vmatpush.bf16.msra.mxu0 0
    %3081 = vmatpush.bf16.msra.mxu0 %v2978
    %3082 = vmatmul.bf16.gmra.mxu0 %v2972
    %v3083 = vpop.f32.mrf.mxu0
    %v3084 = vadd.f32 %v3071, %v3083
    %v3085 = vpop.f32.mrf.mxu0
    %3086 = vdwg.mxu0
    %3087 = vmatpush.bf16.msra.mxu0 %v2847
    %3088 = vmatpush.bf16.msra.mxu0 %v2844
    %3089 = vmatpush.bf16.msra.mxu0 %v2841
    %3090 = vmatpush.bf16.msra.mxu0 %v2838
    %3091 = vmatpush.bf16.msra.mxu0 %v2835
    %3092 = vmatpush.bf16.msra.mxu0 %v2832
    %3093 = vmatpush.bf16.msra.mxu0 %v2829
    %3094 = vmatpush.bf16.msra.mxu0 %v2826
    %3095 = vmatmul.bf16.gmra.mxu0 %v2572
    %v3096 = vpop.f32.mrf.mxu0
    %v3097 = vadd.f32 %v2564, %v3096
    %v3098 = vpop.f32.mrf.mxu0
    %3099 = vdwg.mxu0
    %3100 = vmatpush.bf16.msra.mxu0 %v2871
    %3101 = vmatpush.bf16.msra.mxu0 %v2868
    %3102 = vmatpush.bf16.msra.mxu0 %v2865
    %3103 = vmatpush.bf16.msra.mxu0 %v2862
    %3104 = vmatpush.bf16.msra.mxu0 %v2859
    %3105 = vmatpush.bf16.msra.mxu0 %v2856
    %3106 = vmatpush.bf16.msra.mxu0 %v2853
    %3107 = vmatpush.bf16.msra.mxu0 %v2850
    %3108 = vmatmul.bf16.gmra.mxu0 %v2573
    %v3109 = vpop.f32.mrf.mxu0
    %v3110 = vadd.f32 %v3097, %v3109
    %v3111 = vpop.f32.mrf.mxu0
    %3112 = vdwg.mxu0
    %3113 = vmatpush.bf16.msra.mxu0 %v2895
    %3114 = vmatpush.bf16.msra.mxu0 %v2892
    %3115 = vmatpush.bf16.msra.mxu0 %v2889
    %3116 = vmatpush.bf16.msra.mxu0 %v2886
    %3117 = vmatpush.bf16.msra.mxu0 %v2883
    %3118 = vmatpush.bf16.msra.mxu0 %v2880
    %3119 = vmatpush.bf16.msra.mxu0 %v2877
    %3120 = vmatpush.bf16.msra.mxu0 %v2874
    %3121 = vmatmul.bf16.gmra.mxu0 %v2574
    %v3122 = vpop.f32.mrf.mxu0
    %v3123 = vadd.f32 %v3110, %v3122
    %v3124 = vpop.f32.mrf.mxu0
    %3125 = vdwg.mxu0
    %3126 = vmatpush.bf16.msra.mxu0 0
    %3127 = vmatpush.bf16.msra.mxu0 0
    %3128 = vmatpush.bf16.msra.mxu0 0
    %3129 = vmatpush.bf16.msra.mxu0 0
    %3130 = vmatpush.bf16.msra.mxu0 0
    %3131 = vmatpush.bf16.msra.mxu0 0
    %3132 = vmatpush.bf16.msra.mxu0 0
    %3133 = vmatpush.bf16.msra.mxu0 %v2981
    %3134 = vmatmul.bf16.gmra.mxu0 %v2972
    %v3135 = vpop.f32.mrf.mxu0
    %v3136 = vadd.f32 %v3123, %v3135
    %v3137 = vpop.f32.mrf.mxu0
    %3138 = vdwg.mxu0
    %s3139 = sld [smem:[#allocation8 + $0x1]]
    %vm3140 = vcmp.ge.f32.partialorder %v3032, 0.0
    %vm3141 = vcmp.ge.f32.partialorder %v3084, 0.0
    %vm3142 = vcmp.ge.f32.partialorder %v3136, 0.0
    %v3143 = vstv %s3139
    %v3144 = vmul.f32 %v3143, %v3032
    %v3145 = vmul.f32 %v3143, %v3084
    %v3146 = vmul.f32 %v3143, %v3136
    %v3147 = vsel %vm3140, %v3032, %v3144
    %v3148 = vsel %vm3141, %v3084, %v3145
    %v3149 = vsel %vm3142, %v3136, %v3146
    %v3150 = vmul.f32 %v3147, %v1612
    %v3151 = vmul.f32 %v3148, %v1613
    %v3152 = vmul.f32 %v3149, %v1614
    %v3153 = vpack.c.bf16 %v3151, %v3150
    %v3154 = vpack.c.bf16 %v3152, %v3152
    %3155 = vst [vmem:[#allocation3 + $0x4] sm:$0xff] %v3153
    %3156 = vst [vmem:[#allocation3 + $0xc] sm:$0xf] %v3154
    %v3157 = vld [vmem:[#allocation3] sm:$0xff]
    %v3158 = vld [vmem:[#allocation3 + $0x8] sm:$0xff]
    %v3159 = vld [vmem:[#allocation3 + $0x10] sm:$0xf]
    %v3160 = vld [vmem:[#allocation3 + $0x4] sm:$0xff]
    %v3161 = vld [vmem:[#allocation3 + $0xc] sm:$0xff]
    %v3164 = vunpack.c.l.b16 %v3157
    %v3165 = vunpack.c.h.b16 %v3157
    %v3166 = vunpack.c.l.b16 %v3158
    %v3167 = vunpack.c.h.b16 %v3158
    %v3168 = vpack.c.b16 %v3164, %v3164
    %v3169 = vpack.c.b16 %v3165, %v3165
    %v3170 = vpack.c.b16 %v3166, %v3166
    %v3171 = vpack.c.b16 %v3167, %v3167
    %3172 = vrot.lane.b32.xlu0 %v3168, 127
    %v3173 = vpop.permute.xlu0 %3172
    %3174 = vrot.lane.b32.xlu0 %v3169, 127
    %v3175 = vpop.permute.xlu0 %3174
    %3176 = vrot.lane.b32.xlu0 %v3170, 127
    %v3177 = vpop.permute.xlu0 %3176
    %3178 = vrot.lane.b32.xlu0 %v3171, 127
    %v3179 = vpop.permute.xlu0 %3178
    %v3180 = vsel %vm81, %v3173, %v3175
    %v3181 = vsel %vm81, %v3175, %v3177
    %v3182 = vsel %vm81, %v3177, %v3179
    %v3185 = vsel %vm85, %v3168, %v3180
    %v3188 = vsel %vm85, %v3169, %v3181
    %v3191 = vsel %vm85, %v3170, %v3182
    %v3194 = vsel %vm85, %v3171, %v3179
    %v3199 = vunpack.c.l.b16 %v3185
    %v3200 = vunpack.c.l.b16 %v3188
    %v3201 = vunpack.c.l.b16 %v3191
    %v3202 = vunpack.c.l.b16 %v3194
    %v3203 = vunpack.c.h.b16 %v3185
    %v3204 = vunpack.c.h.b16 %v3188
    %v3205 = vunpack.c.h.b16 %v3191
    %v3206 = vunpack.c.h.b16 %v3194
    %v3207 = vpack.c.b16 %v3200, %v3199
    %v3208 = vpack.c.b16 %v3202, %v3201
    %v3209 = vpack.c.b16 %v3204, %v3203
    %v3210 = vpack.c.b16 %v3206, %v3205
    %3211 = vrot.lane.b32.xlu0 %v3207, 75
    %v3212 = vpop.permute.xlu0 %3211
    %3213 = vrot.lane.b32.xlu0 %v3208, 75
    %v3214 = vpop.permute.xlu0 %3213
    %3215 = vrot.lane.b32.xlu0 %v3209, 75
    %v3216 = vpop.permute.xlu0 %3215
    %3217 = vrot.lane.b32.xlu0 %v3210, 75
    %v3218 = vpop.permute.xlu0 %3217
    %v3219 = vrot.slane %v3212, 4
    %v3220 = vrot.slane %v3214, 4
    %v3221 = vrot.slane %v3216, 4
    %v3222 = vrot.slane %v3218, 4
    %v3223 = vsel %vm126, %v3219, %v3220
    %v3224 = vsel %vm128, %v3212, %v3223
    %v3225 = vsel %vm128, %v3214, %v3220
    %v3226 = vsel %vm126, %v3221, %v3222
    %v3227 = vsel %vm128, %v3216, %v3226
    %v3228 = vsel %vm128, %v3218, %v3222
    %3233 = vst [vmem:[#allocation4] sm:$0xff] %v3224
    %3234 = vst [vmem:[#allocation4 + $0x8] sm:$0xf] %v3225
    %3235 = vst [vmem:[#allocation4 + $0xc] sm:$0xff] %v3227
    %3236 = vst [vmem:[#allocation4 + $0x14] sm:$0xf] %v3228
    %3237 = vrot.lane.b32.xlu0 %v3207, 73
    %v3238 = vpop.permute.xlu0 %3237
    %3239 = vrot.lane.b32.xlu0 %v3208, 73
    %v3240 = vpop.permute.xlu0 %3239
    %3241 = vrot.lane.b32.xlu0 %v3209, 73
    %v3242 = vpop.permute.xlu0 %3241
    %3243 = vrot.lane.b32.xlu0 %v3210, 73
    %v3244 = vpop.permute.xlu0 %3243
    %v3245 = vrot.slane %v3238, 4
    %v3246 = vrot.slane %v3240, 4
    %v3247 = vrot.slane %v3242, 4
    %v3248 = vrot.slane %v3244, 4
    %v3249 = vsel %vm126, %v3245, %v3246
    %v3250 = vsel %vm155, %v3238, %v3249
    %v3251 = vsel %vm155, %v3240, %v3246
    %v3252 = vsel %vm126, %v3247, %v3248
    %v3253 = vsel %vm155, %v3242, %v3252
    %v3254 = vsel %vm155, %v3244, %v3248
    %3259 = vst [vmem:[#allocation4 + $0x18] sm:$0xff] %v3250
    %3260 = vst [vmem:[#allocation4 + $0x20] sm:$0xf] %v3251
    %3261 = vst [vmem:[#allocation4 + $0x24] sm:$0xff] %v3253
    %3262 = vst [vmem:[#allocation4 + $0x2c] sm:$0xf] %v3254
    %3263 = vrot.lane.b32.xlu0 %v3207, 71
    %v3264 = vpop.permute.xlu0 %3263
    %3265 = vrot.lane.b32.xlu0 %v3208, 71
    %v3266 = vpop.permute.xlu0 %3265
    %3267 = vrot.lane.b32.xlu0 %v3209, 71
    %v3268 = vpop.permute.xlu0 %3267
    %3269 = vrot.lane.b32.xlu0 %v3210, 71
    %v3270 = vpop.permute.xlu0 %3269
    %v3271 = vrot.slane %v3264, 4
    %v3272 = vrot.slane %v3266, 4
    %v3273 = vrot.slane %v3268, 4
    %v3274 = vrot.slane %v3270, 4
    %v3275 = vsel %vm126, %v3271, %v3272
    %v3276 = vsel %vm182, %v3264, %v3275
    %v3277 = vsel %vm182, %v3266, %v3272
    %v3278 = vsel %vm126, %v3273, %v3274
    %v3279 = vsel %vm182, %v3268, %v3278
    %v3280 = vsel %vm182, %v3270, %v3274
    %3285 = vst [vmem:[#allocation4 + $0x30] sm:$0xff] %v3276
    %3286 = vst [vmem:[#allocation4 + $0x38] sm:$0xf] %v3277
    %3287 = vst [vmem:[#allocation4 + $0x3c] sm:$0xff] %v3279
    %3288 = vst [vmem:[#allocation4 + $0x44] sm:$0xf] %v3280
    %3289 = vrot.lane.b32.xlu0 %v3168, 110
    %v3290 = vpop.permute.xlu0 %3289
    %3291 = vrot.lane.b32.xlu0 %v3169, 110
    %v3292 = vpop.permute.xlu0 %3291
    %3293 = vrot.lane.b32.xlu0 %v3170, 110
    %v3294 = vpop.permute.xlu0 %3293
    %3295 = vrot.lane.b32.xlu0 %v3171, 110
    %v3296 = vpop.permute.xlu0 %3295
    %v3297 = vsel %vm204, %v3290, %v3292
    %v3298 = vsel %vm204, %v3292, %v3294
    %v3299 = vsel %vm204, %v3294, %v3296
    %v3301 = vsel %vm85, %v3168, %v3297
    %v3303 = vsel %vm85, %v3169, %v3298
    %v3305 = vsel %vm85, %v3170, %v3299
    %v3307 = vsel %vm85, %v3171, %v3296
    %v3312 = vunpack.c.l.b16 %v3301
    %v3313 = vunpack.c.l.b16 %v3303
    %v3314 = vunpack.c.l.b16 %v3305
    %v3315 = vunpack.c.l.b16 %v3307
    %v3316 = vunpack.c.h.b16 %v3301
    %v3317 = vunpack.c.h.b16 %v3303
    %v3318 = vunpack.c.h.b16 %v3305
    %v3319 = vunpack.c.h.b16 %v3307
    %v3320 = vpack.c.b16 %v3313, %v3312
    %v3321 = vpack.c.b16 %v3315, %v3314
    %v3322 = vpack.c.b16 %v3317, %v3316
    %v3323 = vpack.c.b16 %v3319, %v3318
    %3324 = vrot.lane.b32.xlu0 %v3320, 69
    %v3325 = vpop.permute.xlu0 %3324
    %3326 = vrot.lane.b32.xlu0 %v3321, 69
    %v3327 = vpop.permute.xlu0 %3326
    %3328 = vrot.lane.b32.xlu0 %v3322, 69
    %v3329 = vpop.permute.xlu0 %3328
    %3330 = vrot.lane.b32.xlu0 %v3323, 69
    %v3331 = vpop.permute.xlu0 %3330
    %v3332 = vrot.slane %v3325, 4
    %v3333 = vrot.slane %v3327, 4
    %v3334 = vrot.slane %v3329, 4
    %v3335 = vrot.slane %v3331, 4
    %v3336 = vsel %vm126, %v3332, %v3333
    %v3337 = vsel %vm245, %v3325, %v3336
    %v3338 = vsel %vm245, %v3327, %v3333
    %v3339 = vsel %vm126, %v3334, %v3335
    %v3340 = vsel %vm245, %v3329, %v3339
    %v3341 = vsel %vm245, %v3331, %v3335
    %3346 = vst [vmem:[#allocation4 + $0x48] sm:$0xff] %v3337
    %3347 = vst [vmem:[#allocation4 + $0x50] sm:$0xf] %v3338
    %3348 = vst [vmem:[#allocation4 + $0x54] sm:$0xff] %v3340
    %3349 = vst [vmem:[#allocation4 + $0x5c] sm:$0xf] %v3341
    %3350 = vrot.lane.b32.xlu0 %v3207, 50
    %v3351 = vpop.permute.xlu0 %3350
    %3352 = vrot.lane.b32.xlu0 %v3208, 50
    %v3353 = vpop.permute.xlu0 %3352
    %3354 = vrot.lane.b32.xlu0 %v3209, 50
    %v3355 = vpop.permute.xlu0 %3354
    %3356 = vrot.lane.b32.xlu0 %v3210, 50
    %v3357 = vpop.permute.xlu0 %3356
    %v3358 = vrot.slane %v3351, 4
    %v3359 = vrot.slane %v3353, 4
    %v3360 = vrot.slane %v3355, 4
    %v3361 = vrot.slane %v3357, 4
    %v3362 = vsel %vm126, %v3358, %v3359
    %v3363 = vsel %vm272, %v3351, %v3362
    %v3364 = vsel %vm272, %v3353, %v3359
    %v3365 = vsel %vm126, %v3360, %v3361
    %v3366 = vsel %vm272, %v3355, %v3365
    %v3367 = vsel %vm272, %v3357, %v3361
    %3372 = vst [vmem:[#allocation4 + $0x60] sm:$0xff] %v3363
    %3373 = vst [vmem:[#allocation4 + $0x68] sm:$0xf] %v3364
    %3374 = vst [vmem:[#allocation4 + $0x6c] sm:$0xff] %v3366
    %3375 = vst [vmem:[#allocation4 + $0x74] sm:$0xf] %v3367
    %3376 = vrot.lane.b32.xlu0 %v3207, 48
    %v3377 = vpop.permute.xlu0 %3376
    %3378 = vrot.lane.b32.xlu0 %v3208, 48
    %v3379 = vpop.permute.xlu0 %3378
    %3380 = vrot.lane.b32.xlu0 %v3209, 48
    %v3381 = vpop.permute.xlu0 %3380
    %3382 = vrot.lane.b32.xlu0 %v3210, 48
    %v3383 = vpop.permute.xlu0 %3382
    %v3384 = vrot.slane %v3377, 4
    %v3385 = vrot.slane %v3379, 4
    %v3386 = vrot.slane %v3381, 4
    %v3387 = vrot.slane %v3383, 4
    %v3388 = vsel %vm126, %v3384, %v3385
    %v3389 = vsel %vm299, %v3377, %v3388
    %v3390 = vsel %vm299, %v3379, %v3385
    %v3391 = vsel %vm126, %v3386, %v3387
    %v3392 = vsel %vm299, %v3381, %v3391
    %v3393 = vsel %vm299, %v3383, %v3387
    %3398 = vst [vmem:[#allocation4 + $0x78] sm:$0xff] %v3389
    %3399 = vst [vmem:[#allocation4 + $0x80] sm:$0xf] %v3390
    %3400 = vst [vmem:[#allocation4 + $0x84] sm:$0xff] %v3392
    %3401 = vst [vmem:[#allocation4 + $0x8c] sm:$0xf] %v3393
    %3402 = vrot.lane.b32.xlu0 %v3207, 46
    %v3403 = vpop.permute.xlu0 %3402
    %3404 = vrot.lane.b32.xlu0 %v3208, 46
    %v3405 = vpop.permute.xlu0 %3404
    %3406 = vrot.lane.b32.xlu0 %v3209, 46
    %v3407 = vpop.permute.xlu0 %3406
    %3408 = vrot.lane.b32.xlu0 %v3210, 46
    %v3409 = vpop.permute.xlu0 %3408
    %v3410 = vrot.slane %v3403, 4
    %v3411 = vrot.slane %v3405, 4
    %v3412 = vrot.slane %v3407, 4
    %v3413 = vrot.slane %v3409, 4
    %v3414 = vsel %vm126, %v3410, %v3411
    %v3415 = vsel %vm326, %v3403, %v3414
    %v3416 = vsel %vm326, %v3405, %v3411
    %v3417 = vsel %vm126, %v3412, %v3413
    %v3418 = vsel %vm326, %v3407, %v3417
    %v3419 = vsel %vm326, %v3409, %v3413
    %3424 = vst [vmem:[#allocation4 + $0x90] sm:$0xff] %v3415
    %3425 = vst [vmem:[#allocation4 + $0x98] sm:$0xf] %v3416
    %3426 = vst [vmem:[#allocation4 + $0x9c] sm:$0xff] %v3418
    %3427 = vst [vmem:[#allocation4 + $0xa4] sm:$0xf] %v3419
    %3428 = vrot.lane.b32.xlu0 %v3207, 27
    %v3429 = vpop.permute.xlu0 %3428
    %3430 = vrot.lane.b32.xlu0 %v3208, 27
    %v3431 = vpop.permute.xlu0 %3430
    %3432 = vrot.lane.b32.xlu0 %v3209, 27
    %v3433 = vpop.permute.xlu0 %3432
    %3434 = vrot.lane.b32.xlu0 %v3210, 27
    %v3435 = vpop.permute.xlu0 %3434
    %v3436 = vrot.slane %v3429, 4
    %v3437 = vrot.slane %v3431, 4
    %v3438 = vrot.slane %v3433, 4
    %v3439 = vrot.slane %v3435, 4
    %v3440 = vsel %vm126, %v3436, %v3437
    %v3441 = vsel %vm353, %v3429, %v3440
    %v3442 = vsel %vm353, %v3431, %v3437
    %v3443 = vsel %vm126, %v3438, %v3439
    %v3444 = vsel %vm353, %v3433, %v3443
    %v3445 = vsel %vm353, %v3435, %v3439
    %3450 = vst [vmem:[#allocation4 + $0xa8] sm:$0xff] %v3441
    %3451 = vst [vmem:[#allocation4 + $0xb0] sm:$0xf] %v3442
    %3452 = vst [vmem:[#allocation4 + $0xb4] sm:$0xff] %v3444
    %3453 = vst [vmem:[#allocation4 + $0xbc] sm:$0xf] %v3445
    %3454 = vrot.lane.b32.xlu0 %v3207, 25
    %v3455 = vpop.permute.xlu0 %3454
    %3456 = vrot.lane.b32.xlu0 %v3208, 25
    %v3457 = vpop.permute.xlu0 %3456
    %3458 = vrot.lane.b32.xlu0 %v3209, 25
    %v3459 = vpop.permute.xlu0 %3458
    %3460 = vrot.lane.b32.xlu0 %v3210, 25
    %v3461 = vpop.permute.xlu0 %3460
    %v3462 = vrot.slane %v3455, 4
    %v3463 = vrot.slane %v3457, 4
    %v3464 = vrot.slane %v3459, 4
    %v3465 = vrot.slane %v3461, 4
    %v3466 = vsel %vm126, %v3462, %v3463
    %v3467 = vsel %vm380, %v3455, %v3466
    %v3468 = vsel %vm380, %v3457, %v3463
    %v3469 = vsel %vm126, %v3464, %v3465
    %v3470 = vsel %vm380, %v3459, %v3469
    %v3471 = vsel %vm380, %v3461, %v3465
    %3476 = vst [vmem:[#allocation4 + $0xc0] sm:$0xff] %v3467
    %3477 = vst [vmem:[#allocation4 + $0xc8] sm:$0xf] %v3468
    %3478 = vst [vmem:[#allocation4 + $0xcc] sm:$0xff] %v3470
    %3479 = vst [vmem:[#allocation4 + $0xd4] sm:$0xf] %v3471
    %3480 = vrot.lane.b32.xlu0 %v3207, 23
    %v3481 = vpop.permute.xlu0 %3480
    %3482 = vrot.lane.b32.xlu0 %v3208, 23
    %v3483 = vpop.permute.xlu0 %3482
    %3484 = vrot.lane.b32.xlu0 %v3209, 23
    %v3485 = vpop.permute.xlu0 %3484
    %3486 = vrot.lane.b32.xlu0 %v3210, 23
    %v3487 = vpop.permute.xlu0 %3486
    %v3488 = vrot.slane %v3481, 4
    %v3489 = vrot.slane %v3483, 4
    %v3490 = vrot.slane %v3485, 4
    %v3491 = vrot.slane %v3487, 4
    %v3492 = vsel %vm126, %v3488, %v3489
    %v3493 = vsel %vm407, %v3481, %v3492
    %v3494 = vsel %vm407, %v3483, %v3489
    %v3495 = vsel %vm126, %v3490, %v3491
    %v3496 = vsel %vm407, %v3485, %v3495
    %v3497 = vsel %vm407, %v3487, %v3491
    %3502 = vst [vmem:[#allocation4 + $0xd8] sm:$0xff] %v3493
    %3503 = vst [vmem:[#allocation4 + $0xe0] sm:$0xf] %v3494
    %3504 = vst [vmem:[#allocation4 + $0xe4] sm:$0xff] %v3496
    %3505 = vst [vmem:[#allocation4 + $0xec] sm:$0xf] %v3497
    %3506 = vrot.lane.b32.xlu0 %v3320, 21
    %v3507 = vpop.permute.xlu0 %3506
    %3508 = vrot.lane.b32.xlu0 %v3321, 21
    %v3509 = vpop.permute.xlu0 %3508
    %3510 = vrot.lane.b32.xlu0 %v3322, 21
    %v3511 = vpop.permute.xlu0 %3510
    %3512 = vrot.lane.b32.xlu0 %v3323, 21
    %v3513 = vpop.permute.xlu0 %3512
    %v3514 = vrot.slane %v3507, 4
    %v3515 = vrot.slane %v3509, 4
    %v3516 = vrot.slane %v3511, 4
    %v3517 = vrot.slane %v3513, 4
    %v3518 = vsel %vm126, %v3514, %v3515
    %v3519 = vsel %vm434, %v3507, %v3518
    %v3520 = vsel %vm434, %v3509, %v3515
    %v3521 = vsel %vm126, %v3516, %v3517
    %v3522 = vsel %vm434, %v3511, %v3521
    %v3523 = vsel %vm434, %v3513, %v3517
    %3528 = vst [vmem:[#allocation4 + $0xf0] sm:$0xff] %v3519
    %3529 = vst [vmem:[#allocation4 + $0xf8] sm:$0xf] %v3520
    %3530 = vst [vmem:[#allocation4 + $0xfc] sm:$0xff] %v3522
    %3531 = vst [vmem:[#allocation4 + $0x104] sm:$0xf] %v3523
    %3532 = vrot.lane.b32.xlu0 %v3207, 2
    %v3533 = vpop.permute.xlu0 %3532
    %3534 = vrot.lane.b32.xlu0 %v3208, 2
    %v3535 = vpop.permute.xlu0 %3534
    %3536 = vrot.lane.b32.xlu0 %v3209, 2
    %v3537 = vpop.permute.xlu0 %3536
    %3538 = vrot.lane.b32.xlu0 %v3210, 2
    %v3539 = vpop.permute.xlu0 %3538
    %v3540 = vrot.slane %v3533, 4
    %v3541 = vrot.slane %v3535, 4
    %v3542 = vrot.slane %v3537, 4
    %v3543 = vrot.slane %v3539, 4
    %v3544 = vsel %vm126, %v3540, %v3541
    %v3545 = vsel %vm461, %v3533, %v3544
    %v3546 = vsel %vm461, %v3535, %v3541
    %v3547 = vsel %vm126, %v3542, %v3543
    %v3548 = vsel %vm461, %v3537, %v3547
    %v3549 = vsel %vm461, %v3539, %v3543
    %3554 = vst [vmem:[#allocation4 + $0x108] sm:$0xff] %v3545
    %3555 = vst [vmem:[#allocation4 + $0x110] sm:$0xf] %v3546
    %3556 = vst [vmem:[#allocation4 + $0x114] sm:$0xff] %v3548
    %3557 = vst [vmem:[#allocation4 + $0x11c] sm:$0xf] %v3549
    %v3559 = vunpack.c.l.b16 %v3159
    %v3560 = vpack.c.b16 %v3559, %v3559
    %3561 = vrot.lane.b32.xlu0 %v3560, 127
    %v3562 = vpop.permute.xlu0 %3561
    %v3563 = vsel %vm81, %v3179, %v3562
    %v3565 = vsel %vm85, %v3171, %v3563
    %v3567 = vunpack.c.l.b16 %v3565
    %v3568 = vunpack.c.h.b16 %v3565
    %v3569 = vpack.c.b16 %v3201, %v3200
    %v3570 = vpack.c.b16 %v3567, %v3567
    %v3571 = vpack.c.b16 %v3205, %v3204
    %v3572 = vpack.c.b16 %v3568, %v3568
    %3577 = vst [vmem:[#allocation4 + $0x120] sm:$0xff] %v3569
    %3578 = vst [vmem:[#allocation4 + $0x128] sm:$0xf] %v3570
    %3579 = vst [vmem:[#allocation4 + $0x12c] sm:$0xff] %v3571
    %3580 = vst [vmem:[#allocation4 + $0x134] sm:$0xf] %v3572
    %3581 = vrot.lane.b32.xlu0 %v3169, 126
    %v3582 = vpop.permute.xlu0 %3581
    %3583 = vrot.lane.b32.xlu0 %v3170, 126
    %v3584 = vpop.permute.xlu0 %3583
    %3585 = vrot.lane.b32.xlu0 %v3171, 126
    %v3586 = vpop.permute.xlu0 %3585
    %3587 = vrot.lane.b32.xlu0 %v3560, 126
    %v3588 = vpop.permute.xlu0 %3587
    %v3589 = vsel %vm506, %v3582, %v3584
    %v3590 = vsel %vm506, %v3584, %v3586
    %v3591 = vsel %vm506, %v3586, %v3588
    %3592 = vrot.lane.b32.xlu0 %v3169, 125
    %v3593 = vpop.permute.xlu0 %3592
    %3594 = vrot.lane.b32.xlu0 %v3170, 125
    %v3595 = vpop.permute.xlu0 %3594
    %3596 = vrot.lane.b32.xlu0 %v3171, 125
    %v3597 = vpop.permute.xlu0 %3596
    %3598 = vrot.lane.b32.xlu0 %v3560, 125
    %v3599 = vpop.permute.xlu0 %3598
    %v3600 = vsel %vm518, %v3593, %v3595
    %v3601 = vsel %vm518, %v3595, %v3597
    %v3602 = vsel %vm518, %v3597, %v3599
    %v3605 = vsel %vm85, %v3589, %v3600
    %v3608 = vsel %vm85, %v3590, %v3601
    %v3611 = vsel %vm85, %v3591, %v3602
    %v3615 = vunpack.c.l.b16 %v3605
    %v3616 = vunpack.c.l.b16 %v3608
    %v3617 = vunpack.c.l.b16 %v3611
    %v3618 = vunpack.c.h.b16 %v3605
    %v3619 = vunpack.c.h.b16 %v3608
    %v3620 = vunpack.c.h.b16 %v3611
    %v3621 = vpack.c.b16 %v3616, %v3615
    %v3622 = vpack.c.b16 %v3617, %v3617
    %v3623 = vpack.c.b16 %v3619, %v3618
    %v3624 = vpack.c.b16 %v3620, %v3620
    %3629 = vst [vmem:[#allocation4 + $0x138] sm:$0xff] %v3621
    %3630 = vst [vmem:[#allocation4 + $0x140] sm:$0xf] %v3622
    %3631 = vst [vmem:[#allocation4 + $0x144] sm:$0xff] %v3623
    %3632 = vst [vmem:[#allocation4 + $0x14c] sm:$0xf] %v3624
    %v3635 = vunpack.c.l.b16 %v3160
    %v3636 = vunpack.c.h.b16 %v3160
    %v3637 = vunpack.c.l.b16 %v3161
    %v3638 = vunpack.c.h.b16 %v3161
    %v3639 = vpack.c.b16 %v3635, %v3635
    %v3640 = vpack.c.b16 %v3636, %v3636
    %v3641 = vpack.c.b16 %v3637, %v3637
    %v3642 = vpack.c.b16 %v3638, %v3638
    %3643 = vrot.lane.b32.xlu0 %v3639, 127
    %v3644 = vpop.permute.xlu0 %3643
    %3645 = vrot.lane.b32.xlu0 %v3640, 127
    %v3646 = vpop.permute.xlu0 %3645
    %3647 = vrot.lane.b32.xlu0 %v3641, 127
    %v3648 = vpop.permute.xlu0 %3647
    %3649 = vrot.lane.b32.xlu0 %v3642, 127
    %v3650 = vpop.permute.xlu0 %3649
    %v3651 = vsel %vm81, %v3644, %v3646
    %v3652 = vsel %vm81, %v3646, %v3648
    %v3653 = vsel %vm81, %v3648, %v3650
    %v3656 = vsel %vm85, %v3639, %v3651
    %v3659 = vsel %vm85, %v3640, %v3652
    %v3662 = vsel %vm85, %v3641, %v3653
    %v3665 = vsel %vm85, %v3642, %v3650
    %v3670 = vunpack.c.l.b16 %v3656
    %v3671 = vunpack.c.l.b16 %v3659
    %v3672 = vunpack.c.l.b16 %v3662
    %v3673 = vunpack.c.l.b16 %v3665
    %v3674 = vunpack.c.h.b16 %v3656
    %v3675 = vunpack.c.h.b16 %v3659
    %v3676 = vunpack.c.h.b16 %v3662
    %v3677 = vunpack.c.h.b16 %v3665
    %v3678 = vpack.c.b16 %v3671, %v3670
    %v3679 = vpack.c.b16 %v3673, %v3672
    %v3680 = vpack.c.b16 %v3675, %v3674
    %v3681 = vpack.c.b16 %v3677, %v3676
    %3682 = vrot.lane.b32.xlu0 %v3678, 107
    %v3683 = vpop.permute.xlu0 %3682
    %3684 = vrot.lane.b32.xlu0 %v3679, 107
    %v3685 = vpop.permute.xlu0 %3684
    %3686 = vrot.lane.b32.xlu0 %v3680, 107
    %v3687 = vpop.permute.xlu0 %3686
    %3688 = vrot.lane.b32.xlu0 %v3681, 107
    %v3689 = vpop.permute.xlu0 %3688
    %v3690 = vrot.slane %v3683, 4
    %v3691 = vrot.slane %v3685, 4
    %v3692 = vrot.slane %v3687, 4
    %v3693 = vrot.slane %v3689, 4
    %v3694 = vsel %vm126, %v3690, %v3691
    %v3695 = vsel %vm614, %v3683, %v3694
    %v3696 = vsel %vm614, %v3685, %v3691
    %v3697 = vsel %vm126, %v3692, %v3693
    %v3698 = vsel %vm614, %v3687, %v3697
    %v3699 = vsel %vm614, %v3689, %v3693
    %3704 = vst [vmem:[#allocation4 + $0x150] sm:$0xff] %v3695
    %3705 = vst [vmem:[#allocation4 + $0x158] sm:$0xf] %v3696
    %3706 = vst [vmem:[#allocation4 + $0x15c] sm:$0xff] %v3698
    %3707 = vst [vmem:[#allocation4 + $0x164] sm:$0xf] %v3699
    %3708 = vrot.lane.b32.xlu0 %v3678, 105
    %v3709 = vpop.permute.xlu0 %3708
    %3710 = vrot.lane.b32.xlu0 %v3679, 105
    %v3711 = vpop.permute.xlu0 %3710
    %3712 = vrot.lane.b32.xlu0 %v3680, 105
    %v3713 = vpop.permute.xlu0 %3712
    %3714 = vrot.lane.b32.xlu0 %v3681, 105
    %v3715 = vpop.permute.xlu0 %3714
    %v3716 = vrot.slane %v3709, 4
    %v3717 = vrot.slane %v3711, 4
    %v3718 = vrot.slane %v3713, 4
    %v3719 = vrot.slane %v3715, 4
    %v3720 = vsel %vm126, %v3716, %v3717
    %v3721 = vsel %vm641, %v3709, %v3720
    %v3722 = vsel %vm641, %v3711, %v3717
    %v3723 = vsel %vm126, %v3718, %v3719
    %v3724 = vsel %vm641, %v3713, %v3723
    %v3725 = vsel %vm641, %v3715, %v3719
    %3730 = vst [vmem:[#allocation4 + $0x168] sm:$0xff] %v3721
    %3731 = vst [vmem:[#allocation4 + $0x170] sm:$0xf] %v3722
    %3732 = vst [vmem:[#allocation4 + $0x174] sm:$0xff] %v3724
    %3733 = vst [vmem:[#allocation4 + $0x17c] sm:$0xf] %v3725
    %3734 = vrot.lane.b32.xlu0 %v3678, 103
    %v3735 = vpop.permute.xlu0 %3734
    %3736 = vrot.lane.b32.xlu0 %v3679, 103
    %v3737 = vpop.permute.xlu0 %3736
    %3738 = vrot.lane.b32.xlu0 %v3680, 103
    %v3739 = vpop.permute.xlu0 %3738
    %3740 = vrot.lane.b32.xlu0 %v3681, 103
    %v3741 = vpop.permute.xlu0 %3740
    %v3742 = vrot.slane %v3735, 4
    %v3743 = vrot.slane %v3737, 4
    %v3744 = vrot.slane %v3739, 4
    %v3745 = vrot.slane %v3741, 4
    %v3746 = vsel %vm126, %v3742, %v3743
    %v3747 = vsel %vm668, %v3735, %v3746
    %v3748 = vsel %vm668, %v3737, %v3743
    %v3749 = vsel %vm126, %v3744, %v3745
    %v3750 = vsel %vm668, %v3739, %v3749
    %v3751 = vsel %vm668, %v3741, %v3745
    %3756 = vst [vmem:[#allocation4 + $0x180] sm:$0xff] %v3747
    %3757 = vst [vmem:[#allocation4 + $0x188] sm:$0xf] %v3748
    %3758 = vst [vmem:[#allocation4 + $0x18c] sm:$0xff] %v3750
    %3759 = vst [vmem:[#allocation4 + $0x194] sm:$0xf] %v3751
    %3760 = vrot.lane.b32.xlu0 %v3639, 110
    %v3761 = vpop.permute.xlu0 %3760
    %3762 = vrot.lane.b32.xlu0 %v3640, 110
    %v3763 = vpop.permute.xlu0 %3762
    %3764 = vrot.lane.b32.xlu0 %v3641, 110
    %v3765 = vpop.permute.xlu0 %3764
    %3766 = vrot.lane.b32.xlu0 %v3642, 110
    %v3767 = vpop.permute.xlu0 %3766
    %v3768 = vsel %vm204, %v3761, %v3763
    %v3769 = vsel %vm204, %v3763, %v3765
    %v3770 = vsel %vm204, %v3765, %v3767
    %v3772 = vsel %vm85, %v3639, %v3768
    %v3774 = vsel %vm85, %v3640, %v3769
    %v3776 = vsel %vm85, %v3641, %v3770
    %v3778 = vsel %vm85, %v3642, %v3767
    %v3783 = vunpack.c.l.b16 %v3772
    %v3784 = vunpack.c.l.b16 %v3774
    %v3785 = vunpack.c.l.b16 %v3776
    %v3786 = vunpack.c.l.b16 %v3778
    %v3787 = vunpack.c.h.b16 %v3772
    %v3788 = vunpack.c.h.b16 %v3774
    %v3789 = vunpack.c.h.b16 %v3776
    %v3790 = vunpack.c.h.b16 %v3778
    %v3791 = vpack.c.b16 %v3784, %v3783
    %v3792 = vpack.c.b16 %v3786, %v3785
    %v3793 = vpack.c.b16 %v3788, %v3787
    %v3794 = vpack.c.b16 %v3790, %v3789
    %3795 = vrot.lane.b32.xlu0 %v3791, 101
    %v3796 = vpop.permute.xlu0 %3795
    %3797 = vrot.lane.b32.xlu0 %v3792, 101
    %v3798 = vpop.permute.xlu0 %3797
    %3799 = vrot.lane.b32.xlu0 %v3793, 101
    %v3800 = vpop.permute.xlu0 %3799
    %3801 = vrot.lane.b32.xlu0 %v3794, 101
    %v3802 = vpop.permute.xlu0 %3801
    %v3803 = vrot.slane %v3796, 4
    %v3804 = vrot.slane %v3798, 4
    %v3805 = vrot.slane %v3800, 4
    %v3806 = vrot.slane %v3802, 4
    %v3807 = vsel %vm126, %v3803, %v3804
    %v3808 = vsel %vm730, %v3796, %v3807
    %v3809 = vsel %vm730, %v3798, %v3804
    %v3810 = vsel %vm126, %v3805, %v3806
    %v3811 = vsel %vm730, %v3800, %v3810
    %v3812 = vsel %vm730, %v3802, %v3806
    %3817 = vst [vmem:[#allocation4 + $0x198] sm:$0xff] %v3808
    %3818 = vst [vmem:[#allocation4 + $0x1a0] sm:$0xf] %v3809
    %3819 = vst [vmem:[#allocation4 + $0x1a4] sm:$0xff] %v3811
    %3820 = vst [vmem:[#allocation4 + $0x1ac] sm:$0xf] %v3812
    %3821 = vrot.lane.b32.xlu0 %v3678, 82
    %v3822 = vpop.permute.xlu0 %3821
    %3823 = vrot.lane.b32.xlu0 %v3679, 82
    %v3824 = vpop.permute.xlu0 %3823
    %3825 = vrot.lane.b32.xlu0 %v3680, 82
    %v3826 = vpop.permute.xlu0 %3825
    %3827 = vrot.lane.b32.xlu0 %v3681, 82
    %v3828 = vpop.permute.xlu0 %3827
    %v3829 = vrot.slane %v3822, 4
    %v3830 = vrot.slane %v3824, 4
    %v3831 = vrot.slane %v3826, 4
    %v3832 = vrot.slane %v3828, 4
    %v3833 = vsel %vm126, %v3829, %v3830
    %v3834 = vsel %vm757, %v3822, %v3833
    %v3835 = vsel %vm757, %v3824, %v3830
    %v3836 = vsel %vm126, %v3831, %v3832
    %v3837 = vsel %vm757, %v3826, %v3836
    %v3838 = vsel %vm757, %v3828, %v3832
    %3843 = vst [vmem:[#allocation4 + $0x1b0] sm:$0xff] %v3834
    %3844 = vst [vmem:[#allocation4 + $0x1b8] sm:$0xf] %v3835
    %3845 = vst [vmem:[#allocation4 + $0x1bc] sm:$0xff] %v3837
    %3846 = vst [vmem:[#allocation4 + $0x1c4] sm:$0xf] %v3838
    %3847 = vrot.lane.b32.xlu0 %v3678, 80
    %v3848 = vpop.permute.xlu0 %3847
    %3849 = vrot.lane.b32.xlu0 %v3679, 80
    %v3850 = vpop.permute.xlu0 %3849
    %3851 = vrot.lane.b32.xlu0 %v3680, 80
    %v3852 = vpop.permute.xlu0 %3851
    %3853 = vrot.lane.b32.xlu0 %v3681, 80
    %v3854 = vpop.permute.xlu0 %3853
    %v3855 = vrot.slane %v3848, 4
    %v3856 = vrot.slane %v3850, 4
    %v3857 = vrot.slane %v3852, 4
    %v3858 = vrot.slane %v3854, 4
    %v3859 = vsel %vm126, %v3855, %v3856
    %v3860 = vsel %vm784, %v3848, %v3859
    %v3861 = vsel %vm784, %v3850, %v3856
    %v3862 = vsel %vm126, %v3857, %v3858
    %v3863 = vsel %vm784, %v3852, %v3862
    %v3864 = vsel %vm784, %v3854, %v3858
    %3869 = vst [vmem:[#allocation4 + $0x1c8] sm:$0xff] %v3860
    %3870 = vst [vmem:[#allocation4 + $0x1d0] sm:$0xf] %v3861
    %3871 = vst [vmem:[#allocation4 + $0x1d4] sm:$0xff] %v3863
    %3872 = vst [vmem:[#allocation4 + $0x1dc] sm:$0xf] %v3864
    %3873 = vrot.lane.b32.xlu0 %v3678, 78
    %v3874 = vpop.permute.xlu0 %3873
    %3875 = vrot.lane.b32.xlu0 %v3679, 78
    %v3876 = vpop.permute.xlu0 %3875
    %3877 = vrot.lane.b32.xlu0 %v3680, 78
    %v3878 = vpop.permute.xlu0 %3877
    %3879 = vrot.lane.b32.xlu0 %v3681, 78
    %v3880 = vpop.permute.xlu0 %3879
    %v3881 = vrot.slane %v3874, 4
    %v3882 = vrot.slane %v3876, 4
    %v3883 = vrot.slane %v3878, 4
    %v3884 = vrot.slane %v3880, 4
    %v3885 = vsel %vm126, %v3881, %v3882
    %v3886 = vsel %vm811, %v3874, %v3885
    %v3887 = vsel %vm811, %v3876, %v3882
    %v3888 = vsel %vm126, %v3883, %v3884
    %v3889 = vsel %vm811, %v3878, %v3888
    %v3890 = vsel %vm811, %v3880, %v3884
    %3895 = vst [vmem:[#allocation4 + $0x1e0] sm:$0xff] %v3886
    %3896 = vst [vmem:[#allocation4 + $0x1e8] sm:$0xf] %v3887
    %3897 = vst [vmem:[#allocation4 + $0x1ec] sm:$0xff] %v3889
    %3898 = vst [vmem:[#allocation4 + $0x1f4] sm:$0xf] %v3890
    %3899 = vrot.lane.b32.xlu0 %v3678, 59
    %v3900 = vpop.permute.xlu0 %3899
    %3901 = vrot.lane.b32.xlu0 %v3679, 59
    %v3902 = vpop.permute.xlu0 %3901
    %3903 = vrot.lane.b32.xlu0 %v3680, 59
    %v3904 = vpop.permute.xlu0 %3903
    %3905 = vrot.lane.b32.xlu0 %v3681, 59
    %v3906 = vpop.permute.xlu0 %3905
    %v3907 = vrot.slane %v3900, 4
    %v3908 = vrot.slane %v3902, 4
    %v3909 = vrot.slane %v3904, 4
    %v3910 = vrot.slane %v3906, 4
    %v3911 = vsel %vm126, %v3907, %v3908
    %v3912 = vsel %vm838, %v3900, %v3911
    %v3913 = vsel %vm838, %v3902, %v3908
    %v3914 = vsel %vm126, %v3909, %v3910
    %v3915 = vsel %vm838, %v3904, %v3914
    %v3916 = vsel %vm838, %v3906, %v3910
    %3921 = vst [vmem:[#allocation4 + $0x1f8] sm:$0xff] %v3912
    %3922 = vst [vmem:[#allocation4 + $0x200] sm:$0xf] %v3913
    %3923 = vst [vmem:[#allocation4 + $0x204] sm:$0xff] %v3915
    %3924 = vst [vmem:[#allocation4 + $0x20c] sm:$0xf] %v3916
    %3925 = vrot.lane.b32.xlu0 %v3678, 57
    %v3926 = vpop.permute.xlu0 %3925
    %3927 = vrot.lane.b32.xlu0 %v3679, 57
    %v3928 = vpop.permute.xlu0 %3927
    %3929 = vrot.lane.b32.xlu0 %v3680, 57
    %v3930 = vpop.permute.xlu0 %3929
    %3931 = vrot.lane.b32.xlu0 %v3681, 57
    %v3932 = vpop.permute.xlu0 %3931
    %v3933 = vrot.slane %v3926, 4
    %v3934 = vrot.slane %v3928, 4
    %v3935 = vrot.slane %v3930, 4
    %v3936 = vrot.slane %v3932, 4
    %v3937 = vsel %vm126, %v3933, %v3934
    %v3938 = vsel %vm865, %v3926, %v3937
    %v3939 = vsel %vm865, %v3928, %v3934
    %v3940 = vsel %vm126, %v3935, %v3936
    %v3941 = vsel %vm865, %v3930, %v3940
    %v3942 = vsel %vm865, %v3932, %v3936
    %3947 = vst [vmem:[#allocation4 + $0x210] sm:$0xff] %v3938
    %3948 = vst [vmem:[#allocation4 + $0x218] sm:$0xf] %v3939
    %3949 = vst [vmem:[#allocation4 + $0x21c] sm:$0xff] %v3941
    %3950 = vst [vmem:[#allocation4 + $0x224] sm:$0xf] %v3942
    %3951 = vrot.lane.b32.xlu0 %v3678, 55
    %v3952 = vpop.permute.xlu0 %3951
    %3953 = vrot.lane.b32.xlu0 %v3679, 55
    %v3954 = vpop.permute.xlu0 %3953
    %3955 = vrot.lane.b32.xlu0 %v3680, 55
    %v3956 = vpop.permute.xlu0 %3955
    %3957 = vrot.lane.b32.xlu0 %v3681, 55
    %v3958 = vpop.permute.xlu0 %3957
    %v3959 = vrot.slane %v3952, 4
    %v3960 = vrot.slane %v3954, 4
    %v3961 = vrot.slane %v3956, 4
    %v3962 = vrot.slane %v3958, 4
    %v3963 = vsel %vm126, %v3959, %v3960
    %v3964 = vsel %vm892, %v3952, %v3963
    %v3965 = vsel %vm892, %v3954, %v3960
    %v3966 = vsel %vm126, %v3961, %v3962
    %v3967 = vsel %vm892, %v3956, %v3966
    %v3968 = vsel %vm892, %v3958, %v3962
    %3973 = vst [vmem:[#allocation4 + $0x228] sm:$0xff] %v3964
    %3974 = vst [vmem:[#allocation4 + $0x230] sm:$0xf] %v3965
    %3975 = vst [vmem:[#allocation4 + $0x234] sm:$0xff] %v3967
    %3976 = vst [vmem:[#allocation4 + $0x23c] sm:$0xf] %v3968
    %3977 = vrot.lane.b32.xlu0 %v3160, 53
    %v3978 = vpop.permute.xlu0 %3977
    %3979 = vrot.lane.b32.xlu0 %v3161, 53
    %v3980 = vpop.permute.xlu0 %3979
    %v3981 = vrot.slane %v3978, 4
    %v3982 = vrot.slane %v3980, 4
    %v3983 = vsel %vm126, %v3981, %v3982
    %v3984 = vsel %vm913, %v3978, %v3983
    %v3985 = vsel %vm913, %v3980, %v3982
    %3988 = vst [vmem:[#allocation4 + $0x240] sm:$0xff] %v3984
    %3989 = vst [vmem:[#allocation4 + $0x248] sm:$0xf] %v3985
    %s3990 = scalar_lea.vmem %s1, 32
    %v3991 = vld [vmem:[%s3990] sm:$0xff]
    %v3992 = vld [vmem:[%s3990 + $0x8] sm:$0xff]
    %v3993 = vld [vmem:[#allocation4] sm:$0xff]
    %v3994 = vld [vmem:[#allocation4 + $0x8] sm:$0xf]
    %v3995 = vld [vmem:[#allocation4 + $0xc] sm:$0xff]
    %v3996 = vld [vmem:[#allocation4 + $0x14] sm:$0xf]
    %v3997 = vld [vmem:[#allocation4 + $0x18] sm:$0xff]
    %v3998 = vld [vmem:[#allocation4 + $0x20] sm:$0xf]
    %v3999 = vld [vmem:[#allocation4 + $0x24] sm:$0xff]
    %v4000 = vld [vmem:[#allocation4 + $0x2c] sm:$0xf]
    %v4001 = vld [vmem:[#allocation4 + $0x30] sm:$0xff]
    %v4002 = vld [vmem:[#allocation4 + $0x38] sm:$0xf]
    %v4003 = vld [vmem:[#allocation4 + $0x3c] sm:$0xff]
    %v4004 = vld [vmem:[#allocation4 + $0x44] sm:$0xf]
    %v4005 = vld [vmem:[#allocation4 + $0x48] sm:$0xff]
    %v4006 = vld [vmem:[#allocation4 + $0x50] sm:$0xf]
    %v4007 = vld [vmem:[#allocation4 + $0x54] sm:$0xff]
    %v4008 = vld [vmem:[#allocation4 + $0x5c] sm:$0xf]
    %v4009 = vld [vmem:[#allocation4 + $0x60] sm:$0xff]
    %v4010 = vld [vmem:[#allocation4 + $0x68] sm:$0xf]
    %v4011 = vld [vmem:[#allocation4 + $0x6c] sm:$0xff]
    %v4012 = vld [vmem:[#allocation4 + $0x74] sm:$0xf]
    %v4013 = vld [vmem:[#allocation4 + $0x78] sm:$0xff]
    %v4014 = vld [vmem:[#allocation4 + $0x80] sm:$0xf]
    %v4015 = vld [vmem:[#allocation4 + $0x84] sm:$0xff]
    %v4016 = vld [vmem:[#allocation4 + $0x8c] sm:$0xf]
    %v4017 = vld [vmem:[#allocation4 + $0x90] sm:$0xff]
    %v4018 = vld [vmem:[#allocation4 + $0x98] sm:$0xf]
    %v4019 = vld [vmem:[#allocation4 + $0x9c] sm:$0xff]
    %v4020 = vld [vmem:[#allocation4 + $0xa4] sm:$0xf]
    %v4021 = vld [vmem:[#allocation4 + $0xa8] sm:$0xff]
    %v4022 = vld [vmem:[#allocation4 + $0xb0] sm:$0xf]
    %v4023 = vld [vmem:[#allocation4 + $0xb4] sm:$0xff]
    %v4024 = vld [vmem:[#allocation4 + $0xbc] sm:$0xf]
    %v4025 = vld [vmem:[#allocation4 + $0xc0] sm:$0xff]
    %v4026 = vld [vmem:[#allocation4 + $0xc8] sm:$0xf]
    %v4027 = vld [vmem:[#allocation4 + $0xcc] sm:$0xff]
    %v4028 = vld [vmem:[#allocation4 + $0xd4] sm:$0xf]
    %v4029 = vld [vmem:[#allocation4 + $0xd8] sm:$0xff]
    %v4030 = vld [vmem:[#allocation4 + $0xe0] sm:$0xf]
    %v4031 = vld [vmem:[#allocation4 + $0xe4] sm:$0xff]
    %v4032 = vld [vmem:[#allocation4 + $0xec] sm:$0xf]
    %v4033 = vld [vmem:[#allocation4 + $0xf0] sm:$0xff]
    %v4034 = vld [vmem:[#allocation4 + $0xf8] sm:$0xf]
    %v4035 = vld [vmem:[#allocation4 + $0xfc] sm:$0xff]
    %v4036 = vld [vmem:[#allocation4 + $0x104] sm:$0xf]
    %v4037 = vld [vmem:[#allocation4 + $0x108] sm:$0xff]
    %v4038 = vld [vmem:[#allocation4 + $0x110] sm:$0xf]
    %v4039 = vld [vmem:[#allocation4 + $0x114] sm:$0xff]
    %v4040 = vld [vmem:[#allocation4 + $0x11c] sm:$0xf]
    %v4041 = vld [vmem:[#allocation4 + $0x120] sm:$0xff]
    %v4042 = vld [vmem:[#allocation4 + $0x128] sm:$0xf]
    %v4043 = vld [vmem:[#allocation4 + $0x12c] sm:$0xff]
    %v4044 = vld [vmem:[#allocation4 + $0x134] sm:$0xf]
    %v4045 = vld [vmem:[#allocation4 + $0x138] sm:$0xff]
    %v4046 = vld [vmem:[#allocation4 + $0x140] sm:$0xf]
    %v4047 = vld [vmem:[#allocation4 + $0x144] sm:$0xff]
    %v4048 = vld [vmem:[#allocation4 + $0x14c] sm:$0xf]
    %v4049 = vld [vmem:[#allocation4 + $0x150] sm:$0xff]
    %v4050 = vld [vmem:[#allocation4 + $0x158] sm:$0xf]
    %v4051 = vld [vmem:[#allocation4 + $0x15c] sm:$0xff]
    %v4052 = vld [vmem:[#allocation4 + $0x164] sm:$0xf]
    %v4053 = vld [vmem:[#allocation4 + $0x168] sm:$0xff]
    %v4054 = vld [vmem:[#allocation4 + $0x170] sm:$0xf]
    %v4055 = vld [vmem:[#allocation4 + $0x174] sm:$0xff]
    %v4056 = vld [vmem:[#allocation4 + $0x17c] sm:$0xf]
    %v4057 = vld [vmem:[#allocation4 + $0x180] sm:$0xff]
    %v4058 = vld [vmem:[#allocation4 + $0x188] sm:$0xf]
    %v4059 = vld [vmem:[#allocation4 + $0x18c] sm:$0xff]
    %v4060 = vld [vmem:[#allocation4 + $0x194] sm:$0xf]
    %v4061 = vld [vmem:[#allocation4 + $0x198] sm:$0xff]
    %v4062 = vld [vmem:[#allocation4 + $0x1a0] sm:$0xf]
    %v4063 = vld [vmem:[#allocation4 + $0x1a4] sm:$0xff]
    %v4064 = vld [vmem:[#allocation4 + $0x1ac] sm:$0xf]
    %v4065 = vld [vmem:[#allocation4 + $0x1b0] sm:$0xff]
    %v4066 = vld [vmem:[#allocation4 + $0x1b8] sm:$0xf]
    %v4067 = vld [vmem:[#allocation4 + $0x1bc] sm:$0xff]
    %v4068 = vld [vmem:[#allocation4 + $0x1c4] sm:$0xf]
    %v4069 = vld [vmem:[#allocation4 + $0x1c8] sm:$0xff]
    %v4070 = vld [vmem:[#allocation4 + $0x1d0] sm:$0xf]
    %v4071 = vld [vmem:[#allocation4 + $0x1d4] sm:$0xff]
    %v4072 = vld [vmem:[#allocation4 + $0x1dc] sm:$0xf]
    %v4073 = vld [vmem:[#allocation4 + $0x1e0] sm:$0xff]
    %v4074 = vld [vmem:[#allocation4 + $0x1e8] sm:$0xf]
    %v4075 = vld [vmem:[#allocation4 + $0x1ec] sm:$0xff]
    %v4076 = vld [vmem:[#allocation4 + $0x1f4] sm:$0xf]
    %v4077 = vld [vmem:[#allocation4 + $0x1f8] sm:$0xff]
    %v4078 = vld [vmem:[#allocation4 + $0x200] sm:$0xf]
    %v4079 = vld [vmem:[#allocation4 + $0x204] sm:$0xff]
    %v4080 = vld [vmem:[#allocation4 + $0x20c] sm:$0xf]
    %v4081 = vld [vmem:[#allocation4 + $0x210] sm:$0xff]
    %v4082 = vld [vmem:[#allocation4 + $0x218] sm:$0xf]
    %v4083 = vld [vmem:[#allocation4 + $0x21c] sm:$0xff]
    %v4084 = vld [vmem:[#allocation4 + $0x224] sm:$0xf]
    %v4085 = vld [vmem:[#allocation4 + $0x228] sm:$0xff]
    %v4086 = vld [vmem:[#allocation4 + $0x230] sm:$0xf]
    %v4087 = vld [vmem:[#allocation4 + $0x234] sm:$0xff]
    %v4088 = vld [vmem:[#allocation4 + $0x23c] sm:$0xf]
    %v4089 = vld [vmem:[#allocation4 + $0x240] sm:$0xff]
    %v4090 = vld [vmem:[#allocation4 + $0x248] sm:$0xf]
    %s4091 = scalar_lea.vmem [#allocation5], 16
    %v4092 = vld [vmem:[%s4091] sm:$0xff]
    %4094 = vset.pattern.permute.xlu0 0
    %4095 = vperm.xlu0 %4094, %v4092
    %v4096 = vpop.permute.xlu0 %4095
    %v4100 = vunpack.c.l.b16 %v3991
    %v4101 = vunpack.c.h.b16 %v3991
    %v4102 = vunpack.c.l.b16 %v3992
    %v4103 = vunpack.c.h.b16 %v3992
    %v4104 = vpack.c.b16 %v4100, %v4100
    %v4105 = vpack.c.b16 %v4101, %v4101
    %v4106 = vpack.c.b16 %v4102, %v4102
    %v4107 = vpack.c.b16 %v4103, %v4103
    %v4209 = vunpack.c.l.b16 %v3993
    %v4210 = vunpack.c.h.b16 %v3993
    %v4211 = vunpack.c.l.b16 %v3994
    %v4212 = vunpack.c.l.b16 %v3995
    %v4213 = vunpack.c.h.b16 %v3995
    %v4214 = vunpack.c.l.b16 %v3996
    %v4215 = vunpack.c.l.b16 %v3997
    %v4216 = vunpack.c.h.b16 %v3997
    %v4217 = vunpack.c.l.b16 %v3998
    %v4218 = vunpack.c.l.b16 %v3999
    %v4219 = vunpack.c.h.b16 %v3999
    %v4220 = vunpack.c.l.b16 %v4000
    %v4221 = vunpack.c.l.b16 %v4001
    %v4222 = vunpack.c.h.b16 %v4001
    %v4223 = vunpack.c.l.b16 %v4002
    %v4224 = vunpack.c.l.b16 %v4003
    %v4225 = vunpack.c.h.b16 %v4003
    %v4226 = vunpack.c.l.b16 %v4004
    %v4227 = vunpack.c.l.b16 %v4005
    %v4228 = vunpack.c.h.b16 %v4005
    %v4229 = vunpack.c.l.b16 %v4006
    %v4230 = vunpack.c.l.b16 %v4007
    %v4231 = vunpack.c.h.b16 %v4007
    %v4232 = vunpack.c.l.b16 %v4008
    %v4233 = vunpack.c.l.b16 %v4009
    %v4234 = vunpack.c.h.b16 %v4009
    %v4235 = vunpack.c.l.b16 %v4010
    %v4236 = vunpack.c.l.b16 %v4011
    %v4237 = vunpack.c.h.b16 %v4011
    %v4238 = vunpack.c.l.b16 %v4012
    %v4239 = vunpack.c.l.b16 %v4013
    %v4240 = vunpack.c.h.b16 %v4013
    %v4241 = vunpack.c.l.b16 %v4014
    %v4242 = vunpack.c.l.b16 %v4015
    %v4243 = vunpack.c.h.b16 %v4015
    %v4244 = vunpack.c.l.b16 %v4016
    %v4245 = vunpack.c.l.b16 %v4017
    %v4246 = vunpack.c.h.b16 %v4017
    %v4247 = vunpack.c.l.b16 %v4018
    %v4248 = vunpack.c.l.b16 %v4019
    %v4249 = vunpack.c.h.b16 %v4019
    %v4250 = vunpack.c.l.b16 %v4020
    %v4251 = vunpack.c.l.b16 %v4021
    %v4252 = vunpack.c.h.b16 %v4021
    %v4253 = vunpack.c.l.b16 %v4022
    %v4254 = vunpack.c.l.b16 %v4023
    %v4255 = vunpack.c.h.b16 %v4023
    %v4256 = vunpack.c.l.b16 %v4024
    %v4257 = vunpack.c.l.b16 %v4025
    %v4258 = vunpack.c.h.b16 %v4025
    %v4259 = vunpack.c.l.b16 %v4026
    %v4260 = vunpack.c.l.b16 %v4027
    %v4261 = vunpack.c.h.b16 %v4027
    %v4262 = vunpack.c.l.b16 %v4028
    %v4263 = vunpack.c.l.b16 %v4029
    %v4264 = vunpack.c.h.b16 %v4029
    %v4265 = vunpack.c.l.b16 %v4030
    %v4266 = vunpack.c.l.b16 %v4031
    %v4267 = vunpack.c.h.b16 %v4031
    %v4268 = vunpack.c.l.b16 %v4032
    %v4269 = vunpack.c.l.b16 %v4033
    %v4270 = vunpack.c.h.b16 %v4033
    %v4271 = vunpack.c.l.b16 %v4034
    %v4272 = vunpack.c.l.b16 %v4035
    %v4273 = vunpack.c.h.b16 %v4035
    %v4274 = vunpack.c.l.b16 %v4036
    %v4275 = vunpack.c.l.b16 %v4037
    %v4276 = vunpack.c.h.b16 %v4037
    %v4277 = vunpack.c.l.b16 %v4038
    %v4278 = vunpack.c.l.b16 %v4039
    %v4279 = vunpack.c.h.b16 %v4039
    %v4280 = vunpack.c.l.b16 %v4040
    %v4281 = vunpack.c.l.b16 %v4041
    %v4282 = vunpack.c.h.b16 %v4041
    %v4283 = vunpack.c.l.b16 %v4042
    %v4284 = vunpack.c.l.b16 %v4043
    %v4285 = vunpack.c.h.b16 %v4043
    %v4286 = vunpack.c.l.b16 %v4044
    %v4287 = vunpack.c.l.b16 %v4045
    %v4288 = vunpack.c.h.b16 %v4045
    %v4289 = vunpack.c.l.b16 %v4046
    %v4290 = vunpack.c.l.b16 %v4047
    %v4291 = vunpack.c.h.b16 %v4047
    %v4292 = vunpack.c.l.b16 %v4048
    %v4293 = vunpack.c.l.b16 %v4049
    %v4294 = vunpack.c.h.b16 %v4049
    %v4295 = vunpack.c.l.b16 %v4050
    %v4296 = vunpack.c.l.b16 %v4051
    %v4297 = vunpack.c.h.b16 %v4051
    %v4298 = vunpack.c.l.b16 %v4052
    %v4299 = vunpack.c.l.b16 %v4053
    %v4300 = vunpack.c.h.b16 %v4053
    %v4301 = vunpack.c.l.b16 %v4054
    %v4302 = vunpack.c.l.b16 %v4055
    %v4303 = vunpack.c.h.b16 %v4055
    %v4304 = vunpack.c.l.b16 %v4056
    %v4305 = vunpack.c.l.b16 %v4057
    %v4306 = vunpack.c.h.b16 %v4057
    %v4307 = vunpack.c.l.b16 %v4058
    %v4308 = vunpack.c.l.b16 %v4059
    %v4309 = vunpack.c.h.b16 %v4059
    %v4310 = vunpack.c.l.b16 %v4060
    %v4311 = vunpack.c.l.b16 %v4061
    %v4312 = vunpack.c.h.b16 %v4061
    %v4313 = vunpack.c.l.b16 %v4062
    %v4314 = vunpack.c.l.b16 %v4063
    %v4315 = vunpack.c.h.b16 %v4063
    %v4316 = vunpack.c.l.b16 %v4064
    %v4317 = vunpack.c.l.b16 %v4065
    %v4318 = vunpack.c.h.b16 %v4065
    %v4319 = vunpack.c.l.b16 %v4066
    %v4320 = vunpack.c.l.b16 %v4067
    %v4321 = vunpack.c.h.b16 %v4067
    %v4322 = vunpack.c.l.b16 %v4068
    %v4323 = vunpack.c.l.b16 %v4069
    %v4324 = vunpack.c.h.b16 %v4069
    %v4325 = vunpack.c.l.b16 %v4070
    %v4326 = vunpack.c.l.b16 %v4071
    %v4327 = vunpack.c.h.b16 %v4071
    %v4328 = vunpack.c.l.b16 %v4072
    %v4329 = vunpack.c.l.b16 %v4073
    %v4330 = vunpack.c.h.b16 %v4073
    %v4331 = vunpack.c.l.b16 %v4074
    %v4332 = vunpack.c.l.b16 %v4075
    %v4333 = vunpack.c.h.b16 %v4075
    %v4334 = vunpack.c.l.b16 %v4076
    %v4335 = vunpack.c.l.b16 %v4077
    %v4336 = vunpack.c.h.b16 %v4077
    %v4337 = vunpack.c.l.b16 %v4078
    %v4338 = vunpack.c.l.b16 %v4079
    %v4339 = vunpack.c.h.b16 %v4079
    %v4340 = vunpack.c.l.b16 %v4080
    %v4341 = vunpack.c.l.b16 %v4081
    %v4342 = vunpack.c.h.b16 %v4081
    %v4343 = vunpack.c.l.b16 %v4082
    %v4344 = vunpack.c.l.b16 %v4083
    %v4345 = vunpack.c.h.b16 %v4083
    %v4346 = vunpack.c.l.b16 %v4084
    %v4347 = vunpack.c.l.b16 %v4085
    %v4348 = vunpack.c.h.b16 %v4085
    %v4349 = vunpack.c.l.b16 %v4086
    %v4350 = vunpack.c.l.b16 %v4087
    %v4351 = vunpack.c.h.b16 %v4087
    %v4352 = vunpack.c.l.b16 %v4088
    %v4353 = vunpack.c.l.b16 %v4089
    %v4354 = vunpack.c.h.b16 %v4089
    %v4355 = vunpack.c.l.b16 %v4090
    %v4356 = vpack.c.b16 %v4212, %v4209
    %v4357 = vpack.c.b16 %v4213, %v4210
    %v4358 = vpack.c.b16 %v4214, %v4211
    %v4359 = vpack.c.b16 %v4218, %v4215
    %v4360 = vpack.c.b16 %v4219, %v4216
    %v4361 = vpack.c.b16 %v4220, %v4217
    %v4362 = vpack.c.b16 %v4224, %v4221
    %v4363 = vpack.c.b16 %v4225, %v4222
    %v4364 = vpack.c.b16 %v4226, %v4223
    %v4365 = vpack.c.b16 %v4230, %v4227
    %v4366 = vpack.c.b16 %v4231, %v4228
    %v4367 = vpack.c.b16 %v4232, %v4229
    %v4368 = vpack.c.b16 %v4236, %v4233
    %v4369 = vpack.c.b16 %v4237, %v4234
    %v4370 = vpack.c.b16 %v4238, %v4235
    %v4371 = vpack.c.b16 %v4242, %v4239
    %v4372 = vpack.c.b16 %v4243, %v4240
    %v4373 = vpack.c.b16 %v4244, %v4241
    %v4374 = vpack.c.b16 %v4248, %v4245
    %v4375 = vpack.c.b16 %v4249, %v4246
    %v4376 = vpack.c.b16 %v4250, %v4247
    %v4377 = vpack.c.b16 %v4254, %v4251
    %v4378 = vpack.c.b16 %v4255, %v4252
    %v4379 = vpack.c.b16 %v4256, %v4253
    %v4380 = vpack.c.b16 %v4260, %v4257
    %v4381 = vpack.c.b16 %v4261, %v4258
    %v4382 = vpack.c.b16 %v4262, %v4259
    %v4383 = vpack.c.b16 %v4266, %v4263
    %v4384 = vpack.c.b16 %v4267, %v4264
    %v4385 = vpack.c.b16 %v4268, %v4265
    %v4386 = vpack.c.b16 %v4272, %v4269
    %v4387 = vpack.c.b16 %v4273, %v4270
    %v4388 = vpack.c.b16 %v4274, %v4271
    %v4389 = vpack.c.b16 %v4278, %v4275
    %v4390 = vpack.c.b16 %v4279, %v4276
    %v4391 = vpack.c.b16 %v4280, %v4277
    %v4392 = vpack.c.b16 %v4284, %v4281
    %v4393 = vpack.c.b16 %v4285, %v4282
    %v4394 = vpack.c.b16 %v4286, %v4283
    %v4395 = vpack.c.b16 %v4290, %v4287
    %v4396 = vpack.c.b16 %v4291, %v4288
    %v4397 = vpack.c.b16 %v4292, %v4289
    %v4398 = vpack.c.b16 %v4296, %v4293
    %v4399 = vpack.c.b16 %v4297, %v4294
    %v4400 = vpack.c.b16 %v4298, %v4295
    %v4401 = vpack.c.b16 %v4302, %v4299
    %v4402 = vpack.c.b16 %v4303, %v4300
    %v4403 = vpack.c.b16 %v4304, %v4301
    %v4404 = vpack.c.b16 %v4308, %v4305
    %v4405 = vpack.c.b16 %v4309, %v4306
    %v4406 = vpack.c.b16 %v4310, %v4307
    %v4407 = vpack.c.b16 %v4314, %v4311
    %v4408 = vpack.c.b16 %v4315, %v4312
    %v4409 = vpack.c.b16 %v4316, %v4313
    %v4410 = vpack.c.b16 %v4320, %v4317
    %v4411 = vpack.c.b16 %v4321, %v4318
    %v4412 = vpack.c.b16 %v4322, %v4319
    %v4413 = vpack.c.b16 %v4326, %v4323
    %v4414 = vpack.c.b16 %v4327, %v4324
    %v4415 = vpack.c.b16 %v4328, %v4325
    %v4416 = vpack.c.b16 %v4332, %v4329
    %v4417 = vpack.c.b16 %v4333, %v4330
    %v4418 = vpack.c.b16 %v4334, %v4331
    %v4419 = vpack.c.b16 %v4338, %v4335
    %v4420 = vpack.c.b16 %v4339, %v4336
    %v4421 = vpack.c.b16 %v4340, %v4337
    %v4422 = vpack.c.b16 %v4344, %v4341
    %v4423 = vpack.c.b16 %v4345, %v4342
    %v4424 = vpack.c.b16 %v4346, %v4343
    %v4425 = vpack.c.b16 %v4350, %v4347
    %v4426 = vpack.c.b16 %v4351, %v4348
    %v4427 = vpack.c.b16 %v4352, %v4349
    %v4428 = vpack.c.b16 %v4353, %v4353
    %v4429 = vpack.c.b16 %v4354, %v4354
    %v4430 = vpack.c.b16 %v4355, %v4355
    %v4504 = vsel %vm1431, %v4107, 0
    %v4507 = vsel %vm85, %v4428, 0
    %v4510 = vsel %vm85, %v4429, 0
    %v4513 = vsel %vm85, %v4430, 0
    %4515 = vmatpush.bf16.msra.mxu0 %v4377
    %4516 = vmatpush.bf16.msra.mxu0 %v4374
    %4517 = vmatpush.bf16.msra.mxu0 %v4371
    %4518 = vmatpush.bf16.msra.mxu0 %v4368
    %4519 = vmatpush.bf16.msra.mxu0 %v4365
    %4520 = vmatpush.bf16.msra.mxu0 %v4362
    %4521 = vmatpush.bf16.msra.mxu0 %v4359
    %4522 = vmatpush.bf16.msra.mxu0 %v4356
    %4523 = vmatmul.bf16.gmra.mxu0 %v4104
    %v4524 = vpop.f32.mrf.mxu0
    %v4525 = vadd.f32 %v4096, %v4524
    %v4526 = vpop.f32.mrf.mxu0
    %4527 = vdwg.mxu0
    %4528 = vmatpush.bf16.msra.mxu0 %v4401
    %4529 = vmatpush.bf16.msra.mxu0 %v4398
    %4530 = vmatpush.bf16.msra.mxu0 %v4395
    %4531 = vmatpush.bf16.msra.mxu0 %v4392
    %4532 = vmatpush.bf16.msra.mxu0 %v4389
    %4533 = vmatpush.bf16.msra.mxu0 %v4386
    %4534 = vmatpush.bf16.msra.mxu0 %v4383
    %4535 = vmatpush.bf16.msra.mxu0 %v4380
    %4536 = vmatmul.bf16.gmra.mxu0 %v4105
    %v4537 = vpop.f32.mrf.mxu0
    %v4538 = vadd.f32 %v4525, %v4537
    %v4539 = vpop.f32.mrf.mxu0
    %4540 = vdwg.mxu0
    %4541 = vmatpush.bf16.msra.mxu0 %v4425
    %4542 = vmatpush.bf16.msra.mxu0 %v4422
    %4543 = vmatpush.bf16.msra.mxu0 %v4419
    %4544 = vmatpush.bf16.msra.mxu0 %v4416
    %4545 = vmatpush.bf16.msra.mxu0 %v4413
    %4546 = vmatpush.bf16.msra.mxu0 %v4410
    %4547 = vmatpush.bf16.msra.mxu0 %v4407
    %4548 = vmatpush.bf16.msra.mxu0 %v4404
    %4549 = vmatmul.bf16.gmra.mxu0 %v4106
    %v4550 = vpop.f32.mrf.mxu0
    %v4551 = vadd.f32 %v4538, %v4550
    %v4552 = vpop.f32.mrf.mxu0
    %4553 = vdwg.mxu0
    %4554 = vmatpush.bf16.msra.mxu0 0
    %4555 = vmatpush.bf16.msra.mxu0 0
    %4556 = vmatpush.bf16.msra.mxu0 0
    %4557 = vmatpush.bf16.msra.mxu0 0
    %4558 = vmatpush.bf16.msra.mxu0 0
    %4559 = vmatpush.bf16.msra.mxu0 0
    %4560 = vmatpush.bf16.msra.mxu0 0
    %4561 = vmatpush.bf16.msra.mxu0 %v4507
    %4562 = vmatmul.bf16.gmra.mxu0 %v4504
    %v4563 = vpop.f32.mrf.mxu0
    %v4564 = vadd.f32 %v4551, %v4563
    %v4565 = vpop.f32.mrf.mxu0
    %4566 = vdwg.mxu0
    %4567 = vmatpush.bf16.msra.mxu0 %v4378
    %4568 = vmatpush.bf16.msra.mxu0 %v4375
    %4569 = vmatpush.bf16.msra.mxu0 %v4372
    %4570 = vmatpush.bf16.msra.mxu0 %v4369
    %4571 = vmatpush.bf16.msra.mxu0 %v4366
    %4572 = vmatpush.bf16.msra.mxu0 %v4363
    %4573 = vmatpush.bf16.msra.mxu0 %v4360
    %4574 = vmatpush.bf16.msra.mxu0 %v4357
    %4575 = vmatmul.bf16.gmra.mxu0 %v4104
    %v4576 = vpop.f32.mrf.mxu0
    %v4577 = vadd.f32 %v4096, %v4576
    %v4578 = vpop.f32.mrf.mxu0
    %4579 = vdwg.mxu0
    %4580 = vmatpush.bf16.msra.mxu0 %v4402
    %4581 = vmatpush.bf16.msra.mxu0 %v4399
    %4582 = vmatpush.bf16.msra.mxu0 %v4396
    %4583 = vmatpush.bf16.msra.mxu0 %v4393
    %4584 = vmatpush.bf16.msra.mxu0 %v4390
    %4585 = vmatpush.bf16.msra.mxu0 %v4387
    %4586 = vmatpush.bf16.msra.mxu0 %v4384
    %4587 = vmatpush.bf16.msra.mxu0 %v4381
    %4588 = vmatmul.bf16.gmra.mxu0 %v4105
    %v4589 = vpop.f32.mrf.mxu0
    %v4590 = vadd.f32 %v4577, %v4589
    %v4591 = vpop.f32.mrf.mxu0
    %4592 = vdwg.mxu0
    %4593 = vmatpush.bf16.msra.mxu0 %v4426
    %4594 = vmatpush.bf16.msra.mxu0 %v4423
    %4595 = vmatpush.bf16.msra.mxu0 %v4420
    %4596 = vmatpush.bf16.msra.mxu0 %v4417
    %4597 = vmatpush.bf16.msra.mxu0 %v4414
    %4598 = vmatpush.bf16.msra.mxu0 %v4411
    %4599 = vmatpush.bf16.msra.mxu0 %v4408
    %4600 = vmatpush.bf16.msra.mxu0 %v4405
    %4601 = vmatmul.bf16.gmra.mxu0 %v4106
    %v4602 = vpop.f32.mrf.mxu0
    %v4603 = vadd.f32 %v4590, %v4602
    %v4604 = vpop.f32.mrf.mxu0
    %4605 = vdwg.mxu0
    %4606 = vmatpush.bf16.msra.mxu0 0
    %4607 = vmatpush.bf16.msra.mxu0 0
    %4608 = vmatpush.bf16.msra.mxu0 0
    %4609 = vmatpush.bf16.msra.mxu0 0
    %4610 = vmatpush.bf16.msra.mxu0 0
    %4611 = vmatpush.bf16.msra.mxu0 0
    %4612 = vmatpush.bf16.msra.mxu0 0
    %4613 = vmatpush.bf16.msra.mxu0 %v4510
    %4614 = vmatmul.bf16.gmra.mxu0 %v4504
    %v4615 = vpop.f32.mrf.mxu0
    %v4616 = vadd.f32 %v4603, %v4615
    %v4617 = vpop.f32.mrf.mxu0
    %4618 = vdwg.mxu0
    %4619 = vmatpush.bf16.msra.mxu0 %v4379
    %4620 = vmatpush.bf16.msra.mxu0 %v4376
    %4621 = vmatpush.bf16.msra.mxu0 %v4373
    %4622 = vmatpush.bf16.msra.mxu0 %v4370
    %4623 = vmatpush.bf16.msra.mxu0 %v4367
    %4624 = vmatpush.bf16.msra.mxu0 %v4364
    %4625 = vmatpush.bf16.msra.mxu0 %v4361
    %4626 = vmatpush.bf16.msra.mxu0 %v4358
    %4627 = vmatmul.bf16.gmra.mxu0 %v4104
    %v4628 = vpop.f32.mrf.mxu0
    %v4629 = vadd.f32 %v4096, %v4628
    %v4630 = vpop.f32.mrf.mxu0
    %4631 = vdwg.mxu0
    %4632 = vmatpush.bf16.msra.mxu0 %v4403
    %4633 = vmatpush.bf16.msra.mxu0 %v4400
    %4634 = vmatpush.bf16.msra.mxu0 %v4397
    %4635 = vmatpush.bf16.msra.mxu0 %v4394
    %4636 = vmatpush.bf16.msra.mxu0 %v4391
    %4637 = vmatpush.bf16.msra.mxu0 %v4388
    %4638 = vmatpush.bf16.msra.mxu0 %v4385
    %4639 = vmatpush.bf16.msra.mxu0 %v4382
    %4640 = vmatmul.bf16.gmra.mxu0 %v4105
    %v4641 = vpop.f32.mrf.mxu0
    %v4642 = vadd.f32 %v4629, %v4641
    %v4643 = vpop.f32.mrf.mxu0
    %4644 = vdwg.mxu0
    %4645 = vmatpush.bf16.msra.mxu0 %v4427
    %4646 = vmatpush.bf16.msra.mxu0 %v4424
    %4647 = vmatpush.bf16.msra.mxu0 %v4421
    %4648 = vmatpush.bf16.msra.mxu0 %v4418
    %4649 = vmatpush.bf16.msra.mxu0 %v4415
    %4650 = vmatpush.bf16.msra.mxu0 %v4412
    %4651 = vmatpush.bf16.msra.mxu0 %v4409
    %4652 = vmatpush.bf16.msra.mxu0 %v4406
    %4653 = vmatmul.bf16.gmra.mxu0 %v4106
    %v4654 = vpop.f32.mrf.mxu0
    %v4655 = vadd.f32 %v4642, %v4654
    %v4656 = vpop.f32.mrf.mxu0
    %4657 = vdwg.mxu0
    %4658 = vmatpush.bf16.msra.mxu0 0
    %4659 = vmatpush.bf16.msra.mxu0 0
    %4660 = vmatpush.bf16.msra.mxu0 0
    %4661 = vmatpush.bf16.msra.mxu0 0
    %4662 = vmatpush.bf16.msra.mxu0 0
    %4663 = vmatpush.bf16.msra.mxu0 0
    %4664 = vmatpush.bf16.msra.mxu0 0
    %4665 = vmatpush.bf16.msra.mxu0 %v4513
    %4666 = vmatmul.bf16.gmra.mxu0 %v4504
    %v4667 = vpop.f32.mrf.mxu0
    %v4668 = vadd.f32 %v4655, %v4667
    %v4669 = vpop.f32.mrf.mxu0
    %4670 = vdwg.mxu0
    %s4671 = sld [smem:[#allocation8 + $0x2]]
    %vm4672 = vcmp.ge.f32.partialorder %v4564, 0.0
    %vm4673 = vcmp.ge.f32.partialorder %v4616, 0.0
    %vm4674 = vcmp.ge.f32.partialorder %v4668, 0.0
    %v4675 = vstv %s4671
    %v4676 = vmul.f32 %v4675, %v4564
    %v4677 = vmul.f32 %v4675, %v4616
    %v4678 = vmul.f32 %v4675, %v4668
    %v4679 = vsel %vm4672, %v4564, %v4676
    %v4680 = vsel %vm4673, %v4616, %v4677
    %v4681 = vsel %vm4674, %v4668, %v4678
    %v4682 = vmul.f32 %v4679, %v1612
    %v4683 = vmul.f32 %v4680, %v1613
    %v4684 = vmul.f32 %v4681, %v1614
    %v4685 = vpack.c.bf16 %v4683, %v4682
    %v4686 = vpack.c.bf16 %v4684, %v4684
    %4687 = vst [vmem:[#allocation2 + $0x4] sm:$0xff] %v4685
    %4688 = vst [vmem:[#allocation2 + $0xc] sm:$0xf] %v4686
    %v4689 = vld [vmem:[#allocation2] sm:$0xff]
    %v4690 = vld [vmem:[#allocation2 + $0x8] sm:$0xff]
    %v4691 = vld [vmem:[#allocation2 + $0x10] sm:$0xf]
    %v4692 = vld [vmem:[#allocation2 + $0x4] sm:$0xff]
    %v4693 = vld [vmem:[#allocation2 + $0xc] sm:$0xff]
    %v4696 = vunpack.c.l.b16 %v4689
    %v4697 = vunpack.c.h.b16 %v4689
    %v4698 = vunpack.c.l.b16 %v4690
    %v4699 = vunpack.c.h.b16 %v4690
    %v4700 = vpack.c.b16 %v4696, %v4696
    %v4701 = vpack.c.b16 %v4697, %v4697
    %v4702 = vpack.c.b16 %v4698, %v4698
    %v4703 = vpack.c.b16 %v4699, %v4699
    %4704 = vrot.lane.b32.xlu0 %v4700, 127
    %v4705 = vpop.permute.xlu0 %4704
    %4706 = vrot.lane.b32.xlu0 %v4701, 127
    %v4707 = vpop.permute.xlu0 %4706
    %4708 = vrot.lane.b32.xlu0 %v4702, 127
    %v4709 = vpop.permute.xlu0 %4708
    %4710 = vrot.lane.b32.xlu0 %v4703, 127
    %v4711 = vpop.permute.xlu0 %4710
    %v4712 = vsel %vm81, %v4705, %v4707
    %v4713 = vsel %vm81, %v4707, %v4709
    %v4714 = vsel %vm81, %v4709, %v4711
    %v4717 = vsel %vm85, %v4700, %v4712
    %v4720 = vsel %vm85, %v4701, %v4713
    %v4723 = vsel %vm85, %v4702, %v4714
    %v4726 = vsel %vm85, %v4703, %v4711
    %v4731 = vunpack.c.l.b16 %v4717
    %v4732 = vunpack.c.l.b16 %v4720
    %v4733 = vunpack.c.l.b16 %v4723
    %v4734 = vunpack.c.l.b16 %v4726
    %v4735 = vunpack.c.h.b16 %v4717
    %v4736 = vunpack.c.h.b16 %v4720
    %v4737 = vunpack.c.h.b16 %v4723
    %v4738 = vunpack.c.h.b16 %v4726
    %v4739 = vpack.c.b16 %v4732, %v4731
    %v4740 = vpack.c.b16 %v4734, %v4733
    %v4741 = vpack.c.b16 %v4736, %v4735
    %v4742 = vpack.c.b16 %v4738, %v4737
    %4743 = vrot.lane.b32.xlu0 %v4739, 75
    %v4744 = vpop.permute.xlu0 %4743
    %4745 = vrot.lane.b32.xlu0 %v4740, 75
    %v4746 = vpop.permute.xlu0 %4745
    %4747 = vrot.lane.b32.xlu0 %v4741, 75
    %v4748 = vpop.permute.xlu0 %4747
    %4749 = vrot.lane.b32.xlu0 %v4742, 75
    %v4750 = vpop.permute.xlu0 %4749
    %v4751 = vrot.slane %v4744, 4
    %v4752 = vrot.slane %v4746, 4
    %v4753 = vrot.slane %v4748, 4
    %v4754 = vrot.slane %v4750, 4
    %v4755 = vsel %vm126, %v4751, %v4752
    %v4756 = vsel %vm128, %v4744, %v4755
    %v4757 = vsel %vm128, %v4746, %v4752
    %v4758 = vsel %vm126, %v4753, %v4754
    %v4759 = vsel %vm128, %v4748, %v4758
    %v4760 = vsel %vm128, %v4750, %v4754
    %4765 = vst [vmem:[#allocation4] sm:$0xff] %v4756
    %4766 = vst [vmem:[#allocation4 + $0x8] sm:$0xf] %v4757
    %4767 = vst [vmem:[#allocation4 + $0xc] sm:$0xff] %v4759
    %4768 = vst [vmem:[#allocation4 + $0x14] sm:$0xf] %v4760
    %4769 = vrot.lane.b32.xlu0 %v4739, 73
    %v4770 = vpop.permute.xlu0 %4769
    %4771 = vrot.lane.b32.xlu0 %v4740, 73
    %v4772 = vpop.permute.xlu0 %4771
    %4773 = vrot.lane.b32.xlu0 %v4741, 73
    %v4774 = vpop.permute.xlu0 %4773
    %4775 = vrot.lane.b32.xlu0 %v4742, 73
    %v4776 = vpop.permute.xlu0 %4775
    %v4777 = vrot.slane %v4770, 4
    %v4778 = vrot.slane %v4772, 4
    %v4779 = vrot.slane %v4774, 4
    %v4780 = vrot.slane %v4776, 4
    %v4781 = vsel %vm126, %v4777, %v4778
    %v4782 = vsel %vm155, %v4770, %v4781
    %v4783 = vsel %vm155, %v4772, %v4778
    %v4784 = vsel %vm126, %v4779, %v4780
    %v4785 = vsel %vm155, %v4774, %v4784
    %v4786 = vsel %vm155, %v4776, %v4780
    %4791 = vst [vmem:[#allocation4 + $0x18] sm:$0xff] %v4782
    %4792 = vst [vmem:[#allocation4 + $0x20] sm:$0xf] %v4783
    %4793 = vst [vmem:[#allocation4 + $0x24] sm:$0xff] %v4785
    %4794 = vst [vmem:[#allocation4 + $0x2c] sm:$0xf] %v4786
    %4795 = vrot.lane.b32.xlu0 %v4739, 71
    %v4796 = vpop.permute.xlu0 %4795
    %4797 = vrot.lane.b32.xlu0 %v4740, 71
    %v4798 = vpop.permute.xlu0 %4797
    %4799 = vrot.lane.b32.xlu0 %v4741, 71
    %v4800 = vpop.permute.xlu0 %4799
    %4801 = vrot.lane.b32.xlu0 %v4742, 71
    %v4802 = vpop.permute.xlu0 %4801
    %v4803 = vrot.slane %v4796, 4
    %v4804 = vrot.slane %v4798, 4
    %v4805 = vrot.slane %v4800, 4
    %v4806 = vrot.slane %v4802, 4
    %v4807 = vsel %vm126, %v4803, %v4804
    %v4808 = vsel %vm182, %v4796, %v4807
    %v4809 = vsel %vm182, %v4798, %v4804
    %v4810 = vsel %vm126, %v4805, %v4806
    %v4811 = vsel %vm182, %v4800, %v4810
    %v4812 = vsel %vm182, %v4802, %v4806
    %4817 = vst [vmem:[#allocation4 + $0x30] sm:$0xff] %v4808
    %4818 = vst [vmem:[#allocation4 + $0x38] sm:$0xf] %v4809
    %4819 = vst [vmem:[#allocation4 + $0x3c] sm:$0xff] %v4811
    %4820 = vst [vmem:[#allocation4 + $0x44] sm:$0xf] %v4812
    %4821 = vrot.lane.b32.xlu0 %v4700, 110
    %v4822 = vpop.permute.xlu0 %4821
    %4823 = vrot.lane.b32.xlu0 %v4701, 110
    %v4824 = vpop.permute.xlu0 %4823
    %4825 = vrot.lane.b32.xlu0 %v4702, 110
    %v4826 = vpop.permute.xlu0 %4825
    %4827 = vrot.lane.b32.xlu0 %v4703, 110
    %v4828 = vpop.permute.xlu0 %4827
    %v4829 = vsel %vm204, %v4822, %v4824
    %v4830 = vsel %vm204, %v4824, %v4826
    %v4831 = vsel %vm204, %v4826, %v4828
    %v4833 = vsel %vm85, %v4700, %v4829
    %v4835 = vsel %vm85, %v4701, %v4830
    %v4837 = vsel %vm85, %v4702, %v4831
    %v4839 = vsel %vm85, %v4703, %v4828
    %v4844 = vunpack.c.l.b16 %v4833
    %v4845 = vunpack.c.l.b16 %v4835
    %v4846 = vunpack.c.l.b16 %v4837
    %v4847 = vunpack.c.l.b16 %v4839
    %v4848 = vunpack.c.h.b16 %v4833
    %v4849 = vunpack.c.h.b16 %v4835
    %v4850 = vunpack.c.h.b16 %v4837
    %v4851 = vunpack.c.h.b16 %v4839
    %v4852 = vpack.c.b16 %v4845, %v4844
    %v4853 = vpack.c.b16 %v4847, %v4846
    %v4854 = vpack.c.b16 %v4849, %v4848
    %v4855 = vpack.c.b16 %v4851, %v4850
    %4856 = vrot.lane.b32.xlu0 %v4852, 69
    %v4857 = vpop.permute.xlu0 %4856
    %4858 = vrot.lane.b32.xlu0 %v4853, 69
    %v4859 = vpop.permute.xlu0 %4858
    %4860 = vrot.lane.b32.xlu0 %v4854, 69
    %v4861 = vpop.permute.xlu0 %4860
    %4862 = vrot.lane.b32.xlu0 %v4855, 69
    %v4863 = vpop.permute.xlu0 %4862
    %v4864 = vrot.slane %v4857, 4
    %v4865 = vrot.slane %v4859, 4
    %v4866 = vrot.slane %v4861, 4
    %v4867 = vrot.slane %v4863, 4
    %v4868 = vsel %vm126, %v4864, %v4865
    %v4869 = vsel %vm245, %v4857, %v4868
    %v4870 = vsel %vm245, %v4859, %v4865
    %v4871 = vsel %vm126, %v4866, %v4867
    %v4872 = vsel %vm245, %v4861, %v4871
    %v4873 = vsel %vm245, %v4863, %v4867
    %4878 = vst [vmem:[#allocation4 + $0x48] sm:$0xff] %v4869
    %4879 = vst [vmem:[#allocation4 + $0x50] sm:$0xf] %v4870
    %4880 = vst [vmem:[#allocation4 + $0x54] sm:$0xff] %v4872
    %4881 = vst [vmem:[#allocation4 + $0x5c] sm:$0xf] %v4873
    %4882 = vrot.lane.b32.xlu0 %v4739, 50
    %v4883 = vpop.permute.xlu0 %4882
    %4884 = vrot.lane.b32.xlu0 %v4740, 50
    %v4885 = vpop.permute.xlu0 %4884
    %4886 = vrot.lane.b32.xlu0 %v4741, 50
    %v4887 = vpop.permute.xlu0 %4886
    %4888 = vrot.lane.b32.xlu0 %v4742, 50
    %v4889 = vpop.permute.xlu0 %4888
    %v4890 = vrot.slane %v4883, 4
    %v4891 = vrot.slane %v4885, 4
    %v4892 = vrot.slane %v4887, 4
    %v4893 = vrot.slane %v4889, 4
    %v4894 = vsel %vm126, %v4890, %v4891
    %v4895 = vsel %vm272, %v4883, %v4894
    %v4896 = vsel %vm272, %v4885, %v4891
    %v4897 = vsel %vm126, %v4892, %v4893
    %v4898 = vsel %vm272, %v4887, %v4897
    %v4899 = vsel %vm272, %v4889, %v4893
    %4904 = vst [vmem:[#allocation4 + $0x60] sm:$0xff] %v4895
    %4905 = vst [vmem:[#allocation4 + $0x68] sm:$0xf] %v4896
    %4906 = vst [vmem:[#allocation4 + $0x6c] sm:$0xff] %v4898
    %4907 = vst [vmem:[#allocation4 + $0x74] sm:$0xf] %v4899
    %4908 = vrot.lane.b32.xlu0 %v4739, 48
    %v4909 = vpop.permute.xlu0 %4908
    %4910 = vrot.lane.b32.xlu0 %v4740, 48
    %v4911 = vpop.permute.xlu0 %4910
    %4912 = vrot.lane.b32.xlu0 %v4741, 48
    %v4913 = vpop.permute.xlu0 %4912
    %4914 = vrot.lane.b32.xlu0 %v4742, 48
    %v4915 = vpop.permute.xlu0 %4914
    %v4916 = vrot.slane %v4909, 4
    %v4917 = vrot.slane %v4911, 4
    %v4918 = vrot.slane %v4913, 4
    %v4919 = vrot.slane %v4915, 4
    %v4920 = vsel %vm126, %v4916, %v4917
    %v4921 = vsel %vm299, %v4909, %v4920
    %v4922 = vsel %vm299, %v4911, %v4917
    %v4923 = vsel %vm126, %v4918, %v4919
    %v4924 = vsel %vm299, %v4913, %v4923
    %v4925 = vsel %vm299, %v4915, %v4919
    %4930 = vst [vmem:[#allocation4 + $0x78] sm:$0xff] %v4921
    %4931 = vst [vmem:[#allocation4 + $0x80] sm:$0xf] %v4922
    %4932 = vst [vmem:[#allocation4 + $0x84] sm:$0xff] %v4924
    %4933 = vst [vmem:[#allocation4 + $0x8c] sm:$0xf] %v4925
    %4934 = vrot.lane.b32.xlu0 %v4739, 46
    %v4935 = vpop.permute.xlu0 %4934
    %4936 = vrot.lane.b32.xlu0 %v4740, 46
    %v4937 = vpop.permute.xlu0 %4936
    %4938 = vrot.lane.b32.xlu0 %v4741, 46
    %v4939 = vpop.permute.xlu0 %4938
    %4940 = vrot.lane.b32.xlu0 %v4742, 46
    %v4941 = vpop.permute.xlu0 %4940
    %v4942 = vrot.slane %v4935, 4
    %v4943 = vrot.slane %v4937, 4
    %v4944 = vrot.slane %v4939, 4
    %v4945 = vrot.slane %v4941, 4
    %v4946 = vsel %vm126, %v4942, %v4943
    %v4947 = vsel %vm326, %v4935, %v4946
    %v4948 = vsel %vm326, %v4937, %v4943
    %v4949 = vsel %vm126, %v4944, %v4945
    %v4950 = vsel %vm326, %v4939, %v4949
    %v4951 = vsel %vm326, %v4941, %v4945
    %4956 = vst [vmem:[#allocation4 + $0x90] sm:$0xff] %v4947
    %4957 = vst [vmem:[#allocation4 + $0x98] sm:$0xf] %v4948
    %4958 = vst [vmem:[#allocation4 + $0x9c] sm:$0xff] %v4950
    %4959 = vst [vmem:[#allocation4 + $0xa4] sm:$0xf] %v4951
    %4960 = vrot.lane.b32.xlu0 %v4739, 27
    %v4961 = vpop.permute.xlu0 %4960
    %4962 = vrot.lane.b32.xlu0 %v4740, 27
    %v4963 = vpop.permute.xlu0 %4962
    %4964 = vrot.lane.b32.xlu0 %v4741, 27
    %v4965 = vpop.permute.xlu0 %4964
    %4966 = vrot.lane.b32.xlu0 %v4742, 27
    %v4967 = vpop.permute.xlu0 %4966
    %v4968 = vrot.slane %v4961, 4
    %v4969 = vrot.slane %v4963, 4
    %v4970 = vrot.slane %v4965, 4
    %v4971 = vrot.slane %v4967, 4
    %v4972 = vsel %vm126, %v4968, %v4969
    %v4973 = vsel %vm353, %v4961, %v4972
    %v4974 = vsel %vm353, %v4963, %v4969
    %v4975 = vsel %vm126, %v4970, %v4971
    %v4976 = vsel %vm353, %v4965, %v4975
    %v4977 = vsel %vm353, %v4967, %v4971
    %4982 = vst [vmem:[#allocation4 + $0xa8] sm:$0xff] %v4973
    %4983 = vst [vmem:[#allocation4 + $0xb0] sm:$0xf] %v4974
    %4984 = vst [vmem:[#allocation4 + $0xb4] sm:$0xff] %v4976
    %4985 = vst [vmem:[#allocation4 + $0xbc] sm:$0xf] %v4977
    %4986 = vrot.lane.b32.xlu0 %v4739, 25
    %v4987 = vpop.permute.xlu0 %4986
    %4988 = vrot.lane.b32.xlu0 %v4740, 25
    %v4989 = vpop.permute.xlu0 %4988
    %4990 = vrot.lane.b32.xlu0 %v4741, 25
    %v4991 = vpop.permute.xlu0 %4990
    %4992 = vrot.lane.b32.xlu0 %v4742, 25
    %v4993 = vpop.permute.xlu0 %4992
    %v4994 = vrot.slane %v4987, 4
    %v4995 = vrot.slane %v4989, 4
    %v4996 = vrot.slane %v4991, 4
    %v4997 = vrot.slane %v4993, 4
    %v4998 = vsel %vm126, %v4994, %v4995
    %v4999 = vsel %vm380, %v4987, %v4998
    %v5000 = vsel %vm380, %v4989, %v4995
    %v5001 = vsel %vm126, %v4996, %v4997
    %v5002 = vsel %vm380, %v4991, %v5001
    %v5003 = vsel %vm380, %v4993, %v4997
    %5008 = vst [vmem:[#allocation4 + $0xc0] sm:$0xff] %v4999
    %5009 = vst [vmem:[#allocation4 + $0xc8] sm:$0xf] %v5000
    %5010 = vst [vmem:[#allocation4 + $0xcc] sm:$0xff] %v5002
    %5011 = vst [vmem:[#allocation4 + $0xd4] sm:$0xf] %v5003
    %5012 = vrot.lane.b32.xlu0 %v4739, 23
    %v5013 = vpop.permute.xlu0 %5012
    %5014 = vrot.lane.b32.xlu0 %v4740, 23
    %v5015 = vpop.permute.xlu0 %5014
    %5016 = vrot.lane.b32.xlu0 %v4741, 23
    %v5017 = vpop.permute.xlu0 %5016
    %5018 = vrot.lane.b32.xlu0 %v4742, 23
    %v5019 = vpop.permute.xlu0 %5018
    %v5020 = vrot.slane %v5013, 4
    %v5021 = vrot.slane %v5015, 4
    %v5022 = vrot.slane %v5017, 4
    %v5023 = vrot.slane %v5019, 4
    %v5024 = vsel %vm126, %v5020, %v5021
    %v5025 = vsel %vm407, %v5013, %v5024
    %v5026 = vsel %vm407, %v5015, %v5021
    %v5027 = vsel %vm126, %v5022, %v5023
    %v5028 = vsel %vm407, %v5017, %v5027
    %v5029 = vsel %vm407, %v5019, %v5023
    %5034 = vst [vmem:[#allocation4 + $0xd8] sm:$0xff] %v5025
    %5035 = vst [vmem:[#allocation4 + $0xe0] sm:$0xf] %v5026
    %5036 = vst [vmem:[#allocation4 + $0xe4] sm:$0xff] %v5028
    %5037 = vst [vmem:[#allocation4 + $0xec] sm:$0xf] %v5029
    %5038 = vrot.lane.b32.xlu0 %v4852, 21
    %v5039 = vpop.permute.xlu0 %5038
    %5040 = vrot.lane.b32.xlu0 %v4853, 21
    %v5041 = vpop.permute.xlu0 %5040
    %5042 = vrot.lane.b32.xlu0 %v4854, 21
    %v5043 = vpop.permute.xlu0 %5042
    %5044 = vrot.lane.b32.xlu0 %v4855, 21
    %v5045 = vpop.permute.xlu0 %5044
    %v5046 = vrot.slane %v5039, 4
    %v5047 = vrot.slane %v5041, 4
    %v5048 = vrot.slane %v5043, 4
    %v5049 = vrot.slane %v5045, 4
    %v5050 = vsel %vm126, %v5046, %v5047
    %v5051 = vsel %vm434, %v5039, %v5050
    %v5052 = vsel %vm434, %v5041, %v5047
    %v5053 = vsel %vm126, %v5048, %v5049
    %v5054 = vsel %vm434, %v5043, %v5053
    %v5055 = vsel %vm434, %v5045, %v5049
    %5060 = vst [vmem:[#allocation4 + $0xf0] sm:$0xff] %v5051
    %5061 = vst [vmem:[#allocation4 + $0xf8] sm:$0xf] %v5052
    %5062 = vst [vmem:[#allocation4 + $0xfc] sm:$0xff] %v5054
    %5063 = vst [vmem:[#allocation4 + $0x104] sm:$0xf] %v5055
    %5064 = vrot.lane.b32.xlu0 %v4739, 2
    %v5065 = vpop.permute.xlu0 %5064
    %5066 = vrot.lane.b32.xlu0 %v4740, 2
    %v5067 = vpop.permute.xlu0 %5066
    %5068 = vrot.lane.b32.xlu0 %v4741, 2
    %v5069 = vpop.permute.xlu0 %5068
    %5070 = vrot.lane.b32.xlu0 %v4742, 2
    %v5071 = vpop.permute.xlu0 %5070
    %v5072 = vrot.slane %v5065, 4
    %v5073 = vrot.slane %v5067, 4
    %v5074 = vrot.slane %v5069, 4
    %v5075 = vrot.slane %v5071, 4
    %v5076 = vsel %vm126, %v5072, %v5073
    %v5077 = vsel %vm461, %v5065, %v5076
    %v5078 = vsel %vm461, %v5067, %v5073
    %v5079 = vsel %vm126, %v5074, %v5075
    %v5080 = vsel %vm461, %v5069, %v5079
    %v5081 = vsel %vm461, %v5071, %v5075
    %5086 = vst [vmem:[#allocation4 + $0x108] sm:$0xff] %v5077
    %5087 = vst [vmem:[#allocation4 + $0x110] sm:$0xf] %v5078
    %5088 = vst [vmem:[#allocation4 + $0x114] sm:$0xff] %v5080
    %5089 = vst [vmem:[#allocation4 + $0x11c] sm:$0xf] %v5081
    %v5091 = vunpack.c.l.b16 %v4691
    %v5092 = vpack.c.b16 %v5091, %v5091
    %5093 = vrot.lane.b32.xlu0 %v5092, 127
    %v5094 = vpop.permute.xlu0 %5093
    %v5095 = vsel %vm81, %v4711, %v5094
    %v5097 = vsel %vm85, %v4703, %v5095
    %v5099 = vunpack.c.l.b16 %v5097
    %v5100 = vunpack.c.h.b16 %v5097
    %v5101 = vpack.c.b16 %v4733, %v4732
    %v5102 = vpack.c.b16 %v5099, %v5099
    %v5103 = vpack.c.b16 %v4737, %v4736
    %v5104 = vpack.c.b16 %v5100, %v5100
    %5109 = vst [vmem:[#allocation4 + $0x120] sm:$0xff] %v5101
    %5110 = vst [vmem:[#allocation4 + $0x128] sm:$0xf] %v5102
    %5111 = vst [vmem:[#allocation4 + $0x12c] sm:$0xff] %v5103
    %5112 = vst [vmem:[#allocation4 + $0x134] sm:$0xf] %v5104
    %5113 = vrot.lane.b32.xlu0 %v4701, 126
    %v5114 = vpop.permute.xlu0 %5113
    %5115 = vrot.lane.b32.xlu0 %v4702, 126
    %v5116 = vpop.permute.xlu0 %5115
    %5117 = vrot.lane.b32.xlu0 %v4703, 126
    %v5118 = vpop.permute.xlu0 %5117
    %5119 = vrot.lane.b32.xlu0 %v5092, 126
    %v5120 = vpop.permute.xlu0 %5119
    %v5121 = vsel %vm506, %v5114, %v5116
    %v5122 = vsel %vm506, %v5116, %v5118
    %v5123 = vsel %vm506, %v5118, %v5120
    %5124 = vrot.lane.b32.xlu0 %v4701, 125
    %v5125 = vpop.permute.xlu0 %5124
    %5126 = vrot.lane.b32.xlu0 %v4702, 125
    %v5127 = vpop.permute.xlu0 %5126
    %5128 = vrot.lane.b32.xlu0 %v4703, 125
    %v5129 = vpop.permute.xlu0 %5128
    %5130 = vrot.lane.b32.xlu0 %v5092, 125
    %v5131 = vpop.permute.xlu0 %5130
    %v5132 = vsel %vm518, %v5125, %v5127
    %v5133 = vsel %vm518, %v5127, %v5129
    %v5134 = vsel %vm518, %v5129, %v5131
    %v5137 = vsel %vm85, %v5121, %v5132
    %v5140 = vsel %vm85, %v5122, %v5133
    %v5143 = vsel %vm85, %v5123, %v5134
    %v5147 = vunpack.c.l.b16 %v5137
    %v5148 = vunpack.c.l.b16 %v5140
    %v5149 = vunpack.c.l.b16 %v5143
    %v5150 = vunpack.c.h.b16 %v5137
    %v5151 = vunpack.c.h.b16 %v5140
    %v5152 = vunpack.c.h.b16 %v5143
    %v5153 = vpack.c.b16 %v5148, %v5147
    %v5154 = vpack.c.b16 %v5149, %v5149
    %v5155 = vpack.c.b16 %v5151, %v5150
    %v5156 = vpack.c.b16 %v5152, %v5152
    %5161 = vst [vmem:[#allocation4 + $0x138] sm:$0xff] %v5153
    %5162 = vst [vmem:[#allocation4 + $0x140] sm:$0xf] %v5154
    %5163 = vst [vmem:[#allocation4 + $0x144] sm:$0xff] %v5155
    %5164 = vst [vmem:[#allocation4 + $0x14c] sm:$0xf] %v5156
    %v5167 = vunpack.c.l.b16 %v4692
    %v5168 = vunpack.c.h.b16 %v4692
    %v5169 = vunpack.c.l.b16 %v4693
    %v5170 = vunpack.c.h.b16 %v4693
    %v5171 = vpack.c.b16 %v5167, %v5167
    %v5172 = vpack.c.b16 %v5168, %v5168
    %v5173 = vpack.c.b16 %v5169, %v5169
    %v5174 = vpack.c.b16 %v5170, %v5170
    %5175 = vrot.lane.b32.xlu0 %v5171, 127
    %v5176 = vpop.permute.xlu0 %5175
    %5177 = vrot.lane.b32.xlu0 %v5172, 127
    %v5178 = vpop.permute.xlu0 %5177
    %5179 = vrot.lane.b32.xlu0 %v5173, 127
    %v5180 = vpop.permute.xlu0 %5179
    %5181 = vrot.lane.b32.xlu0 %v5174, 127
    %v5182 = vpop.permute.xlu0 %5181
    %v5183 = vsel %vm81, %v5176, %v5178
    %v5184 = vsel %vm81, %v5178, %v5180
    %v5185 = vsel %vm81, %v5180, %v5182
    %v5188 = vsel %vm85, %v5171, %v5183
    %v5191 = vsel %vm85, %v5172, %v5184
    %v5194 = vsel %vm85, %v5173, %v5185
    %v5197 = vsel %vm85, %v5174, %v5182
    %v5202 = vunpack.c.l.b16 %v5188
    %v5203 = vunpack.c.l.b16 %v5191
    %v5204 = vunpack.c.l.b16 %v5194
    %v5205 = vunpack.c.l.b16 %v5197
    %v5206 = vunpack.c.h.b16 %v5188
    %v5207 = vunpack.c.h.b16 %v5191
    %v5208 = vunpack.c.h.b16 %v5194
    %v5209 = vunpack.c.h.b16 %v5197
    %v5210 = vpack.c.b16 %v5203, %v5202
    %v5211 = vpack.c.b16 %v5205, %v5204
    %v5212 = vpack.c.b16 %v5207, %v5206
    %v5213 = vpack.c.b16 %v5209, %v5208
    %5214 = vrot.lane.b32.xlu0 %v5210, 107
    %v5215 = vpop.permute.xlu0 %5214
    %5216 = vrot.lane.b32.xlu0 %v5211, 107
    %v5217 = vpop.permute.xlu0 %5216
    %5218 = vrot.lane.b32.xlu0 %v5212, 107
    %v5219 = vpop.permute.xlu0 %5218
    %5220 = vrot.lane.b32.xlu0 %v5213, 107
    %v5221 = vpop.permute.xlu0 %5220
    %v5222 = vrot.slane %v5215, 4
    %v5223 = vrot.slane %v5217, 4
    %v5224 = vrot.slane %v5219, 4
    %v5225 = vrot.slane %v5221, 4
    %v5226 = vsel %vm126, %v5222, %v5223
    %v5227 = vsel %vm614, %v5215, %v5226
    %v5228 = vsel %vm614, %v5217, %v5223
    %v5229 = vsel %vm126, %v5224, %v5225
    %v5230 = vsel %vm614, %v5219, %v5229
    %v5231 = vsel %vm614, %v5221, %v5225
    %5236 = vst [vmem:[#allocation4 + $0x150] sm:$0xff] %v5227
    %5237 = vst [vmem:[#allocation4 + $0x158] sm:$0xf] %v5228
    %5238 = vst [vmem:[#allocation4 + $0x15c] sm:$0xff] %v5230
    %5239 = vst [vmem:[#allocation4 + $0x164] sm:$0xf] %v5231
    %5240 = vrot.lane.b32.xlu0 %v5210, 105
    %v5241 = vpop.permute.xlu0 %5240
    %5242 = vrot.lane.b32.xlu0 %v5211, 105
    %v5243 = vpop.permute.xlu0 %5242
    %5244 = vrot.lane.b32.xlu0 %v5212, 105
    %v5245 = vpop.permute.xlu0 %5244
    %5246 = vrot.lane.b32.xlu0 %v5213, 105
    %v5247 = vpop.permute.xlu0 %5246
    %v5248 = vrot.slane %v5241, 4
    %v5249 = vrot.slane %v5243, 4
    %v5250 = vrot.slane %v5245, 4
    %v5251 = vrot.slane %v5247, 4
    %v5252 = vsel %vm126, %v5248, %v5249
    %v5253 = vsel %vm641, %v5241, %v5252
    %v5254 = vsel %vm641, %v5243, %v5249
    %v5255 = vsel %vm126, %v5250, %v5251
    %v5256 = vsel %vm641, %v5245, %v5255
    %v5257 = vsel %vm641, %v5247, %v5251
    %5262 = vst [vmem:[#allocation4 + $0x168] sm:$0xff] %v5253
    %5263 = vst [vmem:[#allocation4 + $0x170] sm:$0xf] %v5254
    %5264 = vst [vmem:[#allocation4 + $0x174] sm:$0xff] %v5256
    %5265 = vst [vmem:[#allocation4 + $0x17c] sm:$0xf] %v5257
    %5266 = vrot.lane.b32.xlu0 %v5210, 103
    %v5267 = vpop.permute.xlu0 %5266
    %5268 = vrot.lane.b32.xlu0 %v5211, 103
    %v5269 = vpop.permute.xlu0 %5268
    %5270 = vrot.lane.b32.xlu0 %v5212, 103
    %v5271 = vpop.permute.xlu0 %5270
    %5272 = vrot.lane.b32.xlu0 %v5213, 103
    %v5273 = vpop.permute.xlu0 %5272
    %v5274 = vrot.slane %v5267, 4
    %v5275 = vrot.slane %v5269, 4
    %v5276 = vrot.slane %v5271, 4
    %v5277 = vrot.slane %v5273, 4
    %v5278 = vsel %vm126, %v5274, %v5275
    %v5279 = vsel %vm668, %v5267, %v5278
    %v5280 = vsel %vm668, %v5269, %v5275
    %v5281 = vsel %vm126, %v5276, %v5277
    %v5282 = vsel %vm668, %v5271, %v5281
    %v5283 = vsel %vm668, %v5273, %v5277
    %5288 = vst [vmem:[#allocation4 + $0x180] sm:$0xff] %v5279
    %5289 = vst [vmem:[#allocation4 + $0x188] sm:$0xf] %v5280
    %5290 = vst [vmem:[#allocation4 + $0x18c] sm:$0xff] %v5282
    %5291 = vst [vmem:[#allocation4 + $0x194] sm:$0xf] %v5283
    %5292 = vrot.lane.b32.xlu0 %v5171, 110
    %v5293 = vpop.permute.xlu0 %5292
    %5294 = vrot.lane.b32.xlu0 %v5172, 110
    %v5295 = vpop.permute.xlu0 %5294
    %5296 = vrot.lane.b32.xlu0 %v5173, 110
    %v5297 = vpop.permute.xlu0 %5296
    %5298 = vrot.lane.b32.xlu0 %v5174, 110
    %v5299 = vpop.permute.xlu0 %5298
    %v5300 = vsel %vm204, %v5293, %v5295
    %v5301 = vsel %vm204, %v5295, %v5297
    %v5302 = vsel %vm204, %v5297, %v5299
    %v5304 = vsel %vm85, %v5171, %v5300
    %v5306 = vsel %vm85, %v5172, %v5301
    %v5308 = vsel %vm85, %v5173, %v5302
    %v5310 = vsel %vm85, %v5174, %v5299
    %v5315 = vunpack.c.l.b16 %v5304
    %v5316 = vunpack.c.l.b16 %v5306
    %v5317 = vunpack.c.l.b16 %v5308
    %v5318 = vunpack.c.l.b16 %v5310
    %v5319 = vunpack.c.h.b16 %v5304
    %v5320 = vunpack.c.h.b16 %v5306
    %v5321 = vunpack.c.h.b16 %v5308
    %v5322 = vunpack.c.h.b16 %v5310
    %v5323 = vpack.c.b16 %v5316, %v5315
    %v5324 = vpack.c.b16 %v5318, %v5317
    %v5325 = vpack.c.b16 %v5320, %v5319
    %v5326 = vpack.c.b16 %v5322, %v5321
    %5327 = vrot.lane.b32.xlu0 %v5323, 101
    %v5328 = vpop.permute.xlu0 %5327
    %5329 = vrot.lane.b32.xlu0 %v5324, 101
    %v5330 = vpop.permute.xlu0 %5329
    %5331 = vrot.lane.b32.xlu0 %v5325, 101
    %v5332 = vpop.permute.xlu0 %5331
    %5333 = vrot.lane.b32.xlu0 %v5326, 101
    %v5334 = vpop.permute.xlu0 %5333
    %v5335 = vrot.slane %v5328, 4
    %v5336 = vrot.slane %v5330, 4
    %v5337 = vrot.slane %v5332, 4
    %v5338 = vrot.slane %v5334, 4
    %v5339 = vsel %vm126, %v5335, %v5336
    %v5340 = vsel %vm730, %v5328, %v5339
    %v5341 = vsel %vm730, %v5330, %v5336
    %v5342 = vsel %vm126, %v5337, %v5338
    %v5343 = vsel %vm730, %v5332, %v5342
    %v5344 = vsel %vm730, %v5334, %v5338
    %5349 = vst [vmem:[#allocation4 + $0x198] sm:$0xff] %v5340
    %5350 = vst [vmem:[#allocation4 + $0x1a0] sm:$0xf] %v5341
    %5351 = vst [vmem:[#allocation4 + $0x1a4] sm:$0xff] %v5343
    %5352 = vst [vmem:[#allocation4 + $0x1ac] sm:$0xf] %v5344
    %5353 = vrot.lane.b32.xlu0 %v5210, 82
    %v5354 = vpop.permute.xlu0 %5353
    %5355 = vrot.lane.b32.xlu0 %v5211, 82
    %v5356 = vpop.permute.xlu0 %5355
    %5357 = vrot.lane.b32.xlu0 %v5212, 82
    %v5358 = vpop.permute.xlu0 %5357
    %5359 = vrot.lane.b32.xlu0 %v5213, 82
    %v5360 = vpop.permute.xlu0 %5359
    %v5361 = vrot.slane %v5354, 4
    %v5362 = vrot.slane %v5356, 4
    %v5363 = vrot.slane %v5358, 4
    %v5364 = vrot.slane %v5360, 4
    %v5365 = vsel %vm126, %v5361, %v5362
    %v5366 = vsel %vm757, %v5354, %v5365
    %v5367 = vsel %vm757, %v5356, %v5362
    %v5368 = vsel %vm126, %v5363, %v5364
    %v5369 = vsel %vm757, %v5358, %v5368
    %v5370 = vsel %vm757, %v5360, %v5364
    %5375 = vst [vmem:[#allocation4 + $0x1b0] sm:$0xff] %v5366
    %5376 = vst [vmem:[#allocation4 + $0x1b8] sm:$0xf] %v5367
    %5377 = vst [vmem:[#allocation4 + $0x1bc] sm:$0xff] %v5369
    %5378 = vst [vmem:[#allocation4 + $0x1c4] sm:$0xf] %v5370
    %5379 = vrot.lane.b32.xlu0 %v5210, 80
    %v5380 = vpop.permute.xlu0 %5379
    %5381 = vrot.lane.b32.xlu0 %v5211, 80
    %v5382 = vpop.permute.xlu0 %5381
    %5383 = vrot.lane.b32.xlu0 %v5212, 80
    %v5384 = vpop.permute.xlu0 %5383
    %5385 = vrot.lane.b32.xlu0 %v5213, 80
    %v5386 = vpop.permute.xlu0 %5385
    %v5387 = vrot.slane %v5380, 4
    %v5388 = vrot.slane %v5382, 4
    %v5389 = vrot.slane %v5384, 4
    %v5390 = vrot.slane %v5386, 4
    %v5391 = vsel %vm126, %v5387, %v5388
    %v5392 = vsel %vm784, %v5380, %v5391
    %v5393 = vsel %vm784, %v5382, %v5388
    %v5394 = vsel %vm126, %v5389, %v5390
    %v5395 = vsel %vm784, %v5384, %v5394
    %v5396 = vsel %vm784, %v5386, %v5390
    %5401 = vst [vmem:[#allocation4 + $0x1c8] sm:$0xff] %v5392
    %5402 = vst [vmem:[#allocation4 + $0x1d0] sm:$0xf] %v5393
    %5403 = vst [vmem:[#allocation4 + $0x1d4] sm:$0xff] %v5395
    %5404 = vst [vmem:[#allocation4 + $0x1dc] sm:$0xf] %v5396
    %5405 = vrot.lane.b32.xlu0 %v5210, 78
    %v5406 = vpop.permute.xlu0 %5405
    %5407 = vrot.lane.b32.xlu0 %v5211, 78
    %v5408 = vpop.permute.xlu0 %5407
    %5409 = vrot.lane.b32.xlu0 %v5212, 78
    %v5410 = vpop.permute.xlu0 %5409
    %5411 = vrot.lane.b32.xlu0 %v5213, 78
    %v5412 = vpop.permute.xlu0 %5411
    %v5413 = vrot.slane %v5406, 4
    %v5414 = vrot.slane %v5408, 4
    %v5415 = vrot.slane %v5410, 4
    %v5416 = vrot.slane %v5412, 4
    %v5417 = vsel %vm126, %v5413, %v5414
    %v5418 = vsel %vm811, %v5406, %v5417
    %v5419 = vsel %vm811, %v5408, %v5414
    %v5420 = vsel %vm126, %v5415, %v5416
    %v5421 = vsel %vm811, %v5410, %v5420
    %v5422 = vsel %vm811, %v5412, %v5416
    %5427 = vst [vmem:[#allocation4 + $0x1e0] sm:$0xff] %v5418
    %5428 = vst [vmem:[#allocation4 + $0x1e8] sm:$0xf] %v5419
    %5429 = vst [vmem:[#allocation4 + $0x1ec] sm:$0xff] %v5421
    %5430 = vst [vmem:[#allocation4 + $0x1f4] sm:$0xf] %v5422
    %5431 = vrot.lane.b32.xlu0 %v5210, 59
    %v5432 = vpop.permute.xlu0 %5431
    %5433 = vrot.lane.b32.xlu0 %v5211, 59
    %v5434 = vpop.permute.xlu0 %5433
    %5435 = vrot.lane.b32.xlu0 %v5212, 59
    %v5436 = vpop.permute.xlu0 %5435
    %5437 = vrot.lane.b32.xlu0 %v5213, 59
    %v5438 = vpop.permute.xlu0 %5437
    %v5439 = vrot.slane %v5432, 4
    %v5440 = vrot.slane %v5434, 4
    %v5441 = vrot.slane %v5436, 4
    %v5442 = vrot.slane %v5438, 4
    %v5443 = vsel %vm126, %v5439, %v5440
    %v5444 = vsel %vm838, %v5432, %v5443
    %v5445 = vsel %vm838, %v5434, %v5440
    %v5446 = vsel %vm126, %v5441, %v5442
    %v5447 = vsel %vm838, %v5436, %v5446
    %v5448 = vsel %vm838, %v5438, %v5442
    %5453 = vst [vmem:[#allocation4 + $0x1f8] sm:$0xff] %v5444
    %5454 = vst [vmem:[#allocation4 + $0x200] sm:$0xf] %v5445
    %5455 = vst [vmem:[#allocation4 + $0x204] sm:$0xff] %v5447
    %5456 = vst [vmem:[#allocation4 + $0x20c] sm:$0xf] %v5448
    %5457 = vrot.lane.b32.xlu0 %v5210, 57
    %v5458 = vpop.permute.xlu0 %5457
    %5459 = vrot.lane.b32.xlu0 %v5211, 57
    %v5460 = vpop.permute.xlu0 %5459
    %5461 = vrot.lane.b32.xlu0 %v5212, 57
    %v5462 = vpop.permute.xlu0 %5461
    %5463 = vrot.lane.b32.xlu0 %v5213, 57
    %v5464 = vpop.permute.xlu0 %5463
    %v5465 = vrot.slane %v5458, 4
    %v5466 = vrot.slane %v5460, 4
    %v5467 = vrot.slane %v5462, 4
    %v5468 = vrot.slane %v5464, 4
    %v5469 = vsel %vm126, %v5465, %v5466
    %v5470 = vsel %vm865, %v5458, %v5469
    %v5471 = vsel %vm865, %v5460, %v5466
    %v5472 = vsel %vm126, %v5467, %v5468
    %v5473 = vsel %vm865, %v5462, %v5472
    %v5474 = vsel %vm865, %v5464, %v5468
    %5479 = vst [vmem:[#allocation4 + $0x210] sm:$0xff] %v5470
    %5480 = vst [vmem:[#allocation4 + $0x218] sm:$0xf] %v5471
    %5481 = vst [vmem:[#allocation4 + $0x21c] sm:$0xff] %v5473
    %5482 = vst [vmem:[#allocation4 + $0x224] sm:$0xf] %v5474
    %5483 = vrot.lane.b32.xlu0 %v5210, 55
    %v5484 = vpop.permute.xlu0 %5483
    %5485 = vrot.lane.b32.xlu0 %v5211, 55
    %v5486 = vpop.permute.xlu0 %5485
    %5487 = vrot.lane.b32.xlu0 %v5212, 55
    %v5488 = vpop.permute.xlu0 %5487
    %5489 = vrot.lane.b32.xlu0 %v5213, 55
    %v5490 = vpop.permute.xlu0 %5489
    %v5491 = vrot.slane %v5484, 4
    %v5492 = vrot.slane %v5486, 4
    %v5493 = vrot.slane %v5488, 4
    %v5494 = vrot.slane %v5490, 4
    %v5495 = vsel %vm126, %v5491, %v5492
    %v5496 = vsel %vm892, %v5484, %v5495
    %v5497 = vsel %vm892, %v5486, %v5492
    %v5498 = vsel %vm126, %v5493, %v5494
    %v5499 = vsel %vm892, %v5488, %v5498
    %v5500 = vsel %vm892, %v5490, %v5494
    %5505 = vst [vmem:[#allocation4 + $0x228] sm:$0xff] %v5496
    %5506 = vst [vmem:[#allocation4 + $0x230] sm:$0xf] %v5497
    %5507 = vst [vmem:[#allocation4 + $0x234] sm:$0xff] %v5499
    %5508 = vst [vmem:[#allocation4 + $0x23c] sm:$0xf] %v5500
    %5509 = vrot.lane.b32.xlu0 %v4692, 53
    %v5510 = vpop.permute.xlu0 %5509
    %5511 = vrot.lane.b32.xlu0 %v4693, 53
    %v5512 = vpop.permute.xlu0 %5511
    %v5513 = vrot.slane %v5510, 4
    %v5514 = vrot.slane %v5512, 4
    %v5515 = vsel %vm126, %v5513, %v5514
    %v5516 = vsel %vm913, %v5510, %v5515
    %v5517 = vsel %vm913, %v5512, %v5514
    %5520 = vst [vmem:[#allocation4 + $0x240] sm:$0xff] %v5516
    %5521 = vst [vmem:[#allocation4 + $0x248] sm:$0xf] %v5517
    %s5522 = scalar_lea.vmem %s1, 48
    %v5523 = vld [vmem:[%s5522] sm:$0xff]
    %v5524 = vld [vmem:[%s5522 + $0x8] sm:$0xff]
    %v5525 = vld [vmem:[#allocation4] sm:$0xff]
    %v5526 = vld [vmem:[#allocation4 + $0x8] sm:$0xf]
    %v5527 = vld [vmem:[#allocation4 + $0xc] sm:$0xff]
    %v5528 = vld [vmem:[#allocation4 + $0x14] sm:$0xf]
    %v5529 = vld [vmem:[#allocation4 + $0x18] sm:$0xff]
    %v5530 = vld [vmem:[#allocation4 + $0x20] sm:$0xf]
    %v5531 = vld [vmem:[#allocation4 + $0x24] sm:$0xff]
    %v5532 = vld [vmem:[#allocation4 + $0x2c] sm:$0xf]
    %v5533 = vld [vmem:[#allocation4 + $0x30] sm:$0xff]
    %v5534 = vld [vmem:[#allocation4 + $0x38] sm:$0xf]
    %v5535 = vld [vmem:[#allocation4 + $0x3c] sm:$0xff]
    %v5536 = vld [vmem:[#allocation4 + $0x44] sm:$0xf]
    %v5537 = vld [vmem:[#allocation4 + $0x48] sm:$0xff]
    %v5538 = vld [vmem:[#allocation4 + $0x50] sm:$0xf]
    %v5539 = vld [vmem:[#allocation4 + $0x54] sm:$0xff]
    %v5540 = vld [vmem:[#allocation4 + $0x5c] sm:$0xf]
    %v5541 = vld [vmem:[#allocation4 + $0x60] sm:$0xff]
    %v5542 = vld [vmem:[#allocation4 + $0x68] sm:$0xf]
    %v5543 = vld [vmem:[#allocation4 + $0x6c] sm:$0xff]
    %v5544 = vld [vmem:[#allocation4 + $0x74] sm:$0xf]
    %v5545 = vld [vmem:[#allocation4 + $0x78] sm:$0xff]
    %v5546 = vld [vmem:[#allocation4 + $0x80] sm:$0xf]
    %v5547 = vld [vmem:[#allocation4 + $0x84] sm:$0xff]
    %v5548 = vld [vmem:[#allocation4 + $0x8c] sm:$0xf]
    %v5549 = vld [vmem:[#allocation4 + $0x90] sm:$0xff]
    %v5550 = vld [vmem:[#allocation4 + $0x98] sm:$0xf]
    %v5551 = vld [vmem:[#allocation4 + $0x9c] sm:$0xff]
    %v5552 = vld [vmem:[#allocation4 + $0xa4] sm:$0xf]
    %v5553 = vld [vmem:[#allocation4 + $0xa8] sm:$0xff]
    %v5554 = vld [vmem:[#allocation4 + $0xb0] sm:$0xf]
    %v5555 = vld [vmem:[#allocation4 + $0xb4] sm:$0xff]
    %v5556 = vld [vmem:[#allocation4 + $0xbc] sm:$0xf]
    %v5557 = vld [vmem:[#allocation4 + $0xc0] sm:$0xff]
    %v5558 = vld [vmem:[#allocation4 + $0xc8] sm:$0xf]
    %v5559 = vld [vmem:[#allocation4 + $0xcc] sm:$0xff]
    %v5560 = vld [vmem:[#allocation4 + $0xd4] sm:$0xf]
    %v5561 = vld [vmem:[#allocation4 + $0xd8] sm:$0xff]
    %v5562 = vld [vmem:[#allocation4 + $0xe0] sm:$0xf]
    %v5563 = vld [vmem:[#allocation4 + $0xe4] sm:$0xff]
    %v5564 = vld [vmem:[#allocation4 + $0xec] sm:$0xf]
    %v5565 = vld [vmem:[#allocation4 + $0xf0] sm:$0xff]
    %v5566 = vld [vmem:[#allocation4 + $0xf8] sm:$0xf]
    %v5567 = vld [vmem:[#allocation4 + $0xfc] sm:$0xff]
    %v5568 = vld [vmem:[#allocation4 + $0x104] sm:$0xf]
    %v5569 = vld [vmem:[#allocation4 + $0x108] sm:$0xff]
    %v5570 = vld [vmem:[#allocation4 + $0x110] sm:$0xf]
    %v5571 = vld [vmem:[#allocation4 + $0x114] sm:$0xff]
    %v5572 = vld [vmem:[#allocation4 + $0x11c] sm:$0xf]
    %v5573 = vld [vmem:[#allocation4 + $0x120] sm:$0xff]
    %v5574 = vld [vmem:[#allocation4 + $0x128] sm:$0xf]
    %v5575 = vld [vmem:[#allocation4 + $0x12c] sm:$0xff]
    %v5576 = vld [vmem:[#allocation4 + $0x134] sm:$0xf]
    %v5577 = vld [vmem:[#allocation4 + $0x138] sm:$0xff]
    %v5578 = vld [vmem:[#allocation4 + $0x140] sm:$0xf]
    %v5579 = vld [vmem:[#allocation4 + $0x144] sm:$0xff]
    %v5580 = vld [vmem:[#allocation4 + $0x14c] sm:$0xf]
    %v5581 = vld [vmem:[#allocation4 + $0x150] sm:$0xff]
    %v5582 = vld [vmem:[#allocation4 + $0x158] sm:$0xf]
    %v5583 = vld [vmem:[#allocation4 + $0x15c] sm:$0xff]
    %v5584 = vld [vmem:[#allocation4 + $0x164] sm:$0xf]
    %v5585 = vld [vmem:[#allocation4 + $0x168] sm:$0xff]
    %v5586 = vld [vmem:[#allocation4 + $0x170] sm:$0xf]
    %v5587 = vld [vmem:[#allocation4 + $0x174] sm:$0xff]
    %v5588 = vld [vmem:[#allocation4 + $0x17c] sm:$0xf]
    %v5589 = vld [vmem:[#allocation4 + $0x180] sm:$0xff]
    %v5590 = vld [vmem:[#allocation4 + $0x188] sm:$0xf]
    %v5591 = vld [vmem:[#allocation4 + $0x18c] sm:$0xff]
    %v5592 = vld [vmem:[#allocation4 + $0x194] sm:$0xf]
    %v5593 = vld [vmem:[#allocation4 + $0x198] sm:$0xff]
    %v5594 = vld [vmem:[#allocation4 + $0x1a0] sm:$0xf]
    %v5595 = vld [vmem:[#allocation4 + $0x1a4] sm:$0xff]
    %v5596 = vld [vmem:[#allocation4 + $0x1ac] sm:$0xf]
    %v5597 = vld [vmem:[#allocation4 + $0x1b0] sm:$0xff]
    %v5598 = vld [vmem:[#allocation4 + $0x1b8] sm:$0xf]
    %v5599 = vld [vmem:[#allocation4 + $0x1bc] sm:$0xff]
    %v5600 = vld [vmem:[#allocation4 + $0x1c4] sm:$0xf]
    %v5601 = vld [vmem:[#allocation4 + $0x1c8] sm:$0xff]
    %v5602 = vld [vmem:[#allocation4 + $0x1d0] sm:$0xf]
    %v5603 = vld [vmem:[#allocation4 + $0x1d4] sm:$0xff]
    %v5604 = vld [vmem:[#allocation4 + $0x1dc] sm:$0xf]
    %v5605 = vld [vmem:[#allocation4 + $0x1e0] sm:$0xff]
    %v5606 = vld [vmem:[#allocation4 + $0x1e8] sm:$0xf]
    %v5607 = vld [vmem:[#allocation4 + $0x1ec] sm:$0xff]
    %v5608 = vld [vmem:[#allocation4 + $0x1f4] sm:$0xf]
    %v5609 = vld [vmem:[#allocation4 + $0x1f8] sm:$0xff]
    %v5610 = vld [vmem:[#allocation4 + $0x200] sm:$0xf]
    %v5611 = vld [vmem:[#allocation4 + $0x204] sm:$0xff]
    %v5612 = vld [vmem:[#allocation4 + $0x20c] sm:$0xf]
    %v5613 = vld [vmem:[#allocation4 + $0x210] sm:$0xff]
    %v5614 = vld [vmem:[#allocation4 + $0x218] sm:$0xf]
    %v5615 = vld [vmem:[#allocation4 + $0x21c] sm:$0xff]
    %v5616 = vld [vmem:[#allocation4 + $0x224] sm:$0xf]
    %v5617 = vld [vmem:[#allocation4 + $0x228] sm:$0xff]
    %v5618 = vld [vmem:[#allocation4 + $0x230] sm:$0xf]
    %v5619 = vld [vmem:[#allocation4 + $0x234] sm:$0xff]
    %v5620 = vld [vmem:[#allocation4 + $0x23c] sm:$0xf]
    %v5621 = vld [vmem:[#allocation4 + $0x240] sm:$0xff]
    %v5622 = vld [vmem:[#allocation4 + $0x248] sm:$0xf]
    %s5623 = scalar_lea.vmem [#allocation5], 24
    %v5624 = vld [vmem:[%s5623] sm:$0xff]
    %5626 = vset.pattern.permute.xlu0 0
    %5627 = vperm.xlu0 %5626, %v5624
    %v5628 = vpop.permute.xlu0 %5627
    %v5632 = vunpack.c.l.b16 %v5523
    %v5633 = vunpack.c.h.b16 %v5523
    %v5634 = vunpack.c.l.b16 %v5524
    %v5635 = vunpack.c.h.b16 %v5524
    %v5636 = vpack.c.b16 %v5632, %v5632
    %v5637 = vpack.c.b16 %v5633, %v5633
    %v5638 = vpack.c.b16 %v5634, %v5634
    %v5639 = vpack.c.b16 %v5635, %v5635
    %v5741 = vunpack.c.l.b16 %v5525
    %v5742 = vunpack.c.h.b16 %v5525
    %v5743 = vunpack.c.l.b16 %v5526
    %v5744 = vunpack.c.l.b16 %v5527
    %v5745 = vunpack.c.h.b16 %v5527
    %v5746 = vunpack.c.l.b16 %v5528
    %v5747 = vunpack.c.l.b16 %v5529
    %v5748 = vunpack.c.h.b16 %v5529
    %v5749 = vunpack.c.l.b16 %v5530
    %v5750 = vunpack.c.l.b16 %v5531
    %v5751 = vunpack.c.h.b16 %v5531
    %v5752 = vunpack.c.l.b16 %v5532
    %v5753 = vunpack.c.l.b16 %v5533
    %v5754 = vunpack.c.h.b16 %v5533
    %v5755 = vunpack.c.l.b16 %v5534
    %v5756 = vunpack.c.l.b16 %v5535
    %v5757 = vunpack.c.h.b16 %v5535
    %v5758 = vunpack.c.l.b16 %v5536
    %v5759 = vunpack.c.l.b16 %v5537
    %v5760 = vunpack.c.h.b16 %v5537
    %v5761 = vunpack.c.l.b16 %v5538
    %v5762 = vunpack.c.l.b16 %v5539
    %v5763 = vunpack.c.h.b16 %v5539
    %v5764 = vunpack.c.l.b16 %v5540
    %v5765 = vunpack.c.l.b16 %v5541
    %v5766 = vunpack.c.h.b16 %v5541
    %v5767 = vunpack.c.l.b16 %v5542
    %v5768 = vunpack.c.l.b16 %v5543
    %v5769 = vunpack.c.h.b16 %v5543
    %v5770 = vunpack.c.l.b16 %v5544
    %v5771 = vunpack.c.l.b16 %v5545
    %v5772 = vunpack.c.h.b16 %v5545
    %v5773 = vunpack.c.l.b16 %v5546
    %v5774 = vunpack.c.l.b16 %v5547
    %v5775 = vunpack.c.h.b16 %v5547
    %v5776 = vunpack.c.l.b16 %v5548
    %v5777 = vunpack.c.l.b16 %v5549
    %v5778 = vunpack.c.h.b16 %v5549
    %v5779 = vunpack.c.l.b16 %v5550
    %v5780 = vunpack.c.l.b16 %v5551
    %v5781 = vunpack.c.h.b16 %v5551
    %v5782 = vunpack.c.l.b16 %v5552
    %v5783 = vunpack.c.l.b16 %v5553
    %v5784 = vunpack.c.h.b16 %v5553
    %v5785 = vunpack.c.l.b16 %v5554
    %v5786 = vunpack.c.l.b16 %v5555
    %v5787 = vunpack.c.h.b16 %v5555
    %v5788 = vunpack.c.l.b16 %v5556
    %v5789 = vunpack.c.l.b16 %v5557
    %v5790 = vunpack.c.h.b16 %v5557
    %v5791 = vunpack.c.l.b16 %v5558
    %v5792 = vunpack.c.l.b16 %v5559
    %v5793 = vunpack.c.h.b16 %v5559
    %v5794 = vunpack.c.l.b16 %v5560
    %v5795 = vunpack.c.l.b16 %v5561
    %v5796 = vunpack.c.h.b16 %v5561
    %v5797 = vunpack.c.l.b16 %v5562
    %v5798 = vunpack.c.l.b16 %v5563
    %v5799 = vunpack.c.h.b16 %v5563
    %v5800 = vunpack.c.l.b16 %v5564
    %v5801 = vunpack.c.l.b16 %v5565
    %v5802 = vunpack.c.h.b16 %v5565
    %v5803 = vunpack.c.l.b16 %v5566
    %v5804 = vunpack.c.l.b16 %v5567
    %v5805 = vunpack.c.h.b16 %v5567
    %v5806 = vunpack.c.l.b16 %v5568
    %v5807 = vunpack.c.l.b16 %v5569
    %v5808 = vunpack.c.h.b16 %v5569
    %v5809 = vunpack.c.l.b16 %v5570
    %v5810 = vunpack.c.l.b16 %v5571
    %v5811 = vunpack.c.h.b16 %v5571
    %v5812 = vunpack.c.l.b16 %v5572
    %v5813 = vunpack.c.l.b16 %v5573
    %v5814 = vunpack.c.h.b16 %v5573
    %v5815 = vunpack.c.l.b16 %v5574
    %v5816 = vunpack.c.l.b16 %v5575
    %v5817 = vunpack.c.h.b16 %v5575
    %v5818 = vunpack.c.l.b16 %v5576
    %v5819 = vunpack.c.l.b16 %v5577
    %v5820 = vunpack.c.h.b16 %v5577
    %v5821 = vunpack.c.l.b16 %v5578
    %v5822 = vunpack.c.l.b16 %v5579
    %v5823 = vunpack.c.h.b16 %v5579
    %v5824 = vunpack.c.l.b16 %v5580
    %v5825 = vunpack.c.l.b16 %v5581
    %v5826 = vunpack.c.h.b16 %v5581
    %v5827 = vunpack.c.l.b16 %v5582
    %v5828 = vunpack.c.l.b16 %v5583
    %v5829 = vunpack.c.h.b16 %v5583
    %v5830 = vunpack.c.l.b16 %v5584
    %v5831 = vunpack.c.l.b16 %v5585
    %v5832 = vunpack.c.h.b16 %v5585
    %v5833 = vunpack.c.l.b16 %v5586
    %v5834 = vunpack.c.l.b16 %v5587
    %v5835 = vunpack.c.h.b16 %v5587
    %v5836 = vunpack.c.l.b16 %v5588
    %v5837 = vunpack.c.l.b16 %v5589
    %v5838 = vunpack.c.h.b16 %v5589
    %v5839 = vunpack.c.l.b16 %v5590
    %v5840 = vunpack.c.l.b16 %v5591
    %v5841 = vunpack.c.h.b16 %v5591
    %v5842 = vunpack.c.l.b16 %v5592
    %v5843 = vunpack.c.l.b16 %v5593
    %v5844 = vunpack.c.h.b16 %v5593
    %v5845 = vunpack.c.l.b16 %v5594
    %v5846 = vunpack.c.l.b16 %v5595
    %v5847 = vunpack.c.h.b16 %v5595
    %v5848 = vunpack.c.l.b16 %v5596
    %v5849 = vunpack.c.l.b16 %v5597
    %v5850 = vunpack.c.h.b16 %v5597
    %v5851 = vunpack.c.l.b16 %v5598
    %v5852 = vunpack.c.l.b16 %v5599
    %v5853 = vunpack.c.h.b16 %v5599
    %v5854 = vunpack.c.l.b16 %v5600
    %v5855 = vunpack.c.l.b16 %v5601
    %v5856 = vunpack.c.h.b16 %v5601
    %v5857 = vunpack.c.l.b16 %v5602
    %v5858 = vunpack.c.l.b16 %v5603
    %v5859 = vunpack.c.h.b16 %v5603
    %v5860 = vunpack.c.l.b16 %v5604
    %v5861 = vunpack.c.l.b16 %v5605
    %v5862 = vunpack.c.h.b16 %v5605
    %v5863 = vunpack.c.l.b16 %v5606
    %v5864 = vunpack.c.l.b16 %v5607
    %v5865 = vunpack.c.h.b16 %v5607
    %v5866 = vunpack.c.l.b16 %v5608
    %v5867 = vunpack.c.l.b16 %v5609
    %v5868 = vunpack.c.h.b16 %v5609
    %v5869 = vunpack.c.l.b16 %v5610
    %v5870 = vunpack.c.l.b16 %v5611
    %v5871 = vunpack.c.h.b16 %v5611
    %v5872 = vunpack.c.l.b16 %v5612
    %v5873 = vunpack.c.l.b16 %v5613
    %v5874 = vunpack.c.h.b16 %v5613
    %v5875 = vunpack.c.l.b16 %v5614
    %v5876 = vunpack.c.l.b16 %v5615
    %v5877 = vunpack.c.h.b16 %v5615
    %v5878 = vunpack.c.l.b16 %v5616
    %v5879 = vunpack.c.l.b16 %v5617
    %v5880 = vunpack.c.h.b16 %v5617
    %v5881 = vunpack.c.l.b16 %v5618
    %v5882 = vunpack.c.l.b16 %v5619
    %v5883 = vunpack.c.h.b16 %v5619
    %v5884 = vunpack.c.l.b16 %v5620
    %v5885 = vunpack.c.l.b16 %v5621
    %v5886 = vunpack.c.h.b16 %v5621
    %v5887 = vunpack.c.l.b16 %v5622
    %v5888 = vpack.c.b16 %v5744, %v5741
    %v5889 = vpack.c.b16 %v5745, %v5742
    %v5890 = vpack.c.b16 %v5746, %v5743
    %v5891 = vpack.c.b16 %v5750, %v5747
    %v5892 = vpack.c.b16 %v5751, %v5748
    %v5893 = vpack.c.b16 %v5752, %v5749
    %v5894 = vpack.c.b16 %v5756, %v5753
    %v5895 = vpack.c.b16 %v5757, %v5754
    %v5896 = vpack.c.b16 %v5758, %v5755
    %v5897 = vpack.c.b16 %v5762, %v5759
    %v5898 = vpack.c.b16 %v5763, %v5760
    %v5899 = vpack.c.b16 %v5764, %v5761
    %v5900 = vpack.c.b16 %v5768, %v5765
    %v5901 = vpack.c.b16 %v5769, %v5766
    %v5902 = vpack.c.b16 %v5770, %v5767
    %v5903 = vpack.c.b16 %v5774, %v5771
    %v5904 = vpack.c.b16 %v5775, %v5772
    %v5905 = vpack.c.b16 %v5776, %v5773
    %v5906 = vpack.c.b16 %v5780, %v5777
    %v5907 = vpack.c.b16 %v5781, %v5778
    %v5908 = vpack.c.b16 %v5782, %v5779
    %v5909 = vpack.c.b16 %v5786, %v5783
    %v5910 = vpack.c.b16 %v5787, %v5784
    %v5911 = vpack.c.b16 %v5788, %v5785
    %v5912 = vpack.c.b16 %v5792, %v5789
    %v5913 = vpack.c.b16 %v5793, %v5790
    %v5914 = vpack.c.b16 %v5794, %v5791
    %v5915 = vpack.c.b16 %v5798, %v5795
    %v5916 = vpack.c.b16 %v5799, %v5796
    %v5917 = vpack.c.b16 %v5800, %v5797
    %v5918 = vpack.c.b16 %v5804, %v5801
    %v5919 = vpack.c.b16 %v5805, %v5802
    %v5920 = vpack.c.b16 %v5806, %v5803
    %v5921 = vpack.c.b16 %v5810, %v5807
    %v5922 = vpack.c.b16 %v5811, %v5808
    %v5923 = vpack.c.b16 %v5812, %v5809
    %v5924 = vpack.c.b16 %v5816, %v5813
    %v5925 = vpack.c.b16 %v5817, %v5814
    %v5926 = vpack.c.b16 %v5818, %v5815
    %v5927 = vpack.c.b16 %v5822, %v5819
    %v5928 = vpack.c.b16 %v5823, %v5820
    %v5929 = vpack.c.b16 %v5824, %v5821
    %v5930 = vpack.c.b16 %v5828, %v5825
    %v5931 = vpack.c.b16 %v5829, %v5826
    %v5932 = vpack.c.b16 %v5830, %v5827
    %v5933 = vpack.c.b16 %v5834, %v5831
    %v5934 = vpack.c.b16 %v5835, %v5832
    %v5935 = vpack.c.b16 %v5836, %v5833
    %v5936 = vpack.c.b16 %v5840, %v5837
    %v5937 = vpack.c.b16 %v5841, %v5838
    %v5938 = vpack.c.b16 %v5842, %v5839
    %v5939 = vpack.c.b16 %v5846, %v5843
    %v5940 = vpack.c.b16 %v5847, %v5844
    %v5941 = vpack.c.b16 %v5848, %v5845
    %v5942 = vpack.c.b16 %v5852, %v5849
    %v5943 = vpack.c.b16 %v5853, %v5850
    %v5944 = vpack.c.b16 %v5854, %v5851
    %v5945 = vpack.c.b16 %v5858, %v5855
    %v5946 = vpack.c.b16 %v5859, %v5856
    %v5947 = vpack.c.b16 %v5860, %v5857
    %v5948 = vpack.c.b16 %v5864, %v5861
    %v5949 = vpack.c.b16 %v5865, %v5862
    %v5950 = vpack.c.b16 %v5866, %v5863
    %v5951 = vpack.c.b16 %v5870, %v5867
    %v5952 = vpack.c.b16 %v5871, %v5868
    %v5953 = vpack.c.b16 %v5872, %v5869
    %v5954 = vpack.c.b16 %v5876, %v5873
    %v5955 = vpack.c.b16 %v5877, %v5874
    %v5956 = vpack.c.b16 %v5878, %v5875
    %v5957 = vpack.c.b16 %v5882, %v5879
    %v5958 = vpack.c.b16 %v5883, %v5880
    %v5959 = vpack.c.b16 %v5884, %v5881
    %v5960 = vpack.c.b16 %v5885, %v5885
    %v5961 = vpack.c.b16 %v5886, %v5886
    %v5962 = vpack.c.b16 %v5887, %v5887
    %v6036 = vsel %vm1431, %v5639, 0
    %v6039 = vsel %vm85, %v5960, 0
    %v6042 = vsel %vm85, %v5961, 0
    %v6045 = vsel %vm85, %v5962, 0
    %6047 = vmatpush.bf16.msra.mxu0 %v5909
    %6048 = vmatpush.bf16.msra.mxu0 %v5906
    %6049 = vmatpush.bf16.msra.mxu0 %v5903
    %6050 = vmatpush.bf16.msra.mxu0 %v5900
    %6051 = vmatpush.bf16.msra.mxu0 %v5897
    %6052 = vmatpush.bf16.msra.mxu0 %v5894
    %6053 = vmatpush.bf16.msra.mxu0 %v5891
    %6054 = vmatpush.bf16.msra.mxu0 %v5888
    %6055 = vmatmul.bf16.gmra.mxu0 %v5636
    %v6056 = vpop.f32.mrf.mxu0
    %v6057 = vadd.f32 %v5628, %v6056
    %v6058 = vpop.f32.mrf.mxu0
    %6059 = vdwg.mxu0
    %6060 = vmatpush.bf16.msra.mxu0 %v5933
    %6061 = vmatpush.bf16.msra.mxu0 %v5930
    %6062 = vmatpush.bf16.msra.mxu0 %v5927
    %6063 = vmatpush.bf16.msra.mxu0 %v5924
    %6064 = vmatpush.bf16.msra.mxu0 %v5921
    %6065 = vmatpush.bf16.msra.mxu0 %v5918
    %6066 = vmatpush.bf16.msra.mxu0 %v5915
    %6067 = vmatpush.bf16.msra.mxu0 %v5912
    %6068 = vmatmul.bf16.gmra.mxu0 %v5637
    %v6069 = vpop.f32.mrf.mxu0
    %v6070 = vadd.f32 %v6057, %v6069
    %v6071 = vpop.f32.mrf.mxu0
    %6072 = vdwg.mxu0
    %6073 = vmatpush.bf16.msra.mxu0 %v5957
    %6074 = vmatpush.bf16.msra.mxu0 %v5954
    %6075 = vmatpush.bf16.msra.mxu0 %v5951
    %6076 = vmatpush.bf16.msra.mxu0 %v5948
    %6077 = vmatpush.bf16.msra.mxu0 %v5945
    %6078 = vmatpush.bf16.msra.mxu0 %v5942
    %6079 = vmatpush.bf16.msra.mxu0 %v5939
    %6080 = vmatpush.bf16.msra.mxu0 %v5936
    %6081 = vmatmul.bf16.gmra.mxu0 %v5638
    %v6082 = vpop.f32.mrf.mxu0
    %v6083 = vadd.f32 %v6070, %v6082
    %v6084 = vpop.f32.mrf.mxu0
    %6085 = vdwg.mxu0
    %6086 = vmatpush.bf16.msra.mxu0 0
    %6087 = vmatpush.bf16.msra.mxu0 0
    %6088 = vmatpush.bf16.msra.mxu0 0
    %6089 = vmatpush.bf16.msra.mxu0 0
    %6090 = vmatpush.bf16.msra.mxu0 0
    %6091 = vmatpush.bf16.msra.mxu0 0
    %6092 = vmatpush.bf16.msra.mxu0 0
    %6093 = vmatpush.bf16.msra.mxu0 %v6039
    %6094 = vmatmul.bf16.gmra.mxu0 %v6036
    %v6095 = vpop.f32.mrf.mxu0
    %v6096 = vadd.f32 %v6083, %v6095
    %v6097 = vpop.f32.mrf.mxu0
    %6098 = vdwg.mxu0
    %6099 = vmatpush.bf16.msra.mxu0 %v5910
    %6100 = vmatpush.bf16.msra.mxu0 %v5907
    %6101 = vmatpush.bf16.msra.mxu0 %v5904
    %6102 = vmatpush.bf16.msra.mxu0 %v5901
    %6103 = vmatpush.bf16.msra.mxu0 %v5898
    %6104 = vmatpush.bf16.msra.mxu0 %v5895
    %6105 = vmatpush.bf16.msra.mxu0 %v5892
    %6106 = vmatpush.bf16.msra.mxu0 %v5889
    %6107 = vmatmul.bf16.gmra.mxu0 %v5636
    %v6108 = vpop.f32.mrf.mxu0
    %v6109 = vadd.f32 %v5628, %v6108
    %v6110 = vpop.f32.mrf.mxu0
    %6111 = vdwg.mxu0
    %6112 = vmatpush.bf16.msra.mxu0 %v5934
    %6113 = vmatpush.bf16.msra.mxu0 %v5931
    %6114 = vmatpush.bf16.msra.mxu0 %v5928
    %6115 = vmatpush.bf16.msra.mxu0 %v5925
    %6116 = vmatpush.bf16.msra.mxu0 %v5922
    %6117 = vmatpush.bf16.msra.mxu0 %v5919
    %6118 = vmatpush.bf16.msra.mxu0 %v5916
    %6119 = vmatpush.bf16.msra.mxu0 %v5913
    %6120 = vmatmul.bf16.gmra.mxu0 %v5637
    %v6121 = vpop.f32.mrf.mxu0
    %v6122 = vadd.f32 %v6109, %v6121
    %v6123 = vpop.f32.mrf.mxu0
    %6124 = vdwg.mxu0
    %6125 = vmatpush.bf16.msra.mxu0 %v5958
    %6126 = vmatpush.bf16.msra.mxu0 %v5955
    %6127 = vmatpush.bf16.msra.mxu0 %v5952
    %6128 = vmatpush.bf16.msra.mxu0 %v5949
    %6129 = vmatpush.bf16.msra.mxu0 %v5946
    %6130 = vmatpush.bf16.msra.mxu0 %v5943
    %6131 = vmatpush.bf16.msra.mxu0 %v5940
    %6132 = vmatpush.bf16.msra.mxu0 %v5937
    %6133 = vmatmul.bf16.gmra.mxu0 %v5638
    %v6134 = vpop.f32.mrf.mxu0
    %v6135 = vadd.f32 %v6122, %v6134
    %v6136 = vpop.f32.mrf.mxu0
    %6137 = vdwg.mxu0
    %6138 = vmatpush.bf16.msra.mxu0 0
    %6139 = vmatpush.bf16.msra.mxu0 0
    %6140 = vmatpush.bf16.msra.mxu0 0
    %6141 = vmatpush.bf16.msra.mxu0 0
    %6142 = vmatpush.bf16.msra.mxu0 0
    %6143 = vmatpush.bf16.msra.mxu0 0
    %6144 = vmatpush.bf16.msra.mxu0 0
    %6145 = vmatpush.bf16.msra.mxu0 %v6042
    %6146 = vmatmul.bf16.gmra.mxu0 %v6036
    %v6147 = vpop.f32.mrf.mxu0
    %v6148 = vadd.f32 %v6135, %v6147
    %v6149 = vpop.f32.mrf.mxu0
    %6150 = vdwg.mxu0
    %6151 = vmatpush.bf16.msra.mxu0 %v5911
    %6152 = vmatpush.bf16.msra.mxu0 %v5908
    %6153 = vmatpush.bf16.msra.mxu0 %v5905
    %6154 = vmatpush.bf16.msra.mxu0 %v5902
    %6155 = vmatpush.bf16.msra.mxu0 %v5899
    %6156 = vmatpush.bf16.msra.mxu0 %v5896
    %6157 = vmatpush.bf16.msra.mxu0 %v5893
    %6158 = vmatpush.bf16.msra.mxu0 %v5890
    %6159 = vmatmul.bf16.gmra.mxu0 %v5636
    %v6160 = vpop.f32.mrf.mxu0
    %v6161 = vadd.f32 %v5628, %v6160
    %v6162 = vpop.f32.mrf.mxu0
    %6163 = vdwg.mxu0
    %6164 = vmatpush.bf16.msra.mxu0 %v5935
    %6165 = vmatpush.bf16.msra.mxu0 %v5932
    %6166 = vmatpush.bf16.msra.mxu0 %v5929
    %6167 = vmatpush.bf16.msra.mxu0 %v5926
    %6168 = vmatpush.bf16.msra.mxu0 %v5923
    %6169 = vmatpush.bf16.msra.mxu0 %v5920
    %6170 = vmatpush.bf16.msra.mxu0 %v5917
    %6171 = vmatpush.bf16.msra.mxu0 %v5914
    %6172 = vmatmul.bf16.gmra.mxu0 %v5637
    %v6173 = vpop.f32.mrf.mxu0
    %v6174 = vadd.f32 %v6161, %v6173
    %v6175 = vpop.f32.mrf.mxu0
    %6176 = vdwg.mxu0
    %6177 = vmatpush.bf16.msra.mxu0 %v5959
    %6178 = vmatpush.bf16.msra.mxu0 %v5956
    %6179 = vmatpush.bf16.msra.mxu0 %v5953
    %6180 = vmatpush.bf16.msra.mxu0 %v5950
    %6181 = vmatpush.bf16.msra.mxu0 %v5947
    %6182 = vmatpush.bf16.msra.mxu0 %v5944
    %6183 = vmatpush.bf16.msra.mxu0 %v5941
    %6184 = vmatpush.bf16.msra.mxu0 %v5938
    %6185 = vmatmul.bf16.gmra.mxu0 %v5638
    %v6186 = vpop.f32.mrf.mxu0
    %v6187 = vadd.f32 %v6174, %v6186
    %v6188 = vpop.f32.mrf.mxu0
    %6189 = vdwg.mxu0
    %6190 = vmatpush.bf16.msra.mxu0 0
    %6191 = vmatpush.bf16.msra.mxu0 0
    %6192 = vmatpush.bf16.msra.mxu0 0
    %6193 = vmatpush.bf16.msra.mxu0 0
    %6194 = vmatpush.bf16.msra.mxu0 0
    %6195 = vmatpush.bf16.msra.mxu0 0
    %6196 = vmatpush.bf16.msra.mxu0 0
    %6197 = vmatpush.bf16.msra.mxu0 %v6045
    %6198 = vmatmul.bf16.gmra.mxu0 %v6036
    %v6199 = vpop.f32.mrf.mxu0
    %v6200 = vadd.f32 %v6187, %v6199
    %v6201 = vpop.f32.mrf.mxu0
    %6202 = vdwg.mxu0
    %s6203 = sld [smem:[#allocation8 + $0x3]]
    %vm6204 = vcmp.ge.f32.partialorder %v6096, 0.0
    %vm6205 = vcmp.ge.f32.partialorder %v6148, 0.0
    %vm6206 = vcmp.ge.f32.partialorder %v6200, 0.0
    %v6207 = vstv %s6203
    %v6208 = vmul.f32 %v6207, %v6096
    %v6209 = vmul.f32 %v6207, %v6148
    %v6210 = vmul.f32 %v6207, %v6200
    %v6211 = vsel %vm6204, %v6096, %v6208
    %v6212 = vsel %vm6205, %v6148, %v6209
    %v6213 = vsel %vm6206, %v6200, %v6210
    %v6214 = vmul.f32 %v6211, %v1612
    %v6215 = vmul.f32 %v6212, %v1613
    %v6216 = vmul.f32 %v6213, %v1614
    %v6217 = vpack.c.bf16 %v6215, %v6214
    %v6218 = vpack.c.bf16 %v6216, %v6216
    %6219 = vst [vmem:[#allocation3 + $0x4] sm:$0xff] %v6217
    %6220 = vst [vmem:[#allocation3 + $0xc] sm:$0xf] %v6218
    %v6221 = vld [vmem:[#allocation3] sm:$0xff]
    %v6222 = vld [vmem:[#allocation3 + $0x8] sm:$0xff]
    %v6223 = vld [vmem:[#allocation3 + $0x10] sm:$0xf]
    %v6224 = vld [vmem:[#allocation3 + $0x4] sm:$0xff]
    %v6225 = vld [vmem:[#allocation3 + $0xc] sm:$0xff]
    %v6228 = vunpack.c.l.b16 %v6221
    %v6229 = vunpack.c.h.b16 %v6221
    %v6230 = vunpack.c.l.b16 %v6222
    %v6231 = vunpack.c.h.b16 %v6222
    %v6232 = vpack.c.b16 %v6228, %v6228
    %v6233 = vpack.c.b16 %v6229, %v6229
    %v6234 = vpack.c.b16 %v6230, %v6230
    %v6235 = vpack.c.b16 %v6231, %v6231
    %6236 = vrot.lane.b32.xlu0 %v6232, 127
    %v6237 = vpop.permute.xlu0 %6236
    %6238 = vrot.lane.b32.xlu0 %v6233, 127
    %v6239 = vpop.permute.xlu0 %6238
    %6240 = vrot.lane.b32.xlu0 %v6234, 127
    %v6241 = vpop.permute.xlu0 %6240
    %6242 = vrot.lane.b32.xlu0 %v6235, 127
    %v6243 = vpop.permute.xlu0 %6242
    %v6244 = vsel %vm81, %v6237, %v6239
    %v6245 = vsel %vm81, %v6239, %v6241
    %v6246 = vsel %vm81, %v6241, %v6243
    %v6249 = vsel %vm85, %v6232, %v6244
    %v6252 = vsel %vm85, %v6233, %v6245
    %v6255 = vsel %vm85, %v6234, %v6246
    %v6258 = vsel %vm85, %v6235, %v6243
    %v6263 = vunpack.c.l.b16 %v6249
    %v6264 = vunpack.c.l.b16 %v6252
    %v6265 = vunpack.c.l.b16 %v6255
    %v6266 = vunpack.c.l.b16 %v6258
    %v6267 = vunpack.c.h.b16 %v6249
    %v6268 = vunpack.c.h.b16 %v6252
    %v6269 = vunpack.c.h.b16 %v6255
    %v6270 = vunpack.c.h.b16 %v6258
    %v6271 = vpack.c.b16 %v6264, %v6263
    %v6272 = vpack.c.b16 %v6266, %v6265
    %v6273 = vpack.c.b16 %v6268, %v6267
    %v6274 = vpack.c.b16 %v6270, %v6269
    %6275 = vrot.lane.b32.xlu0 %v6271, 75
    %v6276 = vpop.permute.xlu0 %6275
    %6277 = vrot.lane.b32.xlu0 %v6272, 75
    %v6278 = vpop.permute.xlu0 %6277
    %6279 = vrot.lane.b32.xlu0 %v6273, 75
    %v6280 = vpop.permute.xlu0 %6279
    %6281 = vrot.lane.b32.xlu0 %v6274, 75
    %v6282 = vpop.permute.xlu0 %6281
    %v6283 = vrot.slane %v6276, 4
    %v6284 = vrot.slane %v6278, 4
    %v6285 = vrot.slane %v6280, 4
    %v6286 = vrot.slane %v6282, 4
    %v6287 = vsel %vm126, %v6283, %v6284
    %v6288 = vsel %vm128, %v6276, %v6287
    %v6289 = vsel %vm128, %v6278, %v6284
    %v6290 = vsel %vm126, %v6285, %v6286
    %v6291 = vsel %vm128, %v6280, %v6290
    %v6292 = vsel %vm128, %v6282, %v6286
    %6297 = vst [vmem:[#allocation4] sm:$0xff] %v6288
    %6298 = vst [vmem:[#allocation4 + $0x8] sm:$0xf] %v6289
    %6299 = vst [vmem:[#allocation4 + $0xc] sm:$0xff] %v6291
    %6300 = vst [vmem:[#allocation4 + $0x14] sm:$0xf] %v6292
    %6301 = vrot.lane.b32.xlu0 %v6271, 73
    %v6302 = vpop.permute.xlu0 %6301
    %6303 = vrot.lane.b32.xlu0 %v6272, 73
    %v6304 = vpop.permute.xlu0 %6303
    %6305 = vrot.lane.b32.xlu0 %v6273, 73
    %v6306 = vpop.permute.xlu0 %6305
    %6307 = vrot.lane.b32.xlu0 %v6274, 73
    %v6308 = vpop.permute.xlu0 %6307
    %v6309 = vrot.slane %v6302, 4
    %v6310 = vrot.slane %v6304, 4
    %v6311 = vrot.slane %v6306, 4
    %v6312 = vrot.slane %v6308, 4
    %v6313 = vsel %vm126, %v6309, %v6310
    %v6314 = vsel %vm155, %v6302, %v6313
    %v6315 = vsel %vm155, %v6304, %v6310
    %v6316 = vsel %vm126, %v6311, %v6312
    %v6317 = vsel %vm155, %v6306, %v6316
    %v6318 = vsel %vm155, %v6308, %v6312
    %6323 = vst [vmem:[#allocation4 + $0x18] sm:$0xff] %v6314
    %6324 = vst [vmem:[#allocation4 + $0x20] sm:$0xf] %v6315
    %6325 = vst [vmem:[#allocation4 + $0x24] sm:$0xff] %v6317
    %6326 = vst [vmem:[#allocation4 + $0x2c] sm:$0xf] %v6318
    %6327 = vrot.lane.b32.xlu0 %v6271, 71
    %v6328 = vpop.permute.xlu0 %6327
    %6329 = vrot.lane.b32.xlu0 %v6272, 71
    %v6330 = vpop.permute.xlu0 %6329
    %6331 = vrot.lane.b32.xlu0 %v6273, 71
    %v6332 = vpop.permute.xlu0 %6331
    %6333 = vrot.lane.b32.xlu0 %v6274, 71
    %v6334 = vpop.permute.xlu0 %6333
    %v6335 = vrot.slane %v6328, 4
    %v6336 = vrot.slane %v6330, 4
    %v6337 = vrot.slane %v6332, 4
    %v6338 = vrot.slane %v6334, 4
    %v6339 = vsel %vm126, %v6335, %v6336
    %v6340 = vsel %vm182, %v6328, %v6339
    %v6341 = vsel %vm182, %v6330, %v6336
    %v6342 = vsel %vm126, %v6337, %v6338
    %v6343 = vsel %vm182, %v6332, %v6342
    %v6344 = vsel %vm182, %v6334, %v6338
    %6349 = vst [vmem:[#allocation4 + $0x30] sm:$0xff] %v6340
    %6350 = vst [vmem:[#allocation4 + $0x38] sm:$0xf] %v6341
    %6351 = vst [vmem:[#allocation4 + $0x3c] sm:$0xff] %v6343
    %6352 = vst [vmem:[#allocation4 + $0x44] sm:$0xf] %v6344
    %6353 = vrot.lane.b32.xlu0 %v6232, 110
    %v6354 = vpop.permute.xlu0 %6353
    %6355 = vrot.lane.b32.xlu0 %v6233, 110
    %v6356 = vpop.permute.xlu0 %6355
    %6357 = vrot.lane.b32.xlu0 %v6234, 110
    %v6358 = vpop.permute.xlu0 %6357
    %6359 = vrot.lane.b32.xlu0 %v6235, 110
    %v6360 = vpop.permute.xlu0 %6359
    %v6361 = vsel %vm204, %v6354, %v6356
    %v6362 = vsel %vm204, %v6356, %v6358
    %v6363 = vsel %vm204, %v6358, %v6360
    %v6365 = vsel %vm85, %v6232, %v6361
    %v6367 = vsel %vm85, %v6233, %v6362
    %v6369 = vsel %vm85, %v6234, %v6363
    %v6371 = vsel %vm85, %v6235, %v6360
    %v6376 = vunpack.c.l.b16 %v6365
    %v6377 = vunpack.c.l.b16 %v6367
    %v6378 = vunpack.c.l.b16 %v6369
    %v6379 = vunpack.c.l.b16 %v6371
    %v6380 = vunpack.c.h.b16 %v6365
    %v6381 = vunpack.c.h.b16 %v6367
    %v6382 = vunpack.c.h.b16 %v6369
    %v6383 = vunpack.c.h.b16 %v6371
    %v6384 = vpack.c.b16 %v6377, %v6376
    %v6385 = vpack.c.b16 %v6379, %v6378
    %v6386 = vpack.c.b16 %v6381, %v6380
    %v6387 = vpack.c.b16 %v6383, %v6382
    %6388 = vrot.lane.b32.xlu0 %v6384, 69
    %v6389 = vpop.permute.xlu0 %6388
    %6390 = vrot.lane.b32.xlu0 %v6385, 69
    %v6391 = vpop.permute.xlu0 %6390
    %6392 = vrot.lane.b32.xlu0 %v6386, 69
    %v6393 = vpop.permute.xlu0 %6392
    %6394 = vrot.lane.b32.xlu0 %v6387, 69
    %v6395 = vpop.permute.xlu0 %6394
    %v6396 = vrot.slane %v6389, 4
    %v6397 = vrot.slane %v6391, 4
    %v6398 = vrot.slane %v6393, 4
    %v6399 = vrot.slane %v6395, 4
    %v6400 = vsel %vm126, %v6396, %v6397
    %v6401 = vsel %vm245, %v6389, %v6400
    %v6402 = vsel %vm245, %v6391, %v6397
    %v6403 = vsel %vm126, %v6398, %v6399
    %v6404 = vsel %vm245, %v6393, %v6403
    %v6405 = vsel %vm245, %v6395, %v6399
    %6410 = vst [vmem:[#allocation4 + $0x48] sm:$0xff] %v6401
    %6411 = vst [vmem:[#allocation4 + $0x50] sm:$0xf] %v6402
    %6412 = vst [vmem:[#allocation4 + $0x54] sm:$0xff] %v6404
    %6413 = vst [vmem:[#allocation4 + $0x5c] sm:$0xf] %v6405
    %6414 = vrot.lane.b32.xlu0 %v6271, 50
    %v6415 = vpop.permute.xlu0 %6414
    %6416 = vrot.lane.b32.xlu0 %v6272, 50
    %v6417 = vpop.permute.xlu0 %6416
    %6418 = vrot.lane.b32.xlu0 %v6273, 50
    %v6419 = vpop.permute.xlu0 %6418
    %6420 = vrot.lane.b32.xlu0 %v6274, 50
    %v6421 = vpop.permute.xlu0 %6420
    %v6422 = vrot.slane %v6415, 4
    %v6423 = vrot.slane %v6417, 4
    %v6424 = vrot.slane %v6419, 4
    %v6425 = vrot.slane %v6421, 4
    %v6426 = vsel %vm126, %v6422, %v6423
    %v6427 = vsel %vm272, %v6415, %v6426
    %v6428 = vsel %vm272, %v6417, %v6423
    %v6429 = vsel %vm126, %v6424, %v6425
    %v6430 = vsel %vm272, %v6419, %v6429
    %v6431 = vsel %vm272, %v6421, %v6425
    %6436 = vst [vmem:[#allocation4 + $0x60] sm:$0xff] %v6427
    %6437 = vst [vmem:[#allocation4 + $0x68] sm:$0xf] %v6428
    %6438 = vst [vmem:[#allocation4 + $0x6c] sm:$0xff] %v6430
    %6439 = vst [vmem:[#allocation4 + $0x74] sm:$0xf] %v6431
    %6440 = vrot.lane.b32.xlu0 %v6271, 48
    %v6441 = vpop.permute.xlu0 %6440
    %6442 = vrot.lane.b32.xlu0 %v6272, 48
    %v6443 = vpop.permute.xlu0 %6442
    %6444 = vrot.lane.b32.xlu0 %v6273, 48
    %v6445 = vpop.permute.xlu0 %6444
    %6446 = vrot.lane.b32.xlu0 %v6274, 48
    %v6447 = vpop.permute.xlu0 %6446
    %v6448 = vrot.slane %v6441, 4
    %v6449 = vrot.slane %v6443, 4
    %v6450 = vrot.slane %v6445, 4
    %v6451 = vrot.slane %v6447, 4
    %v6452 = vsel %vm126, %v6448, %v6449
    %v6453 = vsel %vm299, %v6441, %v6452
    %v6454 = vsel %vm299, %v6443, %v6449
    %v6455 = vsel %vm126, %v6450, %v6451
    %v6456 = vsel %vm299, %v6445, %v6455
    %v6457 = vsel %vm299, %v6447, %v6451
    %6462 = vst [vmem:[#allocation4 + $0x78] sm:$0xff] %v6453
    %6463 = vst [vmem:[#allocation4 + $0x80] sm:$0xf] %v6454
    %6464 = vst [vmem:[#allocation4 + $0x84] sm:$0xff] %v6456
    %6465 = vst [vmem:[#allocation4 + $0x8c] sm:$0xf] %v6457
    %6466 = vrot.lane.b32.xlu0 %v6271, 46
    %v6467 = vpop.permute.xlu0 %6466
    %6468 = vrot.lane.b32.xlu0 %v6272, 46
    %v6469 = vpop.permute.xlu0 %6468
    %6470 = vrot.lane.b32.xlu0 %v6273, 46
    %v6471 = vpop.permute.xlu0 %6470
    %6472 = vrot.lane.b32.xlu0 %v6274, 46
    %v6473 = vpop.permute.xlu0 %6472
    %v6474 = vrot.slane %v6467, 4
    %v6475 = vrot.slane %v6469, 4
    %v6476 = vrot.slane %v6471, 4
    %v6477 = vrot.slane %v6473, 4
    %v6478 = vsel %vm126, %v6474, %v6475
    %v6479 = vsel %vm326, %v6467, %v6478
    %v6480 = vsel %vm326, %v6469, %v6475
    %v6481 = vsel %vm126, %v6476, %v6477
    %v6482 = vsel %vm326, %v6471, %v6481
    %v6483 = vsel %vm326, %v6473, %v6477
    %6488 = vst [vmem:[#allocation4 + $0x90] sm:$0xff] %v6479
    %6489 = vst [vmem:[#allocation4 + $0x98] sm:$0xf] %v6480
    %6490 = vst [vmem:[#allocation4 + $0x9c] sm:$0xff] %v6482
    %6491 = vst [vmem:[#allocation4 + $0xa4] sm:$0xf] %v6483
    %6492 = vrot.lane.b32.xlu0 %v6271, 27
    %v6493 = vpop.permute.xlu0 %6492
    %6494 = vrot.lane.b32.xlu0 %v6272, 27
    %v6495 = vpop.permute.xlu0 %6494
    %6496 = vrot.lane.b32.xlu0 %v6273, 27
    %v6497 = vpop.permute.xlu0 %6496
    %6498 = vrot.lane.b32.xlu0 %v6274, 27
    %v6499 = vpop.permute.xlu0 %6498
    %v6500 = vrot.slane %v6493, 4
    %v6501 = vrot.slane %v6495, 4
    %v6502 = vrot.slane %v6497, 4
    %v6503 = vrot.slane %v6499, 4
    %v6504 = vsel %vm126, %v6500, %v6501
    %v6505 = vsel %vm353, %v6493, %v6504
    %v6506 = vsel %vm353, %v6495, %v6501
    %v6507 = vsel %vm126, %v6502, %v6503
    %v6508 = vsel %vm353, %v6497, %v6507
    %v6509 = vsel %vm353, %v6499, %v6503
    %6514 = vst [vmem:[#allocation4 + $0xa8] sm:$0xff] %v6505
    %6515 = vst [vmem:[#allocation4 + $0xb0] sm:$0xf] %v6506
    %6516 = vst [vmem:[#allocation4 + $0xb4] sm:$0xff] %v6508
    %6517 = vst [vmem:[#allocation4 + $0xbc] sm:$0xf] %v6509
    %6518 = vrot.lane.b32.xlu0 %v6271, 25
    %v6519 = vpop.permute.xlu0 %6518
    %6520 = vrot.lane.b32.xlu0 %v6272, 25
    %v6521 = vpop.permute.xlu0 %6520
    %6522 = vrot.lane.b32.xlu0 %v6273, 25
    %v6523 = vpop.permute.xlu0 %6522
    %6524 = vrot.lane.b32.xlu0 %v6274, 25
    %v6525 = vpop.permute.xlu0 %6524
    %v6526 = vrot.slane %v6519, 4
    %v6527 = vrot.slane %v6521, 4
    %v6528 = vrot.slane %v6523, 4
    %v6529 = vrot.slane %v6525, 4
    %v6530 = vsel %vm126, %v6526, %v6527
    %v6531 = vsel %vm380, %v6519, %v6530
    %v6532 = vsel %vm380, %v6521, %v6527
    %v6533 = vsel %vm126, %v6528, %v6529
    %v6534 = vsel %vm380, %v6523, %v6533
    %v6535 = vsel %vm380, %v6525, %v6529
    %6540 = vst [vmem:[#allocation4 + $0xc0] sm:$0xff] %v6531
    %6541 = vst [vmem:[#allocation4 + $0xc8] sm:$0xf] %v6532
    %6542 = vst [vmem:[#allocation4 + $0xcc] sm:$0xff] %v6534
    %6543 = vst [vmem:[#allocation4 + $0xd4] sm:$0xf] %v6535
    %6544 = vrot.lane.b32.xlu0 %v6271, 23
    %v6545 = vpop.permute.xlu0 %6544
    %6546 = vrot.lane.b32.xlu0 %v6272, 23
    %v6547 = vpop.permute.xlu0 %6546
    %6548 = vrot.lane.b32.xlu0 %v6273, 23
    %v6549 = vpop.permute.xlu0 %6548
    %6550 = vrot.lane.b32.xlu0 %v6274, 23
    %v6551 = vpop.permute.xlu0 %6550
    %v6552 = vrot.slane %v6545, 4
    %v6553 = vrot.slane %v6547, 4
    %v6554 = vrot.slane %v6549, 4
    %v6555 = vrot.slane %v6551, 4
    %v6556 = vsel %vm126, %v6552, %v6553
    %v6557 = vsel %vm407, %v6545, %v6556
    %v6558 = vsel %vm407, %v6547, %v6553
    %v6559 = vsel %vm126, %v6554, %v6555
    %v6560 = vsel %vm407, %v6549, %v6559
    %v6561 = vsel %vm407, %v6551, %v6555
    %6566 = vst [vmem:[#allocation4 + $0xd8] sm:$0xff] %v6557
    %6567 = vst [vmem:[#allocation4 + $0xe0] sm:$0xf] %v6558
    %6568 = vst [vmem:[#allocation4 + $0xe4] sm:$0xff] %v6560
    %6569 = vst [vmem:[#allocation4 + $0xec] sm:$0xf] %v6561
    %6570 = vrot.lane.b32.xlu0 %v6384, 21
    %v6571 = vpop.permute.xlu0 %6570
    %6572 = vrot.lane.b32.xlu0 %v6385, 21
    %v6573 = vpop.permute.xlu0 %6572
    %6574 = vrot.lane.b32.xlu0 %v6386, 21
    %v6575 = vpop.permute.xlu0 %6574
    %6576 = vrot.lane.b32.xlu0 %v6387, 21
    %v6577 = vpop.permute.xlu0 %6576
    %v6578 = vrot.slane %v6571, 4
    %v6579 = vrot.slane %v6573, 4
    %v6580 = vrot.slane %v6575, 4
    %v6581 = vrot.slane %v6577, 4
    %v6582 = vsel %vm126, %v6578, %v6579
    %v6583 = vsel %vm434, %v6571, %v6582
    %v6584 = vsel %vm434, %v6573, %v6579
    %v6585 = vsel %vm126, %v6580, %v6581
    %v6586 = vsel %vm434, %v6575, %v6585
    %v6587 = vsel %vm434, %v6577, %v6581
    %6592 = vst [vmem:[#allocation4 + $0xf0] sm:$0xff] %v6583
    %6593 = vst [vmem:[#allocation4 + $0xf8] sm:$0xf] %v6584
    %6594 = vst [vmem:[#allocation4 + $0xfc] sm:$0xff] %v6586
    %6595 = vst [vmem:[#allocation4 + $0x104] sm:$0xf] %v6587
    %6596 = vrot.lane.b32.xlu0 %v6271, 2
    %v6597 = vpop.permute.xlu0 %6596
    %6598 = vrot.lane.b32.xlu0 %v6272, 2
    %v6599 = vpop.permute.xlu0 %6598
    %6600 = vrot.lane.b32.xlu0 %v6273, 2
    %v6601 = vpop.permute.xlu0 %6600
    %6602 = vrot.lane.b32.xlu0 %v6274, 2
    %v6603 = vpop.permute.xlu0 %6602
    %v6604 = vrot.slane %v6597, 4
    %v6605 = vrot.slane %v6599, 4
    %v6606 = vrot.slane %v6601, 4
    %v6607 = vrot.slane %v6603, 4
    %v6608 = vsel %vm126, %v6604, %v6605
    %v6609 = vsel %vm461, %v6597, %v6608
    %v6610 = vsel %vm461, %v6599, %v6605
    %v6611 = vsel %vm126, %v6606, %v6607
    %v6612 = vsel %vm461, %v6601, %v6611
    %v6613 = vsel %vm461, %v6603, %v6607
    %6618 = vst [vmem:[#allocation4 + $0x108] sm:$0xff] %v6609
    %6619 = vst [vmem:[#allocation4 + $0x110] sm:$0xf] %v6610
    %6620 = vst [vmem:[#allocation4 + $0x114] sm:$0xff] %v6612
    %6621 = vst [vmem:[#allocation4 + $0x11c] sm:$0xf] %v6613
    %v6623 = vunpack.c.l.b16 %v6223
    %v6624 = vpack.c.b16 %v6623, %v6623
    %6625 = vrot.lane.b32.xlu0 %v6624, 127
    %v6626 = vpop.permute.xlu0 %6625
    %v6627 = vsel %vm81, %v6243, %v6626
    %v6629 = vsel %vm85, %v6235, %v6627
    %v6631 = vunpack.c.l.b16 %v6629
    %v6632 = vunpack.c.h.b16 %v6629
    %v6633 = vpack.c.b16 %v6265, %v6264
    %v6634 = vpack.c.b16 %v6631, %v6631
    %v6635 = vpack.c.b16 %v6269, %v6268
    %v6636 = vpack.c.b16 %v6632, %v6632
    %6641 = vst [vmem:[#allocation4 + $0x120] sm:$0xff] %v6633
    %6642 = vst [vmem:[#allocation4 + $0x128] sm:$0xf] %v6634
    %6643 = vst [vmem:[#allocation4 + $0x12c] sm:$0xff] %v6635
    %6644 = vst [vmem:[#allocation4 + $0x134] sm:$0xf] %v6636
    %6645 = vrot.lane.b32.xlu0 %v6233, 126
    %v6646 = vpop.permute.xlu0 %6645
    %6647 = vrot.lane.b32.xlu0 %v6234, 126
    %v6648 = vpop.permute.xlu0 %6647
    %6649 = vrot.lane.b32.xlu0 %v6235, 126
    %v6650 = vpop.permute.xlu0 %6649
    %6651 = vrot.lane.b32.xlu0 %v6624, 126
    %v6652 = vpop.permute.xlu0 %6651
    %v6653 = vsel %vm506, %v6646, %v6648
    %v6654 = vsel %vm506, %v6648, %v6650
    %v6655 = vsel %vm506, %v6650, %v6652
    %6656 = vrot.lane.b32.xlu0 %v6233, 125
    %v6657 = vpop.permute.xlu0 %6656
    %6658 = vrot.lane.b32.xlu0 %v6234, 125
    %v6659 = vpop.permute.xlu0 %6658
    %6660 = vrot.lane.b32.xlu0 %v6235, 125
    %v6661 = vpop.permute.xlu0 %6660
    %6662 = vrot.lane.b32.xlu0 %v6624, 125
    %v6663 = vpop.permute.xlu0 %6662
    %v6664 = vsel %vm518, %v6657, %v6659
    %v6665 = vsel %vm518, %v6659, %v6661
    %v6666 = vsel %vm518, %v6661, %v6663
    %v6669 = vsel %vm85, %v6653, %v6664
    %v6672 = vsel %vm85, %v6654, %v6665
    %v6675 = vsel %vm85, %v6655, %v6666
    %v6679 = vunpack.c.l.b16 %v6669
    %v6680 = vunpack.c.l.b16 %v6672
    %v6681 = vunpack.c.l.b16 %v6675
    %v6682 = vunpack.c.h.b16 %v6669
    %v6683 = vunpack.c.h.b16 %v6672
    %v6684 = vunpack.c.h.b16 %v6675
    %v6685 = vpack.c.b16 %v6680, %v6679
    %v6686 = vpack.c.b16 %v6681, %v6681
    %v6687 = vpack.c.b16 %v6683, %v6682
    %v6688 = vpack.c.b16 %v6684, %v6684
    %6693 = vst [vmem:[#allocation4 + $0x138] sm:$0xff] %v6685
    %6694 = vst [vmem:[#allocation4 + $0x140] sm:$0xf] %v6686
    %6695 = vst [vmem:[#allocation4 + $0x144] sm:$0xff] %v6687
    %6696 = vst [vmem:[#allocation4 + $0x14c] sm:$0xf] %v6688
    %v6699 = vunpack.c.l.b16 %v6224
    %v6700 = vunpack.c.h.b16 %v6224
    %v6701 = vunpack.c.l.b16 %v6225
    %v6702 = vunpack.c.h.b16 %v6225
    %v6703 = vpack.c.b16 %v6699, %v6699
    %v6704 = vpack.c.b16 %v6700, %v6700
    %v6705 = vpack.c.b16 %v6701, %v6701
    %v6706 = vpack.c.b16 %v6702, %v6702
    %6707 = vrot.lane.b32.xlu0 %v6703, 127
    %v6708 = vpop.permute.xlu0 %6707
    %6709 = vrot.lane.b32.xlu0 %v6704, 127
    %v6710 = vpop.permute.xlu0 %6709
    %6711 = vrot.lane.b32.xlu0 %v6705, 127
    %v6712 = vpop.permute.xlu0 %6711
    %6713 = vrot.lane.b32.xlu0 %v6706, 127
    %v6714 = vpop.permute.xlu0 %6713
    %v6715 = vsel %vm81, %v6708, %v6710
    %v6716 = vsel %vm81, %v6710, %v6712
    %v6717 = vsel %vm81, %v6712, %v6714
    %v6720 = vsel %vm85, %v6703, %v6715
    %v6723 = vsel %vm85, %v6704, %v6716
    %v6726 = vsel %vm85, %v6705, %v6717
    %v6729 = vsel %vm85, %v6706, %v6714
    %v6734 = vunpack.c.l.b16 %v6720
    %v6735 = vunpack.c.l.b16 %v6723
    %v6736 = vunpack.c.l.b16 %v6726
    %v6737 = vunpack.c.l.b16 %v6729
    %v6738 = vunpack.c.h.b16 %v6720
    %v6739 = vunpack.c.h.b16 %v6723
    %v6740 = vunpack.c.h.b16 %v6726
    %v6741 = vunpack.c.h.b16 %v6729
    %v6742 = vpack.c.b16 %v6735, %v6734
    %v6743 = vpack.c.b16 %v6737, %v6736
    %v6744 = vpack.c.b16 %v6739, %v6738
    %v6745 = vpack.c.b16 %v6741, %v6740
    %6746 = vrot.lane.b32.xlu0 %v6742, 107
    %v6747 = vpop.permute.xlu0 %6746
    %6748 = vrot.lane.b32.xlu0 %v6743, 107
    %v6749 = vpop.permute.xlu0 %6748
    %6750 = vrot.lane.b32.xlu0 %v6744, 107
    %v6751 = vpop.permute.xlu0 %6750
    %6752 = vrot.lane.b32.xlu0 %v6745, 107
    %v6753 = vpop.permute.xlu0 %6752
    %v6754 = vrot.slane %v6747, 4
    %v6755 = vrot.slane %v6749, 4
    %v6756 = vrot.slane %v6751, 4
    %v6757 = vrot.slane %v6753, 4
    %v6758 = vsel %vm126, %v6754, %v6755
    %v6759 = vsel %vm614, %v6747, %v6758
    %v6760 = vsel %vm614, %v6749, %v6755
    %v6761 = vsel %vm126, %v6756, %v6757
    %v6762 = vsel %vm614, %v6751, %v6761
    %v6763 = vsel %vm614, %v6753, %v6757
    %6768 = vst [vmem:[#allocation4 + $0x150] sm:$0xff] %v6759
    %6769 = vst [vmem:[#allocation4 + $0x158] sm:$0xf] %v6760
    %6770 = vst [vmem:[#allocation4 + $0x15c] sm:$0xff] %v6762
    %6771 = vst [vmem:[#allocation4 + $0x164] sm:$0xf] %v6763
    %6772 = vrot.lane.b32.xlu0 %v6742, 105
    %v6773 = vpop.permute.xlu0 %6772
    %6774 = vrot.lane.b32.xlu0 %v6743, 105
    %v6775 = vpop.permute.xlu0 %6774
    %6776 = vrot.lane.b32.xlu0 %v6744, 105
    %v6777 = vpop.permute.xlu0 %6776
    %6778 = vrot.lane.b32.xlu0 %v6745, 105
    %v6779 = vpop.permute.xlu0 %6778
    %v6780 = vrot.slane %v6773, 4
    %v6781 = vrot.slane %v6775, 4
    %v6782 = vrot.slane %v6777, 4
    %v6783 = vrot.slane %v6779, 4
    %v6784 = vsel %vm126, %v6780, %v6781
    %v6785 = vsel %vm641, %v6773, %v6784
    %v6786 = vsel %vm641, %v6775, %v6781
    %v6787 = vsel %vm126, %v6782, %v6783
    %v6788 = vsel %vm641, %v6777, %v6787
    %v6789 = vsel %vm641, %v6779, %v6783
    %6794 = vst [vmem:[#allocation4 + $0x168] sm:$0xff] %v6785
    %6795 = vst [vmem:[#allocation4 + $0x170] sm:$0xf] %v6786
    %6796 = vst [vmem:[#allocation4 + $0x174] sm:$0xff] %v6788
    %6797 = vst [vmem:[#allocation4 + $0x17c] sm:$0xf] %v6789
    %6798 = vrot.lane.b32.xlu0 %v6742, 103
    %v6799 = vpop.permute.xlu0 %6798
    %6800 = vrot.lane.b32.xlu0 %v6743, 103
    %v6801 = vpop.permute.xlu0 %6800
    %6802 = vrot.lane.b32.xlu0 %v6744, 103
    %v6803 = vpop.permute.xlu0 %6802
    %6804 = vrot.lane.b32.xlu0 %v6745, 103
    %v6805 = vpop.permute.xlu0 %6804
    %v6806 = vrot.slane %v6799, 4
    %v6807 = vrot.slane %v6801, 4
    %v6808 = vrot.slane %v6803, 4
    %v6809 = vrot.slane %v6805, 4
    %v6810 = vsel %vm126, %v6806, %v6807
    %v6811 = vsel %vm668, %v6799, %v6810
    %v6812 = vsel %vm668, %v6801, %v6807
    %v6813 = vsel %vm126, %v6808, %v6809
    %v6814 = vsel %vm668, %v6803, %v6813
    %v6815 = vsel %vm668, %v6805, %v6809
    %6820 = vst [vmem:[#allocation4 + $0x180] sm:$0xff] %v6811
    %6821 = vst [vmem:[#allocation4 + $0x188] sm:$0xf] %v6812
    %6822 = vst [vmem:[#allocation4 + $0x18c] sm:$0xff] %v6814
    %6823 = vst [vmem:[#allocation4 + $0x194] sm:$0xf] %v6815
    %6824 = vrot.lane.b32.xlu0 %v6703, 110
    %v6825 = vpop.permute.xlu0 %6824
    %6826 = vrot.lane.b32.xlu0 %v6704, 110
    %v6827 = vpop.permute.xlu0 %6826
    %6828 = vrot.lane.b32.xlu0 %v6705, 110
    %v6829 = vpop.permute.xlu0 %6828
    %6830 = vrot.lane.b32.xlu0 %v6706, 110
    %v6831 = vpop.permute.xlu0 %6830
    %v6832 = vsel %vm204, %v6825, %v6827
    %v6833 = vsel %vm204, %v6827, %v6829
    %v6834 = vsel %vm204, %v6829, %v6831
    %v6836 = vsel %vm85, %v6703, %v6832
    %v6838 = vsel %vm85, %v6704, %v6833
    %v6840 = vsel %vm85, %v6705, %v6834
    %v6842 = vsel %vm85, %v6706, %v6831
    %v6847 = vunpack.c.l.b16 %v6836
    %v6848 = vunpack.c.l.b16 %v6838
    %v6849 = vunpack.c.l.b16 %v6840
    %v6850 = vunpack.c.l.b16 %v6842
    %v6851 = vunpack.c.h.b16 %v6836
    %v6852 = vunpack.c.h.b16 %v6838
    %v6853 = vunpack.c.h.b16 %v6840
    %v6854 = vunpack.c.h.b16 %v6842
    %v6855 = vpack.c.b16 %v6848, %v6847
    %v6856 = vpack.c.b16 %v6850, %v6849
    %v6857 = vpack.c.b16 %v6852, %v6851
    %v6858 = vpack.c.b16 %v6854, %v6853
    %6859 = vrot.lane.b32.xlu0 %v6855, 101
    %v6860 = vpop.permute.xlu0 %6859
    %6861 = vrot.lane.b32.xlu0 %v6856, 101
    %v6862 = vpop.permute.xlu0 %6861
    %6863 = vrot.lane.b32.xlu0 %v6857, 101
    %v6864 = vpop.permute.xlu0 %6863
    %6865 = vrot.lane.b32.xlu0 %v6858, 101
    %v6866 = vpop.permute.xlu0 %6865
    %v6867 = vrot.slane %v6860, 4
    %v6868 = vrot.slane %v6862, 4
    %v6869 = vrot.slane %v6864, 4
    %v6870 = vrot.slane %v6866, 4
    %v6871 = vsel %vm126, %v6867, %v6868
    %v6872 = vsel %vm730, %v6860, %v6871
    %v6873 = vsel %vm730, %v6862, %v6868
    %v6874 = vsel %vm126, %v6869, %v6870
    %v6875 = vsel %vm730, %v6864, %v6874
    %v6876 = vsel %vm730, %v6866, %v6870
    %6881 = vst [vmem:[#allocation4 + $0x198] sm:$0xff] %v6872
    %6882 = vst [vmem:[#allocation4 + $0x1a0] sm:$0xf] %v6873
    %6883 = vst [vmem:[#allocation4 + $0x1a4] sm:$0xff] %v6875
    %6884 = vst [vmem:[#allocation4 + $0x1ac] sm:$0xf] %v6876
    %6885 = vrot.lane.b32.xlu0 %v6742, 82
    %v6886 = vpop.permute.xlu0 %6885
    %6887 = vrot.lane.b32.xlu0 %v6743, 82
    %v6888 = vpop.permute.xlu0 %6887
    %6889 = vrot.lane.b32.xlu0 %v6744, 82
    %v6890 = vpop.permute.xlu0 %6889
    %6891 = vrot.lane.b32.xlu0 %v6745, 82
    %v6892 = vpop.permute.xlu0 %6891
    %v6893 = vrot.slane %v6886, 4
    %v6894 = vrot.slane %v6888, 4
    %v6895 = vrot.slane %v6890, 4
    %v6896 = vrot.slane %v6892, 4
    %v6897 = vsel %vm126, %v6893, %v6894
    %v6898 = vsel %vm757, %v6886, %v6897
    %v6899 = vsel %vm757, %v6888, %v6894
    %v6900 = vsel %vm126, %v6895, %v6896
    %v6901 = vsel %vm757, %v6890, %v6900
    %v6902 = vsel %vm757, %v6892, %v6896
    %6907 = vst [vmem:[#allocation4 + $0x1b0] sm:$0xff] %v6898
    %6908 = vst [vmem:[#allocation4 + $0x1b8] sm:$0xf] %v6899
    %6909 = vst [vmem:[#allocation4 + $0x1bc] sm:$0xff] %v6901
    %6910 = vst [vmem:[#allocation4 + $0x1c4] sm:$0xf] %v6902
    %6911 = vrot.lane.b32.xlu0 %v6742, 80
    %v6912 = vpop.permute.xlu0 %6911
    %6913 = vrot.lane.b32.xlu0 %v6743, 80
    %v6914 = vpop.permute.xlu0 %6913
    %6915 = vrot.lane.b32.xlu0 %v6744, 80
    %v6916 = vpop.permute.xlu0 %6915
    %6917 = vrot.lane.b32.xlu0 %v6745, 80
    %v6918 = vpop.permute.xlu0 %6917
    %v6919 = vrot.slane %v6912, 4
    %v6920 = vrot.slane %v6914, 4
    %v6921 = vrot.slane %v6916, 4
    %v6922 = vrot.slane %v6918, 4
    %v6923 = vsel %vm126, %v6919, %v6920
    %v6924 = vsel %vm784, %v6912, %v6923
    %v6925 = vsel %vm784, %v6914, %v6920
    %v6926 = vsel %vm126, %v6921, %v6922
    %v6927 = vsel %vm784, %v6916, %v6926
    %v6928 = vsel %vm784, %v6918, %v6922
    %6933 = vst [vmem:[#allocation4 + $0x1c8] sm:$0xff] %v6924
    %6934 = vst [vmem:[#allocation4 + $0x1d0] sm:$0xf] %v6925
    %6935 = vst [vmem:[#allocation4 + $0x1d4] sm:$0xff] %v6927
    %6936 = vst [vmem:[#allocation4 + $0x1dc] sm:$0xf] %v6928
    %6937 = vrot.lane.b32.xlu0 %v6742, 78
    %v6938 = vpop.permute.xlu0 %6937
    %6939 = vrot.lane.b32.xlu0 %v6743, 78
    %v6940 = vpop.permute.xlu0 %6939
    %6941 = vrot.lane.b32.xlu0 %v6744, 78
    %v6942 = vpop.permute.xlu0 %6941
    %6943 = vrot.lane.b32.xlu0 %v6745, 78
    %v6944 = vpop.permute.xlu0 %6943
    %v6945 = vrot.slane %v6938, 4
    %v6946 = vrot.slane %v6940, 4
    %v6947 = vrot.slane %v6942, 4
    %v6948 = vrot.slane %v6944, 4
    %v6949 = vsel %vm126, %v6945, %v6946
    %v6950 = vsel %vm811, %v6938, %v6949
    %v6951 = vsel %vm811, %v6940, %v6946
    %v6952 = vsel %vm126, %v6947, %v6948
    %v6953 = vsel %vm811, %v6942, %v6952
    %v6954 = vsel %vm811, %v6944, %v6948
    %6959 = vst [vmem:[#allocation4 + $0x1e0] sm:$0xff] %v6950
    %6960 = vst [vmem:[#allocation4 + $0x1e8] sm:$0xf] %v6951
    %6961 = vst [vmem:[#allocation4 + $0x1ec] sm:$0xff] %v6953
    %6962 = vst [vmem:[#allocation4 + $0x1f4] sm:$0xf] %v6954
    %6963 = vrot.lane.b32.xlu0 %v6742, 59
    %v6964 = vpop.permute.xlu0 %6963
    %6965 = vrot.lane.b32.xlu0 %v6743, 59
    %v6966 = vpop.permute.xlu0 %6965
    %6967 = vrot.lane.b32.xlu0 %v6744, 59
    %v6968 = vpop.permute.xlu0 %6967
    %6969 = vrot.lane.b32.xlu0 %v6745, 59
    %v6970 = vpop.permute.xlu0 %6969
    %v6971 = vrot.slane %v6964, 4
    %v6972 = vrot.slane %v6966, 4
    %v6973 = vrot.slane %v6968, 4
    %v6974 = vrot.slane %v6970, 4
    %v6975 = vsel %vm126, %v6971, %v6972
    %v6976 = vsel %vm838, %v6964, %v6975
    %v6977 = vsel %vm838, %v6966, %v6972
    %v6978 = vsel %vm126, %v6973, %v6974
    %v6979 = vsel %vm838, %v6968, %v6978
    %v6980 = vsel %vm838, %v6970, %v6974
    %6985 = vst [vmem:[#allocation4 + $0x1f8] sm:$0xff] %v6976
    %6986 = vst [vmem:[#allocation4 + $0x200] sm:$0xf] %v6977
    %6987 = vst [vmem:[#allocation4 + $0x204] sm:$0xff] %v6979
    %6988 = vst [vmem:[#allocation4 + $0x20c] sm:$0xf] %v6980
    %6989 = vrot.lane.b32.xlu0 %v6742, 57
    %v6990 = vpop.permute.xlu0 %6989
    %6991 = vrot.lane.b32.xlu0 %v6743, 57
    %v6992 = vpop.permute.xlu0 %6991
    %6993 = vrot.lane.b32.xlu0 %v6744, 57
    %v6994 = vpop.permute.xlu0 %6993
    %6995 = vrot.lane.b32.xlu0 %v6745, 57
    %v6996 = vpop.permute.xlu0 %6995
    %v6997 = vrot.slane %v6990, 4
    %v6998 = vrot.slane %v6992, 4
    %v6999 = vrot.slane %v6994, 4
    %v7000 = vrot.slane %v6996, 4
    %v7001 = vsel %vm126, %v6997, %v6998
    %v7002 = vsel %vm865, %v6990, %v7001
    %v7003 = vsel %vm865, %v6992, %v6998
    %v7004 = vsel %vm126, %v6999, %v7000
    %v7005 = vsel %vm865, %v6994, %v7004
    %v7006 = vsel %vm865, %v6996, %v7000
    %7011 = vst [vmem:[#allocation4 + $0x210] sm:$0xff] %v7002
    %7012 = vst [vmem:[#allocation4 + $0x218] sm:$0xf] %v7003
    %7013 = vst [vmem:[#allocation4 + $0x21c] sm:$0xff] %v7005
    %7014 = vst [vmem:[#allocation4 + $0x224] sm:$0xf] %v7006
    %7015 = vrot.lane.b32.xlu0 %v6742, 55
    %v7016 = vpop.permute.xlu0 %7015
    %7017 = vrot.lane.b32.xlu0 %v6743, 55
    %v7018 = vpop.permute.xlu0 %7017
    %7019 = vrot.lane.b32.xlu0 %v6744, 55
    %v7020 = vpop.permute.xlu0 %7019
    %7021 = vrot.lane.b32.xlu0 %v6745, 55
    %v7022 = vpop.permute.xlu0 %7021
    %v7023 = vrot.slane %v7016, 4
    %v7024 = vrot.slane %v7018, 4
    %v7025 = vrot.slane %v7020, 4
    %v7026 = vrot.slane %v7022, 4
    %v7027 = vsel %vm126, %v7023, %v7024
    %v7028 = vsel %vm892, %v7016, %v7027
    %v7029 = vsel %vm892, %v7018, %v7024
    %v7030 = vsel %vm126, %v7025, %v7026
    %v7031 = vsel %vm892, %v7020, %v7030
    %v7032 = vsel %vm892, %v7022, %v7026
    %7037 = vst [vmem:[#allocation4 + $0x228] sm:$0xff] %v7028
    %7038 = vst [vmem:[#allocation4 + $0x230] sm:$0xf] %v7029
    %7039 = vst [vmem:[#allocation4 + $0x234] sm:$0xff] %v7031
    %7040 = vst [vmem:[#allocation4 + $0x23c] sm:$0xf] %v7032
    %7041 = vrot.lane.b32.xlu0 %v6224, 53
    %v7042 = vpop.permute.xlu0 %7041
    %7043 = vrot.lane.b32.xlu0 %v6225, 53
    %v7044 = vpop.permute.xlu0 %7043
    %v7045 = vrot.slane %v7042, 4
    %v7046 = vrot.slane %v7044, 4
    %v7047 = vsel %vm126, %v7045, %v7046
    %v7048 = vsel %vm913, %v7042, %v7047
    %v7049 = vsel %vm913, %v7044, %v7046
    %7052 = vst [vmem:[#allocation4 + $0x240] sm:$0xff] %v7048
    %7053 = vst [vmem:[#allocation4 + $0x248] sm:$0xf] %v7049
    %s7054 = scalar_lea.vmem %s1, 64
    %v7055 = vld [vmem:[%s7054] sm:$0xff]
    %v7056 = vld [vmem:[%s7054 + $0x8] sm:$0xff]
    %v7057 = vld [vmem:[#allocation4] sm:$0xff]
    %v7058 = vld [vmem:[#allocation4 + $0x8] sm:$0xf]
    %v7059 = vld [vmem:[#allocation4 + $0xc] sm:$0xff]
    %v7060 = vld [vmem:[#allocation4 + $0x14] sm:$0xf]
    %v7061 = vld [vmem:[#allocation4 + $0x18] sm:$0xff]
    %v7062 = vld [vmem:[#allocation4 + $0x20] sm:$0xf]
    %v7063 = vld [vmem:[#allocation4 + $0x24] sm:$0xff]
    %v7064 = vld [vmem:[#allocation4 + $0x2c] sm:$0xf]
    %v7065 = vld [vmem:[#allocation4 + $0x30] sm:$0xff]
    %v7066 = vld [vmem:[#allocation4 + $0x38] sm:$0xf]
    %v7067 = vld [vmem:[#allocation4 + $0x3c] sm:$0xff]
    %v7068 = vld [vmem:[#allocation4 + $0x44] sm:$0xf]
    %v7069 = vld [vmem:[#allocation4 + $0x48] sm:$0xff]
    %v7070 = vld [vmem:[#allocation4 + $0x50] sm:$0xf]
    %v7071 = vld [vmem:[#allocation4 + $0x54] sm:$0xff]
    %v7072 = vld [vmem:[#allocation4 + $0x5c] sm:$0xf]
    %v7073 = vld [vmem:[#allocation4 + $0x60] sm:$0xff]
    %v7074 = vld [vmem:[#allocation4 + $0x68] sm:$0xf]
    %v7075 = vld [vmem:[#allocation4 + $0x6c] sm:$0xff]
    %v7076 = vld [vmem:[#allocation4 + $0x74] sm:$0xf]
    %v7077 = vld [vmem:[#allocation4 + $0x78] sm:$0xff]
    %v7078 = vld [vmem:[#allocation4 + $0x80] sm:$0xf]
    %v7079 = vld [vmem:[#allocation4 + $0x84] sm:$0xff]
    %v7080 = vld [vmem:[#allocation4 + $0x8c] sm:$0xf]
    %v7081 = vld [vmem:[#allocation4 + $0x90] sm:$0xff]
    %v7082 = vld [vmem:[#allocation4 + $0x98] sm:$0xf]
    %v7083 = vld [vmem:[#allocation4 + $0x9c] sm:$0xff]
    %v7084 = vld [vmem:[#allocation4 + $0xa4] sm:$0xf]
    %v7085 = vld [vmem:[#allocation4 + $0xa8] sm:$0xff]
    %v7086 = vld [vmem:[#allocation4 + $0xb0] sm:$0xf]
    %v7087 = vld [vmem:[#allocation4 + $0xb4] sm:$0xff]
    %v7088 = vld [vmem:[#allocation4 + $0xbc] sm:$0xf]
    %v7089 = vld [vmem:[#allocation4 + $0xc0] sm:$0xff]
    %v7090 = vld [vmem:[#allocation4 + $0xc8] sm:$0xf]
    %v7091 = vld [vmem:[#allocation4 + $0xcc] sm:$0xff]
    %v7092 = vld [vmem:[#allocation4 + $0xd4] sm:$0xf]
    %v7093 = vld [vmem:[#allocation4 + $0xd8] sm:$0xff]
    %v7094 = vld [vmem:[#allocation4 + $0xe0] sm:$0xf]
    %v7095 = vld [vmem:[#allocation4 + $0xe4] sm:$0xff]
    %v7096 = vld [vmem:[#allocation4 + $0xec] sm:$0xf]
    %v7097 = vld [vmem:[#allocation4 + $0xf0] sm:$0xff]
    %v7098 = vld [vmem:[#allocation4 + $0xf8] sm:$0xf]
    %v7099 = vld [vmem:[#allocation4 + $0xfc] sm:$0xff]
    %v7100 = vld [vmem:[#allocation4 + $0x104] sm:$0xf]
    %v7101 = vld [vmem:[#allocation4 + $0x108] sm:$0xff]
    %v7102 = vld [vmem:[#allocation4 + $0x110] sm:$0xf]
    %v7103 = vld [vmem:[#allocation4 + $0x114] sm:$0xff]
    %v7104 = vld [vmem:[#allocation4 + $0x11c] sm:$0xf]
    %v7105 = vld [vmem:[#allocation4 + $0x120] sm:$0xff]
    %v7106 = vld [vmem:[#allocation4 + $0x128] sm:$0xf]
    %v7107 = vld [vmem:[#allocation4 + $0x12c] sm:$0xff]
    %v7108 = vld [vmem:[#allocation4 + $0x134] sm:$0xf]
    %v7109 = vld [vmem:[#allocation4 + $0x138] sm:$0xff]
    %v7110 = vld [vmem:[#allocation4 + $0x140] sm:$0xf]
    %v7111 = vld [vmem:[#allocation4 + $0x144] sm:$0xff]
    %v7112 = vld [vmem:[#allocation4 + $0x14c] sm:$0xf]
    %v7113 = vld [vmem:[#allocation4 + $0x150] sm:$0xff]
    %v7114 = vld [vmem:[#allocation4 + $0x158] sm:$0xf]
    %v7115 = vld [vmem:[#allocation4 + $0x15c] sm:$0xff]
    %v7116 = vld [vmem:[#allocation4 + $0x164] sm:$0xf]
    %v7117 = vld [vmem:[#allocation4 + $0x168] sm:$0xff]
    %v7118 = vld [vmem:[#allocation4 + $0x170] sm:$0xf]
    %v7119 = vld [vmem:[#allocation4 + $0x174] sm:$0xff]
    %v7120 = vld [vmem:[#allocation4 + $0x17c] sm:$0xf]
    %v7121 = vld [vmem:[#allocation4 + $0x180] sm:$0xff]
    %v7122 = vld [vmem:[#allocation4 + $0x188] sm:$0xf]
    %v7123 = vld [vmem:[#allocation4 + $0x18c] sm:$0xff]
    %v7124 = vld [vmem:[#allocation4 + $0x194] sm:$0xf]
    %v7125 = vld [vmem:[#allocation4 + $0x198] sm:$0xff]
    %v7126 = vld [vmem:[#allocation4 + $0x1a0] sm:$0xf]
    %v7127 = vld [vmem:[#allocation4 + $0x1a4] sm:$0xff]
    %v7128 = vld [vmem:[#allocation4 + $0x1ac] sm:$0xf]
    %v7129 = vld [vmem:[#allocation4 + $0x1b0] sm:$0xff]
    %v7130 = vld [vmem:[#allocation4 + $0x1b8] sm:$0xf]
    %v7131 = vld [vmem:[#allocation4 + $0x1bc] sm:$0xff]
    %v7132 = vld [vmem:[#allocation4 + $0x1c4] sm:$0xf]
    %v7133 = vld [vmem:[#allocation4 + $0x1c8] sm:$0xff]
    %v7134 = vld [vmem:[#allocation4 + $0x1d0] sm:$0xf]
    %v7135 = vld [vmem:[#allocation4 + $0x1d4] sm:$0xff]
    %v7136 = vld [vmem:[#allocation4 + $0x1dc] sm:$0xf]
    %v7137 = vld [vmem:[#allocation4 + $0x1e0] sm:$0xff]
    %v7138 = vld [vmem:[#allocation4 + $0x1e8] sm:$0xf]
    %v7139 = vld [vmem:[#allocation4 + $0x1ec] sm:$0xff]
    %v7140 = vld [vmem:[#allocation4 + $0x1f4] sm:$0xf]
    %v7141 = vld [vmem:[#allocation4 + $0x1f8] sm:$0xff]
    %v7142 = vld [vmem:[#allocation4 + $0x200] sm:$0xf]
    %v7143 = vld [vmem:[#allocation4 + $0x204] sm:$0xff]
    %v7144 = vld [vmem:[#allocation4 + $0x20c] sm:$0xf]
    %v7145 = vld [vmem:[#allocation4 + $0x210] sm:$0xff]
    %v7146 = vld [vmem:[#allocation4 + $0x218] sm:$0xf]
    %v7147 = vld [vmem:[#allocation4 + $0x21c] sm:$0xff]
    %v7148 = vld [vmem:[#allocation4 + $0x224] sm:$0xf]
    %v7149 = vld [vmem:[#allocation4 + $0x228] sm:$0xff]
    %v7150 = vld [vmem:[#allocation4 + $0x230] sm:$0xf]
    %v7151 = vld [vmem:[#allocation4 + $0x234] sm:$0xff]
    %v7152 = vld [vmem:[#allocation4 + $0x23c] sm:$0xf]
    %v7153 = vld [vmem:[#allocation4 + $0x240] sm:$0xff]
    %v7154 = vld [vmem:[#allocation4 + $0x248] sm:$0xf]
    %s7155 = scalar_lea.vmem [#allocation5], 32
    %v7156 = vld [vmem:[%s7155] sm:$0xff]
    %7158 = vset.pattern.permute.xlu0 0
    %7159 = vperm.xlu0 %7158, %v7156
    %v7160 = vpop.permute.xlu0 %7159
    %v7164 = vunpack.c.l.b16 %v7055
    %v7165 = vunpack.c.h.b16 %v7055
    %v7166 = vunpack.c.l.b16 %v7056
    %v7167 = vunpack.c.h.b16 %v7056
    %v7168 = vpack.c.b16 %v7164, %v7164
    %v7169 = vpack.c.b16 %v7165, %v7165
    %v7170 = vpack.c.b16 %v7166, %v7166
    %v7171 = vpack.c.b16 %v7167, %v7167
    %v7273 = vunpack.c.l.b16 %v7057
    %v7274 = vunpack.c.h.b16 %v7057
    %v7275 = vunpack.c.l.b16 %v7058
    %v7276 = vunpack.c.l.b16 %v7059
    %v7277 = vunpack.c.h.b16 %v7059
    %v7278 = vunpack.c.l.b16 %v7060
    %v7279 = vunpack.c.l.b16 %v7061
    %v7280 = vunpack.c.h.b16 %v7061
    %v7281 = vunpack.c.l.b16 %v7062
    %v7282 = vunpack.c.l.b16 %v7063
    %v7283 = vunpack.c.h.b16 %v7063
    %v7284 = vunpack.c.l.b16 %v7064
    %v7285 = vunpack.c.l.b16 %v7065
    %v7286 = vunpack.c.h.b16 %v7065
    %v7287 = vunpack.c.l.b16 %v7066
    %v7288 = vunpack.c.l.b16 %v7067
    %v7289 = vunpack.c.h.b16 %v7067
    %v7290 = vunpack.c.l.b16 %v7068
    %v7291 = vunpack.c.l.b16 %v7069
    %v7292 = vunpack.c.h.b16 %v7069
    %v7293 = vunpack.c.l.b16 %v7070
    %v7294 = vunpack.c.l.b16 %v7071
    %v7295 = vunpack.c.h.b16 %v7071
    %v7296 = vunpack.c.l.b16 %v7072
    %v7297 = vunpack.c.l.b16 %v7073
    %v7298 = vunpack.c.h.b16 %v7073
    %v7299 = vunpack.c.l.b16 %v7074
    %v7300 = vunpack.c.l.b16 %v7075
    %v7301 = vunpack.c.h.b16 %v7075
    %v7302 = vunpack.c.l.b16 %v7076
    %v7303 = vunpack.c.l.b16 %v7077
    %v7304 = vunpack.c.h.b16 %v7077
    %v7305 = vunpack.c.l.b16 %v7078
    %v7306 = vunpack.c.l.b16 %v7079
    %v7307 = vunpack.c.h.b16 %v7079
    %v7308 = vunpack.c.l.b16 %v7080
    %v7309 = vunpack.c.l.b16 %v7081
    %v7310 = vunpack.c.h.b16 %v7081
    %v7311 = vunpack.c.l.b16 %v7082
    %v7312 = vunpack.c.l.b16 %v7083
    %v7313 = vunpack.c.h.b16 %v7083
    %v7314 = vunpack.c.l.b16 %v7084
    %v7315 = vunpack.c.l.b16 %v7085
    %v7316 = vunpack.c.h.b16 %v7085
    %v7317 = vunpack.c.l.b16 %v7086
    %v7318 = vunpack.c.l.b16 %v7087
    %v7319 = vunpack.c.h.b16 %v7087
    %v7320 = vunpack.c.l.b16 %v7088
    %v7321 = vunpack.c.l.b16 %v7089
    %v7322 = vunpack.c.h.b16 %v7089
    %v7323 = vunpack.c.l.b16 %v7090
    %v7324 = vunpack.c.l.b16 %v7091
    %v7325 = vunpack.c.h.b16 %v7091
    %v7326 = vunpack.c.l.b16 %v7092
    %v7327 = vunpack.c.l.b16 %v7093
    %v7328 = vunpack.c.h.b16 %v7093
    %v7329 = vunpack.c.l.b16 %v7094
    %v7330 = vunpack.c.l.b16 %v7095
    %v7331 = vunpack.c.h.b16 %v7095
    %v7332 = vunpack.c.l.b16 %v7096
    %v7333 = vunpack.c.l.b16 %v7097
    %v7334 = vunpack.c.h.b16 %v7097
    %v7335 = vunpack.c.l.b16 %v7098
    %v7336 = vunpack.c.l.b16 %v7099
    %v7337 = vunpack.c.h.b16 %v7099
    %v7338 = vunpack.c.l.b16 %v7100
    %v7339 = vunpack.c.l.b16 %v7101
    %v7340 = vunpack.c.h.b16 %v7101
    %v7341 = vunpack.c.l.b16 %v7102
    %v7342 = vunpack.c.l.b16 %v7103
    %v7343 = vunpack.c.h.b16 %v7103
    %v7344 = vunpack.c.l.b16 %v7104
    %v7345 = vunpack.c.l.b16 %v7105
    %v7346 = vunpack.c.h.b16 %v7105
    %v7347 = vunpack.c.l.b16 %v7106
    %v7348 = vunpack.c.l.b16 %v7107
    %v7349 = vunpack.c.h.b16 %v7107
    %v7350 = vunpack.c.l.b16 %v7108
    %v7351 = vunpack.c.l.b16 %v7109
    %v7352 = vunpack.c.h.b16 %v7109
    %v7353 = vunpack.c.l.b16 %v7110
    %v7354 = vunpack.c.l.b16 %v7111
    %v7355 = vunpack.c.h.b16 %v7111
    %v7356 = vunpack.c.l.b16 %v7112
    %v7357 = vunpack.c.l.b16 %v7113
    %v7358 = vunpack.c.h.b16 %v7113
    %v7359 = vunpack.c.l.b16 %v7114
    %v7360 = vunpack.c.l.b16 %v7115
    %v7361 = vunpack.c.h.b16 %v7115
    %v7362 = vunpack.c.l.b16 %v7116
    %v7363 = vunpack.c.l.b16 %v7117
    %v7364 = vunpack.c.h.b16 %v7117
    %v7365 = vunpack.c.l.b16 %v7118
    %v7366 = vunpack.c.l.b16 %v7119
    %v7367 = vunpack.c.h.b16 %v7119
    %v7368 = vunpack.c.l.b16 %v7120
    %v7369 = vunpack.c.l.b16 %v7121
    %v7370 = vunpack.c.h.b16 %v7121
    %v7371 = vunpack.c.l.b16 %v7122
    %v7372 = vunpack.c.l.b16 %v7123
    %v7373 = vunpack.c.h.b16 %v7123
    %v7374 = vunpack.c.l.b16 %v7124
    %v7375 = vunpack.c.l.b16 %v7125
    %v7376 = vunpack.c.h.b16 %v7125
    %v7377 = vunpack.c.l.b16 %v7126
    %v7378 = vunpack.c.l.b16 %v7127
    %v7379 = vunpack.c.h.b16 %v7127
    %v7380 = vunpack.c.l.b16 %v7128
    %v7381 = vunpack.c.l.b16 %v7129
    %v7382 = vunpack.c.h.b16 %v7129
    %v7383 = vunpack.c.l.b16 %v7130
    %v7384 = vunpack.c.l.b16 %v7131
    %v7385 = vunpack.c.h.b16 %v7131
    %v7386 = vunpack.c.l.b16 %v7132
    %v7387 = vunpack.c.l.b16 %v7133
    %v7388 = vunpack.c.h.b16 %v7133
    %v7389 = vunpack.c.l.b16 %v7134
    %v7390 = vunpack.c.l.b16 %v7135
    %v7391 = vunpack.c.h.b16 %v7135
    %v7392 = vunpack.c.l.b16 %v7136
    %v7393 = vunpack.c.l.b16 %v7137
    %v7394 = vunpack.c.h.b16 %v7137
    %v7395 = vunpack.c.l.b16 %v7138
    %v7396 = vunpack.c.l.b16 %v7139
    %v7397 = vunpack.c.h.b16 %v7139
    %v7398 = vunpack.c.l.b16 %v7140
    %v7399 = vunpack.c.l.b16 %v7141
    %v7400 = vunpack.c.h.b16 %v7141
    %v7401 = vunpack.c.l.b16 %v7142
    %v7402 = vunpack.c.l.b16 %v7143
    %v7403 = vunpack.c.h.b16 %v7143
    %v7404 = vunpack.c.l.b16 %v7144
    %v7405 = vunpack.c.l.b16 %v7145
    %v7406 = vunpack.c.h.b16 %v7145
    %v7407 = vunpack.c.l.b16 %v7146
    %v7408 = vunpack.c.l.b16 %v7147
    %v7409 = vunpack.c.h.b16 %v7147
    %v7410 = vunpack.c.l.b16 %v7148
    %v7411 = vunpack.c.l.b16 %v7149
    %v7412 = vunpack.c.h.b16 %v7149
    %v7413 = vunpack.c.l.b16 %v7150
    %v7414 = vunpack.c.l.b16 %v7151
    %v7415 = vunpack.c.h.b16 %v7151
    %v7416 = vunpack.c.l.b16 %v7152
    %v7417 = vunpack.c.l.b16 %v7153
    %v7418 = vunpack.c.h.b16 %v7153
    %v7419 = vunpack.c.l.b16 %v7154
    %v7420 = vpack.c.b16 %v7276, %v7273
    %v7421 = vpack.c.b16 %v7277, %v7274
    %v7422 = vpack.c.b16 %v7278, %v7275
    %v7423 = vpack.c.b16 %v7282, %v7279
    %v7424 = vpack.c.b16 %v7283, %v7280
    %v7425 = vpack.c.b16 %v7284, %v7281
    %v7426 = vpack.c.b16 %v7288, %v7285
    %v7427 = vpack.c.b16 %v7289, %v7286
    %v7428 = vpack.c.b16 %v7290, %v7287
    %v7429 = vpack.c.b16 %v7294, %v7291
    %v7430 = vpack.c.b16 %v7295, %v7292
    %v7431 = vpack.c.b16 %v7296, %v7293
    %v7432 = vpack.c.b16 %v7300, %v7297
    %v7433 = vpack.c.b16 %v7301, %v7298
    %v7434 = vpack.c.b16 %v7302, %v7299
    %v7435 = vpack.c.b16 %v7306, %v7303
    %v7436 = vpack.c.b16 %v7307, %v7304
    %v7437 = vpack.c.b16 %v7308, %v7305
    %v7438 = vpack.c.b16 %v7312, %v7309
    %v7439 = vpack.c.b16 %v7313, %v7310
    %v7440 = vpack.c.b16 %v7314, %v7311
    %v7441 = vpack.c.b16 %v7318, %v7315
    %v7442 = vpack.c.b16 %v7319, %v7316
    %v7443 = vpack.c.b16 %v7320, %v7317
    %v7444 = vpack.c.b16 %v7324, %v7321
    %v7445 = vpack.c.b16 %v7325, %v7322
    %v7446 = vpack.c.b16 %v7326, %v7323
    %v7447 = vpack.c.b16 %v7330, %v7327
    %v7448 = vpack.c.b16 %v7331, %v7328
    %v7449 = vpack.c.b16 %v7332, %v7329
    %v7450 = vpack.c.b16 %v7336, %v7333
    %v7451 = vpack.c.b16 %v7337, %v7334
    %v7452 = vpack.c.b16 %v7338, %v7335
    %v7453 = vpack.c.b16 %v7342, %v7339
    %v7454 = vpack.c.b16 %v7343, %v7340
    %v7455 = vpack.c.b16 %v7344, %v7341
    %v7456 = vpack.c.b16 %v7348, %v7345
    %v7457 = vpack.c.b16 %v7349, %v7346
    %v7458 = vpack.c.b16 %v7350, %v7347
    %v7459 = vpack.c.b16 %v7354, %v7351
    %v7460 = vpack.c.b16 %v7355, %v7352
    %v7461 = vpack.c.b16 %v7356, %v7353
    %v7462 = vpack.c.b16 %v7360, %v7357
    %v7463 = vpack.c.b16 %v7361, %v7358
    %v7464 = vpack.c.b16 %v7362, %v7359
    %v7465 = vpack.c.b16 %v7366, %v7363
    %v7466 = vpack.c.b16 %v7367, %v7364
    %v7467 = vpack.c.b16 %v7368, %v7365
    %v7468 = vpack.c.b16 %v7372, %v7369
    %v7469 = vpack.c.b16 %v7373, %v7370
    %v7470 = vpack.c.b16 %v7374, %v7371
    %v7471 = vpack.c.b16 %v7378, %v7375
    %v7472 = vpack.c.b16 %v7379, %v7376
    %v7473 = vpack.c.b16 %v7380, %v7377
    %v7474 = vpack.c.b16 %v7384, %v7381
    %v7475 = vpack.c.b16 %v7385, %v7382
    %v7476 = vpack.c.b16 %v7386, %v7383
    %v7477 = vpack.c.b16 %v7390, %v7387
    %v7478 = vpack.c.b16 %v7391, %v7388
    %v7479 = vpack.c.b16 %v7392, %v7389
    %v7480 = vpack.c.b16 %v7396, %v7393
    %v7481 = vpack.c.b16 %v7397, %v7394
    %v7482 = vpack.c.b16 %v7398, %v7395
    %v7483 = vpack.c.b16 %v7402, %v7399
    %v7484 = vpack.c.b16 %v7403, %v7400
    %v7485 = vpack.c.b16 %v7404, %v7401
    %v7486 = vpack.c.b16 %v7408, %v7405
    %v7487 = vpack.c.b16 %v7409, %v7406
    %v7488 = vpack.c.b16 %v7410, %v7407
    %v7489 = vpack.c.b16 %v7414, %v7411
    %v7490 = vpack.c.b16 %v7415, %v7412
    %v7491 = vpack.c.b16 %v7416, %v7413
    %v7492 = vpack.c.b16 %v7417, %v7417
    %v7493 = vpack.c.b16 %v7418, %v7418
    %v7494 = vpack.c.b16 %v7419, %v7419
    %v7568 = vsel %vm1431, %v7171, 0
    %v7571 = vsel %vm85, %v7492, 0
    %v7574 = vsel %vm85, %v7493, 0
    %v7577 = vsel %vm85, %v7494, 0
    %7579 = vmatpush.bf16.msra.mxu0 %v7441
    %7580 = vmatpush.bf16.msra.mxu0 %v7438
    %7581 = vmatpush.bf16.msra.mxu0 %v7435
    %7582 = vmatpush.bf16.msra.mxu0 %v7432
    %7583 = vmatpush.bf16.msra.mxu0 %v7429
    %7584 = vmatpush.bf16.msra.mxu0 %v7426
    %7585 = vmatpush.bf16.msra.mxu0 %v7423
    %7586 = vmatpush.bf16.msra.mxu0 %v7420
    %7587 = vmatmul.bf16.gmra.mxu0 %v7168
    %v7588 = vpop.f32.mrf.mxu0
    %v7589 = vadd.f32 %v7160, %v7588
    %v7590 = vpop.f32.mrf.mxu0
    %7591 = vdwg.mxu0
    %7592 = vmatpush.bf16.msra.mxu0 %v7465
    %7593 = vmatpush.bf16.msra.mxu0 %v7462
    %7594 = vmatpush.bf16.msra.mxu0 %v7459
    %7595 = vmatpush.bf16.msra.mxu0 %v7456
    %7596 = vmatpush.bf16.msra.mxu0 %v7453
    %7597 = vmatpush.bf16.msra.mxu0 %v7450
    %7598 = vmatpush.bf16.msra.mxu0 %v7447
    %7599 = vmatpush.bf16.msra.mxu0 %v7444
    %7600 = vmatmul.bf16.gmra.mxu0 %v7169
    %v7601 = vpop.f32.mrf.mxu0
    %v7602 = vadd.f32 %v7589, %v7601
    %v7603 = vpop.f32.mrf.mxu0
    %7604 = vdwg.mxu0
    %7605 = vmatpush.bf16.msra.mxu0 %v7489
    %7606 = vmatpush.bf16.msra.mxu0 %v7486
    %7607 = vmatpush.bf16.msra.mxu0 %v7483
    %7608 = vmatpush.bf16.msra.mxu0 %v7480
    %7609 = vmatpush.bf16.msra.mxu0 %v7477
    %7610 = vmatpush.bf16.msra.mxu0 %v7474
    %7611 = vmatpush.bf16.msra.mxu0 %v7471
    %7612 = vmatpush.bf16.msra.mxu0 %v7468
    %7613 = vmatmul.bf16.gmra.mxu0 %v7170
    %v7614 = vpop.f32.mrf.mxu0
    %v7615 = vadd.f32 %v7602, %v7614
    %v7616 = vpop.f32.mrf.mxu0
    %7617 = vdwg.mxu0
    %7618 = vmatpush.bf16.msra.mxu0 0
    %7619 = vmatpush.bf16.msra.mxu0 0
    %7620 = vmatpush.bf16.msra.mxu0 0
    %7621 = vmatpush.bf16.msra.mxu0 0
    %7622 = vmatpush.bf16.msra.mxu0 0
    %7623 = vmatpush.bf16.msra.mxu0 0
    %7624 = vmatpush.bf16.msra.mxu0 0
    %7625 = vmatpush.bf16.msra.mxu0 %v7571
    %7626 = vmatmul.bf16.gmra.mxu0 %v7568
    %v7627 = vpop.f32.mrf.mxu0
    %v7628 = vadd.f32 %v7615, %v7627
    %v7629 = vpop.f32.mrf.mxu0
    %7630 = vdwg.mxu0
    %7631 = vmatpush.bf16.msra.mxu0 %v7442
    %7632 = vmatpush.bf16.msra.mxu0 %v7439
    %7633 = vmatpush.bf16.msra.mxu0 %v7436
    %7634 = vmatpush.bf16.msra.mxu0 %v7433
    %7635 = vmatpush.bf16.msra.mxu0 %v7430
    %7636 = vmatpush.bf16.msra.mxu0 %v7427
    %7637 = vmatpush.bf16.msra.mxu0 %v7424
    %7638 = vmatpush.bf16.msra.mxu0 %v7421
    %7639 = vmatmul.bf16.gmra.mxu0 %v7168
    %v7640 = vpop.f32.mrf.mxu0
    %v7641 = vadd.f32 %v7160, %v7640
    %v7642 = vpop.f32.mrf.mxu0
    %7643 = vdwg.mxu0
    %7644 = vmatpush.bf16.msra.mxu0 %v7466
    %7645 = vmatpush.bf16.msra.mxu0 %v7463
    %7646 = vmatpush.bf16.msra.mxu0 %v7460
    %7647 = vmatpush.bf16.msra.mxu0 %v7457
    %7648 = vmatpush.bf16.msra.mxu0 %v7454
    %7649 = vmatpush.bf16.msra.mxu0 %v7451
    %7650 = vmatpush.bf16.msra.mxu0 %v7448
    %7651 = vmatpush.bf16.msra.mxu0 %v7445
    %7652 = vmatmul.bf16.gmra.mxu0 %v7169
    %v7653 = vpop.f32.mrf.mxu0
    %v7654 = vadd.f32 %v7641, %v7653
    %v7655 = vpop.f32.mrf.mxu0
    %7656 = vdwg.mxu0
    %7657 = vmatpush.bf16.msra.mxu0 %v7490
    %7658 = vmatpush.bf16.msra.mxu0 %v7487
    %7659 = vmatpush.bf16.msra.mxu0 %v7484
    %7660 = vmatpush.bf16.msra.mxu0 %v7481
    %7661 = vmatpush.bf16.msra.mxu0 %v7478
    %7662 = vmatpush.bf16.msra.mxu0 %v7475
    %7663 = vmatpush.bf16.msra.mxu0 %v7472
    %7664 = vmatpush.bf16.msra.mxu0 %v7469
    %7665 = vmatmul.bf16.gmra.mxu0 %v7170
    %v7666 = vpop.f32.mrf.mxu0
    %v7667 = vadd.f32 %v7654, %v7666
    %v7668 = vpop.f32.mrf.mxu0
    %7669 = vdwg.mxu0
    %7670 = vmatpush.bf16.msra.mxu0 0
    %7671 = vmatpush.bf16.msra.mxu0 0
    %7672 = vmatpush.bf16.msra.mxu0 0
    %7673 = vmatpush.bf16.msra.mxu0 0
    %7674 = vmatpush.bf16.msra.mxu0 0
    %7675 = vmatpush.bf16.msra.mxu0 0
    %7676 = vmatpush.bf16.msra.mxu0 0
    %7677 = vmatpush.bf16.msra.mxu0 %v7574
    %7678 = vmatmul.bf16.gmra.mxu0 %v7568
    %v7679 = vpop.f32.mrf.mxu0
    %v7680 = vadd.f32 %v7667, %v7679
    %v7681 = vpop.f32.mrf.mxu0
    %7682 = vdwg.mxu0
    %7683 = vmatpush.bf16.msra.mxu0 %v7443
    %7684 = vmatpush.bf16.msra.mxu0 %v7440
    %7685 = vmatpush.bf16.msra.mxu0 %v7437
    %7686 = vmatpush.bf16.msra.mxu0 %v7434
    %7687 = vmatpush.bf16.msra.mxu0 %v7431
    %7688 = vmatpush.bf16.msra.mxu0 %v7428
    %7689 = vmatpush.bf16.msra.mxu0 %v7425
    %7690 = vmatpush.bf16.msra.mxu0 %v7422
    %7691 = vmatmul.bf16.gmra.mxu0 %v7168
    %v7692 = vpop.f32.mrf.mxu0
    %v7693 = vadd.f32 %v7160, %v7692
    %v7694 = vpop.f32.mrf.mxu0
    %7695 = vdwg.mxu0
    %7696 = vmatpush.bf16.msra.mxu0 %v7467
    %7697 = vmatpush.bf16.msra.mxu0 %v7464
    %7698 = vmatpush.bf16.msra.mxu0 %v7461
    %7699 = vmatpush.bf16.msra.mxu0 %v7458
    %7700 = vmatpush.bf16.msra.mxu0 %v7455
    %7701 = vmatpush.bf16.msra.mxu0 %v7452
    %7702 = vmatpush.bf16.msra.mxu0 %v7449
    %7703 = vmatpush.bf16.msra.mxu0 %v7446
    %7704 = vmatmul.bf16.gmra.mxu0 %v7169
    %v7705 = vpop.f32.mrf.mxu0
    %v7706 = vadd.f32 %v7693, %v7705
    %v7707 = vpop.f32.mrf.mxu0
    %7708 = vdwg.mxu0
    %7709 = vmatpush.bf16.msra.mxu0 %v7491
    %7710 = vmatpush.bf16.msra.mxu0 %v7488
    %7711 = vmatpush.bf16.msra.mxu0 %v7485
    %7712 = vmatpush.bf16.msra.mxu0 %v7482
    %7713 = vmatpush.bf16.msra.mxu0 %v7479
    %7714 = vmatpush.bf16.msra.mxu0 %v7476
    %7715 = vmatpush.bf16.msra.mxu0 %v7473
    %7716 = vmatpush.bf16.msra.mxu0 %v7470
    %7717 = vmatmul.bf16.gmra.mxu0 %v7170
    %v7718 = vpop.f32.mrf.mxu0
    %v7719 = vadd.f32 %v7706, %v7718
    %v7720 = vpop.f32.mrf.mxu0
    %7721 = vdwg.mxu0
    %7722 = vmatpush.bf16.msra.mxu0 0
    %7723 = vmatpush.bf16.msra.mxu0 0
    %7724 = vmatpush.bf16.msra.mxu0 0
    %7725 = vmatpush.bf16.msra.mxu0 0
    %7726 = vmatpush.bf16.msra.mxu0 0
    %7727 = vmatpush.bf16.msra.mxu0 0
    %7728 = vmatpush.bf16.msra.mxu0 0
    %7729 = vmatpush.bf16.msra.mxu0 %v7577
    %7730 = vmatmul.bf16.gmra.mxu0 %v7568
    %v7731 = vpop.f32.mrf.mxu0
    %v7732 = vadd.f32 %v7719, %v7731
    %v7733 = vpop.f32.mrf.mxu0
    %7734 = vdwg.mxu0
    %s7735 = sld [smem:[#allocation8 + $0x4]]
    %vm7736 = vcmp.ge.f32.partialorder %v7628, 0.0
    %vm7737 = vcmp.ge.f32.partialorder %v7680, 0.0
    %vm7738 = vcmp.ge.f32.partialorder %v7732, 0.0
    %v7739 = vstv %s7735
    %v7740 = vmul.f32 %v7739, %v7628
    %v7741 = vmul.f32 %v7739, %v7680
    %v7742 = vmul.f32 %v7739, %v7732
    %v7743 = vsel %vm7736, %v7628, %v7740
    %v7744 = vsel %vm7737, %v7680, %v7741
    %v7745 = vsel %vm7738, %v7732, %v7742
    %v7749 = vrot.slane %v7744, 7
    %v7750 = vrot.slane %v7745, 6
    %vm7751 = vcmask 1040384
    %v7752 = vsel %vm7751, %v7743, %v7749
    %vm7753 = vcmask 1041408
    %v7754 = vsel %vm7753, %v7752, %v7750
    %v7756 = vlaneseq
    %vm7757 = vcmp.ge.s32.totalorder %v7756, 0
    %vm7758 = vcmp.lt.s32.totalorder %v7756, 384
    %vm7759 = vmand %vm7757, %vm7758
    %7760 = vst.msk [vmem:[%s5] sm:$0x7] %vm7759, %v7754
    // Predicated region
    $region30: #{_lambda_.1} parent=1 // pred_check
      _
    $region31: #{_lambda_.1} parent=1 // pred_check_branch
      %7762 = sbr.rel (0) target = $region33
    $region32: #{_lambda_.1} parent=1 // pred_region
      _
    $region33: #{_lambda_.1} parent=1 // pred_fallthru
      _
    // Predicated region
    $region34: #{_lambda_.1} parent=1 // pred_check
      _
    $region35: #{_lambda_.1} parent=1 // pred_check_branch
      %7764 = sbr.rel (0) target = $region37
    $region36: #{_lambda_.1} parent=1 // pred_region
      _
    $region37: #{_lambda_.1} parent=1 // pred_fallthru
      _
    %7765 = vsyncpa [#allocation6], 1
    %7766 = vsyncpa [#allocation7], 1

</llo_original>
